<compile_context>
chip_gen: v5e
topology: v5e:2x2
jax: 0.10.0
libtpu: 0.0.40
codegen_flags: <defaults>
</compile_context>

<pallas_src>
import math
import functools

import jax
import jax.numpy as jnp
from jax.experimental import pallas as pl
from jax.experimental.pallas import tpu as pltpu

LN_EPS = 1e-5

ENC_FIELDS = ("wqkv", "bqkv", "wo", "bo", "ln1g", "ln1b",
              "w1", "b1", "w2", "b2", "ln2g", "ln2b")
DEC_FIELDS = ("s_wqkv", "s_bqkv", "s_wo", "s_bo", "ln1g", "ln1b",
              "c_wq", "c_bq", "c_wkv", "c_bkv", "c_wo", "c_bo", "ln2g", "ln2b",
              "w1", "b1", "w2", "b2", "ln3g", "ln3b")


def _vmem():
    return pl.BlockSpec(memory_space=pltpu.MemorySpace.VMEM)


# --------------------------- In-kernel building blocks ---------------------------

def _layer_norm(x, g, b, eps):
    mean = jnp.mean(x, axis=-1, keepdims=True)
    xc = x - mean
    var = jnp.mean(xc * xc, axis=-1, keepdims=True)
    return xc * jax.lax.rsqrt(var + eps) * g + b


def _ffn(x, w1, b1, w2, b2):
    """x: (N, D) f32; w1 (D, F) bf16; w2 (F, D) bf16.  Hidden never leaves VMEM."""
    h = jnp.dot(x.astype(jnp.bfloat16), w1, preferred_element_type=jnp.float32) + b1
    h = jnp.maximum(h, 0.0)
    return jnp.dot(h.astype(jnp.bfloat16), w2, preferred_element_type=jnp.float32) + b2


def _attend(q, k, v, num_heads, causal, B, Lq, Lk):
    """q: (B*Lq, D) (1/sqrt(Dh) already folded in), k/v: (B*Lk, D) -> (B*Lq, D) f32."""
    D = q.shape[-1]
    Dh = D // num_heads
    if causal:
        qi = jax.lax.broadcasted_iota(jnp.int32, (Lq, Lk), 0)
        ki = jax.lax.broadcasted_iota(jnp.int32, (Lq, Lk), 1)
        keep = (ki <= qi)[None, :, :]
    heads = []
    for h in range(num_heads):  # static unroll: only tiny score/AV matmuls stay per-head
        c0 = h * Dh
        q_h = q[:, c0:c0 + Dh].reshape(B, Lq, Dh).astype(jnp.bfloat16)
        k_h = k[:, c0:c0 + Dh].reshape(B, Lk, Dh).astype(jnp.bfloat16)
        v_h = v[:, c0:c0 + Dh].reshape(B, Lk, Dh).astype(jnp.bfloat16)
        s = jnp.einsum('bqd,bkd->bqk', q_h, k_h, preferred_element_type=jnp.float32)
        if causal:
            s = jnp.where(keep, s, -1e30)
        m = jnp.max(s, axis=-1, keepdims=True)
        p = jnp.exp(s - m)
        p = p * pl.reciprocal(jnp.sum(p, axis=-1, keepdims=True), approx=True)
        o_h = jnp.einsum('bqk,bkd->bqd', p.astype(jnp.bfloat16), v_h,
                         preferred_element_type=jnp.float32)
        heads.append(o_h.reshape(B * Lq, Dh))
    # Lane-contiguous concat so the out-projection is one full-width matmul.
    return jnp.concatenate(heads, axis=-1)


def _self_attn(x, wqkv, bqkv, wo, bo, num_heads, causal, B, L):
    D = x.shape[-1]
    qkv = jnp.dot(x.astype(jnp.bfloat16), wqkv,
                  preferred_element_type=jnp.float32) + bqkv           # fused QKV matmul
    o = _attend(qkv[:, :D], qkv[:, D:2 * D], qkv[:, 2 * D:],
                num_heads, causal, B, L, L)
    return jnp.dot(o.astype(jnp.bfloat16), wo, preferred_element_type=jnp.float32) + bo


def _cross_attn(x, mem, wq, bq, wkv, bkv, wo, bo, num_heads, B, Lq, Lk):
    D = x.shape[-1]
    q = jnp.dot(x.astype(jnp.bfloat16), wq, preferred_element_type=jnp.float32) + bq
    kv = jnp.dot(mem.astype(jnp.bfloat16), wkv,
                 preferred_element_type=jnp.float32) + bkv             # fused KV matmul
    o = _attend(q, kv[:, :D], kv[:, D:], num_heads, False, B, Lq, Lk)
    return jnp.dot(o.astype(jnp.bfloat16), wo, preferred_element_type=jnp.float32) + bo


# --------------------------- Fused whole-stage kernels ---------------------------

def _encoder_kernel(patches_ref, w_pe_ref, b_pe_ref, pos_ref,
                    wqkv, bqkv, wo, bo, ln1g, ln1b, w1, b1, w2, b2, ln2g, ln2b,
                    o_ref, *, num_heads, num_layers, eps, B, Lp):
    D = w_pe_ref.shape[1]
    Pd = patches_ref.shape[2]
    pf = patches_ref[...].reshape(B * Lp, Pd).astype(jnp.bfloat16)
    x = jnp.dot(pf, w_pe_ref[...], preferred_element_type=jnp.float32) + b_pe_ref[...]
    x = x + jnp.concatenate([pos_ref[...]] * B, axis=0)     # learned pos, tiled over batch
    for l in range(num_layers):   # static unroll: activations stay in VMEM/vregs
        a = _self_attn(x, wqkv[l], bqkv[l], wo[l], bo[l], num_heads, False, B, Lp)
        x = _layer_norm(x + a, ln1g[l], ln1b[l], eps)
        f = _ffn(x, w1[l], b1[l], w2[l], b2[l])
        x = _layer_norm(x + f, ln2g[l], ln2b[l], eps)
    o_ref[...] = x.reshape(B, Lp, D).astype(o_ref.dtype)


def _decoder_kernel(x_ref, mem_ref,
                    s_wqkv, s_bqkv, s_wo, s_bo, ln1g, ln1b,
                    c_wq, c_bq, c_wkv, c_bkv, c_wo, c_bo, ln2g, ln2b,
                    w1, b1, w2, b2, ln3g, ln3b,
                    wh_ref, bh_ref, o_ref,
                    *, num_heads, num_layers, eps, B, L, Lm):
    D = x_ref.shape[2]
    x = x_ref[...].reshape(B * L, D).astype(jnp.float32)
    mem = mem_ref[...].reshape(B * Lm, D)                    # bf16; feeds bf16 KV proj
    for l in range(num_layers):
        a = _self_attn(x, s_wqkv[l], s_bqkv[l], s_wo[l], s_bo[l],
                       num_heads, True, B, L)
        x = _layer_norm(x + a, ln1g[l], ln1b[l], eps)
        c = _cross_attn(x, mem, c_wq[l], c_bq[l], c_wkv[l], c_bkv[l],
                        c_wo[l], c_bo[l], num_heads, B, L, Lm)
        x = _layer_norm(x + c, ln2g[l], ln2b[l], eps)
        f = _ffn(x, w1[l], b1[l], w2[l], b2[l])
        x = _layer_norm(x + f, ln3g[l], ln3b[l], eps)
    logits = jnp.dot(x.astype(jnp.bfloat16), wh_ref[...],
                     preferred_element_type=jnp.float32) + bh_ref[...]
    o_ref[...] = logits.astype(o_ref.dtype)                  # lane-dense (Vpad=128k) store


# --------------------------- Wrappers (one pallas_call per stage) ---------------------------

def encode(prep, patches, num_heads, num_layers):
    B, Lp, _ = patches.shape
    D = prep["w_pe"].shape[1]
    args = ([patches, prep["w_pe"], prep["b_pe"], prep["pos"]]
            + [prep["enc"][k] for k in ENC_FIELDS])
    kern = functools.partial(_encoder_kernel, num_heads=num_heads,
                             num_layers=num_layers, eps=LN_EPS, B=B, Lp=Lp)
    return pl.pallas_call(
        kern,
        out_shape=jax.ShapeDtypeStruct((B, Lp, D), jnp.bfloat16),  # bf16 across HBM
        in_specs=[_vmem() for _ in args],
        out_specs=_vmem(),
        compiler_params=pltpu.CompilerParams(vmem_limit_bytes=32 * 1024 * 1024),
    )(*args)


def decode(prep, x_emb, memory, num_heads, num_layers, vocab_size):
    B, L, _ = x_emb.shape
    Lm = memory.shape[1]
    Vpad = prep["w_head"].shape[1]
    args = ([x_emb, memory] + [prep["dec"][k] for k in DEC_FIELDS]
            + [prep["w_head"], prep["b_head"]])
    kern = functools.partial(_decoder_kernel, num_heads=num_heads,
                             num_layers=num_layers, eps=LN_EPS, B=B, L=L, Lm=Lm)
    out = pl.pallas_call(
        kern,
        out_shape=jax.ShapeDtypeStruct((B * L, Vpad), jnp.float32),
        in_specs=[_vmem() for _ in args],
        out_specs=_vmem(),
        compiler_params=pltpu.CompilerParams(vmem_limit_bytes=32 * 1024 * 1024),
    )(*args)
    return out.reshape(B, L, Vpad)[:, :, :vocab_size]


# --------------------------- One-time parameter preparation ---------------------------

def sinusoidal_pe(max_len, D):
    pos = jnp.arange(max_len, dtype=jnp.float32)[:, None]
    div = jnp.exp(jnp.arange(0, D, 2, dtype=jnp.float32) * (-math.log(10000.0) / D))
    pe = jnp.zeros((max_len, D), jnp.float32)
    pe = pe.at[:, 0::2].set(jnp.sin(pos * div))
    pe = pe.at[:, 1::2].set(jnp.cos(pos * div))
    return pe


def prepare_params(params, num_heads, max_len=64):
    """Hoisted, run ONCE: concat/cast/reshape/pad all weights into kernel-ready slabs."""
    enc = params["encoder"]
    dec = params["decoder"]
    D = enc["patch_embed"]["w"].shape[1]
    Dh = D // num_heads
    scale = 1.0 / math.sqrt(Dh)

    def _ln(p):
        return (p["g"].reshape(1, D).astype(jnp.float32),
                p["b"].reshape(1, D).astype(jnp.float32))

    def _attn_fused(p):   # self-attention: one (D, 3D) QKV slab, scale folded into Q part
        wqkv = jnp.concatenate([p["wq"]["w"] * scale, p["wk"]["w"], p["wv"]["w"]], axis=1)
        bqkv = jnp.concatenate([p["wq"]["b"] * scale, p["wk"]["b"], p["wv"]["b"]], axis=0)
        return (wqkv.astype(jnp.bfloat16),
                bqkv.reshape(1, 3 * D).astype(jnp.float32),
                p["wo"]["w"].astype(jnp.bfloat16),
                p["wo"]["b"].reshape(1, D).astype(jnp.float32))

    def _attn_cross(p):   # cross-attention: Q (D, D) + fused KV (D, 2D)
        wkv = jnp.concatenate([p["wk"]["w"], p["wv"]["w"]], axis=1)
        bkv = jnp.concatenate([p["wk"]["b"], p["wv"]["b"]], axis=0)
        return ((p["wq"]["w"] * scale).astype(jnp.bfloat16),
                (p["wq"]["b"] * scale).reshape(1, D).astype(jnp.float32),
                wkv.astype(jnp.bfloat16),
                bkv.reshape(1, 2 * D).astype(jnp.float32),
                p["wo"]["w"].astype(jnp.bfloat16),
                p["wo"]["b"].reshape(1, D).astype(jnp.float32))

    def _ffn_p(p):
        return (p["ff1"]["w"].astype(jnp.bfloat16),
                p["ff1"]["b"].reshape(1, -1).astype(jnp.float32),
                p["ff2"]["w"].astype(jnp.bfloat16),
                p["ff2"]["b"].reshape(1, -1).astype(jnp.float32))

    enc_list = []
    for lp in enc["layers"]:
        wqkv, bqkv, wo, bo = _attn_fused(lp["attn"])
        l1g, l1b = _ln(lp["ln1"]); l2g, l2b = _ln(lp["ln2"])
        w1, b1, w2, b2 = _ffn_p(lp)
        enc_list.append(dict(wqkv=wqkv, bqkv=bqkv, wo=wo, bo=bo,
                             ln1g=l1g, ln1b=l1b, w1=w1, b1=b1, w2=w2, b2=b2,
                             ln2g=l2g, ln2b=l2b))
    enc_stacked = {k: jnp.stack([d[k] for d in enc_list]) for k in ENC_FIELDS}

    dec_list = []
    for lp in dec["layers"]:
        s_wqkv, s_bqkv, s_wo, s_bo = _attn_fused(lp["self_attn"])
        c_wq, c_bq, c_wkv, c_bkv, c_wo, c_bo = _attn_cross(lp["cross_attn"])
        l1g, l1b = _ln(lp["ln1"]); l2g, l2b = _ln(lp["ln2"]); l3g, l3b = _ln(lp["ln3"])
        w1, b1, w2, b2 = _ffn_p(lp)
        dec_list.append(dict(s_wqkv=s_wqkv, s_bqkv=s_bqkv, s_wo=s_wo, s_bo=s_bo,
                             ln1g=l1g, ln1b=l1b,
                             c_wq=c_wq, c_bq=c_bq, c_wkv=c_wkv, c_bkv=c_bkv,
                             c_wo=c_wo, c_bo=c_bo, ln2g=l2g, ln2b=l2b,
                             w1=w1, b1=b1, w2=w2, b2=b2, ln3g=l3g, ln3b=l3b))
    dec_stacked = {k: jnp.stack([d[k] for d in dec_list]) for k in DEC_FIELDS}

    V = dec["out"]["w"].shape[1]
    Vpad = max(128, ((V + 127) // 128) * 128)   # pad ONCE -> lane-dense head matmul/store
    w_head = jnp.zeros((D, Vpad), jnp.bfloat16).at[:, :V].set(dec["out"]["w"].astype(jnp.bfloat16))
    b_head = jnp.zeros((1, Vpad), jnp.float32).at[:, :V].set(dec["out"]["b"])

    return {
        "w_pe": enc["patch_embed"]["w"].astype(jnp.bfloat16),
        "b_pe": enc["patch_embed"]["b"].reshape(1, D).astype(jnp.float32),
        "pos": enc["pos"].astype(jnp.float32),
        "enc": enc_stacked,
        "dec": dec_stacked,
        "embed_scaled": (dec["embed"] * math.sqrt(D)).astype(jnp.float32),
        "pe": sinusoidal_pe(max_len, D),
        "w_head": w_head,
        "b_head": b_head,
    }


# --------------------------- Forward (2 pallas_calls + tiny XLA glue) ---------------------------

def build_forward(num_heads, patch, enc_layers, dec_layers, vocab_size):
    @jax.jit
    def forward(prep, images, captions):
        B, C, H, W = images.shape
        hp, wp = H // patch, W // patch
        patches = images.reshape(B, C, hp, patch, wp, patch)
        patches = patches.transpose(0, 2, 4, 1, 3, 5).reshape(B, hp * wp, C * patch * patch)
        image_code = encode(prep, patches, num_heads, enc_layers)
        L = captions.shape[1]
        # TODO(synk): no <pad> key-padding mask applied (reference masks unknown).
        x_emb = jnp.take(prep["embed_scaled"], captions, axis=0) + prep["pe"][:L][None]
        return decode(prep, x_emb, image_code, num_heads, dec_layers, vocab_size)
    return forward


# --------------------------- Deterministic parameter init ---------------------------

def init_params(key, vocab_size, embed_dim, num_heads, num_layers, ff_dim,
                img_channels, img_size, patch, enc_layers):
    D = embed_dim
    num_patches = (img_size // patch) ** 2
    patch_dim = img_channels * patch * patch
    keys = iter(jax.random.split(key, 512))

    def lin(fan_in, fan_out):
        k = next(keys)
        return {"w": jax.random.normal(k, (fan_in, fan_out), jnp.float32) * 0.02,
                "b": jnp.zeros((fan_out,), jnp.float32)}

    def ln():
        return {"g": jnp.ones((D,), jnp.float32), "b": jnp.zeros((D,), jnp.float32)}

    def attn_block():
        return {"wq": lin(D, D), "wk": lin(D, D), "wv": lin(D, D), "wo": lin(D, D)}

    def enc_layer():
        return {"attn": attn_block(), "ln1": ln(),
                "ff1": lin(D, ff_dim), "ff2": lin(ff_dim, D), "ln2": ln()}

    def dec_layer():
        return {"self_attn": attn_block(), "ln1": ln(),
                "cross_attn": attn_block(), "ln2": ln(),
                "ff1": lin(D, ff_dim), "ff2": lin(ff_dim, D), "ln3": ln()}

    return {
        "encoder": {
            "patch_embed": lin(patch_dim, D),
            "pos": jax.random.normal(next(keys), (num_patches, D), jnp.float32) * 0.02,
            "layers": [enc_layer() for _ in range(enc_layers)],
        },
        "decoder": {
            "embed": jax.random.normal(next(keys), (vocab_size, D), jnp.float32) * 0.02,
            "layers": [dec_layer() for _ in range(num_layers)],
            "out": lin(D, vocab_size),
        },
    }


# --------------------------- Main ---------------------------

if __name__ == "__main__":
    # vocab dict as in the PyTorch module (only len(vocab) matters for the forward)
    vocab = {f"tok{i}": i for i in range(13)}
    vocab.update({"<start>": 13, "<end>": 14, "<pad>": 15})
    vocab_size = len(vocab)  # 16

    embed_dim, num_heads, num_layers, ff_dim = 128, 4, 2, 256
    img_channels, img_size, patch = 3, 16, 8
    enc_layers = 2
    batch, seq_len = 2, 8

    key = jax.random.PRNGKey(0)
    kp, ki, kc = jax.random.split(key, 3)
    params = init_params(kp, vocab_size, embed_dim, num_heads, num_layers, ff_dim,
                         img_channels, img_size, patch, enc_layers)
    prep = prepare_params(params, num_heads)            # one-time weight prep (hoisted)
    prep = jax.block_until_ready(prep)

    images = jax.random.normal(ki, (batch, img_channels, img_size, img_size),
                               jnp.float32)             # NCHW
    captions = jax.random.randint(kc, (batch, seq_len), 0, vocab_size, dtype=jnp.int32)

    forward = build_forward(num_heads, patch, enc_layers, num_layers, vocab_size)
    logits = forward(prep, images, captions)
    logits = jax.block_until_ready(logits)
    assert logits.shape == (batch, seq_len, vocab_size)
    assert bool(jnp.all(jnp.isfinite(logits)))
    print("KERNEL_OK")
</pallas_src>

<mosaic_0001>
module attributes {stable_mosaic.version = 11 : i64} {
  func.func @_encoder_kernel(%arg0: memref<2x4x192xf32, #tpu.memory_space<vmem>>, %arg1: memref<192x128xbf16, #tpu.memory_space<vmem>>, %arg2: memref<1x128xf32, #tpu.memory_space<vmem>>, %arg3: memref<4x128xf32, #tpu.memory_space<vmem>>, %arg4: memref<2x128x384xbf16, #tpu.memory_space<vmem>>, %arg5: memref<2x1x384xf32, #tpu.memory_space<vmem>>, %arg6: memref<2x128x128xbf16, #tpu.memory_space<vmem>>, %arg7: memref<2x1x128xf32, #tpu.memory_space<vmem>>, %arg8: memref<2x1x128xf32, #tpu.memory_space<vmem>>, %arg9: memref<2x1x128xf32, #tpu.memory_space<vmem>>, %arg10: memref<2x128x256xbf16, #tpu.memory_space<vmem>>, %arg11: memref<2x1x256xf32, #tpu.memory_space<vmem>>, %arg12: memref<2x256x128xbf16, #tpu.memory_space<vmem>>, %arg13: memref<2x1x128xf32, #tpu.memory_space<vmem>>, %arg14: memref<2x1x128xf32, #tpu.memory_space<vmem>>, %arg15: memref<2x1x128xf32, #tpu.memory_space<vmem>>, %arg16: memref<2x4x128xbf16, #tpu.memory_space<vmem>>) attributes {dimension_semantics = [], scalar_prefetch = 0 : i64, scratch_operands = 0 : i64, tpu.core_type = #tpu.core_type<tc>} {
    %c0 = arith.constant 0 : index
    %c0_0 = arith.constant 0 : index
    %c0_1 = arith.constant 0 : index
    %0 = vector.load %arg0[%c0, %c0_0, %c0_1] : memref<2x4x192xf32, #tpu.memory_space<vmem>>, vector<2x4x192xf32>
    %1 = vector.shape_cast %0 : vector<2x4x192xf32> to vector<8x192xf32>
    %2 = arith.truncf %1 : vector<8x192xf32> to vector<8x192xbf16>
    %c0_2 = arith.constant 0 : index
    %c0_3 = arith.constant 0 : index
    %3 = vector.load %arg1[%c0_2, %c0_3] : memref<192x128xbf16, #tpu.memory_space<vmem>>, vector<192x128xbf16>
    %cst = arith.constant dense<0.000000e+00> : vector<8x128xf32>
    %4 = tpu.matmul %2, %3, %cst {dimension_numbers = #tpu.dot_dimension_numbers<[1], [0], [0], [1], [0, 0, 1, 1], [], []>} : vector<8x192xbf16>, vector<192x128xbf16>, vector<8x128xf32> -> vector<8x128xf32>
    %c0_4 = arith.constant 0 : index
    %c0_5 = arith.constant 0 : index
    %5 = vector.load %arg2[%c0_4, %c0_5] : memref<1x128xf32, #tpu.memory_space<vmem>>, vector<1x128xf32>
    %6 = vector.broadcast %5 : vector<1x128xf32> to vector<8x128xf32>
    %7 = arith.addf %4, %6 : vector<8x128xf32>
    %c0_6 = arith.constant 0 : index
    %c0_7 = arith.constant 0 : index
    %8 = vector.load %arg3[%c0_6, %c0_7] : memref<4x128xf32, #tpu.memory_space<vmem>>, vector<4x128xf32>
    %9 = tpu.concatenate %8, %8 in 0 : vector<4x128xf32>, vector<4x128xf32> -> vector<8x128xf32>
    %10 = arith.addf %7, %9 : vector<8x128xf32>
    %c0_8 = arith.constant 0 : index
    %c0_9 = arith.constant 0 : index
    %c0_10 = arith.constant 0 : index
    %11 = vector.load %arg4[%c0_8, %c0_9, %c0_10] : memref<2x128x384xbf16, #tpu.memory_space<vmem>>, vector<1x128x384xbf16>
    %12 = vector.shape_cast %11 : vector<1x128x384xbf16> to vector<128x384xbf16>
    %c0_11 = arith.constant 0 : index
    %c0_12 = arith.constant 0 : index
    %c0_13 = arith.constant 0 : index
    %13 = vector.load %arg5[%c0_11, %c0_12, %c0_13] : memref<2x1x384xf32, #tpu.memory_space<vmem>>, vector<1x1x384xf32>
    %14 = vector.shape_cast %13 : vector<1x1x384xf32> to vector<1x384xf32>
    %c0_14 = arith.constant 0 : index
    %c0_15 = arith.constant 0 : index
    %c0_16 = arith.constant 0 : index
    %15 = vector.load %arg6[%c0_14, %c0_15, %c0_16] : memref<2x128x128xbf16, #tpu.memory_space<vmem>>, vector<1x128x128xbf16>
    %16 = vector.shape_cast %15 : vector<1x128x128xbf16> to vector<128x128xbf16>
    %c0_17 = arith.constant 0 : index
    %c0_18 = arith.constant 0 : index
    %c0_19 = arith.constant 0 : index
    %17 = vector.load %arg7[%c0_17, %c0_18, %c0_19] : memref<2x1x128xf32, #tpu.memory_space<vmem>>, vector<1x1x128xf32>
    %18 = vector.shape_cast %17 : vector<1x1x128xf32> to vector<1x128xf32>
    %19 = arith.truncf %10 : vector<8x128xf32> to vector<8x128xbf16>
    %cst_20 = arith.constant dense<0.000000e+00> : vector<8x384xf32>
    %20 = tpu.matmul %19, %12, %cst_20 {dimension_numbers = #tpu.dot_dimension_numbers<[1], [0], [0], [1], [0, 0, 1, 1], [], []>} : vector<8x128xbf16>, vector<128x384xbf16>, vector<8x384xf32> -> vector<8x384xf32>
    %21 = vector.broadcast %14 : vector<1x384xf32> to vector<8x384xf32>
    %22 = arith.addf %20, %21 : vector<8x384xf32>
    %23 = vector.extract_strided_slice %22 {offsets = [0, 0], sizes = [8, 128], strides = [1, 1]} : vector<8x384xf32> to vector<8x128xf32>
    %24 = vector.extract_strided_slice %22 {offsets = [0, 128], sizes = [8, 128], strides = [1, 1]} : vector<8x384xf32> to vector<8x128xf32>
    %25 = vector.extract_strided_slice %22 {offsets = [0, 256], sizes = [8, 128], strides = [1, 1]} : vector<8x384xf32> to vector<8x128xf32>
    %26 = vector.extract_strided_slice %23 {offsets = [0, 0], sizes = [8, 32], strides = [1, 1]} : vector<8x128xf32> to vector<8x32xf32>
    %27 = vector.shape_cast %26 : vector<8x32xf32> to vector<2x4x32xf32>
    %28 = arith.truncf %27 : vector<2x4x32xf32> to vector<2x4x32xbf16>
    %29 = vector.extract_strided_slice %24 {offsets = [0, 0], sizes = [8, 32], strides = [1, 1]} : vector<8x128xf32> to vector<8x32xf32>
    %30 = vector.shape_cast %29 : vector<8x32xf32> to vector<2x4x32xf32>
    %31 = arith.truncf %30 : vector<2x4x32xf32> to vector<2x4x32xbf16>
    %32 = vector.extract_strided_slice %25 {offsets = [0, 0], sizes = [8, 32], strides = [1, 1]} : vector<8x128xf32> to vector<8x32xf32>
    %33 = vector.shape_cast %32 : vector<8x32xf32> to vector<2x4x32xf32>
    %34 = arith.truncf %33 : vector<2x4x32xf32> to vector<2x4x32xbf16>
    "tpu.trace_start"() <{level = 10 : i32, message = "bqd,bkd->bqk"}> : () -> ()
    %cst_21 = arith.constant dense<0.000000e+00> : vector<2x4x4xf32>
    %35 = tpu.matmul %28, %31, %cst_21 {dimension_numbers = #tpu.dot_dimension_numbers<[2], [2], [1], [1], [0, 0, 0, 1, 1, 1], [0], [0]>} : vector<2x4x32xbf16>, vector<2x4x32xbf16>, vector<2x4x4xf32> -> vector<2x4x4xf32>
    "tpu.trace_stop"() : () -> ()
    %cst_22 = arith.constant dense<0xFF800000> : vector<2x4xf32>
    %36 = vector.multi_reduction <maximumf>, %35, %cst_22 [2] : vector<2x4x4xf32> to vector<2x4xf32>
    %37 = vector.shape_cast %36 : vector<2x4xf32> to vector<2x4x1xf32>
    %38 = vector.broadcast %37 : vector<2x4x1xf32> to vector<2x4x4xf32>
    %39 = arith.subf %35, %38 : vector<2x4x4xf32>
    %40 = math.exp %39 : vector<2x4x4xf32>
    %cst_23 = arith.constant dense<0.000000e+00> : vector<2x4xf32>
    %41 = vector.multi_reduction <add>, %40, %cst_23 [2] : vector<2x4x4xf32> to vector<2x4xf32>
    %42 = vector.shape_cast %41 : vector<2x4xf32> to vector<2x4x1xf32>
    %43 = tpu.reciprocal %42 {approx = true} : vector<2x4x1xf32> -> vector<2x4x1xf32>
    %44 = vector.broadcast %43 : vector<2x4x1xf32> to vector<2x4x4xf32>
    %45 = arith.mulf %40, %44 : vector<2x4x4xf32>
    %46 = arith.truncf %45 : vector<2x4x4xf32> to vector<2x4x4xbf16>
    "tpu.trace_start"() <{level = 10 : i32, message = "bqk,bkd->bqd"}> : () -> ()
    %cst_24 = arith.constant dense<0.000000e+00> : vector<2x4x32xf32>
    %47 = tpu.matmul %46, %34, %cst_24 {dimension_numbers = #tpu.dot_dimension_numbers<[2], [1], [1], [2], [0, 0, 0, 1, 1, 2], [0], [0]>} : vector<2x4x4xbf16>, vector<2x4x32xbf16>, vector<2x4x32xf32> -> vector<2x4x32xf32>
    "tpu.trace_stop"() : () -> ()
    %48 = vector.shape_cast %47 : vector<2x4x32xf32> to vector<8x32xf32>
    %49 = vector.extract_strided_slice %23 {offsets = [0, 32], sizes = [8, 32], strides = [1, 1]} : vector<8x128xf32> to vector<8x32xf32>
    %50 = vector.shape_cast %49 : vector<8x32xf32> to vector<2x4x32xf32>
    %51 = arith.truncf %50 : vector<2x4x32xf32> to vector<2x4x32xbf16>
    %52 = vector.extract_strided_slice %24 {offsets = [0, 32], sizes = [8, 32], strides = [1, 1]} : vector<8x128xf32> to vector<8x32xf32>
    %53 = vector.shape_cast %52 : vector<8x32xf32> to vector<2x4x32xf32>
    %54 = arith.truncf %53 : vector<2x4x32xf32> to vector<2x4x32xbf16>
    %55 = vector.extract_strided_slice %25 {offsets = [0, 32], sizes = [8, 32], strides = [1, 1]} : vector<8x128xf32> to vector<8x32xf32>
    %56 = vector.shape_cast %55 : vector<8x32xf32> to vector<2x4x32xf32>
    %57 = arith.truncf %56 : vector<2x4x32xf32> to vector<2x4x32xbf16>
    "tpu.trace_start"() <{level = 10 : i32, message = "bqd,bkd->bqk"}> : () -> ()
    %cst_25 = arith.constant dense<0.000000e+00> : vector<2x4x4xf32>
    %58 = tpu.matmul %51, %54, %cst_25 {dimension_numbers = #tpu.dot_dimension_numbers<[2], [2], [1], [1], [0, 0, 0, 1, 1, 1], [0], [0]>} : vector<2x4x32xbf16>, vector<2x4x32xbf16>, vector<2x4x4xf32> -> vector<2x4x4xf32>
    "tpu.trace_stop"() : () -> ()
    %cst_26 = arith.constant dense<0xFF800000> : vector<2x4xf32>
    %59 = vector.multi_reduction <maximumf>, %58, %cst_26 [2] : vector<2x4x4xf32> to vector<2x4xf32>
    %60 = vector.shape_cast %59 : vector<2x4xf32> to vector<2x4x1xf32>
    %61 = vector.broadcast %60 : vector<2x4x1xf32> to vector<2x4x4xf32>
    %62 = arith.subf %58, %61 : vector<2x4x4xf32>
    %63 = math.exp %62 : vector<2x4x4xf32>
    %cst_27 = arith.constant dense<0.000000e+00> : vector<2x4xf32>
    %64 = vector.multi_reduction <add>, %63, %cst_27 [2] : vector<2x4x4xf32> to vector<2x4xf32>
    %65 = vector.shape_cast %64 : vector<2x4xf32> to vector<2x4x1xf32>
    %66 = tpu.reciprocal %65 {approx = true} : vector<2x4x1xf32> -> vector<2x4x1xf32>
    %67 = vector.broadcast %66 : vector<2x4x1xf32> to vector<2x4x4xf32>
    %68 = arith.mulf %63, %67 : vector<2x4x4xf32>
    %69 = arith.truncf %68 : vector<2x4x4xf32> to vector<2x4x4xbf16>
    "tpu.trace_start"() <{level = 10 : i32, message = "bqk,bkd->bqd"}> : () -> ()
    %cst_28 = arith.constant dense<0.000000e+00> : vector<2x4x32xf32>
    %70 = tpu.matmul %69, %57, %cst_28 {dimension_numbers = #tpu.dot_dimension_numbers<[2], [1], [1], [2], [0, 0, 0, 1, 1, 2], [0], [0]>} : vector<2x4x4xbf16>, vector<2x4x32xbf16>, vector<2x4x32xf32> -> vector<2x4x32xf32>
    "tpu.trace_stop"() : () -> ()
    %71 = vector.shape_cast %70 : vector<2x4x32xf32> to vector<8x32xf32>
    %72 = vector.extract_strided_slice %23 {offsets = [0, 64], sizes = [8, 32], strides = [1, 1]} : vector<8x128xf32> to vector<8x32xf32>
    %73 = vector.shape_cast %72 : vector<8x32xf32> to vector<2x4x32xf32>
    %74 = arith.truncf %73 : vector<2x4x32xf32> to vector<2x4x32xbf16>
    %75 = vector.extract_strided_slice %24 {offsets = [0, 64], sizes = [8, 32], strides = [1, 1]} : vector<8x128xf32> to vector<8x32xf32>
    %76 = vector.shape_cast %75 : vector<8x32xf32> to vector<2x4x32xf32>
    %77 = arith.truncf %76 : vector<2x4x32xf32> to vector<2x4x32xbf16>
    %78 = vector.extract_strided_slice %25 {offsets = [0, 64], sizes = [8, 32], strides = [1, 1]} : vector<8x128xf32> to vector<8x32xf32>
    %79 = vector.shape_cast %78 : vector<8x32xf32> to vector<2x4x32xf32>
    %80 = arith.truncf %79 : vector<2x4x32xf32> to vector<2x4x32xbf16>
    "tpu.trace_start"() <{level = 10 : i32, message = "bqd,bkd->bqk"}> : () -> ()
    %cst_29 = arith.constant dense<0.000000e+00> : vector<2x4x4xf32>
    %81 = tpu.matmul %74, %77, %cst_29 {dimension_numbers = #tpu.dot_dimension_numbers<[2], [2], [1], [1], [0, 0, 0, 1, 1, 1], [0], [0]>} : vector<2x4x32xbf16>, vector<2x4x32xbf16>, vector<2x4x4xf32> -> vector<2x4x4xf32>
    "tpu.trace_stop"() : () -> ()
    %cst_30 = arith.constant dense<0xFF800000> : vector<2x4xf32>
    %82 = vector.multi_reduction <maximumf>, %81, %cst_30 [2] : vector<2x4x4xf32> to vector<2x4xf32>
    %83 = vector.shape_cast %82 : vector<2x4xf32> to vector<2x4x1xf32>
    %84 = vector.broadcast %83 : vector<2x4x1xf32> to vector<2x4x4xf32>
    %85 = arith.subf %81, %84 : vector<2x4x4xf32>
    %86 = math.exp %85 : vector<2x4x4xf32>
    %cst_31 = arith.constant dense<0.000000e+00> : vector<2x4xf32>
    %87 = vector.multi_reduction <add>, %86, %cst_31 [2] : vector<2x4x4xf32> to vector<2x4xf32>
    %88 = vector.shape_cast %87 : vector<2x4xf32> to vector<2x4x1xf32>
    %89 = tpu.reciprocal %88 {approx = true} : vector<2x4x1xf32> -> vector<2x4x1xf32>
    %90 = vector.broadcast %89 : vector<2x4x1xf32> to vector<2x4x4xf32>
    %91 = arith.mulf %86, %90 : vector<2x4x4xf32>
    %92 = arith.truncf %91 : vector<2x4x4xf32> to vector<2x4x4xbf16>
    "tpu.trace_start"() <{level = 10 : i32, message = "bqk,bkd->bqd"}> : () -> ()
    %cst_32 = arith.constant dense<0.000000e+00> : vector<2x4x32xf32>
    %93 = tpu.matmul %92, %80, %cst_32 {dimension_numbers = #tpu.dot_dimension_numbers<[2], [1], [1], [2], [0, 0, 0, 1, 1, 2], [0], [0]>} : vector<2x4x4xbf16>, vector<2x4x32xbf16>, vector<2x4x32xf32> -> vector<2x4x32xf32>
    "tpu.trace_stop"() : () -> ()
    %94 = vector.shape_cast %93 : vector<2x4x32xf32> to vector<8x32xf32>
    %95 = vector.extract_strided_slice %23 {offsets = [0, 96], sizes = [8, 32], strides = [1, 1]} : vector<8x128xf32> to vector<8x32xf32>
    %96 = vector.shape_cast %95 : vector<8x32xf32> to vector<2x4x32xf32>
    %97 = arith.truncf %96 : vector<2x4x32xf32> to vector<2x4x32xbf16>
    %98 = vector.extract_strided_slice %24 {offsets = [0, 96], sizes = [8, 32], strides = [1, 1]} : vector<8x128xf32> to vector<8x32xf32>
    %99 = vector.shape_cast %98 : vector<8x32xf32> to vector<2x4x32xf32>
    %100 = arith.truncf %99 : vector<2x4x32xf32> to vector<2x4x32xbf16>
    %101 = vector.extract_strided_slice %25 {offsets = [0, 96], sizes = [8, 32], strides = [1, 1]} : vector<8x128xf32> to vector<8x32xf32>
    %102 = vector.shape_cast %101 : vector<8x32xf32> to vector<2x4x32xf32>
    %103 = arith.truncf %102 : vector<2x4x32xf32> to vector<2x4x32xbf16>
    "tpu.trace_start"() <{level = 10 : i32, message = "bqd,bkd->bqk"}> : () -> ()
    %cst_33 = arith.constant dense<0.000000e+00> : vector<2x4x4xf32>
    %104 = tpu.matmul %97, %100, %cst_33 {dimension_numbers = #tpu.dot_dimension_numbers<[2], [2], [1], [1], [0, 0, 0, 1, 1, 1], [0], [0]>} : vector<2x4x32xbf16>, vector<2x4x32xbf16>, vector<2x4x4xf32> -> vector<2x4x4xf32>
    "tpu.trace_stop"() : () -> ()
    %cst_34 = arith.constant dense<0xFF800000> : vector<2x4xf32>
    %105 = vector.multi_reduction <maximumf>, %104, %cst_34 [2] : vector<2x4x4xf32> to vector<2x4xf32>
    %106 = vector.shape_cast %105 : vector<2x4xf32> to vector<2x4x1xf32>
    %107 = vector.broadcast %106 : vector<2x4x1xf32> to vector<2x4x4xf32>
    %108 = arith.subf %104, %107 : vector<2x4x4xf32>
    %109 = math.exp %108 : vector<2x4x4xf32>
    %cst_35 = arith.constant dense<0.000000e+00> : vector<2x4xf32>
    %110 = vector.multi_reduction <add>, %109, %cst_35 [2] : vector<2x4x4xf32> to vector<2x4xf32>
    %111 = vector.shape_cast %110 : vector<2x4xf32> to vector<2x4x1xf32>
    %112 = tpu.reciprocal %111 {approx = true} : vector<2x4x1xf32> -> vector<2x4x1xf32>
    %113 = vector.broadcast %112 : vector<2x4x1xf32> to vector<2x4x4xf32>
    %114 = arith.mulf %109, %113 : vector<2x4x4xf32>
    %115 = arith.truncf %114 : vector<2x4x4xf32> to vector<2x4x4xbf16>
    "tpu.trace_start"() <{level = 10 : i32, message = "bqk,bkd->bqd"}> : () -> ()
    %cst_36 = arith.constant dense<0.000000e+00> : vector<2x4x32xf32>
    %116 = tpu.matmul %115, %103, %cst_36 {dimension_numbers = #tpu.dot_dimension_numbers<[2], [1], [1], [2], [0, 0, 0, 1, 1, 2], [0], [0]>} : vector<2x4x4xbf16>, vector<2x4x32xbf16>, vector<2x4x32xf32> -> vector<2x4x32xf32>
    "tpu.trace_stop"() : () -> ()
    %117 = vector.shape_cast %116 : vector<2x4x32xf32> to vector<8x32xf32>
    %118 = tpu.concatenate %48, %71, %94, %117 in 1 : vector<8x32xf32>, vector<8x32xf32>, vector<8x32xf32>, vector<8x32xf32> -> vector<8x128xf32>
    %119 = arith.truncf %118 : vector<8x128xf32> to vector<8x128xbf16>
    %cst_37 = arith.constant dense<0.000000e+00> : vector<8x128xf32>
    %120 = tpu.matmul %119, %16, %cst_37 {dimension_numbers = #tpu.dot_dimension_numbers<[1], [0], [0], [1], [0, 0, 1, 1], [], []>} : vector<8x128xbf16>, vector<128x128xbf16>, vector<8x128xf32> -> vector<8x128xf32>
    %121 = vector.broadcast %18 : vector<1x128xf32> to vector<8x128xf32>
    %122 = arith.addf %120, %121 : vector<8x128xf32>
    %123 = arith.addf %10, %122 : vector<8x128xf32>
    %c0_38 = arith.constant 0 : index
    %c0_39 = arith.constant 0 : index
    %c0_40 = arith.constant 0 : index
    %124 = vector.load %arg8[%c0_38, %c0_39, %c0_40] : memref<2x1x128xf32, #tpu.memory_space<vmem>>, vector<1x1x128xf32>
    %125 = vector.shape_cast %124 : vector<1x1x128xf32> to vector<1x128xf32>
    %c0_41 = arith.constant 0 : index
    %c0_42 = arith.constant 0 : index
    %c0_43 = arith.constant 0 : index
    %126 = vector.load %arg9[%c0_41, %c0_42, %c0_43] : memref<2x1x128xf32, #tpu.memory_space<vmem>>, vector<1x1x128xf32>
    %127 = vector.shape_cast %126 : vector<1x1x128xf32> to vector<1x128xf32>
    %cst_44 = arith.constant dense<0.000000e+00> : vector<8xf32>
    %128 = vector.multi_reduction <add>, %123, %cst_44 [1] : vector<8x128xf32> to vector<8xf32>
    %129 = vector.shape_cast %128 : vector<8xf32> to vector<8x1xf32>
    %cst_45 = arith.constant 1.280000e+02 : f32
    %130 = vector.broadcast %cst_45 : f32 to vector<8x1xf32>
    %131 = arith.divf %129, %130 : vector<8x1xf32>
    %132 = vector.broadcast %131 : vector<8x1xf32> to vector<8x128xf32>
    %133 = arith.subf %123, %132 : vector<8x128xf32>
    %134 = arith.mulf %133, %133 : vector<8x128xf32>
    %cst_46 = arith.constant dense<0.000000e+00> : vector<8xf32>
    %135 = vector.multi_reduction <add>, %134, %cst_46 [1] : vector<8x128xf32> to vector<8xf32>
    %136 = vector.shape_cast %135 : vector<8xf32> to vector<8x1xf32>
    %cst_47 = arith.constant 1.280000e+02 : f32
    %137 = vector.broadcast %cst_47 : f32 to vector<8x1xf32>
    %138 = arith.divf %136, %137 : vector<8x1xf32>
    %cst_48 = arith.constant 9.99999974E-6 : f32
    %139 = vector.broadcast %cst_48 : f32 to vector<8x1xf32>
    %140 = arith.addf %138, %139 : vector<8x1xf32>
    %141 = math.rsqrt %140 : vector<8x1xf32>
    %142 = vector.broadcast %141 : vector<8x1xf32> to vector<8x128xf32>
    %143 = arith.mulf %133, %142 : vector<8x128xf32>
    %144 = vector.broadcast %125 : vector<1x128xf32> to vector<8x128xf32>
    %145 = arith.mulf %143, %144 : vector<8x128xf32>
    %146 = vector.broadcast %127 : vector<1x128xf32> to vector<8x128xf32>
    %147 = arith.addf %145, %146 : vector<8x128xf32>
    %c0_49 = arith.constant 0 : index
    %c0_50 = arith.constant 0 : index
    %c0_51 = arith.constant 0 : index
    %148 = vector.load %arg10[%c0_49, %c0_50, %c0_51] : memref<2x128x256xbf16, #tpu.memory_space<vmem>>, vector<1x128x256xbf16>
    %149 = vector.shape_cast %148 : vector<1x128x256xbf16> to vector<128x256xbf16>
    %c0_52 = arith.constant 0 : index
    %c0_53 = arith.constant 0 : index
    %c0_54 = arith.constant 0 : index
    %150 = vector.load %arg11[%c0_52, %c0_53, %c0_54] : memref<2x1x256xf32, #tpu.memory_space<vmem>>, vector<1x1x256xf32>
    %151 = vector.shape_cast %150 : vector<1x1x256xf32> to vector<1x256xf32>
    %c0_55 = arith.constant 0 : index
    %c0_56 = arith.constant 0 : index
    %c0_57 = arith.constant 0 : index
    %152 = vector.load %arg12[%c0_55, %c0_56, %c0_57] : memref<2x256x128xbf16, #tpu.memory_space<vmem>>, vector<1x256x128xbf16>
    %153 = vector.shape_cast %152 : vector<1x256x128xbf16> to vector<256x128xbf16>
    %c0_58 = arith.constant 0 : index
    %c0_59 = arith.constant 0 : index
    %c0_60 = arith.constant 0 : index
    %154 = vector.load %arg13[%c0_58, %c0_59, %c0_60] : memref<2x1x128xf32, #tpu.memory_space<vmem>>, vector<1x1x128xf32>
    %155 = vector.shape_cast %154 : vector<1x1x128xf32> to vector<1x128xf32>
    %156 = arith.truncf %147 : vector<8x128xf32> to vector<8x128xbf16>
    %cst_61 = arith.constant dense<0.000000e+00> : vector<8x256xf32>
    %157 = tpu.matmul %156, %149, %cst_61 {dimension_numbers = #tpu.dot_dimension_numbers<[1], [0], [0], [1], [0, 0, 1, 1], [], []>} : vector<8x128xbf16>, vector<128x256xbf16>, vector<8x256xf32> -> vector<8x256xf32>
    %158 = vector.broadcast %151 : vector<1x256xf32> to vector<8x256xf32>
    %159 = arith.addf %157, %158 : vector<8x256xf32>
    %cst_62 = arith.constant 0.000000e+00 : f32
    %160 = vector.broadcast %cst_62 : f32 to vector<8x256xf32>
    %161 = arith.maximumf %159, %160 : vector<8x256xf32>
    %162 = arith.truncf %161 : vector<8x256xf32> to vector<8x256xbf16>
    %cst_63 = arith.constant dense<0.000000e+00> : vector<8x128xf32>
    %163 = tpu.matmul %162, %153, %cst_63 {dimension_numbers = #tpu.dot_dimension_numbers<[1], [0], [0], [1], [0, 0, 1, 1], [], []>} : vector<8x256xbf16>, vector<256x128xbf16>, vector<8x128xf32> -> vector<8x128xf32>
    %164 = vector.broadcast %155 : vector<1x128xf32> to vector<8x128xf32>
    %165 = arith.addf %163, %164 : vector<8x128xf32>
    %166 = arith.addf %147, %165 : vector<8x128xf32>
    %c0_64 = arith.constant 0 : index
    %c0_65 = arith.constant 0 : index
    %c0_66 = arith.constant 0 : index
    %167 = vector.load %arg14[%c0_64, %c0_65, %c0_66] : memref<2x1x128xf32, #tpu.memory_space<vmem>>, vector<1x1x128xf32>
    %168 = vector.shape_cast %167 : vector<1x1x128xf32> to vector<1x128xf32>
    %c0_67 = arith.constant 0 : index
    %c0_68 = arith.constant 0 : index
    %c0_69 = arith.constant 0 : index
    %169 = vector.load %arg15[%c0_67, %c0_68, %c0_69] : memref<2x1x128xf32, #tpu.memory_space<vmem>>, vector<1x1x128xf32>
    %170 = vector.shape_cast %169 : vector<1x1x128xf32> to vector<1x128xf32>
    %cst_70 = arith.constant dense<0.000000e+00> : vector<8xf32>
    %171 = vector.multi_reduction <add>, %166, %cst_70 [1] : vector<8x128xf32> to vector<8xf32>
    %172 = vector.shape_cast %171 : vector<8xf32> to vector<8x1xf32>
    %cst_71 = arith.constant 1.280000e+02 : f32
    %173 = vector.broadcast %cst_71 : f32 to vector<8x1xf32>
    %174 = arith.divf %172, %173 : vector<8x1xf32>
    %175 = vector.broadcast %174 : vector<8x1xf32> to vector<8x128xf32>
    %176 = arith.subf %166, %175 : vector<8x128xf32>
    %177 = arith.mulf %176, %176 : vector<8x128xf32>
    %cst_72 = arith.constant dense<0.000000e+00> : vector<8xf32>
    %178 = vector.multi_reduction <add>, %177, %cst_72 [1] : vector<8x128xf32> to vector<8xf32>
    %179 = vector.shape_cast %178 : vector<8xf32> to vector<8x1xf32>
    %cst_73 = arith.constant 1.280000e+02 : f32
    %180 = vector.broadcast %cst_73 : f32 to vector<8x1xf32>
    %181 = arith.divf %179, %180 : vector<8x1xf32>
    %cst_74 = arith.constant 9.99999974E-6 : f32
    %182 = vector.broadcast %cst_74 : f32 to vector<8x1xf32>
    %183 = arith.addf %181, %182 : vector<8x1xf32>
    %184 = math.rsqrt %183 : vector<8x1xf32>
    %185 = vector.broadcast %184 : vector<8x1xf32> to vector<8x128xf32>
    %186 = arith.mulf %176, %185 : vector<8x128xf32>
    %187 = vector.broadcast %168 : vector<1x128xf32> to vector<8x128xf32>
    %188 = arith.mulf %186, %187 : vector<8x128xf32>
    %189 = vector.broadcast %170 : vector<1x128xf32> to vector<8x128xf32>
    %190 = arith.addf %188, %189 : vector<8x128xf32>
    %c1 = arith.constant 1 : index
    %c0_75 = arith.constant 0 : index
    %c0_76 = arith.constant 0 : index
    %191 = vector.load %arg4[%c1, %c0_75, %c0_76] : memref<2x128x384xbf16, #tpu.memory_space<vmem>>, vector<1x128x384xbf16>
    %192 = vector.shape_cast %191 : vector<1x128x384xbf16> to vector<128x384xbf16>
    %c1_77 = arith.constant 1 : index
    %c0_78 = arith.constant 0 : index
    %c0_79 = arith.constant 0 : index
    %193 = vector.load %arg5[%c1_77, %c0_78, %c0_79] : memref<2x1x384xf32, #tpu.memory_space<vmem>>, vector<1x1x384xf32>
    %194 = vector.shape_cast %193 : vector<1x1x384xf32> to vector<1x384xf32>
    %c1_80 = arith.constant 1 : index
    %c0_81 = arith.constant 0 : index
    %c0_82 = arith.constant 0 : index
    %195 = vector.load %arg6[%c1_80, %c0_81, %c0_82] : memref<2x128x128xbf16, #tpu.memory_space<vmem>>, vector<1x128x128xbf16>
    %196 = vector.shape_cast %195 : vector<1x128x128xbf16> to vector<128x128xbf16>
    %c1_83 = arith.constant 1 : index
    %c0_84 = arith.constant 0 : index
    %c0_85 = arith.constant 0 : index
    %197 = vector.load %arg7[%c1_83, %c0_84, %c0_85] : memref<2x1x128xf32, #tpu.memory_space<vmem>>, vector<1x1x128xf32>
    %198 = vector.shape_cast %197 : vector<1x1x128xf32> to vector<1x128xf32>
    %199 = arith.truncf %190 : vector<8x128xf32> to vector<8x128xbf16>
    %cst_86 = arith.constant dense<0.000000e+00> : vector<8x384xf32>
    %200 = tpu.matmul %199, %192, %cst_86 {dimension_numbers = #tpu.dot_dimension_numbers<[1], [0], [0], [1], [0, 0, 1, 1], [], []>} : vector<8x128xbf16>, vector<128x384xbf16>, vector<8x384xf32> -> vector<8x384xf32>
    %201 = vector.broadcast %194 : vector<1x384xf32> to vector<8x384xf32>
    %202 = arith.addf %200, %201 : vector<8x384xf32>
    %203 = vector.extract_strided_slice %202 {offsets = [0, 0], sizes = [8, 128], strides = [1, 1]} : vector<8x384xf32> to vector<8x128xf32>
    %204 = vector.extract_strided_slice %202 {offsets = [0, 128], sizes = [8, 128], strides = [1, 1]} : vector<8x384xf32> to vector<8x128xf32>
    %205 = vector.extract_strided_slice %202 {offsets = [0, 256], sizes = [8, 128], strides = [1, 1]} : vector<8x384xf32> to vector<8x128xf32>
    %206 = vector.extract_strided_slice %203 {offsets = [0, 0], sizes = [8, 32], strides = [1, 1]} : vector<8x128xf32> to vector<8x32xf32>
    %207 = vector.shape_cast %206 : vector<8x32xf32> to vector<2x4x32xf32>
    %208 = arith.truncf %207 : vector<2x4x32xf32> to vector<2x4x32xbf16>
    %209 = vector.extract_strided_slice %204 {offsets = [0, 0], sizes = [8, 32], strides = [1, 1]} : vector<8x128xf32> to vector<8x32xf32>
    %210 = vector.shape_cast %209 : vector<8x32xf32> to vector<2x4x32xf32>
    %211 = arith.truncf %210 : vector<2x4x32xf32> to vector<2x4x32xbf16>
    %212 = vector.extract_strided_slice %205 {offsets = [0, 0], sizes = [8, 32], strides = [1, 1]} : vector<8x128xf32> to vector<8x32xf32>
    %213 = vector.shape_cast %212 : vector<8x32xf32> to vector<2x4x32xf32>
    %214 = arith.truncf %213 : vector<2x4x32xf32> to vector<2x4x32xbf16>
    "tpu.trace_start"() <{level = 10 : i32, message = "bqd,bkd->bqk"}> : () -> ()
    %cst_87 = arith.constant dense<0.000000e+00> : vector<2x4x4xf32>
    %215 = tpu.matmul %208, %211, %cst_87 {dimension_numbers = #tpu.dot_dimension_numbers<[2], [2], [1], [1], [0, 0, 0, 1, 1, 1], [0], [0]>} : vector<2x4x32xbf16>, vector<2x4x32xbf16>, vector<2x4x4xf32> -> vector<2x4x4xf32>
    "tpu.trace_stop"() : () -> ()
    %cst_88 = arith.constant dense<0xFF800000> : vector<2x4xf32>
    %216 = vector.multi_reduction <maximumf>, %215, %cst_88 [2] : vector<2x4x4xf32> to vector<2x4xf32>
    %217 = vector.shape_cast %216 : vector<2x4xf32> to vector<2x4x1xf32>
    %218 = vector.broadcast %217 : vector<2x4x1xf32> to vector<2x4x4xf32>
    %219 = arith.subf %215, %218 : vector<2x4x4xf32>
    %220 = math.exp %219 : vector<2x4x4xf32>
    %cst_89 = arith.constant dense<0.000000e+00> : vector<2x4xf32>
    %221 = vector.multi_reduction <add>, %220, %cst_89 [2] : vector<2x4x4xf32> to vector<2x4xf32>
    %222 = vector.shape_cast %221 : vector<2x4xf32> to vector<2x4x1xf32>
    %223 = tpu.reciprocal %222 {approx = true} : vector<2x4x1xf32> -> vector<2x4x1xf32>
    %224 = vector.broadcast %223 : vector<2x4x1xf32> to vector<2x4x4xf32>
    %225 = arith.mulf %220, %224 : vector<2x4x4xf32>
    %226 = arith.truncf %225 : vector<2x4x4xf32> to vector<2x4x4xbf16>
    "tpu.trace_start"() <{level = 10 : i32, message = "bqk,bkd->bqd"}> : () -> ()
    %cst_90 = arith.constant dense<0.000000e+00> : vector<2x4x32xf32>
    %227 = tpu.matmul %226, %214, %cst_90 {dimension_numbers = #tpu.dot_dimension_numbers<[2], [1], [1], [2], [0, 0, 0, 1, 1, 2], [0], [0]>} : vector<2x4x4xbf16>, vector<2x4x32xbf16>, vector<2x4x32xf32> -> vector<2x4x32xf32>
    "tpu.trace_stop"() : () -> ()
    %228 = vector.shape_cast %227 : vector<2x4x32xf32> to vector<8x32xf32>
    %229 = vector.extract_strided_slice %203 {offsets = [0, 32], sizes = [8, 32], strides = [1, 1]} : vector<8x128xf32> to vector<8x32xf32>
    %230 = vector.shape_cast %229 : vector<8x32xf32> to vector<2x4x32xf32>
    %231 = arith.truncf %230 : vector<2x4x32xf32> to vector<2x4x32xbf16>
    %232 = vector.extract_strided_slice %204 {offsets = [0, 32], sizes = [8, 32], strides = [1, 1]} : vector<8x128xf32> to vector<8x32xf32>
    %233 = vector.shape_cast %232 : vector<8x32xf32> to vector<2x4x32xf32>
    %234 = arith.truncf %233 : vector<2x4x32xf32> to vector<2x4x32xbf16>
    %235 = vector.extract_strided_slice %205 {offsets = [0, 32], sizes = [8, 32], strides = [1, 1]} : vector<8x128xf32> to vector<8x32xf32>
    %236 = vector.shape_cast %235 : vector<8x32xf32> to vector<2x4x32xf32>
    %237 = arith.truncf %236 : vector<2x4x32xf32> to vector<2x4x32xbf16>
    "tpu.trace_start"() <{level = 10 : i32, message = "bqd,bkd->bqk"}> : () -> ()
    %cst_91 = arith.constant dense<0.000000e+00> : vector<2x4x4xf32>
    %238 = tpu.matmul %231, %234, %cst_91 {dimension_numbers = #tpu.dot_dimension_numbers<[2], [2], [1], [1], [0, 0, 0, 1, 1, 1], [0], [0]>} : vector<2x4x32xbf16>, vector<2x4x32xbf16>, vector<2x4x4xf32> -> vector<2x4x4xf32>
    "tpu.trace_stop"() : () -> ()
    %cst_92 = arith.constant dense<0xFF800000> : vector<2x4xf32>
    %239 = vector.multi_reduction <maximumf>, %238, %cst_92 [2] : vector<2x4x4xf32> to vector<2x4xf32>
    %240 = vector.shape_cast %239 : vector<2x4xf32> to vector<2x4x1xf32>
    %241 = vector.broadcast %240 : vector<2x4x1xf32> to vector<2x4x4xf32>
    %242 = arith.subf %238, %241 : vector<2x4x4xf32>
    %243 = math.exp %242 : vector<2x4x4xf32>
    %cst_93 = arith.constant dense<0.000000e+00> : vector<2x4xf32>
    %244 = vector.multi_reduction <add>, %243, %cst_93 [2] : vector<2x4x4xf32> to vector<2x4xf32>
    %245 = vector.shape_cast %244 : vector<2x4xf32> to vector<2x4x1xf32>
    %246 = tpu.reciprocal %245 {approx = true} : vector<2x4x1xf32> -> vector<2x4x1xf32>
    %247 = vector.broadcast %246 : vector<2x4x1xf32> to vector<2x4x4xf32>
    %248 = arith.mulf %243, %247 : vector<2x4x4xf32>
    %249 = arith.truncf %248 : vector<2x4x4xf32> to vector<2x4x4xbf16>
    "tpu.trace_start"() <{level = 10 : i32, message = "bqk,bkd->bqd"}> : () -> ()
    %cst_94 = arith.constant dense<0.000000e+00> : vector<2x4x32xf32>
    %250 = tpu.matmul %249, %237, %cst_94 {dimension_numbers = #tpu.dot_dimension_numbers<[2], [1], [1], [2], [0, 0, 0, 1, 1, 2], [0], [0]>} : vector<2x4x4xbf16>, vector<2x4x32xbf16>, vector<2x4x32xf32> -> vector<2x4x32xf32>
    "tpu.trace_stop"() : () -> ()
    %251 = vector.shape_cast %250 : vector<2x4x32xf32> to vector<8x32xf32>
    %252 = vector.extract_strided_slice %203 {offsets = [0, 64], sizes = [8, 32], strides = [1, 1]} : vector<8x128xf32> to vector<8x32xf32>
    %253 = vector.shape_cast %252 : vector<8x32xf32> to vector<2x4x32xf32>
    %254 = arith.truncf %253 : vector<2x4x32xf32> to vector<2x4x32xbf16>
    %255 = vector.extract_strided_slice %204 {offsets = [0, 64], sizes = [8, 32], strides = [1, 1]} : vector<8x128xf32> to vector<8x32xf32>
    %256 = vector.shape_cast %255 : vector<8x32xf32> to vector<2x4x32xf32>
    %257 = arith.truncf %256 : vector<2x4x32xf32> to vector<2x4x32xbf16>
    %258 = vector.extract_strided_slice %205 {offsets = [0, 64], sizes = [8, 32], strides = [1, 1]} : vector<8x128xf32> to vector<8x32xf32>
    %259 = vector.shape_cast %258 : vector<8x32xf32> to vector<2x4x32xf32>
    %260 = arith.truncf %259 : vector<2x4x32xf32> to vector<2x4x32xbf16>
    "tpu.trace_start"() <{level = 10 : i32, message = "bqd,bkd->bqk"}> : () -> ()
    %cst_95 = arith.constant dense<0.000000e+00> : vector<2x4x4xf32>
    %261 = tpu.matmul %254, %257, %cst_95 {dimension_numbers = #tpu.dot_dimension_numbers<[2], [2], [1], [1], [0, 0, 0, 1, 1, 1], [0], [0]>} : vector<2x4x32xbf16>, vector<2x4x32xbf16>, vector<2x4x4xf32> -> vector<2x4x4xf32>
    "tpu.trace_stop"() : () -> ()
    %cst_96 = arith.constant dense<0xFF800000> : vector<2x4xf32>
    %262 = vector.multi_reduction <maximumf>, %261, %cst_96 [2] : vector<2x4x4xf32> to vector<2x4xf32>
    %263 = vector.shape_cast %262 : vector<2x4xf32> to vector<2x4x1xf32>
    %264 = vector.broadcast %263 : vector<2x4x1xf32> to vector<2x4x4xf32>
    %265 = arith.subf %261, %264 : vector<2x4x4xf32>
    %266 = math.exp %265 : vector<2x4x4xf32>
    %cst_97 = arith.constant dense<0.000000e+00> : vector<2x4xf32>
    %267 = vector.multi_reduction <add>, %266, %cst_97 [2] : vector<2x4x4xf32> to vector<2x4xf32>
    %268 = vector.shape_cast %267 : vector<2x4xf32> to vector<2x4x1xf32>
    %269 = tpu.reciprocal %268 {approx = true} : vector<2x4x1xf32> -> vector<2x4x1xf32>
    %270 = vector.broadcast %269 : vector<2x4x1xf32> to vector<2x4x4xf32>
    %271 = arith.mulf %266, %270 : vector<2x4x4xf32>
    %272 = arith.truncf %271 : vector<2x4x4xf32> to vector<2x4x4xbf16>
    "tpu.trace_start"() <{level = 10 : i32, message = "bqk,bkd->bqd"}> : () -> ()
    %cst_98 = arith.constant dense<0.000000e+00> : vector<2x4x32xf32>
    %273 = tpu.matmul %272, %260, %cst_98 {dimension_numbers = #tpu.dot_dimension_numbers<[2], [1], [1], [2], [0, 0, 0, 1, 1, 2], [0], [0]>} : vector<2x4x4xbf16>, vector<2x4x32xbf16>, vector<2x4x32xf32> -> vector<2x4x32xf32>
    "tpu.trace_stop"() : () -> ()
    %274 = vector.shape_cast %273 : vector<2x4x32xf32> to vector<8x32xf32>
    %275 = vector.extract_strided_slice %203 {offsets = [0, 96], sizes = [8, 32], strides = [1, 1]} : vector<8x128xf32> to vector<8x32xf32>
    %276 = vector.shape_cast %275 : vector<8x32xf32> to vector<2x4x32xf32>
    %277 = arith.truncf %276 : vector<2x4x32xf32> to vector<2x4x32xbf16>
    %278 = vector.extract_strided_slice %204 {offsets = [0, 96], sizes = [8, 32], strides = [1, 1]} : vector<8x128xf32> to vector<8x32xf32>
    %279 = vector.shape_cast %278 : vector<8x32xf32> to vector<2x4x32xf32>
    %280 = arith.truncf %279 : vector<2x4x32xf32> to vector<2x4x32xbf16>
    %281 = vector.extract_strided_slice %205 {offsets = [0, 96], sizes = [8, 32], strides = [1, 1]} : vector<8x128xf32> to vector<8x32xf32>
    %282 = vector.shape_cast %281 : vector<8x32xf32> to vector<2x4x32xf32>
    %283 = arith.truncf %282 : vector<2x4x32xf32> to vector<2x4x32xbf16>
    "tpu.trace_start"() <{level = 10 : i32, message = "bqd,bkd->bqk"}> : () -> ()
    %cst_99 = arith.constant dense<0.000000e+00> : vector<2x4x4xf32>
    %284 = tpu.matmul %277, %280, %cst_99 {dimension_numbers = #tpu.dot_dimension_numbers<[2], [2], [1], [1], [0, 0, 0, 1, 1, 1], [0], [0]>} : vector<2x4x32xbf16>, vector<2x4x32xbf16>, vector<2x4x4xf32> -> vector<2x4x4xf32>
    "tpu.trace_stop"() : () -> ()
    %cst_100 = arith.constant dense<0xFF800000> : vector<2x4xf32>
    %285 = vector.multi_reduction <maximumf>, %284, %cst_100 [2] : vector<2x4x4xf32> to vector<2x4xf32>
    %286 = vector.shape_cast %285 : vector<2x4xf32> to vector<2x4x1xf32>
    %287 = vector.broadcast %286 : vector<2x4x1xf32> to vector<2x4x4xf32>
    %288 = arith.subf %284, %287 : vector<2x4x4xf32>
    %289 = math.exp %288 : vector<2x4x4xf32>
    %cst_101 = arith.constant dense<0.000000e+00> : vector<2x4xf32>
    %290 = vector.multi_reduction <add>, %289, %cst_101 [2] : vector<2x4x4xf32> to vector<2x4xf32>
    %291 = vector.shape_cast %290 : vector<2x4xf32> to vector<2x4x1xf32>
    %292 = tpu.reciprocal %291 {approx = true} : vector<2x4x1xf32> -> vector<2x4x1xf32>
    %293 = vector.broadcast %292 : vector<2x4x1xf32> to vector<2x4x4xf32>
    %294 = arith.mulf %289, %293 : vector<2x4x4xf32>
    %295 = arith.truncf %294 : vector<2x4x4xf32> to vector<2x4x4xbf16>
    "tpu.trace_start"() <{level = 10 : i32, message = "bqk,bkd->bqd"}> : () -> ()
    %cst_102 = arith.constant dense<0.000000e+00> : vector<2x4x32xf32>
    %296 = tpu.matmul %295, %283, %cst_102 {dimension_numbers = #tpu.dot_dimension_numbers<[2], [1], [1], [2], [0, 0, 0, 1, 1, 2], [0], [0]>} : vector<2x4x4xbf16>, vector<2x4x32xbf16>, vector<2x4x32xf32> -> vector<2x4x32xf32>
    "tpu.trace_stop"() : () -> ()
    %297 = vector.shape_cast %296 : vector<2x4x32xf32> to vector<8x32xf32>
    %298 = tpu.concatenate %228, %251, %274, %297 in 1 : vector<8x32xf32>, vector<8x32xf32>, vector<8x32xf32>, vector<8x32xf32> -> vector<8x128xf32>
    %299 = arith.truncf %298 : vector<8x128xf32> to vector<8x128xbf16>
    %cst_103 = arith.constant dense<0.000000e+00> : vector<8x128xf32>
    %300 = tpu.matmul %299, %196, %cst_103 {dimension_numbers = #tpu.dot_dimension_numbers<[1], [0], [0], [1], [0, 0, 1, 1], [], []>} : vector<8x128xbf16>, vector<128x128xbf16>, vector<8x128xf32> -> vector<8x128xf32>
    %301 = vector.broadcast %198 : vector<1x128xf32> to vector<8x128xf32>
    %302 = arith.addf %300, %301 : vector<8x128xf32>
    %303 = arith.addf %190, %302 : vector<8x128xf32>
    %c1_104 = arith.constant 1 : index
    %c0_105 = arith.constant 0 : index
    %c0_106 = arith.constant 0 : index
    %304 = vector.load %arg8[%c1_104, %c0_105, %c0_106] : memref<2x1x128xf32, #tpu.memory_space<vmem>>, vector<1x1x128xf32>
    %305 = vector.shape_cast %304 : vector<1x1x128xf32> to vector<1x128xf32>
    %c1_107 = arith.constant 1 : index
    %c0_108 = arith.constant 0 : index
    %c0_109 = arith.constant 0 : index
    %306 = vector.load %arg9[%c1_107, %c0_108, %c0_109] : memref<2x1x128xf32, #tpu.memory_space<vmem>>, vector<1x1x128xf32>
    %307 = vector.shape_cast %306 : vector<1x1x128xf32> to vector<1x128xf32>
    %cst_110 = arith.constant dense<0.000000e+00> : vector<8xf32>
    %308 = vector.multi_reduction <add>, %303, %cst_110 [1] : vector<8x128xf32> to vector<8xf32>
    %309 = vector.shape_cast %308 : vector<8xf32> to vector<8x1xf32>
    %cst_111 = arith.constant 1.280000e+02 : f32
    %310 = vector.broadcast %cst_111 : f32 to vector<8x1xf32>
    %311 = arith.divf %309, %310 : vector<8x1xf32>
    %312 = vector.broadcast %311 : vector<8x1xf32> to vector<8x128xf32>
    %313 = arith.subf %303, %312 : vector<8x128xf32>
    %314 = arith.mulf %313, %313 : vector<8x128xf32>
    %cst_112 = arith.constant dense<0.000000e+00> : vector<8xf32>
    %315 = vector.multi_reduction <add>, %314, %cst_112 [1] : vector<8x128xf32> to vector<8xf32>
    %316 = vector.shape_cast %315 : vector<8xf32> to vector<8x1xf32>
    %cst_113 = arith.constant 1.280000e+02 : f32
    %317 = vector.broadcast %cst_113 : f32 to vector<8x1xf32>
    %318 = arith.divf %316, %317 : vector<8x1xf32>
    %cst_114 = arith.constant 9.99999974E-6 : f32
    %319 = vector.broadcast %cst_114 : f32 to vector<8x1xf32>
    %320 = arith.addf %318, %319 : vector<8x1xf32>
    %321 = math.rsqrt %320 : vector<8x1xf32>
    %322 = vector.broadcast %321 : vector<8x1xf32> to vector<8x128xf32>
    %323 = arith.mulf %313, %322 : vector<8x128xf32>
    %324 = vector.broadcast %305 : vector<1x128xf32> to vector<8x128xf32>
    %325 = arith.mulf %323, %324 : vector<8x128xf32>
    %326 = vector.broadcast %307 : vector<1x128xf32> to vector<8x128xf32>
    %327 = arith.addf %325, %326 : vector<8x128xf32>
    %c1_115 = arith.constant 1 : index
    %c0_116 = arith.constant 0 : index
    %c0_117 = arith.constant 0 : index
    %328 = vector.load %arg10[%c1_115, %c0_116, %c0_117] : memref<2x128x256xbf16, #tpu.memory_space<vmem>>, vector<1x128x256xbf16>
    %329 = vector.shape_cast %328 : vector<1x128x256xbf16> to vector<128x256xbf16>
    %c1_118 = arith.constant 1 : index
    %c0_119 = arith.constant 0 : index
    %c0_120 = arith.constant 0 : index
    %330 = vector.load %arg11[%c1_118, %c0_119, %c0_120] : memref<2x1x256xf32, #tpu.memory_space<vmem>>, vector<1x1x256xf32>
    %331 = vector.shape_cast %330 : vector<1x1x256xf32> to vector<1x256xf32>
    %c1_121 = arith.constant 1 : index
    %c0_122 = arith.constant 0 : index
    %c0_123 = arith.constant 0 : index
    %332 = vector.load %arg12[%c1_121, %c0_122, %c0_123] : memref<2x256x128xbf16, #tpu.memory_space<vmem>>, vector<1x256x128xbf16>
    %333 = vector.shape_cast %332 : vector<1x256x128xbf16> to vector<256x128xbf16>
    %c1_124 = arith.constant 1 : index
    %c0_125 = arith.constant 0 : index
    %c0_126 = arith.constant 0 : index
    %334 = vector.load %arg13[%c1_124, %c0_125, %c0_126] : memref<2x1x128xf32, #tpu.memory_space<vmem>>, vector<1x1x128xf32>
    %335 = vector.shape_cast %334 : vector<1x1x128xf32> to vector<1x128xf32>
    %336 = arith.truncf %327 : vector<8x128xf32> to vector<8x128xbf16>
    %cst_127 = arith.constant dense<0.000000e+00> : vector<8x256xf32>
    %337 = tpu.matmul %336, %329, %cst_127 {dimension_numbers = #tpu.dot_dimension_numbers<[1], [0], [0], [1], [0, 0, 1, 1], [], []>} : vector<8x128xbf16>, vector<128x256xbf16>, vector<8x256xf32> -> vector<8x256xf32>
    %338 = vector.broadcast %331 : vector<1x256xf32> to vector<8x256xf32>
    %339 = arith.addf %337, %338 : vector<8x256xf32>
    %cst_128 = arith.constant 0.000000e+00 : f32
    %340 = vector.broadcast %cst_128 : f32 to vector<8x256xf32>
    %341 = arith.maximumf %339, %340 : vector<8x256xf32>
    %342 = arith.truncf %341 : vector<8x256xf32> to vector<8x256xbf16>
    %cst_129 = arith.constant dense<0.000000e+00> : vector<8x128xf32>
    %343 = tpu.matmul %342, %333, %cst_129 {dimension_numbers = #tpu.dot_dimension_numbers<[1], [0], [0], [1], [0, 0, 1, 1], [], []>} : vector<8x256xbf16>, vector<256x128xbf16>, vector<8x128xf32> -> vector<8x128xf32>
    %344 = vector.broadcast %335 : vector<1x128xf32> to vector<8x128xf32>
    %345 = arith.addf %343, %344 : vector<8x128xf32>
    %346 = arith.addf %327, %345 : vector<8x128xf32>
    %c1_130 = arith.constant 1 : index
    %c0_131 = arith.constant 0 : index
    %c0_132 = arith.constant 0 : index
    %347 = vector.load %arg14[%c1_130, %c0_131, %c0_132] : memref<2x1x128xf32, #tpu.memory_space<vmem>>, vector<1x1x128xf32>
    %348 = vector.shape_cast %347 : vector<1x1x128xf32> to vector<1x128xf32>
    %c1_133 = arith.constant 1 : index
    %c0_134 = arith.constant 0 : index
    %c0_135 = arith.constant 0 : index
    %349 = vector.load %arg15[%c1_133, %c0_134, %c0_135] : memref<2x1x128xf32, #tpu.memory_space<vmem>>, vector<1x1x128xf32>
    %350 = vector.shape_cast %349 : vector<1x1x128xf32> to vector<1x128xf32>
    %cst_136 = arith.constant dense<0.000000e+00> : vector<8xf32>
    %351 = vector.multi_reduction <add>, %346, %cst_136 [1] : vector<8x128xf32> to vector<8xf32>
    %352 = vector.shape_cast %351 : vector<8xf32> to vector<8x1xf32>
    %cst_137 = arith.constant 1.280000e+02 : f32
    %353 = vector.broadcast %cst_137 : f32 to vector<8x1xf32>
    %354 = arith.divf %352, %353 : vector<8x1xf32>
    %355 = vector.broadcast %354 : vector<8x1xf32> to vector<8x128xf32>
    %356 = arith.subf %346, %355 : vector<8x128xf32>
    %357 = arith.mulf %356, %356 : vector<8x128xf32>
    %cst_138 = arith.constant dense<0.000000e+00> : vector<8xf32>
    %358 = vector.multi_reduction <add>, %357, %cst_138 [1] : vector<8x128xf32> to vector<8xf32>
    %359 = vector.shape_cast %358 : vector<8xf32> to vector<8x1xf32>
    %cst_139 = arith.constant 1.280000e+02 : f32
    %360 = vector.broadcast %cst_139 : f32 to vector<8x1xf32>
    %361 = arith.divf %359, %360 : vector<8x1xf32>
    %cst_140 = arith.constant 9.99999974E-6 : f32
    %362 = vector.broadcast %cst_140 : f32 to vector<8x1xf32>
    %363 = arith.addf %361, %362 : vector<8x1xf32>
    %364 = math.rsqrt %363 : vector<8x1xf32>
    %365 = vector.broadcast %364 : vector<8x1xf32> to vector<8x128xf32>
    %366 = arith.mulf %356, %365 : vector<8x128xf32>
    %367 = vector.broadcast %348 : vector<1x128xf32> to vector<8x128xf32>
    %368 = arith.mulf %366, %367 : vector<8x128xf32>
    %369 = vector.broadcast %350 : vector<1x128xf32> to vector<8x128xf32>
    %370 = arith.addf %368, %369 : vector<8x128xf32>
    %371 = vector.shape_cast %370 : vector<8x128xf32> to vector<2x4x128xf32>
    %372 = arith.truncf %371 : vector<2x4x128xf32> to vector<2x4x128xbf16>
    %c0_141 = arith.constant 0 : index
    %c0_142 = arith.constant 0 : index
    %c0_143 = arith.constant 0 : index
    %373 = vector.load %arg16[%c0_141, %c0_142, %c0_143] : memref<2x4x128xbf16, #tpu.memory_space<vmem>>, vector<2x4x128xbf16>
    tpu.vector_store %arg16[%c0_141, %c0_142, %c0_143], %372 {strides = array<i32>} : memref<2x4x128xbf16, #tpu.memory_space<vmem>>, vector<2x4x128xbf16>,
    return
  }
}

module attributes {stable_mosaic.version = 11 : i64} {
  func.func @_decoder_kernel(%arg0: memref<2x8x128xf32, #tpu.memory_space<vmem>>, %arg1: memref<2x4x128xbf16, #tpu.memory_space<vmem>>, %arg2: memref<2x128x384xbf16, #tpu.memory_space<vmem>>, %arg3: memref<2x1x384xf32, #tpu.memory_space<vmem>>, %arg4: memref<2x128x128xbf16, #tpu.memory_space<vmem>>, %arg5: memref<2x1x128xf32, #tpu.memory_space<vmem>>, %arg6: memref<2x1x128xf32, #tpu.memory_space<vmem>>, %arg7: memref<2x1x128xf32, #tpu.memory_space<vmem>>, %arg8: memref<2x128x128xbf16, #tpu.memory_space<vmem>>, %arg9: memref<2x1x128xf32, #tpu.memory_space<vmem>>, %arg10: memref<2x128x256xbf16, #tpu.memory_space<vmem>>, %arg11: memref<2x1x256xf32, #tpu.memory_space<vmem>>, %arg12: memref<2x128x128xbf16, #tpu.memory_space<vmem>>, %arg13: memref<2x1x128xf32, #tpu.memory_space<vmem>>, %arg14: memref<2x1x128xf32, #tpu.memory_space<vmem>>, %arg15: memref<2x1x128xf32, #tpu.memory_space<vmem>>, %arg16: memref<2x128x256xbf16, #tpu.memory_space<vmem>>, %arg17: memref<2x1x256xf32, #tpu.memory_space<vmem>>, %arg18: memref<2x256x128xbf16, #tpu.memory_space<vmem>>, %arg19: memref<2x1x128xf32, #tpu.memory_space<vmem>>, %arg20: memref<2x1x128xf32, #tpu.memory_space<vmem>>, %arg21: memref<2x1x128xf32, #tpu.memory_space<vmem>>, %arg22: memref<128x128xbf16, #tpu.memory_space<vmem>>, %arg23: memref<1x128xf32, #tpu.memory_space<vmem>>, %arg24: memref<16x128xf32, #tpu.memory_space<vmem>>) attributes {dimension_semantics = [], scalar_prefetch = 0 : i64, scratch_operands = 0 : i64, tpu.core_type = #tpu.core_type<tc>} {
    %c0 = arith.constant 0 : index
    %c0_0 = arith.constant 0 : index
    %c0_1 = arith.constant 0 : index
    %0 = vector.load %arg0[%c0, %c0_0, %c0_1] : memref<2x8x128xf32, #tpu.memory_space<vmem>>, vector<2x8x128xf32>
    %1 = vector.shape_cast %0 : vector<2x8x128xf32> to vector<16x128xf32>
    %c0_2 = arith.constant 0 : index
    %c0_3 = arith.constant 0 : index
    %c0_4 = arith.constant 0 : index
    %2 = vector.load %arg1[%c0_2, %c0_3, %c0_4] : memref<2x4x128xbf16, #tpu.memory_space<vmem>>, vector<2x4x128xbf16>
    %3 = vector.shape_cast %2 : vector<2x4x128xbf16> to vector<8x128xbf16>
    %c0_5 = arith.constant 0 : index
    %c0_6 = arith.constant 0 : index
    %c0_7 = arith.constant 0 : index
    %4 = vector.load %arg2[%c0_5, %c0_6, %c0_7] : memref<2x128x384xbf16, #tpu.memory_space<vmem>>, vector<1x128x384xbf16>
    %5 = vector.shape_cast %4 : vector<1x128x384xbf16> to vector<128x384xbf16>
    %c0_8 = arith.constant 0 : index
    %c0_9 = arith.constant 0 : index
    %c0_10 = arith.constant 0 : index
    %6 = vector.load %arg3[%c0_8, %c0_9, %c0_10] : memref<2x1x384xf32, #tpu.memory_space<vmem>>, vector<1x1x384xf32>
    %7 = vector.shape_cast %6 : vector<1x1x384xf32> to vector<1x384xf32>
    %c0_11 = arith.constant 0 : index
    %c0_12 = arith.constant 0 : index
    %c0_13 = arith.constant 0 : index
    %8 = vector.load %arg4[%c0_11, %c0_12, %c0_13] : memref<2x128x128xbf16, #tpu.memory_space<vmem>>, vector<1x128x128xbf16>
    %9 = vector.shape_cast %8 : vector<1x128x128xbf16> to vector<128x128xbf16>
    %c0_14 = arith.constant 0 : index
    %c0_15 = arith.constant 0 : index
    %c0_16 = arith.constant 0 : index
    %10 = vector.load %arg5[%c0_14, %c0_15, %c0_16] : memref<2x1x128xf32, #tpu.memory_space<vmem>>, vector<1x1x128xf32>
    %11 = vector.shape_cast %10 : vector<1x1x128xf32> to vector<1x128xf32>
    %12 = arith.truncf %1 : vector<16x128xf32> to vector<16x128xbf16>
    %cst = arith.constant dense<0.000000e+00> : vector<16x384xf32>
    %13 = tpu.matmul %12, %5, %cst {dimension_numbers = #tpu.dot_dimension_numbers<[1], [0], [0], [1], [0, 0, 1, 1], [], []>} : vector<16x128xbf16>, vector<128x384xbf16>, vector<16x384xf32> -> vector<16x384xf32>
    %14 = vector.broadcast %7 : vector<1x384xf32> to vector<16x384xf32>
    %15 = arith.addf %13, %14 : vector<16x384xf32>
    %16 = vector.extract_strided_slice %15 {offsets = [0, 0], sizes = [16, 128], strides = [1, 1]} : vector<16x384xf32> to vector<16x128xf32>
    %17 = vector.extract_strided_slice %15 {offsets = [0, 128], sizes = [16, 128], strides = [1, 1]} : vector<16x384xf32> to vector<16x128xf32>
    %18 = vector.extract_strided_slice %15 {offsets = [0, 256], sizes = [16, 128], strides = [1, 1]} : vector<16x384xf32> to vector<16x128xf32>
    %19 = tpu.iota {dimensions = array<i32: 0>} : vector<8x8xi32>
    %20 = tpu.iota {dimensions = array<i32: 1>} : vector<8x8xi32>
    %21 = arith.cmpi sle, %20, %19 : vector<8x8xi32>
    %22 = vector.shape_cast %21 : vector<8x8xi1> to vector<1x8x8xi1>
    %23 = vector.extract_strided_slice %16 {offsets = [0, 0], sizes = [16, 32], strides = [1, 1]} : vector<16x128xf32> to vector<16x32xf32>
    %24 = vector.shape_cast %23 : vector<16x32xf32> to vector<2x8x32xf32>
    %25 = arith.truncf %24 : vector<2x8x32xf32> to vector<2x8x32xbf16>
    %26 = vector.extract_strided_slice %17 {offsets = [0, 0], sizes = [16, 32], strides = [1, 1]} : vector<16x128xf32> to vector<16x32xf32>
    %27 = vector.shape_cast %26 : vector<16x32xf32> to vector<2x8x32xf32>
    %28 = arith.truncf %27 : vector<2x8x32xf32> to vector<2x8x32xbf16>
    %29 = vector.extract_strided_slice %18 {offsets = [0, 0], sizes = [16, 32], strides = [1, 1]} : vector<16x128xf32> to vector<16x32xf32>
    %30 = vector.shape_cast %29 : vector<16x32xf32> to vector<2x8x32xf32>
    %31 = arith.truncf %30 : vector<2x8x32xf32> to vector<2x8x32xbf16>
    "tpu.trace_start"() <{level = 10 : i32, message = "bqd,bkd->bqk"}> : () -> ()
    %cst_17 = arith.constant dense<0.000000e+00> : vector<2x8x8xf32>
    %32 = tpu.matmul %25, %28, %cst_17 {dimension_numbers = #tpu.dot_dimension_numbers<[2], [2], [1], [1], [0, 0, 0, 1, 1, 1], [0], [0]>} : vector<2x8x32xbf16>, vector<2x8x32xbf16>, vector<2x8x8xf32> -> vector<2x8x8xf32>
    %cst_18 = arith.constant -1.000000e+30 : f32
    "tpu.trace_stop"() : () -> ()
    %33 = vector.shape_cast %22 : vector<1x8x8xi1> to vector<1x8x8xi1>
    %34 = vector.broadcast %33 : vector<1x8x8xi1> to vector<2x8x8xi1>
    %35 = vector.broadcast %cst_18 : f32 to vector<2x8x8xf32>
    %36 = arith.select %34, %32, %35 : vector<2x8x8xi1>, vector<2x8x8xf32>
    %cst_19 = arith.constant dense<0xFF800000> : vector<2x8xf32>
    %37 = vector.multi_reduction <maximumf>, %36, %cst_19 [2] : vector<2x8x8xf32> to vector<2x8xf32>
    %38 = vector.shape_cast %37 : vector<2x8xf32> to vector<2x8x1xf32>
    %39 = vector.broadcast %38 : vector<2x8x1xf32> to vector<2x8x8xf32>
    %40 = arith.subf %36, %39 : vector<2x8x8xf32>
    %41 = math.exp %40 : vector<2x8x8xf32>
    %cst_20 = arith.constant dense<0.000000e+00> : vector<2x8xf32>
    %42 = vector.multi_reduction <add>, %41, %cst_20 [2] : vector<2x8x8xf32> to vector<2x8xf32>
    %43 = vector.shape_cast %42 : vector<2x8xf32> to vector<2x8x1xf32>
    %44 = tpu.reciprocal %43 {approx = true} : vector<2x8x1xf32> -> vector<2x8x1xf32>
    %45 = vector.broadcast %44 : vector<2x8x1xf32> to vector<2x8x8xf32>
    %46 = arith.mulf %41, %45 : vector<2x8x8xf32>
    %47 = arith.truncf %46 : vector<2x8x8xf32> to vector<2x8x8xbf16>
    "tpu.trace_start"() <{level = 10 : i32, message = "bqk,bkd->bqd"}> : () -> ()
    %cst_21 = arith.constant dense<0.000000e+00> : vector<2x8x32xf32>
    %48 = tpu.matmul %47, %31, %cst_21 {dimension_numbers = #tpu.dot_dimension_numbers<[2], [1], [1], [2], [0, 0, 0, 1, 1, 2], [0], [0]>} : vector<2x8x8xbf16>, vector<2x8x32xbf16>, vector<2x8x32xf32> -> vector<2x8x32xf32>
    "tpu.trace_stop"() : () -> ()
    %49 = vector.shape_cast %48 : vector<2x8x32xf32> to vector<16x32xf32>
    %50 = vector.extract_strided_slice %16 {offsets = [0, 32], sizes = [16, 32], strides = [1, 1]} : vector<16x128xf32> to vector<16x32xf32>
    %51 = vector.shape_cast %50 : vector<16x32xf32> to vector<2x8x32xf32>
    %52 = arith.truncf %51 : vector<2x8x32xf32> to vector<2x8x32xbf16>
    %53 = vector.extract_strided_slice %17 {offsets = [0, 32], sizes = [16, 32], strides = [1, 1]} : vector<16x128xf32> to vector<16x32xf32>
    %54 = vector.shape_cast %53 : vector<16x32xf32> to vector<2x8x32xf32>
    %55 = arith.truncf %54 : vector<2x8x32xf32> to vector<2x8x32xbf16>
    %56 = vector.extract_strided_slice %18 {offsets = [0, 32], sizes = [16, 32], strides = [1, 1]} : vector<16x128xf32> to vector<16x32xf32>
    %57 = vector.shape_cast %56 : vector<16x32xf32> to vector<2x8x32xf32>
    %58 = arith.truncf %57 : vector<2x8x32xf32> to vector<2x8x32xbf16>
    "tpu.trace_start"() <{level = 10 : i32, message = "bqd,bkd->bqk"}> : () -> ()
    %cst_22 = arith.constant dense<0.000000e+00> : vector<2x8x8xf32>
    %59 = tpu.matmul %52, %55, %cst_22 {dimension_numbers = #tpu.dot_dimension_numbers<[2], [2], [1], [1], [0, 0, 0, 1, 1, 1], [0], [0]>} : vector<2x8x32xbf16>, vector<2x8x32xbf16>, vector<2x8x8xf32> -> vector<2x8x8xf32>
    %cst_23 = arith.constant -1.000000e+30 : f32
    "tpu.trace_stop"() : () -> ()
    %60 = vector.shape_cast %22 : vector<1x8x8xi1> to vector<1x8x8xi1>
    %61 = vector.broadcast %60 : vector<1x8x8xi1> to vector<2x8x8xi1>
    %62 = vector.broadcast %cst_23 : f32 to vector<2x8x8xf32>
    %63 = arith.select %61, %59, %62 : vector<2x8x8xi1>, vector<2x8x8xf32>
    %cst_24 = arith.constant dense<0xFF800000> : vector<2x8xf32>
    %64 = vector.multi_reduction <maximumf>, %63, %cst_24 [2] : vector<2x8x8xf32> to vector<2x8xf32>
    %65 = vector.shape_cast %64 : vector<2x8xf32> to vector<2x8x1xf32>
    %66 = vector.broadcast %65 : vector<2x8x1xf32> to vector<2x8x8xf32>
    %67 = arith.subf %63, %66 : vector<2x8x8xf32>
    %68 = math.exp %67 : vector<2x8x8xf32>
    %cst_25 = arith.constant dense<0.000000e+00> : vector<2x8xf32>
    %69 = vector.multi_reduction <add>, %68, %cst_25 [2] : vector<2x8x8xf32> to vector<2x8xf32>
    %70 = vector.shape_cast %69 : vector<2x8xf32> to vector<2x8x1xf32>
    %71 = tpu.reciprocal %70 {approx = true} : vector<2x8x1xf32> -> vector<2x8x1xf32>
    %72 = vector.broadcast %71 : vector<2x8x1xf32> to vector<2x8x8xf32>
    %73 = arith.mulf %68, %72 : vector<2x8x8xf32>
    %74 = arith.truncf %73 : vector<2x8x8xf32> to vector<2x8x8xbf16>
    "tpu.trace_start"() <{level = 10 : i32, message = "bqk,bkd->bqd"}> : () -> ()
    %cst_26 = arith.constant dense<0.000000e+00> : vector<2x8x32xf32>
    %75 = tpu.matmul %74, %58, %cst_26 {dimension_numbers = #tpu.dot_dimension_numbers<[2], [1], [1], [2], [0, 0, 0, 1, 1, 2], [0], [0]>} : vector<2x8x8xbf16>, vector<2x8x32xbf16>, vector<2x8x32xf32> -> vector<2x8x32xf32>
    "tpu.trace_stop"() : () -> ()
    %76 = vector.shape_cast %75 : vector<2x8x32xf32> to vector<16x32xf32>
    %77 = vector.extract_strided_slice %16 {offsets = [0, 64], sizes = [16, 32], strides = [1, 1]} : vector<16x128xf32> to vector<16x32xf32>
    %78 = vector.shape_cast %77 : vector<16x32xf32> to vector<2x8x32xf32>
    %79 = arith.truncf %78 : vector<2x8x32xf32> to vector<2x8x32xbf16>
    %80 = vector.extract_strided_slice %17 {offsets = [0, 64], sizes = [16, 32], strides = [1, 1]} : vector<16x128xf32> to vector<16x32xf32>
    %81 = vector.shape_cast %80 : vector<16x32xf32> to vector<2x8x32xf32>
    %82 = arith.truncf %81 : vector<2x8x32xf32> to vector<2x8x32xbf16>
    %83 = vector.extract_strided_slice %18 {offsets = [0, 64], sizes = [16, 32], strides = [1, 1]} : vector<16x128xf32> to vector<16x32xf32>
    %84 = vector.shape_cast %83 : vector<16x32xf32> to vector<2x8x32xf32>
    %85 = arith.truncf %84 : vector<2x8x32xf32> to vector<2x8x32xbf16>
    "tpu.trace_start"() <{level = 10 : i32, message = "bqd,bkd->bqk"}> : () -> ()
    %cst_27 = arith.constant dense<0.000000e+00> : vector<2x8x8xf32>
    %86 = tpu.matmul %79, %82, %cst_27 {dimension_numbers = #tpu.dot_dimension_numbers<[2], [2], [1], [1], [0, 0, 0, 1, 1, 1], [0], [0]>} : vector<2x8x32xbf16>, vector<2x8x32xbf16>, vector<2x8x8xf32> -> vector<2x8x8xf32>
    %cst_28 = arith.constant -1.000000e+30 : f32
    "tpu.trace_stop"() : () -> ()
    %87 = vector.shape_cast %22 : vector<1x8x8xi1> to vector<1x8x8xi1>
    %88 = vector.broadcast %87 : vector<1x8x8xi1> to vector<2x8x8xi1>
    %89 = vector.broadcast %cst_28 : f32 to vector<2x8x8xf32>
    %90 = arith.select %88, %86, %89 : vector<2x8x8xi1>, vector<2x8x8xf32>
    %cst_29 = arith.constant dense<0xFF800000> : vector<2x8xf32>
    %91 = vector.multi_reduction <maximumf>, %90, %cst_29 [2] : vector<2x8x8xf32> to vector<2x8xf32>
    %92 = vector.shape_cast %91 : vector<2x8xf32> to vector<2x8x1xf32>
    %93 = vector.broadcast %92 : vector<2x8x1xf32> to vector<2x8x8xf32>
    %94 = arith.subf %90, %93 : vector<2x8x8xf32>
    %95 = math.exp %94 : vector<2x8x8xf32>
    %cst_30 = arith.constant dense<0.000000e+00> : vector<2x8xf32>
    %96 = vector.multi_reduction <add>, %95, %cst_30 [2] : vector<2x8x8xf32> to vector<2x8xf32>
    %97 = vector.shape_cast %96 : vector<2x8xf32> to vector<2x8x1xf32>
    %98 = tpu.reciprocal %97 {approx = true} : vector<2x8x1xf32> -> vector<2x8x1xf32>
    %99 = vector.broadcast %98 : vector<2x8x1xf32> to vector<2x8x8xf32>
    %100 = arith.mulf %95, %99 : vector<2x8x8xf32>
    %101 = arith.truncf %100 : vector<2x8x8xf32> to vector<2x8x8xbf16>
    "tpu.trace_start"() <{level = 10 : i32, message = "bqk,bkd->bqd"}> : () -> ()
    %cst_31 = arith.constant dense<0.000000e+00> : vector<2x8x32xf32>
    %102 = tpu.matmul %101, %85, %cst_31 {dimension_numbers = #tpu.dot_dimension_numbers<[2], [1], [1], [2], [0, 0, 0, 1, 1, 2], [0], [0]>} : vector<2x8x8xbf16>, vector<2x8x32xbf16>, vector<2x8x32xf32> -> vector<2x8x32xf32>
    "tpu.trace_stop"() : () -> ()
    %103 = vector.shape_cast %102 : vector<2x8x32xf32> to vector<16x32xf32>
    %104 = vector.extract_strided_slice %16 {offsets = [0, 96], sizes = [16, 32], strides = [1, 1]} : vector<16x128xf32> to vector<16x32xf32>
    %105 = vector.shape_cast %104 : vector<16x32xf32> to vector<2x8x32xf32>
    %106 = arith.truncf %105 : vector<2x8x32xf32> to vector<2x8x32xbf16>
    %107 = vector.extract_strided_slice %17 {offsets = [0, 96], sizes = [16, 32], strides = [1, 1]} : vector<16x128xf32> to vector<16x32xf32>
    %108 = vector.shape_cast %107 : vector<16x32xf32> to vector<2x8x32xf32>
    %109 = arith.truncf %108 : vector<2x8x32xf32> to vector<2x8x32xbf16>
    %110 = vector.extract_strided_slice %18 {offsets = [0, 96], sizes = [16, 32], strides = [1, 1]} : vector<16x128xf32> to vector<16x32xf32>
    %111 = vector.shape_cast %110 : vector<16x32xf32> to vector<2x8x32xf32>
    %112 = arith.truncf %111 : vector<2x8x32xf32> to vector<2x8x32xbf16>
    "tpu.trace_start"() <{level = 10 : i32, message = "bqd,bkd->bqk"}> : () -> ()
    %cst_32 = arith.constant dense<0.000000e+00> : vector<2x8x8xf32>
    %113 = tpu.matmul %106, %109, %cst_32 {dimension_numbers = #tpu.dot_dimension_numbers<[2], [2], [1], [1], [0, 0, 0, 1, 1, 1], [0], [0]>} : vector<2x8x32xbf16>, vector<2x8x32xbf16>, vector<2x8x8xf32> -> vector<2x8x8xf32>
    %cst_33 = arith.constant -1.000000e+30 : f32
    "tpu.trace_stop"() : () -> ()
    %114 = vector.shape_cast %22 : vector<1x8x8xi1> to vector<1x8x8xi1>
    %115 = vector.broadcast %114 : vector<1x8x8xi1> to vector<2x8x8xi1>
    %116 = vector.broadcast %cst_33 : f32 to vector<2x8x8xf32>
    %117 = arith.select %115, %113, %116 : vector<2x8x8xi1>, vector<2x8x8xf32>
    %cst_34 = arith.constant dense<0xFF800000> : vector<2x8xf32>
    %118 = vector.multi_reduction <maximumf>, %117, %cst_34 [2] : vector<2x8x8xf32> to vector<2x8xf32>
    %119 = vector.shape_cast %118 : vector<2x8xf32> to vector<2x8x1xf32>
    %120 = vector.broadcast %119 : vector<2x8x1xf32> to vector<2x8x8xf32>
    %121 = arith.subf %117, %120 : vector<2x8x8xf32>
    %122 = math.exp %121 : vector<2x8x8xf32>
    %cst_35 = arith.constant dense<0.000000e+00> : vector<2x8xf32>
    %123 = vector.multi_reduction <add>, %122, %cst_35 [2] : vector<2x8x8xf32> to vector<2x8xf32>
    %124 = vector.shape_cast %123 : vector<2x8xf32> to vector<2x8x1xf32>
    %125 = tpu.reciprocal %124 {approx = true} : vector<2x8x1xf32> -> vector<2x8x1xf32>
    %126 = vector.broadcast %125 : vector<2x8x1xf32> to vector<2x8x8xf32>
    %127 = arith.mulf %122, %126 : vector<2x8x8xf32>
    %128 = arith.truncf %127 : vector<2x8x8xf32> to vector<2x8x8xbf16>
    "tpu.trace_start"() <{level = 10 : i32, message = "bqk,bkd->bqd"}> : () -> ()
    %cst_36 = arith.constant dense<0.000000e+00> : vector<2x8x32xf32>
    %129 = tpu.matmul %128, %112, %cst_36 {dimension_numbers = #tpu.dot_dimension_numbers<[2], [1], [1], [2], [0, 0, 0, 1, 1, 2], [0], [0]>} : vector<2x8x8xbf16>, vector<2x8x32xbf16>, vector<2x8x32xf32> -> vector<2x8x32xf32>
    "tpu.trace_stop"() : () -> ()
    %130 = vector.shape_cast %129 : vector<2x8x32xf32> to vector<16x32xf32>
    %131 = tpu.concatenate %49, %76, %103, %130 in 1 : vector<16x32xf32>, vector<16x32xf32>, vector<16x32xf32>, vector<16x32xf32> -> vector<16x128xf32>
    %132 = arith.truncf %131 : vector<16x128xf32> to vector<16x128xbf16>
    %cst_37 = arith.constant dense<0.000000e+00> : vector<16x128xf32>
    %133 = tpu.matmul %132, %9, %cst_37 {dimension_numbers = #tpu.dot_dimension_numbers<[1], [0], [0], [1], [0, 0, 1, 1], [], []>} : vector<16x128xbf16>, vector<128x128xbf16>, vector<16x128xf32> -> vector<16x128xf32>
    %134 = vector.broadcast %11 : vector<1x128xf32> to vector<16x128xf32>
    %135 = arith.addf %133, %134 : vector<16x128xf32>
    %136 = arith.addf %1, %135 : vector<16x128xf32>
    %c0_38 = arith.constant 0 : index
    %c0_39 = arith.constant 0 : index
    %c0_40 = arith.constant 0 : index
    %137 = vector.load %arg6[%c0_38, %c0_39, %c0_40] : memref<2x1x128xf32, #tpu.memory_space<vmem>>, vector<1x1x128xf32>
    %138 = vector.shape_cast %137 : vector<1x1x128xf32> to vector<1x128xf32>
    %c0_41 = arith.constant 0 : index
    %c0_42 = arith.constant 0 : index
    %c0_43 = arith.constant 0 : index
    %139 = vector.load %arg7[%c0_41, %c0_42, %c0_43] : memref<2x1x128xf32, #tpu.memory_space<vmem>>, vector<1x1x128xf32>
    %140 = vector.shape_cast %139 : vector<1x1x128xf32> to vector<1x128xf32>
    %cst_44 = arith.constant dense<0.000000e+00> : vector<16xf32>
    %141 = vector.multi_reduction <add>, %136, %cst_44 [1] : vector<16x128xf32> to vector<16xf32>
    %142 = vector.shape_cast %141 : vector<16xf32> to vector<16x1xf32>
    %cst_45 = arith.constant 1.280000e+02 : f32
    %143 = vector.broadcast %cst_45 : f32 to vector<16x1xf32>
    %144 = arith.divf %142, %143 : vector<16x1xf32>
    %145 = vector.broadcast %144 : vector<16x1xf32> to vector<16x128xf32>
    %146 = arith.subf %136, %145 : vector<16x128xf32>
    %147 = arith.mulf %146, %146 : vector<16x128xf32>
    %cst_46 = arith.constant dense<0.000000e+00> : vector<16xf32>
    %148 = vector.multi_reduction <add>, %147, %cst_46 [1] : vector<16x128xf32> to vector<16xf32>
    %149 = vector.shape_cast %148 : vector<16xf32> to vector<16x1xf32>
    %cst_47 = arith.constant 1.280000e+02 : f32
    %150 = vector.broadcast %cst_47 : f32 to vector<16x1xf32>
    %151 = arith.divf %149, %150 : vector<16x1xf32>
    %cst_48 = arith.constant 9.99999974E-6 : f32
    %152 = vector.broadcast %cst_48 : f32 to vector<16x1xf32>
    %153 = arith.addf %151, %152 : vector<16x1xf32>
    %154 = math.rsqrt %153 : vector<16x1xf32>
    %155 = vector.broadcast %154 : vector<16x1xf32> to vector<16x128xf32>
    %156 = arith.mulf %146, %155 : vector<16x128xf32>
    %157 = vector.broadcast %138 : vector<1x128xf32> to vector<16x128xf32>
    %158 = arith.mulf %156, %157 : vector<16x128xf32>
    %159 = vector.broadcast %140 : vector<1x128xf32> to vector<16x128xf32>
    %160 = arith.addf %158, %159 : vector<16x128xf32>
    %c0_49 = arith.constant 0 : index
    %c0_50 = arith.constant 0 : index
    %c0_51 = arith.constant 0 : index
    %161 = vector.load %arg8[%c0_49, %c0_50, %c0_51] : memref<2x128x128xbf16, #tpu.memory_space<vmem>>, vector<1x128x128xbf16>
    %162 = vector.shape_cast %161 : vector<1x128x128xbf16> to vector<128x128xbf16>
    %c0_52 = arith.constant 0 : index
    %c0_53 = arith.constant 0 : index
    %c0_54 = arith.constant 0 : index
    %163 = vector.load %arg9[%c0_52, %c0_53, %c0_54] : memref<2x1x128xf32, #tpu.memory_space<vmem>>, vector<1x1x128xf32>
    %164 = vector.shape_cast %163 : vector<1x1x128xf32> to vector<1x128xf32>
    %c0_55 = arith.constant 0 : index
    %c0_56 = arith.constant 0 : index
    %c0_57 = arith.constant 0 : index
    %165 = vector.load %arg10[%c0_55, %c0_56, %c0_57] : memref<2x128x256xbf16, #tpu.memory_space<vmem>>, vector<1x128x256xbf16>
    %166 = vector.shape_cast %165 : vector<1x128x256xbf16> to vector<128x256xbf16>
    %c0_58 = arith.constant 0 : index
    %c0_59 = arith.constant 0 : index
    %c0_60 = arith.constant 0 : index
    %167 = vector.load %arg11[%c0_58, %c0_59, %c0_60] : memref<2x1x256xf32, #tpu.memory_space<vmem>>, vector<1x1x256xf32>
    %168 = vector.shape_cast %167 : vector<1x1x256xf32> to vector<1x256xf32>
    %c0_61 = arith.constant 0 : index
    %c0_62 = arith.constant 0 : index
    %c0_63 = arith.constant 0 : index
    %169 = vector.load %arg12[%c0_61, %c0_62, %c0_63] : memref<2x128x128xbf16, #tpu.memory_space<vmem>>, vector<1x128x128xbf16>
    %170 = vector.shape_cast %169 : vector<1x128x128xbf16> to vector<128x128xbf16>
    %c0_64 = arith.constant 0 : index
    %c0_65 = arith.constant 0 : index
    %c0_66 = arith.constant 0 : index
    %171 = vector.load %arg13[%c0_64, %c0_65, %c0_66] : memref<2x1x128xf32, #tpu.memory_space<vmem>>, vector<1x1x128xf32>
    %172 = vector.shape_cast %171 : vector<1x1x128xf32> to vector<1x128xf32>
    %173 = arith.truncf %160 : vector<16x128xf32> to vector<16x128xbf16>
    %cst_67 = arith.constant dense<0.000000e+00> : vector<16x128xf32>
    %174 = tpu.matmul %173, %162, %cst_67 {dimension_numbers = #tpu.dot_dimension_numbers<[1], [0], [0], [1], [0, 0, 1, 1], [], []>} : vector<16x128xbf16>, vector<128x128xbf16>, vector<16x128xf32> -> vector<16x128xf32>
    %175 = vector.broadcast %164 : vector<1x128xf32> to vector<16x128xf32>
    %176 = arith.addf %174, %175 : vector<16x128xf32>
    %cst_68 = arith.constant dense<0.000000e+00> : vector<8x256xf32>
    %177 = tpu.matmul %3, %166, %cst_68 {dimension_numbers = #tpu.dot_dimension_numbers<[1], [0], [0], [1], [0, 0, 1, 1], [], []>} : vector<8x128xbf16>, vector<128x256xbf16>, vector<8x256xf32> -> vector<8x256xf32>
    %178 = vector.broadcast %168 : vector<1x256xf32> to vector<8x256xf32>
    %179 = arith.addf %177, %178 : vector<8x256xf32>
    %180 = vector.extract_strided_slice %179 {offsets = [0, 0], sizes = [8, 128], strides = [1, 1]} : vector<8x256xf32> to vector<8x128xf32>
    %181 = vector.extract_strided_slice %179 {offsets = [0, 128], sizes = [8, 128], strides = [1, 1]} : vector<8x256xf32> to vector<8x128xf32>
    %182 = vector.extract_strided_slice %176 {offsets = [0, 0], sizes = [16, 32], strides = [1, 1]} : vector<16x128xf32> to vector<16x32xf32>
    %183 = vector.shape_cast %182 : vector<16x32xf32> to vector<2x8x32xf32>
    %184 = arith.truncf %183 : vector<2x8x32xf32> to vector<2x8x32xbf16>
    %185 = vector.extract_strided_slice %180 {offsets = [0, 0], sizes = [8, 32], strides = [1, 1]} : vector<8x128xf32> to vector<8x32xf32>
    %186 = vector.shape_cast %185 : vector<8x32xf32> to vector<2x4x32xf32>
    %187 = arith.truncf %186 : vector<2x4x32xf32> to vector<2x4x32xbf16>
    %188 = vector.extract_strided_slice %181 {offsets = [0, 0], sizes = [8, 32], strides = [1, 1]} : vector<8x128xf32> to vector<8x32xf32>
    %189 = vector.shape_cast %188 : vector<8x32xf32> to vector<2x4x32xf32>
    %190 = arith.truncf %189 : vector<2x4x32xf32> to vector<2x4x32xbf16>
    "tpu.trace_start"() <{level = 10 : i32, message = "bqd,bkd->bqk"}> : () -> ()
    %cst_69 = arith.constant dense<0.000000e+00> : vector<2x8x4xf32>
    %191 = tpu.matmul %184, %187, %cst_69 {dimension_numbers = #tpu.dot_dimension_numbers<[2], [2], [1], [1], [0, 0, 0, 1, 1, 1], [0], [0]>} : vector<2x8x32xbf16>, vector<2x4x32xbf16>, vector<2x8x4xf32> -> vector<2x8x4xf32>
    "tpu.trace_stop"() : () -> ()
    %cst_70 = arith.constant dense<0xFF800000> : vector<2x8xf32>
    %192 = vector.multi_reduction <maximumf>, %191, %cst_70 [2] : vector<2x8x4xf32> to vector<2x8xf32>
    %193 = vector.shape_cast %192 : vector<2x8xf32> to vector<2x8x1xf32>
    %194 = vector.broadcast %193 : vector<2x8x1xf32> to vector<2x8x4xf32>
    %195 = arith.subf %191, %194 : vector<2x8x4xf32>
    %196 = math.exp %195 : vector<2x8x4xf32>
    %cst_71 = arith.constant dense<0.000000e+00> : vector<2x8xf32>
    %197 = vector.multi_reduction <add>, %196, %cst_71 [2] : vector<2x8x4xf32> to vector<2x8xf32>
    %198 = vector.shape_cast %197 : vector<2x8xf32> to vector<2x8x1xf32>
    %199 = tpu.reciprocal %198 {approx = true} : vector<2x8x1xf32> -> vector<2x8x1xf32>
    %200 = vector.broadcast %199 : vector<2x8x1xf32> to vector<2x8x4xf32>
    %201 = arith.mulf %196, %200 : vector<2x8x4xf32>
    %202 = arith.truncf %201 : vector<2x8x4xf32> to vector<2x8x4xbf16>
    "tpu.trace_start"() <{level = 10 : i32, message = "bqk,bkd->bqd"}> : () -> ()
    %cst_72 = arith.constant dense<0.000000e+00> : vector<2x8x32xf32>
    %203 = tpu.matmul %202, %190, %cst_72 {dimension_numbers = #tpu.dot_dimension_numbers<[2], [1], [1], [2], [0, 0, 0, 1, 1, 2], [0], [0]>} : vector<2x8x4xbf16>, vector<2x4x32xbf16>, vector<2x8x32xf32> -> vector<2x8x32xf32>
    "tpu.trace_stop"() : () -> ()
    %204 = vector.shape_cast %203 : vector<2x8x32xf32> to vector<16x32xf32>
    %205 = vector.extract_strided_slice %176 {offsets = [0, 32], sizes = [16, 32], strides = [1, 1]} : vector<16x128xf32> to vector<16x32xf32>
    %206 = vector.shape_cast %205 : vector<16x32xf32> to vector<2x8x32xf32>
    %207 = arith.truncf %206 : vector<2x8x32xf32> to vector<2x8x32xbf16>
    %208 = vector.extract_strided_slice %180 {offsets = [0, 32], sizes = [8, 32], strides = [1, 1]} : vector<8x128xf32> to vector<8x32xf32>
    %209 = vector.shape_cast %208 : vector<8x32xf32> to vector<2x4x32xf32>
    %210 = arith.truncf %209 : vector<2x4x32xf32> to vector<2x4x32xbf16>
    %211 = vector.extract_strided_slice %181 {offsets = [0, 32], sizes = [8, 32], strides = [1, 1]} : vector<8x128xf32> to vector<8x32xf32>
    %212 = vector.shape_cast %211 : vector<8x32xf32> to vector<2x4x32xf32>
    %213 = arith.truncf %212 : vector<2x4x32xf32> to vector<2x4x32xbf16>
    "tpu.trace_start"() <{level = 10 : i32, message = "bqd,bkd->bqk"}> : () -> ()
    %cst_73 = arith.constant dense<0.000000e+00> : vector<2x8x4xf32>
    %214 = tpu.matmul %207, %210, %cst_73 {dimension_numbers = #tpu.dot_dimension_numbers<[2], [2], [1], [1], [0, 0, 0, 1, 1, 1], [0], [0]>} : vector<2x8x32xbf16>, vector<2x4x32xbf16>, vector<2x8x4xf32> -> vector<2x8x4xf32>
    "tpu.trace_stop"() : () -> ()
    %cst_74 = arith.constant dense<0xFF800000> : vector<2x8xf32>
    %215 = vector.multi_reduction <maximumf>, %214, %cst_74 [2] : vector<2x8x4xf32> to vector<2x8xf32>
    %216 = vector.shape_cast %215 : vector<2x8xf32> to vector<2x8x1xf32>
    %217 = vector.broadcast %216 : vector<2x8x1xf32> to vector<2x8x4xf32>
    %218 = arith.subf %214, %217 : vector<2x8x4xf32>
    %219 = math.exp %218 : vector<2x8x4xf32>
    %cst_75 = arith.constant dense<0.000000e+00> : vector<2x8xf32>
    %220 = vector.multi_reduction <add>, %219, %cst_75 [2] : vector<2x8x4xf32> to vector<2x8xf32>
    %221 = vector.shape_cast %220 : vector<2x8xf32> to vector<2x8x1xf32>
    %222 = tpu.reciprocal %221 {approx = true} : vector<2x8x1xf32> -> vector<2x8x1xf32>
    %223 = vector.broadcast %222 : vector<2x8x1xf32> to vector<2x8x4xf32>
    %224 = arith.mulf %219, %223 : vector<2x8x4xf32>
    %225 = arith.truncf %224 : vector<2x8x4xf32> to vector<2x8x4xbf16>
    "tpu.trace_start"() <{level = 10 : i32, message = "bqk,bkd->bqd"}> : () -> ()
    %cst_76 = arith.constant dense<0.000000e+00> : vector<2x8x32xf32>
    %226 = tpu.matmul %225, %213, %cst_76 {dimension_numbers = #tpu.dot_dimension_numbers<[2], [1], [1], [2], [0, 0, 0, 1, 1, 2], [0], [0]>} : vector<2x8x4xbf16>, vector<2x4x32xbf16>, vector<2x8x32xf32> -> vector<2x8x32xf32>
    "tpu.trace_stop"() : () -> ()
    %227 = vector.shape_cast %226 : vector<2x8x32xf32> to vector<16x32xf32>
    %228 = vector.extract_strided_slice %176 {offsets = [0, 64], sizes = [16, 32], strides = [1, 1]} : vector<16x128xf32> to vector<16x32xf32>
    %229 = vector.shape_cast %228 : vector<16x32xf32> to vector<2x8x32xf32>
    %230 = arith.truncf %229 : vector<2x8x32xf32> to vector<2x8x32xbf16>
    %231 = vector.extract_strided_slice %180 {offsets = [0, 64], sizes = [8, 32], strides = [1, 1]} : vector<8x128xf32> to vector<8x32xf32>
    %232 = vector.shape_cast %231 : vector<8x32xf32> to vector<2x4x32xf32>
    %233 = arith.truncf %232 : vector<2x4x32xf32> to vector<2x4x32xbf16>
    %234 = vector.extract_strided_slice %181 {offsets = [0, 64], sizes = [8, 32], strides = [1, 1]} : vector<8x128xf32> to vector<8x32xf32>
    %235 = vector.shape_cast %234 : vector<8x32xf32> to vector<2x4x32xf32>
    %236 = arith.truncf %235 : vector<2x4x32xf32> to vector<2x4x32xbf16>
    "tpu.trace_start"() <{level = 10 : i32, message = "bqd,bkd->bqk"}> : () -> ()
    %cst_77 = arith.constant dense<0.000000e+00> : vector<2x8x4xf32>
    %237 = tpu.matmul %230, %233, %cst_77 {dimension_numbers = #tpu.dot_dimension_numbers<[2], [2], [1], [1], [0, 0, 0, 1, 1, 1], [0], [0]>} : vector<2x8x32xbf16>, vector<2x4x32xbf16>, vector<2x8x4xf32> -> vector<2x8x4xf32>
    "tpu.trace_stop"() : () -> ()
    %cst_78 = arith.constant dense<0xFF800000> : vector<2x8xf32>
    %238 = vector.multi_reduction <maximumf>, %237, %cst_78 [2] : vector<2x8x4xf32> to vector<2x8xf32>
    %239 = vector.shape_cast %238 : vector<2x8xf32> to vector<2x8x1xf32>
    %240 = vector.broadcast %239 : vector<2x8x1xf32> to vector<2x8x4xf32>
    %241 = arith.subf %237, %240 : vector<2x8x4xf32>
    %242 = math.exp %241 : vector<2x8x4xf32>
    %cst_79 = arith.constant dense<0.000000e+00> : vector<2x8xf32>
    %243 = vector.multi_reduction <add>, %242, %cst_79 [2] : vector<2x8x4xf32> to vector<2x8xf32>
    %244 = vector.shape_cast %243 : vector<2x8xf32> to vector<2x8x1xf32>
    %245 = tpu.reciprocal %244 {approx = true} : vector<2x8x1xf32> -> vector<2x8x1xf32>
    %246 = vector.broadcast %245 : vector<2x8x1xf32> to vector<2x8x4xf32>
    %247 = arith.mulf %242, %246 : vector<2x8x4xf32>
    %248 = arith.truncf %247 : vector<2x8x4xf32> to vector<2x8x4xbf16>
    "tpu.trace_start"() <{level = 10 : i32, message = "bqk,bkd->bqd"}> : () -> ()
    %cst_80 = arith.constant dense<0.000000e+00> : vector<2x8x32xf32>
    %249 = tpu.matmul %248, %236, %cst_80 {dimension_numbers = #tpu.dot_dimension_numbers<[2], [1], [1], [2], [0, 0, 0, 1, 1, 2], [0], [0]>} : vector<2x8x4xbf16>, vector<2x4x32xbf16>, vector<2x8x32xf32> -> vector<2x8x32xf32>
    "tpu.trace_stop"() : () -> ()
    %250 = vector.shape_cast %249 : vector<2x8x32xf32> to vector<16x32xf32>
    %251 = vector.extract_strided_slice %176 {offsets = [0, 96], sizes = [16, 32], strides = [1, 1]} : vector<16x128xf32> to vector<16x32xf32>
    %252 = vector.shape_cast %251 : vector<16x32xf32> to vector<2x8x32xf32>
    %253 = arith.truncf %252 : vector<2x8x32xf32> to vector<2x8x32xbf16>
    %254 = vector.extract_strided_slice %180 {offsets = [0, 96], sizes = [8, 32], strides = [1, 1]} : vector<8x128xf32> to vector<8x32xf32>
    %255 = vector.shape_cast %254 : vector<8x32xf32> to vector<2x4x32xf32>
    %256 = arith.truncf %255 : vector<2x4x32xf32> to vector<2x4x32xbf16>
    %257 = vector.extract_strided_slice %181 {offsets = [0, 96], sizes = [8, 32], strides = [1, 1]} : vector<8x128xf32> to vector<8x32xf32>
    %258 = vector.shape_cast %257 : vector<8x32xf32> to vector<2x4x32xf32>
    %259 = arith.truncf %258 : vector<2x4x32xf32> to vector<2x4x32xbf16>
    "tpu.trace_start"() <{level = 10 : i32, message = "bqd,bkd->bqk"}> : () -> ()
    %cst_81 = arith.constant dense<0.000000e+00> : vector<2x8x4xf32>
    %260 = tpu.matmul %253, %256, %cst_81 {dimension_numbers = #tpu.dot_dimension_numbers<[2], [2], [1], [1], [0, 0, 0, 1, 1, 1], [0], [0]>} : vector<2x8x32xbf16>, vector<2x4x32xbf16>, vector<2x8x4xf32> -> vector<2x8x4xf32>
    "tpu.trace_stop"() : () -> ()
    %cst_82 = arith.constant dense<0xFF800000> : vector<2x8xf32>
    %261 = vector.multi_reduction <maximumf>, %260, %cst_82 [2] : vector<2x8x4xf32> to vector<2x8xf32>
    %262 = vector.shape_cast %261 : vector<2x8xf32> to vector<2x8x1xf32>
    %263 = vector.broadcast %262 : vector<2x8x1xf32> to vector<2x8x4xf32>
    %264 = arith.subf %260, %263 : vector<2x8x4xf32>
    %265 = math.exp %264 : vector<2x8x4xf32>
    %cst_83 = arith.constant dense<0.000000e+00> : vector<2x8xf32>
    %266 = vector.multi_reduction <add>, %265, %cst_83 [2] : vector<2x8x4xf32> to vector<2x8xf32>
    %267 = vector.shape_cast %266 : vector<2x8xf32> to vector<2x8x1xf32>
    %268 = tpu.reciprocal %267 {approx = true} : vector<2x8x1xf32> -> vector<2x8x1xf32>
    %269 = vector.broadcast %268 : vector<2x8x1xf32> to vector<2x8x4xf32>
    %270 = arith.mulf %265, %269 : vector<2x8x4xf32>
    %271 = arith.truncf %270 : vector<2x8x4xf32> to vector<2x8x4xbf16>
    "tpu.trace_start"() <{level = 10 : i32, message = "bqk,bkd->bqd"}> : () -> ()
    %cst_84 = arith.constant dense<0.000000e+00> : vector<2x8x32xf32>
    %272 = tpu.matmul %271, %259, %cst_84 {dimension_numbers = #tpu.dot_dimension_numbers<[2], [1], [1], [2], [0, 0, 0, 1, 1, 2], [0], [0]>} : vector<2x8x4xbf16>, vector<2x4x32xbf16>, vector<2x8x32xf32> -> vector<2x8x32xf32>
    "tpu.trace_stop"() : () -> ()
    %273 = vector.shape_cast %272 : vector<2x8x32xf32> to vector<16x32xf32>
    %274 = tpu.concatenate %204, %227, %250, %273 in 1 : vector<16x32xf32>, vector<16x32xf32>, vector<16x32xf32>, vector<16x32xf32> -> vector<16x128xf32>
    %275 = arith.truncf %274 : vector<16x128xf32> to vector<16x128xbf16>
    %cst_85 = arith.constant dense<0.000000e+00> : vector<16x128xf32>
    %276 = tpu.matmul %275, %170, %cst_85 {dimension_numbers = #tpu.dot_dimension_numbers<[1], [0], [0], [1], [0, 0, 1, 1], [], []>} : vector<16x128xbf16>, vector<128x128xbf16>, vector<16x128xf32> -> vector<16x128xf32>
    %277 = vector.broadcast %172 : vector<1x128xf32> to vector<16x128xf32>
    %278 = arith.addf %276, %277 : vector<16x128xf32>
    %279 = arith.addf %160, %278 : vector<16x128xf32>
    %c0_86 = arith.constant 0 : index
    %c0_87 = arith.constant 0 : index
    %c0_88 = arith.constant 0 : index
    %280 = vector.load %arg14[%c0_86, %c0_87, %c0_88] : memref<2x1x128xf32, #tpu.memory_space<vmem>>, vector<1x1x128xf32>
    %281 = vector.shape_cast %280 : vector<1x1x128xf32> to vector<1x128xf32>
    %c0_89 = arith.constant 0 : index
    %c0_90 = arith.constant 0 : index
    %c0_91 = arith.constant 0 : index
    %282 = vector.load %arg15[%c0_89, %c0_90, %c0_91] : memref<2x1x128xf32, #tpu.memory_space<vmem>>, vector<1x1x128xf32>
    %283 = vector.shape_cast %282 : vector<1x1x128xf32> to vector<1x128xf32>
    %cst_92 = arith.constant dense<0.000000e+00> : vector<16xf32>
    %284 = vector.multi_reduction <add>, %279, %cst_92 [1] : vector<16x128xf32> to vector<16xf32>
    %285 = vector.shape_cast %284 : vector<16xf32> to vector<16x1xf32>
    %cst_93 = arith.constant 1.280000e+02 : f32
    %286 = vector.broadcast %cst_93 : f32 to vector<16x1xf32>
    %287 = arith.divf %285, %286 : vector<16x1xf32>
    %288 = vector.broadcast %287 : vector<16x1xf32> to vector<16x128xf32>
    %289 = arith.subf %279, %288 : vector<16x128xf32>
    %290 = arith.mulf %289, %289 : vector<16x128xf32>
    %cst_94 = arith.constant dense<0.000000e+00> : vector<16xf32>
    %291 = vector.multi_reduction <add>, %290, %cst_94 [1] : vector<16x128xf32> to vector<16xf32>
    %292 = vector.shape_cast %291 : vector<16xf32> to vector<16x1xf32>
    %cst_95 = arith.constant 1.280000e+02 : f32
    %293 = vector.broadcast %cst_95 : f32 to vector<16x1xf32>
    %294 = arith.divf %292, %293 : vector<16x1xf32>
    %cst_96 = arith.constant 9.99999974E-6 : f32
    %295 = vector.broadcast %cst_96 : f32 to vector<16x1xf32>
    %296 = arith.addf %294, %295 : vector<16x1xf32>
    %297 = math.rsqrt %296 : vector<16x1xf32>
    %298 = vector.broadcast %297 : vector<16x1xf32> to vector<16x128xf32>
    %299 = arith.mulf %289, %298 : vector<16x128xf32>
    %300 = vector.broadcast %281 : vector<1x128xf32> to vector<16x128xf32>
    %301 = arith.mulf %299, %300 : vector<16x128xf32>
    %302 = vector.broadcast %283 : vector<1x128xf32> to vector<16x128xf32>
    %303 = arith.addf %301, %302 : vector<16x128xf32>
    %c0_97 = arith.constant 0 : index
    %c0_98 = arith.constant 0 : index
    %c0_99 = arith.constant 0 : index
    %304 = vector.load %arg16[%c0_97, %c0_98, %c0_99] : memref<2x128x256xbf16, #tpu.memory_space<vmem>>, vector<1x128x256xbf16>
    %305 = vector.shape_cast %304 : vector<1x128x256xbf16> to vector<128x256xbf16>
    %c0_100 = arith.constant 0 : index
    %c0_101 = arith.constant 0 : index
    %c0_102 = arith.constant 0 : index
    %306 = vector.load %arg17[%c0_100, %c0_101, %c0_102] : memref<2x1x256xf32, #tpu.memory_space<vmem>>, vector<1x1x256xf32>
    %307 = vector.shape_cast %306 : vector<1x1x256xf32> to vector<1x256xf32>
    %c0_103 = arith.constant 0 : index
    %c0_104 = arith.constant 0 : index
    %c0_105 = arith.constant 0 : index
    %308 = vector.load %arg18[%c0_103, %c0_104, %c0_105] : memref<2x256x128xbf16, #tpu.memory_space<vmem>>, vector<1x256x128xbf16>
    %309 = vector.shape_cast %308 : vector<1x256x128xbf16> to vector<256x128xbf16>
    %c0_106 = arith.constant 0 : index
    %c0_107 = arith.constant 0 : index
    %c0_108 = arith.constant 0 : index
    %310 = vector.load %arg19[%c0_106, %c0_107, %c0_108] : memref<2x1x128xf32, #tpu.memory_space<vmem>>, vector<1x1x128xf32>
    %311 = vector.shape_cast %310 : vector<1x1x128xf32> to vector<1x128xf32>
    %312 = arith.truncf %303 : vector<16x128xf32> to vector<16x128xbf16>
    %cst_109 = arith.constant dense<0.000000e+00> : vector<16x256xf32>
    %313 = tpu.matmul %312, %305, %cst_109 {dimension_numbers = #tpu.dot_dimension_numbers<[1], [0], [0], [1], [0, 0, 1, 1], [], []>} : vector<16x128xbf16>, vector<128x256xbf16>, vector<16x256xf32> -> vector<16x256xf32>
    %314 = vector.broadcast %307 : vector<1x256xf32> to vector<16x256xf32>
    %315 = arith.addf %313, %314 : vector<16x256xf32>
    %cst_110 = arith.constant 0.000000e+00 : f32
    %316 = vector.broadcast %cst_110 : f32 to vector<16x256xf32>
    %317 = arith.maximumf %315, %316 : vector<16x256xf32>
    %318 = arith.truncf %317 : vector<16x256xf32> to vector<16x256xbf16>
    %cst_111 = arith.constant dense<0.000000e+00> : vector<16x128xf32>
    %319 = tpu.matmul %318, %309, %cst_111 {dimension_numbers = #tpu.dot_dimension_numbers<[1], [0], [0], [1], [0, 0, 1, 1], [], []>} : vector<16x256xbf16>, vector<256x128xbf16>, vector<16x128xf32> -> vector<16x128xf32>
    %320 = vector.broadcast %311 : vector<1x128xf32> to vector<16x128xf32>
    %321 = arith.addf %319, %320 : vector<16x128xf32>
    %322 = arith.addf %303, %321 : vector<16x128xf32>
    %c0_112 = arith.constant 0 : index
    %c0_113 = arith.constant 0 : index
    %c0_114 = arith.constant 0 : index
    %323 = vector.load %arg20[%c0_112, %c0_113, %c0_114] : memref<2x1x128xf32, #tpu.memory_space<vmem>>, vector<1x1x128xf32>
    %324 = vector.shape_cast %323 : vector<1x1x128xf32> to vector<1x128xf32>
    %c0_115 = arith.constant 0 : index
    %c0_116 = arith.constant 0 : index
    %c0_117 = arith.constant 0 : index
    %325 = vector.load %arg21[%c0_115, %c0_116, %c0_117] : memref<2x1x128xf32, #tpu.memory_space<vmem>>, vector<1x1x128xf32>
    %326 = vector.shape_cast %325 : vector<1x1x128xf32> to vector<1x128xf32>
    %cst_118 = arith.constant dense<0.000000e+00> : vector<16xf32>
    %327 = vector.multi_reduction <add>, %322, %cst_118 [1] : vector<16x128xf32> to vector<16xf32>
    %328 = vector.shape_cast %327 : vector<16xf32> to vector<16x1xf32>
    %cst_119 = arith.constant 1.280000e+02 : f32
    %329 = vector.broadcast %cst_119 : f32 to vector<16x1xf32>
    %330 = arith.divf %328, %329 : vector<16x1xf32>
    %331 = vector.broadcast %330 : vector<16x1xf32> to vector<16x128xf32>
    %332 = arith.subf %322, %331 : vector<16x128xf32>
    %333 = arith.mulf %332, %332 : vector<16x128xf32>
    %cst_120 = arith.constant dense<0.000000e+00> : vector<16xf32>
    %334 = vector.multi_reduction <add>, %333, %cst_120 [1] : vector<16x128xf32> to vector<16xf32>
    %335 = vector.shape_cast %334 : vector<16xf32> to vector<16x1xf32>
    %cst_121 = arith.constant 1.280000e+02 : f32
    %336 = vector.broadcast %cst_121 : f32 to vector<16x1xf32>
    %337 = arith.divf %335, %336 : vector<16x1xf32>
    %cst_122 = arith.constant 9.99999974E-6 : f32
    %338 = vector.broadcast %cst_122 : f32 to vector<16x1xf32>
    %339 = arith.addf %337, %338 : vector<16x1xf32>
    %340 = math.rsqrt %339 : vector<16x1xf32>
    %341 = vector.broadcast %340 : vector<16x1xf32> to vector<16x128xf32>
    %342 = arith.mulf %332, %341 : vector<16x128xf32>
    %343 = vector.broadcast %324 : vector<1x128xf32> to vector<16x128xf32>
    %344 = arith.mulf %342, %343 : vector<16x128xf32>
    %345 = vector.broadcast %326 : vector<1x128xf32> to vector<16x128xf32>
    %346 = arith.addf %344, %345 : vector<16x128xf32>
    %c1 = arith.constant 1 : index
    %c0_123 = arith.constant 0 : index
    %c0_124 = arith.constant 0 : index
    %347 = vector.load %arg2[%c1, %c0_123, %c0_124] : memref<2x128x384xbf16, #tpu.memory_space<vmem>>, vector<1x128x384xbf16>
    %348 = vector.shape_cast %347 : vector<1x128x384xbf16> to vector<128x384xbf16>
    %c1_125 = arith.constant 1 : index
    %c0_126 = arith.constant 0 : index
    %c0_127 = arith.constant 0 : index
    %349 = vector.load %arg3[%c1_125, %c0_126, %c0_127] : memref<2x1x384xf32, #tpu.memory_space<vmem>>, vector<1x1x384xf32>
    %350 = vector.shape_cast %349 : vector<1x1x384xf32> to vector<1x384xf32>
    %c1_128 = arith.constant 1 : index
    %c0_129 = arith.constant 0 : index
    %c0_130 = arith.constant 0 : index
    %351 = vector.load %arg4[%c1_128, %c0_129, %c0_130] : memref<2x128x128xbf16, #tpu.memory_space<vmem>>, vector<1x128x128xbf16>
    %352 = vector.shape_cast %351 : vector<1x128x128xbf16> to vector<128x128xbf16>
    %c1_131 = arith.constant 1 : index
    %c0_132 = arith.constant 0 : index
    %c0_133 = arith.constant 0 : index
    %353 = vector.load %arg5[%c1_131, %c0_132, %c0_133] : memref<2x1x128xf32, #tpu.memory_space<vmem>>, vector<1x1x128xf32>
    %354 = vector.shape_cast %353 : vector<1x1x128xf32> to vector<1x128xf32>
    %355 = arith.truncf %346 : vector<16x128xf32> to vector<16x128xbf16>
    %cst_134 = arith.constant dense<0.000000e+00> : vector<16x384xf32>
    %356 = tpu.matmul %355, %348, %cst_134 {dimension_numbers = #tpu.dot_dimension_numbers<[1], [0], [0], [1], [0, 0, 1, 1], [], []>} : vector<16x128xbf16>, vector<128x384xbf16>, vector<16x384xf32> -> vector<16x384xf32>
    %357 = vector.broadcast %350 : vector<1x384xf32> to vector<16x384xf32>
    %358 = arith.addf %356, %357 : vector<16x384xf32>
    %359 = vector.extract_strided_slice %358 {offsets = [0, 0], sizes = [16, 128], strides = [1, 1]} : vector<16x384xf32> to vector<16x128xf32>
    %360 = vector.extract_strided_slice %358 {offsets = [0, 128], sizes = [16, 128], strides = [1, 1]} : vector<16x384xf32> to vector<16x128xf32>
    %361 = vector.extract_strided_slice %358 {offsets = [0, 256], sizes = [16, 128], strides = [1, 1]} : vector<16x384xf32> to vector<16x128xf32>
    %362 = tpu.iota {dimensions = array<i32: 0>} : vector<8x8xi32>
    %363 = tpu.iota {dimensions = array<i32: 1>} : vector<8x8xi32>
    %364 = arith.cmpi sle, %363, %362 : vector<8x8xi32>
    %365 = vector.shape_cast %364 : vector<8x8xi1> to vector<1x8x8xi1>
    %366 = vector.extract_strided_slice %359 {offsets = [0, 0], sizes = [16, 32], strides = [1, 1]} : vector<16x128xf32> to vector<16x32xf32>
    %367 = vector.shape_cast %366 : vector<16x32xf32> to vector<2x8x32xf32>
    %368 = arith.truncf %367 : vector<2x8x32xf32> to vector<2x8x32xbf16>
    %369 = vector.extract_strided_slice %360 {offsets = [0, 0], sizes = [16, 32], strides = [1, 1]} : vector<16x128xf32> to vector<16x32xf32>
    %370 = vector.shape_cast %369 : vector<16x32xf32> to vector<2x8x32xf32>
    %371 = arith.truncf %370 : vector<2x8x32xf32> to vector<2x8x32xbf16>
    %372 = vector.extract_strided_slice %361 {offsets = [0, 0], sizes = [16, 32], strides = [1, 1]} : vector<16x128xf32> to vector<16x32xf32>
    %373 = vector.shape_cast %372 : vector<16x32xf32> to vector<2x8x32xf32>
    %374 = arith.truncf %373 : vector<2x8x32xf32> to vector<2x8x32xbf16>
    "tpu.trace_start"() <{level = 10 : i32, message = "bqd,bkd->bqk"}> : () -> ()
    %cst_135 = arith.constant dense<0.000000e+00> : vector<2x8x8xf32>
    %375 = tpu.matmul %368, %371, %cst_135 {dimension_numbers = #tpu.dot_dimension_numbers<[2], [2], [1], [1], [0, 0, 0, 1, 1, 1], [0], [0]>} : vector<2x8x32xbf16>, vector<2x8x32xbf16>, vector<2x8x8xf32> -> vector<2x8x8xf32>
    %cst_136 = arith.constant -1.000000e+30 : f32
    "tpu.trace_stop"() : () -> ()
    %376 = vector.shape_cast %365 : vector<1x8x8xi1> to vector<1x8x8xi1>
    %377 = vector.broadcast %376 : vector<1x8x8xi1> to vector<2x8x8xi1>
    %378 = vector.broadcast %cst_136 : f32 to vector<2x8x8xf32>
    %379 = arith.select %377, %375, %378 : vector<2x8x8xi1>, vector<2x8x8xf32>
    %cst_137 = arith.constant dense<0xFF800000> : vector<2x8xf32>
    %380 = vector.multi_reduction <maximumf>, %379, %cst_137 [2] : vector<2x8x8xf32> to vector<2x8xf32>
    %381 = vector.shape_cast %380 : vector<2x8xf32> to vector<2x8x1xf32>
    %382 = vector.broadcast %381 : vector<2x8x1xf32> to vector<2x8x8xf32>
    %383 = arith.subf %379, %382 : vector<2x8x8xf32>
    %384 = math.exp %383 : vector<2x8x8xf32>
    %cst_138 = arith.constant dense<0.000000e+00> : vector<2x8xf32>
    %385 = vector.multi_reduction <add>, %384, %cst_138 [2] : vector<2x8x8xf32> to vector<2x8xf32>
    %386 = vector.shape_cast %385 : vector<2x8xf32> to vector<2x8x1xf32>
    %387 = tpu.reciprocal %386 {approx = true} : vector<2x8x1xf32> -> vector<2x8x1xf32>
    %388 = vector.broadcast %387 : vector<2x8x1xf32> to vector<2x8x8xf32>
    %389 = arith.mulf %384, %388 : vector<2x8x8xf32>
    %390 = arith.truncf %389 : vector<2x8x8xf32> to vector<2x8x8xbf16>
    "tpu.trace_start"() <{level = 10 : i32, message = "bqk,bkd->bqd"}> : () -> ()
    %cst_139 = arith.constant dense<0.000000e+00> : vector<2x8x32xf32>
    %391 = tpu.matmul %390, %374, %cst_139 {dimension_numbers = #tpu.dot_dimension_numbers<[2], [1], [1], [2], [0, 0, 0, 1, 1, 2], [0], [0]>} : vector<2x8x8xbf16>, vector<2x8x32xbf16>, vector<2x8x32xf32> -> vector<2x8x32xf32>
    "tpu.trace_stop"() : () -> ()
    %392 = vector.shape_cast %391 : vector<2x8x32xf32> to vector<16x32xf32>
    %393 = vector.extract_strided_slice %359 {offsets = [0, 32], sizes = [16, 32], strides = [1, 1]} : vector<16x128xf32> to vector<16x32xf32>
    %394 = vector.shape_cast %393 : vector<16x32xf32> to vector<2x8x32xf32>
    %395 = arith.truncf %394 : vector<2x8x32xf32> to vector<2x8x32xbf16>
    %396 = vector.extract_strided_slice %360 {offsets = [0, 32], sizes = [16, 32], strides = [1, 1]} : vector<16x128xf32> to vector<16x32xf32>
    %397 = vector.shape_cast %396 : vector<16x32xf32> to vector<2x8x32xf32>
    %398 = arith.truncf %397 : vector<2x8x32xf32> to vector<2x8x32xbf16>
    %399 = vector.extract_strided_slice %361 {offsets = [0, 32], sizes = [16, 32], strides = [1, 1]} : vector<16x128xf32> to vector<16x32xf32>
    %400 = vector.shape_cast %399 : vector<16x32xf32> to vector<2x8x32xf32>
    %401 = arith.truncf %400 : vector<2x8x32xf32> to vector<2x8x32xbf16>
    "tpu.trace_start"() <{level = 10 : i32, message = "bqd,bkd->bqk"}> : () -> ()
    %cst_140 = arith.constant dense<0.000000e+00> : vector<2x8x8xf32>
    %402 = tpu.matmul %395, %398, %cst_140 {dimension_numbers = #tpu.dot_dimension_numbers<[2], [2], [1], [1], [0, 0, 0, 1, 1, 1], [0], [0]>} : vector<2x8x32xbf16>, vector<2x8x32xbf16>, vector<2x8x8xf32> -> vector<2x8x8xf32>
    %cst_141 = arith.constant -1.000000e+30 : f32
    "tpu.trace_stop"() : () -> ()
    %403 = vector.shape_cast %365 : vector<1x8x8xi1> to vector<1x8x8xi1>
    %404 = vector.broadcast %403 : vector<1x8x8xi1> to vector<2x8x8xi1>
    %405 = vector.broadcast %cst_141 : f32 to vector<2x8x8xf32>
    %406 = arith.select %404, %402, %405 : vector<2x8x8xi1>, vector<2x8x8xf32>
    %cst_142 = arith.constant dense<0xFF800000> : vector<2x8xf32>
    %407 = vector.multi_reduction <maximumf>, %406, %cst_142 [2] : vector<2x8x8xf32> to vector<2x8xf32>
    %408 = vector.shape_cast %407 : vector<2x8xf32> to vector<2x8x1xf32>
    %409 = vector.broadcast %408 : vector<2x8x1xf32> to vector<2x8x8xf32>
    %410 = arith.subf %406, %409 : vector<2x8x8xf32>
    %411 = math.exp %410 : vector<2x8x8xf32>
    %cst_143 = arith.constant dense<0.000000e+00> : vector<2x8xf32>
    %412 = vector.multi_reduction <add>, %411, %cst_143 [2] : vector<2x8x8xf32> to vector<2x8xf32>
    %413 = vector.shape_cast %412 : vector<2x8xf32> to vector<2x8x1xf32>
    %414 = tpu.reciprocal %413 {approx = true} : vector<2x8x1xf32> -> vector<2x8x1xf32>
    %415 = vector.broadcast %414 : vector<2x8x1xf32> to vector<2x8x8xf32>
    %416 = arith.mulf %411, %415 : vector<2x8x8xf32>
    %417 = arith.truncf %416 : vector<2x8x8xf32> to vector<2x8x8xbf16>
    "tpu.trace_start"() <{level = 10 : i32, message = "bqk,bkd->bqd"}> : () -> ()
    %cst_144 = arith.constant dense<0.000000e+00> : vector<2x8x32xf32>
    %418 = tpu.matmul %417, %401, %cst_144 {dimension_numbers = #tpu.dot_dimension_numbers<[2], [1], [1], [2], [0, 0, 0, 1, 1, 2], [0], [0]>} : vector<2x8x8xbf16>, vector<2x8x32xbf16>, vector<2x8x32xf32> -> vector<2x8x32xf32>
    "tpu.trace_stop"() : () -> ()
    %419 = vector.shape_cast %418 : vector<2x8x32xf32> to vector<16x32xf32>
    %420 = vector.extract_strided_slice %359 {offsets = [0, 64], sizes = [16, 32], strides = [1, 1]} : vector<16x128xf32> to vector<16x32xf32>
    %421 = vector.shape_cast %420 : vector<16x32xf32> to vector<2x8x32xf32>
    %422 = arith.truncf %421 : vector<2x8x32xf32> to vector<2x8x32xbf16>
    %423 = vector.extract_strided_slice %360 {offsets = [0, 64], sizes = [16, 32], strides = [1, 1]} : vector<16x128xf32> to vector<16x32xf32>
    %424 = vector.shape_cast %423 : vector<16x32xf32> to vector<2x8x32xf32>
    %425 = arith.truncf %424 : vector<2x8x32xf32> to vector<2x8x32xbf16>
    %426 = vector.extract_strided_slice %361 {offsets = [0, 64], sizes = [16, 32], strides = [1, 1]} : vector<16x128xf32> to vector<16x32xf32>
    %427 = vector.shape_cast %426 : vector<16x32xf32> to vector<2x8x32xf32>
    %428 = arith.truncf %427 : vector<2x8x32xf32> to vector<2x8x32xbf16>
    "tpu.trace_start"() <{level = 10 : i32, message = "bqd,bkd->bqk"}> : () -> ()
    %cst_145 = arith.constant dense<0.000000e+00> : vector<2x8x8xf32>
    %429 = tpu.matmul %422, %425, %cst_145 {dimension_numbers = #tpu.dot_dimension_numbers<[2], [2], [1], [1], [0, 0, 0, 1, 1, 1], [0], [0]>} : vector<2x8x32xbf16>, vector<2x8x32xbf16>, vector<2x8x8xf32> -> vector<2x8x8xf32>
    %cst_146 = arith.constant -1.000000e+30 : f32
    "tpu.trace_stop"() : () -> ()
    %430 = vector.shape_cast %365 : vector<1x8x8xi1> to vector<1x8x8xi1>
    %431 = vector.broadcast %430 : vector<1x8x8xi1> to vector<2x8x8xi1>
    %432 = vector.broadcast %cst_146 : f32 to vector<2x8x8xf32>
    %433 = arith.select %431, %429, %432 : vector<2x8x8xi1>, vector<2x8x8xf32>
    %cst_147 = arith.constant dense<0xFF800000> : vector<2x8xf32>
    %434 = vector.multi_reduction <maximumf>, %433, %cst_147 [2] : vector<2x8x8xf32> to vector<2x8xf32>
    %435 = vector.shape_cast %434 : vector<2x8xf32> to vector<2x8x1xf32>
    %436 = vector.broadcast %435 : vector<2x8x1xf32> to vector<2x8x8xf32>
    %437 = arith.subf %433, %436 : vector<2x8x8xf32>
    %438 = math.exp %437 : vector<2x8x8xf32>
    %cst_148 = arith.constant dense<0.000000e+00> : vector<2x8xf32>
    %439 = vector.multi_reduction <add>, %438, %cst_148 [2] : vector<2x8x8xf32> to vector<2x8xf32>
    %440 = vector.shape_cast %439 : vector<2x8xf32> to vector<2x8x1xf32>
    %441 = tpu.reciprocal %440 {approx = true} : vector<2x8x1xf32> -> vector<2x8x1xf32>
    %442 = vector.broadcast %441 : vector<2x8x1xf32> to vector<2x8x8xf32>
    %443 = arith.mulf %438, %442 : vector<2x8x8xf32>
    %444 = arith.truncf %443 : vector<2x8x8xf32> to vector<2x8x8xbf16>
    "tpu.trace_start"() <{level = 10 : i32, message = "bqk,bkd->bqd"}> : () -> ()
    %cst_149 = arith.constant dense<0.000000e+00> : vector<2x8x32xf32>
    %445 = tpu.matmul %444, %428, %cst_149 {dimension_numbers = #tpu.dot_dimension_numbers<[2], [1], [1], [2], [0, 0, 0, 1, 1, 2], [0], [0]>} : vector<2x8x8xbf16>, vector<2x8x32xbf16>, vector<2x8x32xf32> -> vector<2x8x32xf32>
    "tpu.trace_stop"() : () -> ()
    %446 = vector.shape_cast %445 : vector<2x8x32xf32> to vector<16x32xf32>
    %447 = vector.extract_strided_slice %359 {offsets = [0, 96], sizes = [16, 32], strides = [1, 1]} : vector<16x128xf32> to vector<16x32xf32>
    %448 = vector.shape_cast %447 : vector<16x32xf32> to vector<2x8x32xf32>
    %449 = arith.truncf %448 : vector<2x8x32xf32> to vector<2x8x32xbf16>
    %450 = vector.extract_strided_slice %360 {offsets = [0, 96], sizes = [16, 32], strides = [1, 1]} : vector<16x128xf32> to vector<16x32xf32>
    %451 = vector.shape_cast %450 : vector<16x32xf32> to vector<2x8x32xf32>
    %452 = arith.truncf %451 : vector<2x8x32xf32> to vector<2x8x32xbf16>
    %453 = vector.extract_strided_slice %361 {offsets = [0, 96], sizes = [16, 32], strides = [1, 1]} : vector<16x128xf32> to vector<16x32xf32>
    %454 = vector.shape_cast %453 : vector<16x32xf32> to vector<2x8x32xf32>
    %455 = arith.truncf %454 : vector<2x8x32xf32> to vector<2x8x32xbf16>
    "tpu.trace_start"() <{level = 10 : i32, message = "bqd,bkd->bqk"}> : () -> ()
    %cst_150 = arith.constant dense<0.000000e+00> : vector<2x8x8xf32>
    %456 = tpu.matmul %449, %452, %cst_150 {dimension_numbers = #tpu.dot_dimension_numbers<[2], [2], [1], [1], [0, 0, 0, 1, 1, 1], [0], [0]>} : vector<2x8x32xbf16>, vector<2x8x32xbf16>, vector<2x8x8xf32> -> vector<2x8x8xf32>
    %cst_151 = arith.constant -1.000000e+30 : f32
    "tpu.trace_stop"() : () -> ()
    %457 = vector.shape_cast %365 : vector<1x8x8xi1> to vector<1x8x8xi1>
    %458 = vector.broadcast %457 : vector<1x8x8xi1> to vector<2x8x8xi1>
    %459 = vector.broadcast %cst_151 : f32 to vector<2x8x8xf32>
    %460 = arith.select %458, %456, %459 : vector<2x8x8xi1>, vector<2x8x8xf32>
    %cst_152 = arith.constant dense<0xFF800000> : vector<2x8xf32>
    %461 = vector.multi_reduction <maximumf>, %460, %cst_152 [2] : vector<2x8x8xf32> to vector<2x8xf32>
    %462 = vector.shape_cast %461 : vector<2x8xf32> to vector<2x8x1xf32>
    %463 = vector.broadcast %462 : vector<2x8x1xf32> to vector<2x8x8xf32>
    %464 = arith.subf %460, %463 : vector<2x8x8xf32>
    %465 = math.exp %464 : vector<2x8x8xf32>
    %cst_153 = arith.constant dense<0.000000e+00> : vector<2x8xf32>
    %466 = vector.multi_reduction <add>, %465, %cst_153 [2] : vector<2x8x8xf32> to vector<2x8xf32>
    %467 = vector.shape_cast %466 : vector<2x8xf32> to vector<2x8x1xf32>
    %468 = tpu.reciprocal %467 {approx = true} : vector<2x8x1xf32> -> vector<2x8x1xf32>
    %469 = vector.broadcast %468 : vector<2x8x1xf32> to vector<2x8x8xf32>
    %470 = arith.mulf %465, %469 : vector<2x8x8xf32>
    %471 = arith.truncf %470 : vector<2x8x8xf32> to vector<2x8x8xbf16>
    "tpu.trace_start"() <{level = 10 : i32, message = "bqk,bkd->bqd"}> : () -> ()
    %cst_154 = arith.constant dense<0.000000e+00> : vector<2x8x32xf32>
    %472 = tpu.matmul %471, %455, %cst_154 {dimension_numbers = #tpu.dot_dimension_numbers<[2], [1], [1], [2], [0, 0, 0, 1, 1, 2], [0], [0]>} : vector<2x8x8xbf16>, vector<2x8x32xbf16>, vector<2x8x32xf32> -> vector<2x8x32xf32>
    "tpu.trace_stop"() : () -> ()
    %473 = vector.shape_cast %472 : vector<2x8x32xf32> to vector<16x32xf32>
    %474 = tpu.concatenate %392, %419, %446, %473 in 1 : vector<16x32xf32>, vector<16x32xf32>, vector<16x32xf32>, vector<16x32xf32> -> vector<16x128xf32>
    %475 = arith.truncf %474 : vector<16x128xf32> to vector<16x128xbf16>
    %cst_155 = arith.constant dense<0.000000e+00> : vector<16x128xf32>
    %476 = tpu.matmul %475, %352, %cst_155 {dimension_numbers = #tpu.dot_dimension_numbers<[1], [0], [0], [1], [0, 0, 1, 1], [], []>} : vector<16x128xbf16>, vector<128x128xbf16>, vector<16x128xf32> -> vector<16x128xf32>
    %477 = vector.broadcast %354 : vector<1x128xf32> to vector<16x128xf32>
    %478 = arith.addf %476, %477 : vector<16x128xf32>
    %479 = arith.addf %346, %478 : vector<16x128xf32>
    %c1_156 = arith.constant 1 : index
    %c0_157 = arith.constant 0 : index
    %c0_158 = arith.constant 0 : index
    %480 = vector.load %arg6[%c1_156, %c0_157, %c0_158] : memref<2x1x128xf32, #tpu.memory_space<vmem>>, vector<1x1x128xf32>
    %481 = vector.shape_cast %480 : vector<1x1x128xf32> to vector<1x128xf32>
    %c1_159 = arith.constant 1 : index
    %c0_160 = arith.constant 0 : index
    %c0_161 = arith.constant 0 : index
    %482 = vector.load %arg7[%c1_159, %c0_160, %c0_161] : memref<2x1x128xf32, #tpu.memory_space<vmem>>, vector<1x1x128xf32>
    %483 = vector.shape_cast %482 : vector<1x1x128xf32> to vector<1x128xf32>
    %cst_162 = arith.constant dense<0.000000e+00> : vector<16xf32>
    %484 = vector.multi_reduction <add>, %479, %cst_162 [1] : vector<16x128xf32> to vector<16xf32>
    %485 = vector.shape_cast %484 : vector<16xf32> to vector<16x1xf32>
    %cst_163 = arith.constant 1.280000e+02 : f32
    %486 = vector.broadcast %cst_163 : f32 to vector<16x1xf32>
    %487 = arith.divf %485, %486 : vector<16x1xf32>
    %488 = vector.broadcast %487 : vector<16x1xf32> to vector<16x128xf32>
    %489 = arith.subf %479, %488 : vector<16x128xf32>
    %490 = arith.mulf %489, %489 : vector<16x128xf32>
    %cst_164 = arith.constant dense<0.000000e+00> : vector<16xf32>
    %491 = vector.multi_reduction <add>, %490, %cst_164 [1] : vector<16x128xf32> to vector<16xf32>
    %492 = vector.shape_cast %491 : vector<16xf32> to vector<16x1xf32>
    %cst_165 = arith.constant 1.280000e+02 : f32
    %493 = vector.broadcast %cst_165 : f32 to vector<16x1xf32>
    %494 = arith.divf %492, %493 : vector<16x1xf32>
    %cst_166 = arith.constant 9.99999974E-6 : f32
    %495 = vector.broadcast %cst_166 : f32 to vector<16x1xf32>
    %496 = arith.addf %494, %495 : vector<16x1xf32>
    %497 = math.rsqrt %496 : vector<16x1xf32>
    %498 = vector.broadcast %497 : vector<16x1xf32> to vector<16x128xf32>
    %499 = arith.mulf %489, %498 : vector<16x128xf32>
    %500 = vector.broadcast %481 : vector<1x128xf32> to vector<16x128xf32>
    %501 = arith.mulf %499, %500 : vector<16x128xf32>
    %502 = vector.broadcast %483 : vector<1x128xf32> to vector<16x128xf32>
    %503 = arith.addf %501, %502 : vector<16x128xf32>
    %c1_167 = arith.constant 1 : index
    %c0_168 = arith.constant 0 : index
    %c0_169 = arith.constant 0 : index
    %504 = vector.load %arg8[%c1_167, %c0_168, %c0_169] : memref<2x128x128xbf16, #tpu.memory_space<vmem>>, vector<1x128x128xbf16>
    %505 = vector.shape_cast %504 : vector<1x128x128xbf16> to vector<128x128xbf16>
    %c1_170 = arith.constant 1 : index
    %c0_171 = arith.constant 0 : index
    %c0_172 = arith.constant 0 : index
    %506 = vector.load %arg9[%c1_170, %c0_171, %c0_172] : memref<2x1x128xf32, #tpu.memory_space<vmem>>, vector<1x1x128xf32>
    %507 = vector.shape_cast %506 : vector<1x1x128xf32> to vector<1x128xf32>
    %c1_173 = arith.constant 1 : index
    %c0_174 = arith.constant 0 : index
    %c0_175 = arith.constant 0 : index
    %508 = vector.load %arg10[%c1_173, %c0_174, %c0_175] : memref<2x128x256xbf16, #tpu.memory_space<vmem>>, vector<1x128x256xbf16>
    %509 = vector.shape_cast %508 : vector<1x128x256xbf16> to vector<128x256xbf16>
    %c1_176 = arith.constant 1 : index
    %c0_177 = arith.constant 0 : index
    %c0_178 = arith.constant 0 : index
    %510 = vector.load %arg11[%c1_176, %c0_177, %c0_178] : memref<2x1x256xf32, #tpu.memory_space<vmem>>, vector<1x1x256xf32>
    %511 = vector.shape_cast %510 : vector<1x1x256xf32> to vector<1x256xf32>
    %c1_179 = arith.constant 1 : index
    %c0_180 = arith.constant 0 : index
    %c0_181 = arith.constant 0 : index
    %512 = vector.load %arg12[%c1_179, %c0_180, %c0_181] : memref<2x128x128xbf16, #tpu.memory_space<vmem>>, vector<1x128x128xbf16>
    %513 = vector.shape_cast %512 : vector<1x128x128xbf16> to vector<128x128xbf16>
    %c1_182 = arith.constant 1 : index
    %c0_183 = arith.constant 0 : index
    %c0_184 = arith.constant 0 : index
    %514 = vector.load %arg13[%c1_182, %c0_183, %c0_184] : memref<2x1x128xf32, #tpu.memory_space<vmem>>, vector<1x1x128xf32>
    %515 = vector.shape_cast %514 : vector<1x1x128xf32> to vector<1x128xf32>
    %516 = arith.truncf %503 : vector<16x128xf32> to vector<16x128xbf16>
    %cst_185 = arith.constant dense<0.000000e+00> : vector<16x128xf32>
    %517 = tpu.matmul %516, %505, %cst_185 {dimension_numbers = #tpu.dot_dimension_numbers<[1], [0], [0], [1], [0, 0, 1, 1], [], []>} : vector<16x128xbf16>, vector<128x128xbf16>, vector<16x128xf32> -> vector<16x128xf32>
    %518 = vector.broadcast %507 : vector<1x128xf32> to vector<16x128xf32>
    %519 = arith.addf %517, %518 : vector<16x128xf32>
    %cst_186 = arith.constant dense<0.000000e+00> : vector<8x256xf32>
    %520 = tpu.matmul %3, %509, %cst_186 {dimension_numbers = #tpu.dot_dimension_numbers<[1], [0], [0], [1], [0, 0, 1, 1], [], []>} : vector<8x128xbf16>, vector<128x256xbf16>, vector<8x256xf32> -> vector<8x256xf32>
    %521 = vector.broadcast %511 : vector<1x256xf32> to vector<8x256xf32>
    %522 = arith.addf %520, %521 : vector<8x256xf32>
    %523 = vector.extract_strided_slice %522 {offsets = [0, 0], sizes = [8, 128], strides = [1, 1]} : vector<8x256xf32> to vector<8x128xf32>
    %524 = vector.extract_strided_slice %522 {offsets = [0, 128], sizes = [8, 128], strides = [1, 1]} : vector<8x256xf32> to vector<8x128xf32>
    %525 = vector.extract_strided_slice %519 {offsets = [0, 0], sizes = [16, 32], strides = [1, 1]} : vector<16x128xf32> to vector<16x32xf32>
    %526 = vector.shape_cast %525 : vector<16x32xf32> to vector<2x8x32xf32>
    %527 = arith.truncf %526 : vector<2x8x32xf32> to vector<2x8x32xbf16>
    %528 = vector.extract_strided_slice %523 {offsets = [0, 0], sizes = [8, 32], strides = [1, 1]} : vector<8x128xf32> to vector<8x32xf32>
    %529 = vector.shape_cast %528 : vector<8x32xf32> to vector<2x4x32xf32>
    %530 = arith.truncf %529 : vector<2x4x32xf32> to vector<2x4x32xbf16>
    %531 = vector.extract_strided_slice %524 {offsets = [0, 0], sizes = [8, 32], strides = [1, 1]} : vector<8x128xf32> to vector<8x32xf32>
    %532 = vector.shape_cast %531 : vector<8x32xf32> to vector<2x4x32xf32>
    %533 = arith.truncf %532 : vector<2x4x32xf32> to vector<2x4x32xbf16>
    "tpu.trace_start"() <{level = 10 : i32, message = "bqd,bkd->bqk"}> : () -> ()
    %cst_187 = arith.constant dense<0.000000e+00> : vector<2x8x4xf32>
    %534 = tpu.matmul %527, %530, %cst_187 {dimension_numbers = #tpu.dot_dimension_numbers<[2], [2], [1], [1], [0, 0, 0, 1, 1, 1], [0], [0]>} : vector<2x8x32xbf16>, vector<2x4x32xbf16>, vector<2x8x4xf32> -> vector<2x8x4xf32>
    "tpu.trace_stop"() : () -> ()
    %cst_188 = arith.constant dense<0xFF800000> : vector<2x8xf32>
    %535 = vector.multi_reduction <maximumf>, %534, %cst_188 [2] : vector<2x8x4xf32> to vector<2x8xf32>
    %536 = vector.shape_cast %535 : vector<2x8xf32> to vector<2x8x1xf32>
    %537 = vector.broadcast %536 : vector<2x8x1xf32> to vector<2x8x4xf32>
    %538 = arith.subf %534, %537 : vector<2x8x4xf32>
    %539 = math.exp %538 : vector<2x8x4xf32>
    %cst_189 = arith.constant dense<0.000000e+00> : vector<2x8xf32>
    %540 = vector.multi_reduction <add>, %539, %cst_189 [2] : vector<2x8x4xf32> to vector<2x8xf32>
    %541 = vector.shape_cast %540 : vector<2x8xf32> to vector<2x8x1xf32>
    %542 = tpu.reciprocal %541 {approx = true} : vector<2x8x1xf32> -> vector<2x8x1xf32>
    %543 = vector.broadcast %542 : vector<2x8x1xf32> to vector<2x8x4xf32>
    %544 = arith.mulf %539, %543 : vector<2x8x4xf32>
    %545 = arith.truncf %544 : vector<2x8x4xf32> to vector<2x8x4xbf16>
    "tpu.trace_start"() <{level = 10 : i32, message = "bqk,bkd->bqd"}> : () -> ()
    %cst_190 = arith.constant dense<0.000000e+00> : vector<2x8x32xf32>
    %546 = tpu.matmul %545, %533, %cst_190 {dimension_numbers = #tpu.dot_dimension_numbers<[2], [1], [1], [2], [0, 0, 0, 1, 1, 2], [0], [0]>} : vector<2x8x4xbf16>, vector<2x4x32xbf16>, vector<2x8x32xf32> -> vector<2x8x32xf32>
    "tpu.trace_stop"() : () -> ()
    %547 = vector.shape_cast %546 : vector<2x8x32xf32> to vector<16x32xf32>
    %548 = vector.extract_strided_slice %519 {offsets = [0, 32], sizes = [16, 32], strides = [1, 1]} : vector<16x128xf32> to vector<16x32xf32>
    %549 = vector.shape_cast %548 : vector<16x32xf32> to vector<2x8x32xf32>
    %550 = arith.truncf %549 : vector<2x8x32xf32> to vector<2x8x32xbf16>
    %551 = vector.extract_strided_slice %523 {offsets = [0, 32], sizes = [8, 32], strides = [1, 1]} : vector<8x128xf32> to vector<8x32xf32>
    %552 = vector.shape_cast %551 : vector<8x32xf32> to vector<2x4x32xf32>
    %553 = arith.truncf %552 : vector<2x4x32xf32> to vector<2x4x32xbf16>
    %554 = vector.extract_strided_slice %524 {offsets = [0, 32], sizes = [8, 32], strides = [1, 1]} : vector<8x128xf32> to vector<8x32xf32>
    %555 = vector.shape_cast %554 : vector<8x32xf32> to vector<2x4x32xf32>
    %556 = arith.truncf %555 : vector<2x4x32xf32> to vector<2x4x32xbf16>
    "tpu.trace_start"() <{level = 10 : i32, message = "bqd,bkd->bqk"}> : () -> ()
    %cst_191 = arith.constant dense<0.000000e+00> : vector<2x8x4xf32>
    %557 = tpu.matmul %550, %553, %cst_191 {dimension_numbers = #tpu.dot_dimension_numbers<[2], [2], [1], [1], [0, 0, 0, 1, 1, 1], [0], [0]>} : vector<2x8x32xbf16>, vector<2x4x32xbf16>, vector<2x8x4xf32> -> vector<2x8x4xf32>
    "tpu.trace_stop"() : () -> ()
    %cst_192 = arith.constant dense<0xFF800000> : vector<2x8xf32>
    %558 = vector.multi_reduction <maximumf>, %557, %cst_192 [2] : vector<2x8x4xf32> to vector<2x8xf32>
    %559 = vector.shape_cast %558 : vector<2x8xf32> to vector<2x8x1xf32>
    %560 = vector.broadcast %559 : vector<2x8x1xf32> to vector<2x8x4xf32>
    %561 = arith.subf %557, %560 : vector<2x8x4xf32>
    %562 = math.exp %561 : vector<2x8x4xf32>
    %cst_193 = arith.constant dense<0.000000e+00> : vector<2x8xf32>
    %563 = vector.multi_reduction <add>, %562, %cst_193 [2] : vector<2x8x4xf32> to vector<2x8xf32>
    %564 = vector.shape_cast %563 : vector<2x8xf32> to vector<2x8x1xf32>
    %565 = tpu.reciprocal %564 {approx = true} : vector<2x8x1xf32> -> vector<2x8x1xf32>
    %566 = vector.broadcast %565 : vector<2x8x1xf32> to vector<2x8x4xf32>
    %567 = arith.mulf %562, %566 : vector<2x8x4xf32>
    %568 = arith.truncf %567 : vector<2x8x4xf32> to vector<2x8x4xbf16>
    "tpu.trace_start"() <{level = 10 : i32, message = "bqk,bkd->bqd"}> : () -> ()
    %cst_194 = arith.constant dense<0.000000e+00> : vector<2x8x32xf32>
    %569 = tpu.matmul %568, %556, %cst_194 {dimension_numbers = #tpu.dot_dimension_numbers<[2], [1], [1], [2], [0, 0, 0, 1, 1, 2], [0], [0]>} : vector<2x8x4xbf16>, vector<2x4x32xbf16>, vector<2x8x32xf32> -> vector<2x8x32xf32>
    "tpu.trace_stop"() : () -> ()
    %570 = vector.shape_cast %569 : vector<2x8x32xf32> to vector<16x32xf32>
    %571 = vector.extract_strided_slice %519 {offsets = [0, 64], sizes = [16, 32], strides = [1, 1]} : vector<16x128xf32> to vector<16x32xf32>
    %572 = vector.shape_cast %571 : vector<16x32xf32> to vector<2x8x32xf32>
    %573 = arith.truncf %572 : vector<2x8x32xf32> to vector<2x8x32xbf16>
    %574 = vector.extract_strided_slice %523 {offsets = [0, 64], sizes = [8, 32], strides = [1, 1]} : vector<8x128xf32> to vector<8x32xf32>
    %575 = vector.shape_cast %574 : vector<8x32xf32> to vector<2x4x32xf32>
    %576 = arith.truncf %575 : vector<2x4x32xf32> to vector<2x4x32xbf16>
    %577 = vector.extract_strided_slice %524 {offsets = [0, 64], sizes = [8, 32], strides = [1, 1]} : vector<8x128xf32> to vector<8x32xf32>
    %578 = vector.shape_cast %577 : vector<8x32xf32> to vector<2x4x32xf32>
    %579 = arith.truncf %578 : vector<2x4x32xf32> to vector<2x4x32xbf16>
    "tpu.trace_start"() <{level = 10 : i32, message = "bqd,bkd->bqk"}> : () -> ()
    %cst_195 = arith.constant dense<0.000000e+00> : vector<2x8x4xf32>
    %580 = tpu.matmul %573, %576, %cst_195 {dimension_numbers = #tpu.dot_dimension_numbers<[2], [2], [1], [1], [0, 0, 0, 1, 1, 1], [0], [0]>} : vector<2x8x32xbf16>, vector<2x4x32xbf16>, vector<2x8x4xf32> -> vector<2x8x4xf32>
    "tpu.trace_stop"() : () -> ()
    %cst_196 = arith.constant dense<0xFF800000> : vector<2x8xf32>
    %581 = vector.multi_reduction <maximumf>, %580, %cst_196 [2] : vector<2x8x4xf32> to vector<2x8xf32>
    %582 = vector.shape_cast %581 : vector<2x8xf32> to vector<2x8x1xf32>
    %583 = vector.broadcast %582 : vector<2x8x1xf32> to vector<2x8x4xf32>
    %584 = arith.subf %580, %583 : vector<2x8x4xf32>
    %585 = math.exp %584 : vector<2x8x4xf32>
    %cst_197 = arith.constant dense<0.000000e+00> : vector<2x8xf32>
    %586 = vector.multi_reduction <add>, %585, %cst_197 [2] : vector<2x8x4xf32> to vector<2x8xf32>
    %587 = vector.shape_cast %586 : vector<2x8xf32> to vector<2x8x1xf32>
    %588 = tpu.reciprocal %587 {approx = true} : vector<2x8x1xf32> -> vector<2x8x1xf32>
    %589 = vector.broadcast %588 : vector<2x8x1xf32> to vector<2x8x4xf32>
    %590 = arith.mulf %585, %589 : vector<2x8x4xf32>
    %591 = arith.truncf %590 : vector<2x8x4xf32> to vector<2x8x4xbf16>
    "tpu.trace_start"() <{level = 10 : i32, message = "bqk,bkd->bqd"}> : () -> ()
    %cst_198 = arith.constant dense<0.000000e+00> : vector<2x8x32xf32>
    %592 = tpu.matmul %591, %579, %cst_198 {dimension_numbers = #tpu.dot_dimension_numbers<[2], [1], [1], [2], [0, 0, 0, 1, 1, 2], [0], [0]>} : vector<2x8x4xbf16>, vector<2x4x32xbf16>, vector<2x8x32xf32> -> vector<2x8x32xf32>
    "tpu.trace_stop"() : () -> ()
    %593 = vector.shape_cast %592 : vector<2x8x32xf32> to vector<16x32xf32>
    %594 = vector.extract_strided_slice %519 {offsets = [0, 96], sizes = [16, 32], strides = [1, 1]} : vector<16x128xf32> to vector<16x32xf32>
    %595 = vector.shape_cast %594 : vector<16x32xf32> to vector<2x8x32xf32>
    %596 = arith.truncf %595 : vector<2x8x32xf32> to vector<2x8x32xbf16>
    %597 = vector.extract_strided_slice %523 {offsets = [0, 96], sizes = [8, 32], strides = [1, 1]} : vector<8x128xf32> to vector<8x32xf32>
    %598 = vector.shape_cast %597 : vector<8x32xf32> to vector<2x4x32xf32>
    %599 = arith.truncf %598 : vector<2x4x32xf32> to vector<2x4x32xbf16>
    %600 = vector.extract_strided_slice %524 {offsets = [0, 96], sizes = [8, 32], strides = [1, 1]} : vector<8x128xf32> to vector<8x32xf32>
    %601 = vector.shape_cast %600 : vector<8x32xf32> to vector<2x4x32xf32>
    %602 = arith.truncf %601 : vector<2x4x32xf32> to vector<2x4x32xbf16>
    "tpu.trace_start"() <{level = 10 : i32, message = "bqd,bkd->bqk"}> : () -> ()
    %cst_199 = arith.constant dense<0.000000e+00> : vector<2x8x4xf32>
    %603 = tpu.matmul %596, %599, %cst_199 {dimension_numbers = #tpu.dot_dimension_numbers<[2], [2], [1], [1], [0, 0, 0, 1, 1, 1], [0], [0]>} : vector<2x8x32xbf16>, vector<2x4x32xbf16>, vector<2x8x4xf32> -> vector<2x8x4xf32>
    "tpu.trace_stop"() : () -> ()
    %cst_200 = arith.constant dense<0xFF800000> : vector<2x8xf32>
    %604 = vector.multi_reduction <maximumf>, %603, %cst_200 [2] : vector<2x8x4xf32> to vector<2x8xf32>
    %605 = vector.shape_cast %604 : vector<2x8xf32> to vector<2x8x1xf32>
    %606 = vector.broadcast %605 : vector<2x8x1xf32> to vector<2x8x4xf32>
    %607 = arith.subf %603, %606 : vector<2x8x4xf32>
    %608 = math.exp %607 : vector<2x8x4xf32>
    %cst_201 = arith.constant dense<0.000000e+00> : vector<2x8xf32>
    %609 = vector.multi_reduction <add>, %608, %cst_201 [2] : vector<2x8x4xf32> to vector<2x8xf32>
    %610 = vector.shape_cast %609 : vector<2x8xf32> to vector<2x8x1xf32>
    %611 = tpu.reciprocal %610 {approx = true} : vector<2x8x1xf32> -> vector<2x8x1xf32>
    %612 = vector.broadcast %611 : vector<2x8x1xf32> to vector<2x8x4xf32>
    %613 = arith.mulf %608, %612 : vector<2x8x4xf32>
    %614 = arith.truncf %613 : vector<2x8x4xf32> to vector<2x8x4xbf16>
    "tpu.trace_start"() <{level = 10 : i32, message = "bqk,bkd->bqd"}> : () -> ()
    %cst_202 = arith.constant dense<0.000000e+00> : vector<2x8x32xf32>
    %615 = tpu.matmul %614, %602, %cst_202 {dimension_numbers = #tpu.dot_dimension_numbers<[2], [1], [1], [2], [0, 0, 0, 1, 1, 2], [0], [0]>} : vector<2x8x4xbf16>, vector<2x4x32xbf16>, vector<2x8x32xf32> -> vector<2x8x32xf32>
    "tpu.trace_stop"() : () -> ()
    %616 = vector.shape_cast %615 : vector<2x8x32xf32> to vector<16x32xf32>
    %617 = tpu.concatenate %547, %570, %593, %616 in 1 : vector<16x32xf32>, vector<16x32xf32>, vector<16x32xf32>, vector<16x32xf32> -> vector<16x128xf32>
    %618 = arith.truncf %617 : vector<16x128xf32> to vector<16x128xbf16>
    %cst_203 = arith.constant dense<0.000000e+00> : vector<16x128xf32>
    %619 = tpu.matmul %618, %513, %cst_203 {dimension_numbers = #tpu.dot_dimension_numbers<[1], [0], [0], [1], [0, 0, 1, 1], [], []>} : vector<16x128xbf16>, vector<128x128xbf16>, vector<16x128xf32> -> vector<16x128xf32>
    %620 = vector.broadcast %515 : vector<1x128xf32> to vector<16x128xf32>
    %621 = arith.addf %619, %620 : vector<16x128xf32>
    %622 = arith.addf %503, %621 : vector<16x128xf32>
    %c1_204 = arith.constant 1 : index
    %c0_205 = arith.constant 0 : index
    %c0_206 = arith.constant 0 : index
    %623 = vector.load %arg14[%c1_204, %c0_205, %c0_206] : memref<2x1x128xf32, #tpu.memory_space<vmem>>, vector<1x1x128xf32>
    %624 = vector.shape_cast %623 : vector<1x1x128xf32> to vector<1x128xf32>
    %c1_207 = arith.constant 1 : index
    %c0_208 = arith.constant 0 : index
    %c0_209 = arith.constant 0 : index
    %625 = vector.load %arg15[%c1_207, %c0_208, %c0_209] : memref<2x1x128xf32, #tpu.memory_space<vmem>>, vector<1x1x128xf32>
    %626 = vector.shape_cast %625 : vector<1x1x128xf32> to vector<1x128xf32>
    %cst_210 = arith.constant dense<0.000000e+00> : vector<16xf32>
    %627 = vector.multi_reduction <add>, %622, %cst_210 [1] : vector<16x128xf32> to vector<16xf32>
    %628 = vector.shape_cast %627 : vector<16xf32> to vector<16x1xf32>
    %cst_211 = arith.constant 1.280000e+02 : f32
    %629 = vector.broadcast %cst_211 : f32 to vector<16x1xf32>
    %630 = arith.divf %628, %629 : vector<16x1xf32>
    %631 = vector.broadcast %630 : vector<16x1xf32> to vector<16x128xf32>
    %632 = arith.subf %622, %631 : vector<16x128xf32>
    %633 = arith.mulf %632, %632 : vector<16x128xf32>
    %cst_212 = arith.constant dense<0.000000e+00> : vector<16xf32>
    %634 = vector.multi_reduction <add>, %633, %cst_212 [1] : vector<16x128xf32> to vector<16xf32>
    %635 = vector.shape_cast %634 : vector<16xf32> to vector<16x1xf32>
    %cst_213 = arith.constant 1.280000e+02 : f32
    %636 = vector.broadcast %cst_213 : f32 to vector<16x1xf32>
    %637 = arith.divf %635, %636 : vector<16x1xf32>
    %cst_214 = arith.constant 9.99999974E-6 : f32
    %638 = vector.broadcast %cst_214 : f32 to vector<16x1xf32>
    %639 = arith.addf %637, %638 : vector<16x1xf32>
    %640 = math.rsqrt %639 : vector<16x1xf32>
    %641 = vector.broadcast %640 : vector<16x1xf32> to vector<16x128xf32>
    %642 = arith.mulf %632, %641 : vector<16x128xf32>
    %643 = vector.broadcast %624 : vector<1x128xf32> to vector<16x128xf32>
    %644 = arith.mulf %642, %643 : vector<16x128xf32>
    %645 = vector.broadcast %626 : vector<1x128xf32> to vector<16x128xf32>
    %646 = arith.addf %644, %645 : vector<16x128xf32>
    %c1_215 = arith.constant 1 : index
    %c0_216 = arith.constant 0 : index
    %c0_217 = arith.constant 0 : index
    %647 = vector.load %arg16[%c1_215, %c0_216, %c0_217] : memref<2x128x256xbf16, #tpu.memory_space<vmem>>, vector<1x128x256xbf16>
    %648 = vector.shape_cast %647 : vector<1x128x256xbf16> to vector<128x256xbf16>
    %c1_218 = arith.constant 1 : index
    %c0_219 = arith.constant 0 : index
    %c0_220 = arith.constant 0 : index
    %649 = vector.load %arg17[%c1_218, %c0_219, %c0_220] : memref<2x1x256xf32, #tpu.memory_space<vmem>>, vector<1x1x256xf32>
    %650 = vector.shape_cast %649 : vector<1x1x256xf32> to vector<1x256xf32>
    %c1_221 = arith.constant 1 : index
    %c0_222 = arith.constant 0 : index
    %c0_223 = arith.constant 0 : index
    %651 = vector.load %arg18[%c1_221, %c0_222, %c0_223] : memref<2x256x128xbf16, #tpu.memory_space<vmem>>, vector<1x256x128xbf16>
    %652 = vector.shape_cast %651 : vector<1x256x128xbf16> to vector<256x128xbf16>
    %c1_224 = arith.constant 1 : index
    %c0_225 = arith.constant 0 : index
    %c0_226 = arith.constant 0 : index
    %653 = vector.load %arg19[%c1_224, %c0_225, %c0_226] : memref<2x1x128xf32, #tpu.memory_space<vmem>>, vector<1x1x128xf32>
    %654 = vector.shape_cast %653 : vector<1x1x128xf32> to vector<1x128xf32>
    %655 = arith.truncf %646 : vector<16x128xf32> to vector<16x128xbf16>
    %cst_227 = arith.constant dense<0.000000e+00> : vector<16x256xf32>
    %656 = tpu.matmul %655, %648, %cst_227 {dimension_numbers = #tpu.dot_dimension_numbers<[1], [0], [0], [1], [0, 0, 1, 1], [], []>} : vector<16x128xbf16>, vector<128x256xbf16>, vector<16x256xf32> -> vector<16x256xf32>
    %657 = vector.broadcast %650 : vector<1x256xf32> to vector<16x256xf32>
    %658 = arith.addf %656, %657 : vector<16x256xf32>
    %cst_228 = arith.constant 0.000000e+00 : f32
    %659 = vector.broadcast %cst_228 : f32 to vector<16x256xf32>
    %660 = arith.maximumf %658, %659 : vector<16x256xf32>
    %661 = arith.truncf %660 : vector<16x256xf32> to vector<16x256xbf16>
    %cst_229 = arith.constant dense<0.000000e+00> : vector<16x128xf32>
    %662 = tpu.matmul %661, %652, %cst_229 {dimension_numbers = #tpu.dot_dimension_numbers<[1], [0], [0], [1], [0, 0, 1, 1], [], []>} : vector<16x256xbf16>, vector<256x128xbf16>, vector<16x128xf32> -> vector<16x128xf32>
    %663 = vector.broadcast %654 : vector<1x128xf32> to vector<16x128xf32>
    %664 = arith.addf %662, %663 : vector<16x128xf32>
    %665 = arith.addf %646, %664 : vector<16x128xf32>
    %c1_230 = arith.constant 1 : index
    %c0_231 = arith.constant 0 : index
    %c0_232 = arith.constant 0 : index
    %666 = vector.load %arg20[%c1_230, %c0_231, %c0_232] : memref<2x1x128xf32, #tpu.memory_space<vmem>>, vector<1x1x128xf32>
    %667 = vector.shape_cast %666 : vector<1x1x128xf32> to vector<1x128xf32>
    %c1_233 = arith.constant 1 : index
    %c0_234 = arith.constant 0 : index
    %c0_235 = arith.constant 0 : index
    %668 = vector.load %arg21[%c1_233, %c0_234, %c0_235] : memref<2x1x128xf32, #tpu.memory_space<vmem>>, vector<1x1x128xf32>
    %669 = vector.shape_cast %668 : vector<1x1x128xf32> to vector<1x128xf32>
    %cst_236 = arith.constant dense<0.000000e+00> : vector<16xf32>
    %670 = vector.multi_reduction <add>, %665, %cst_236 [1] : vector<16x128xf32> to vector<16xf32>
    %671 = vector.shape_cast %670 : vector<16xf32> to vector<16x1xf32>
    %cst_237 = arith.constant 1.280000e+02 : f32
    %672 = vector.broadcast %cst_237 : f32 to vector<16x1xf32>
    %673 = arith.divf %671, %672 : vector<16x1xf32>
    %674 = vector.broadcast %673 : vector<16x1xf32> to vector<16x128xf32>
    %675 = arith.subf %665, %674 : vector<16x128xf32>
    %676 = arith.mulf %675, %675 : vector<16x128xf32>
    %cst_238 = arith.constant dense<0.000000e+00> : vector<16xf32>
    %677 = vector.multi_reduction <add>, %676, %cst_238 [1] : vector<16x128xf32> to vector<16xf32>
    %678 = vector.shape_cast %677 : vector<16xf32> to vector<16x1xf32>
    %cst_239 = arith.constant 1.280000e+02 : f32
    %679 = vector.broadcast %cst_239 : f32 to vector<16x1xf32>
    %680 = arith.divf %678, %679 : vector<16x1xf32>
    %cst_240 = arith.constant 9.99999974E-6 : f32
    %681 = vector.broadcast %cst_240 : f32 to vector<16x1xf32>
    %682 = arith.addf %680, %681 : vector<16x1xf32>
    %683 = math.rsqrt %682 : vector<16x1xf32>
    %684 = vector.broadcast %683 : vector<16x1xf32> to vector<16x128xf32>
    %685 = arith.mulf %675, %684 : vector<16x128xf32>
    %686 = vector.broadcast %667 : vector<1x128xf32> to vector<16x128xf32>
    %687 = arith.mulf %685, %686 : vector<16x128xf32>
    %688 = vector.broadcast %669 : vector<1x128xf32> to vector<16x128xf32>
    %689 = arith.addf %687, %688 : vector<16x128xf32>
    %690 = arith.truncf %689 : vector<16x128xf32> to vector<16x128xbf16>
    %c0_241 = arith.constant 0 : index
    %c0_242 = arith.constant 0 : index
    %691 = vector.load %arg22[%c0_241, %c0_242] : memref<128x128xbf16, #tpu.memory_space<vmem>>, vector<128x128xbf16>
    %cst_243 = arith.constant dense<0.000000e+00> : vector<16x128xf32>
    %692 = tpu.matmul %690, %691, %cst_243 {dimension_numbers = #tpu.dot_dimension_numbers<[1], [0], [0], [1], [0, 0, 1, 1], [], []>} : vector<16x128xbf16>, vector<128x128xbf16>, vector<16x128xf32> -> vector<16x128xf32>
    %c0_244 = arith.constant 0 : index
    %c0_245 = arith.constant 0 : index
    %693 = vector.load %arg23[%c0_244, %c0_245] : memref<1x128xf32, #tpu.memory_space<vmem>>, vector<1x128xf32>
    %694 = vector.broadcast %693 : vector<1x128xf32> to vector<16x128xf32>
    %695 = arith.addf %692, %694 : vector<16x128xf32>
    %c0_246 = arith.constant 0 : index
    %c0_247 = arith.constant 0 : index
    %696 = vector.load %arg24[%c0_246, %c0_247] : memref<16x128xf32, #tpu.memory_space<vmem>>, vector<16x128xf32>
    tpu.vector_store %arg24[%c0_246, %c0_247], %695 {strides = array<i32>} : memref<16x128xf32, #tpu.memory_space<vmem>>, vector<16x128xf32>,
    return
  }
}

</mosaic_0001>

<llo_original>
// kernel: forward.2
$region0: #{forward.2}
  #allocation0 [shape = 'u32[]', space=smem, size = 0x4, offset = 0x4, fixed_abs, tag = 'smem constant byte address 0x4 - core index']
  #allocation1 [shape = 'u32[72,128]{1,0:T(1,128)}', space=vmem, size = 0x9000, scoped, tag = 'internal scratch']
  %s0 = inlined_call_operand.vmem [shape: f32[2,4,192], index: 0, kind: input, shape index: {}]
  %s1 = inlined_call_operand.hbm [shape: bf16[192,128], index: 1, kind: input, shape index: {}]
  %s2 = inlined_call_operand.vmem [shape: f32[1,128], index: 2, kind: input, shape index: {}]
  %s3 = inlined_call_operand.vmem [shape: f32[4,128], index: 3, kind: input, shape index: {}]
  %s4 = inlined_call_operand.vmem [shape: bf16[2,128,384], index: 4, kind: input, shape index: {}]
  %s5 = inlined_call_operand.vmem [shape: f32[2,1,384], index: 5, kind: input, shape index: {}]
  %s6 = inlined_call_operand.hbm [shape: bf16[2,128,128], index: 6, kind: input, shape index: {}]
  %s7 = inlined_call_operand.vmem [shape: f32[2,1,128], index: 7, kind: input, shape index: {}]
  %s8 = inlined_call_operand.vmem [shape: f32[2,1,128], index: 8, kind: input, shape index: {}]
  %s9 = inlined_call_operand.vmem [shape: f32[2,1,128], index: 9, kind: input, shape index: {}]
  %s10 = inlined_call_operand.hbm [shape: bf16[2,128,256], index: 10, kind: input, shape index: {}]
  %s11 = inlined_call_operand.vmem [shape: f32[2,1,256], index: 11, kind: input, shape index: {}]
  %s12 = inlined_call_operand.hbm [shape: bf16[2,256,128], index: 12, kind: input, shape index: {}]
  %s13 = inlined_call_operand.vmem [shape: f32[2,1,128], index: 13, kind: input, shape index: {}]
  %s14 = inlined_call_operand.vmem [shape: f32[2,1,128], index: 14, kind: input, shape index: {}]
  %s15 = inlined_call_operand.vmem [shape: f32[2,1,128], index: 15, kind: input, shape index: {}]
  %s16 = inlined_call_operand.vmem [shape: bf16[2,4,128], index: 16, kind: output, shape index: {}]
  %s17 = sld [smem:[#allocation0]]
  $region90: #{forward.2} parent=0
    _
  %s19 = ssub.s32 1, %s17
  %s20 = scalar_select 0, %s19, %s17
  $region1: #{forward.2} parent=0
    #allocation2 [shape = 'u8[49152]{0}', space=vmem, size = 0xc000, scoped, tag = 'input window, operand 1, single buffered']
    #allocation3 [shape = 's32[1]{0}', space=sflag, size = 0x4, scoped, tag = 'scoped memory for forward.2']
    #allocation4 [shape = 'u8[65536]{0}', space=vmem, size = 0x10000, scoped, tag = 'input window, operand 6, single buffered']
    #allocation5 [shape = 's32[1]{0}', space=sflag, size = 0x4, scoped, tag = 'scoped memory for forward.2']
    #allocation6 [shape = 'u8[131072]{0}', space=vmem, size = 0x20000, scoped, tag = 'input window, operand 10, single buffered']
    #allocation7 [shape = 'u8[131072]{0}', space=vmem, size = 0x20000, scoped, tag = 'input window, operand 12, single buffered']
    #allocation8 [shape = 's32[1]{0}', space=sflag, size = 0x4, scoped, tag = 'scoped memory for forward.2']
    %21 = vsyncpa [#allocation3], 0
    %22 = vsyncpa [#allocation5], 0
    %23 = vsyncpa [#allocation8], 0
    // Predicated region
    $region2: #{forward.2} parent=1 // pred_check
      _
    $region3: #{forward.2} parent=1 // pred_check_branch
      %25 = sbr.rel (0) target = $region5
    $region4: #{forward.2} parent=1 // pred_region
      _
    $region5: #{forward.2} parent=1 // pred_fallthru
      _
    // Predicated region
    $region6: #{forward.2} parent=1 // pred_check
      _
    $region7: #{forward.2} parent=1 // pred_check_branch
      %27 = sbr.rel (0) target = $region9
    $region8: #{forward.2} parent=1 // pred_region
      %29 = vsyncadd [#allocation3], 0
      %s30 = sshll.u32 %s1, 4
      %s31 = int_to_ptr.hbm [resolvable:$true] %s30
      %s32 = sshll.u32 [#allocation2], 4
      %s33 = int_to_ptr.vmem [resolvable:$true] %s32
      %38 = dma.hbm_to_vmem [thread:$0]  %s31, 1536, %s33, [#allocation3], 64, 64, 4
    $region9: #{forward.2} parent=1 // pred_fallthru
      _
    // Predicated region
    $region10: #{forward.2} parent=1 // pred_check
      _
    $region11: #{forward.2} parent=1 // pred_check_branch
      %40 = sbr.rel (0) target = $region13
    $region12: #{forward.2} parent=1 // pred_region
      _
    $region13: #{forward.2} parent=1 // pred_fallthru
      _
    // Predicated region
    $region14: #{forward.2} parent=1 // pred_check
      _
    $region15: #{forward.2} parent=1 // pred_check_branch
      %42 = sbr.rel (0) target = $region17
    $region16: #{forward.2} parent=1 // pred_region
      _
    $region17: #{forward.2} parent=1 // pred_fallthru
      _
    // Predicated region
    $region18: #{forward.2} parent=1 // pred_check
      _
    $region19: #{forward.2} parent=1 // pred_check_branch
      %44 = sbr.rel (0) target = $region21
    $region20: #{forward.2} parent=1 // pred_region
      _
    $region21: #{forward.2} parent=1 // pred_fallthru
      _
    // Predicated region
    $region22: #{forward.2} parent=1 // pred_check
      _
    $region23: #{forward.2} parent=1 // pred_check_branch
      %46 = sbr.rel (0) target = $region25
    $region24: #{forward.2} parent=1 // pred_region
      _
    $region25: #{forward.2} parent=1 // pred_fallthru
      _
    // Predicated region
    $region26: #{forward.2} parent=1 // pred_check
      _
    $region27: #{forward.2} parent=1 // pred_check_branch
      %48 = sbr.rel (0) target = $region29
    $region28: #{forward.2} parent=1 // pred_region
      %50 = vsyncadd [#allocation5], 0
      %s51 = sshll.u32 %s6, 4
      %s52 = int_to_ptr.hbm [resolvable:$true] %s51
      %s53 = sshll.u32 [#allocation4], 4
      %s54 = int_to_ptr.vmem [resolvable:$true] %s53
      %59 = dma.hbm_to_vmem [thread:$0]  %s52, 2048, %s54, [#allocation5], 64, 64, 4
    $region29: #{forward.2} parent=1 // pred_fallthru
      _
    // Predicated region
    $region30: #{forward.2} parent=1 // pred_check
      _
    $region31: #{forward.2} parent=1 // pred_check_branch
      %61 = sbr.rel (0) target = $region33
    $region32: #{forward.2} parent=1 // pred_region
      _
    $region33: #{forward.2} parent=1 // pred_fallthru
      _
    // Predicated region
    $region34: #{forward.2} parent=1 // pred_check
      _
    $region35: #{forward.2} parent=1 // pred_check_branch
      %63 = sbr.rel (0) target = $region37
    $region36: #{forward.2} parent=1 // pred_region
      _
    $region37: #{forward.2} parent=1 // pred_fallthru
      _
    // Predicated region
    $region38: #{forward.2} parent=1 // pred_check
      _
    $region39: #{forward.2} parent=1 // pred_check_branch
      %65 = sbr.rel (0) target = $region41
    $region40: #{forward.2} parent=1 // pred_region
      _
    $region41: #{forward.2} parent=1 // pred_fallthru
      _
    // Predicated region
    $region42: #{forward.2} parent=1 // pred_check
      _
    $region43: #{forward.2} parent=1 // pred_check_branch
      %67 = sbr.rel (0) target = $region45
    $region44: #{forward.2} parent=1 // pred_region
      %69 = vsyncadd [#allocation5], 0
      %s70 = sshll.u32 %s10, 4
      %s71 = int_to_ptr.hbm [resolvable:$true] %s70
      %s72 = sshll.u32 [#allocation6], 4
      %s73 = int_to_ptr.vmem [resolvable:$true] %s72
      %78 = dma.hbm_to_vmem [thread:$0]  %s71, 4096, %s73, [#allocation5], 128, 128, 8
    $region45: #{forward.2} parent=1 // pred_fallthru
      _
    // Predicated region
    $region46: #{forward.2} parent=1 // pred_check
      _
    $region47: #{forward.2} parent=1 // pred_check_branch
      %80 = sbr.rel (0) target = $region49
    $region48: #{forward.2} parent=1 // pred_region
      _
    $region49: #{forward.2} parent=1 // pred_fallthru
      _
    // Predicated region
    $region50: #{forward.2} parent=1 // pred_check
      _
    $region51: #{forward.2} parent=1 // pred_check_branch
      %82 = sbr.rel (0) target = $region53
    $region52: #{forward.2} parent=1 // pred_region
      %84 = vsyncadd [#allocation8], 0
      %s85 = sshll.u32 %s12, 4
      %s86 = int_to_ptr.hbm [resolvable:$true] %s85
      %s87 = sshll.u32 [#allocation7], 4
      %s88 = int_to_ptr.vmem [resolvable:$true] %s87
      %93 = dma.hbm_to_vmem [thread:$0]  %s86, 4096, %s88, [#allocation8], 64, 64, 4
    $region53: #{forward.2} parent=1 // pred_fallthru
      _
    // Predicated region
    $region54: #{forward.2} parent=1 // pred_check
      _
    $region55: #{forward.2} parent=1 // pred_check_branch
      %95 = sbr.rel (0) target = $region57
    $region56: #{forward.2} parent=1 // pred_region
      _
    $region57: #{forward.2} parent=1 // pred_fallthru
      _
    // Predicated region
    $region58: #{forward.2} parent=1 // pred_check
      _
    $region59: #{forward.2} parent=1 // pred_check_branch
      %97 = sbr.rel (0) target = $region61
    $region60: #{forward.2} parent=1 // pred_region
      _
    $region61: #{forward.2} parent=1 // pred_fallthru
      _
    // Predicated region
    $region62: #{forward.2} parent=1 // pred_check
      _
    $region63: #{forward.2} parent=1 // pred_check_branch
      %99 = sbr.rel (0) target = $region65
    $region64: #{forward.2} parent=1 // pred_region
      _
    $region65: #{forward.2} parent=1 // pred_fallthru
      _
    // Predicated region
    $region66: #{forward.2} parent=1 // pred_check
      _
    $region67: #{forward.2} parent=1 // pred_check_branch
      %101 = sbr.rel (0) target = $region69
    $region68: #{forward.2} parent=1 // pred_region
      %103 = dma.done [#allocation3], 1536
    $region69: #{forward.2} parent=1 // pred_fallthru
      _
    // Predicated region
    $region70: #{forward.2} parent=1 // pred_check
      _
    $region71: #{forward.2} parent=1 // pred_check_branch
      %105 = sbr.rel (0) target = $region73
    $region72: #{forward.2} parent=1 // pred_region
      %107 = dma.done [#allocation5], 2048
    $region73: #{forward.2} parent=1 // pred_fallthru
      _
    // Predicated region
    $region74: #{forward.2} parent=1 // pred_check
      _
    $region75: #{forward.2} parent=1 // pred_check_branch
      %109 = sbr.rel (0) target = $region77
    $region76: #{forward.2} parent=1 // pred_region
      %111 = dma.done [#allocation5], 4096
    $region77: #{forward.2} parent=1 // pred_fallthru
      _
    // Predicated region
    $region78: #{forward.2} parent=1 // pred_check
      _
    $region79: #{forward.2} parent=1 // pred_check_branch
      %113 = sbr.rel (0) target = $region81
    $region80: #{forward.2} parent=1 // pred_region
      %115 = dma.done [#allocation8], 4096
    $region81: #{forward.2} parent=1 // pred_fallthru
      _
    %v117 = vld [vmem:[%s0] sm:$0xff]
    %v118 = vld [vmem:[%s0 + $0x8] sm:$0xff]
    %121 = vst [vmem:[#allocation1] ss:$2 sm:$0xff] %v117
    %s122 = scalar_lea.vmem [#allocation1], 1
    %123 = vst [vmem:[%s122] ss:$2 sm:$0xff] %v118
    %v124 = vld.sshfl [vmem:[#allocation1] sm:$0xff pattern:$0x75316420]
    %v125 = vld.sshfl [vmem:[#allocation1 + $0x8] sm:$0xff pattern:$0x75316420]
    %v128 = vpack.c.bf16 %v124, %v124
    %v129 = vpack.c.bf16 %v125, %v125
    %v130 = vld [vmem:[#allocation2] sm:$0xf]
    %v131 = vld [vmem:[#allocation2 + $0x4] sm:$0xf]
    %v132 = vld [vmem:[#allocation2 + $0x8] sm:$0xf]
    %v133 = vld [vmem:[#allocation2 + $0xc] sm:$0xf]
    %v134 = vld [vmem:[#allocation2 + $0x10] sm:$0xf]
    %v135 = vld [vmem:[#allocation2 + $0x14] sm:$0xf]
    %v136 = vld [vmem:[#allocation2 + $0x18] sm:$0xf]
    %v137 = vld [vmem:[#allocation2 + $0x1c] sm:$0xf]
    %v138 = vld [vmem:[#allocation2 + $0x20] sm:$0xf]
    %v139 = vld [vmem:[#allocation2 + $0x24] sm:$0xf]
    %v140 = vld [vmem:[#allocation2 + $0x28] sm:$0xf]
    %v141 = vld [vmem:[#allocation2 + $0x2c] sm:$0xf]
    %v142 = vld [vmem:[#allocation2 + $0x30] sm:$0xf]
    %v143 = vld [vmem:[#allocation2 + $0x34] sm:$0xf]
    %v144 = vld [vmem:[#allocation2 + $0x38] sm:$0xf]
    %v145 = vld [vmem:[#allocation2 + $0x3c] sm:$0xf]
    %v146 = vld [vmem:[#allocation2 + $0x40] sm:$0xf]
    %v147 = vld [vmem:[#allocation2 + $0x44] sm:$0xf]
    %v148 = vld [vmem:[#allocation2 + $0x48] sm:$0xf]
    %v149 = vld [vmem:[#allocation2 + $0x4c] sm:$0xf]
    %v150 = vld [vmem:[#allocation2 + $0x50] sm:$0xf]
    %v151 = vld [vmem:[#allocation2 + $0x54] sm:$0xf]
    %v152 = vld [vmem:[#allocation2 + $0x58] sm:$0xf]
    %v153 = vld [vmem:[#allocation2 + $0x5c] sm:$0xf]
    %v154 = vld [vmem:[%s2] sm:$0x1]
    %v156 = vperm.slane %v154, 0
    %v182 = vunpack.c.l.b16 %v130
    %v183 = vunpack.c.l.b16 %v131
    %v184 = vunpack.c.l.b16 %v132
    %v185 = vunpack.c.l.b16 %v133
    %v186 = vunpack.c.l.b16 %v134
    %v187 = vunpack.c.l.b16 %v135
    %v188 = vunpack.c.l.b16 %v136
    %v189 = vunpack.c.l.b16 %v137
    %v190 = vunpack.c.l.b16 %v138
    %v191 = vunpack.c.l.b16 %v139
    %v192 = vunpack.c.l.b16 %v140
    %v193 = vunpack.c.l.b16 %v141
    %v194 = vunpack.c.l.b16 %v142
    %v195 = vunpack.c.l.b16 %v143
    %v196 = vunpack.c.l.b16 %v144
    %v197 = vunpack.c.l.b16 %v145
    %v198 = vunpack.c.l.b16 %v146
    %v199 = vunpack.c.l.b16 %v147
    %v200 = vunpack.c.l.b16 %v148
    %v201 = vunpack.c.l.b16 %v149
    %v202 = vunpack.c.l.b16 %v150
    %v203 = vunpack.c.l.b16 %v151
    %v204 = vunpack.c.l.b16 %v152
    %v205 = vunpack.c.l.b16 %v153
    %v206 = vpack.c.b16 %v183, %v182
    %v207 = vpack.c.b16 %v185, %v184
    %v208 = vpack.c.b16 %v187, %v186
    %v209 = vpack.c.b16 %v189, %v188
    %v210 = vpack.c.b16 %v191, %v190
    %v211 = vpack.c.b16 %v193, %v192
    %v212 = vpack.c.b16 %v195, %v194
    %v213 = vpack.c.b16 %v197, %v196
    %v214 = vpack.c.b16 %v199, %v198
    %v215 = vpack.c.b16 %v201, %v200
    %v216 = vpack.c.b16 %v203, %v202
    %v217 = vpack.c.b16 %v205, %v204
    %vm230 = vcmask 523264
    %v232 = vsel %vm230, %v129, 0
    %234 = vmatpush.bf16.msra.mxu0 %v213
    %235 = vmatpush.bf16.msra.mxu0 %v212
    %236 = vmatpush.bf16.msra.mxu0 %v211
    %237 = vmatpush.bf16.msra.mxu0 %v210
    %238 = vmatpush.bf16.msra.mxu0 %v209
    %239 = vmatpush.bf16.msra.mxu0 %v208
    %240 = vmatpush.bf16.msra.mxu0 %v207
    %241 = vmatpush.bf16.msra.mxu0 %v206
    %242 = vmatmul.bf16.gmra.mxu0 %v128
    %v243 = vpop.f32.mrf.mxu0
    %v244 = vadd.f32 %v156, %v243
    %v245 = vpop.f32.mrf.mxu0
    %246 = vdwg.mxu0
    %247 = vmatpush.bf16.msra.mxu0 0
    %248 = vmatpush.bf16.msra.mxu0 0
    %249 = vmatpush.bf16.msra.mxu0 0
    %250 = vmatpush.bf16.msra.mxu0 0
    %251 = vmatpush.bf16.msra.mxu0 %v217
    %252 = vmatpush.bf16.msra.mxu0 %v216
    %253 = vmatpush.bf16.msra.mxu0 %v215
    %254 = vmatpush.bf16.msra.mxu0 %v214
    %255 = vmatmul.bf16.gmra.mxu0 %v232
    %v256 = vpop.f32.mrf.mxu0
    %v257 = vadd.f32 %v244, %v256
    %v258 = vpop.f32.mrf.mxu0
    %259 = vdwg.mxu0
    %v260 = vld [vmem:[%s3] sm:$0xf]
    %v262 = vrot.slane %v260, 4
    %vm264 = vcmask 1043456
    %v265 = vsel %vm264, %v260, %v262
    %v266 = vadd.f32 %v257, %v265
    %v267 = vld [vmem:[%s4] sm:$0xff]
    %v268 = vld [vmem:[%s4 + $0x8] sm:$0xf]
    %v269 = vld [vmem:[%s4 + $0xc] sm:$0xff]
    %v270 = vld [vmem:[%s4 + $0x14] sm:$0xf]
    %v271 = vld [vmem:[%s4 + $0x18] sm:$0xff]
    %v272 = vld [vmem:[%s4 + $0x20] sm:$0xf]
    %v273 = vld [vmem:[%s4 + $0x24] sm:$0xff]
    %v274 = vld [vmem:[%s4 + $0x2c] sm:$0xf]
    %v275 = vld [vmem:[%s4 + $0x30] sm:$0xff]
    %v276 = vld [vmem:[%s4 + $0x38] sm:$0xf]
    %v277 = vld [vmem:[%s4 + $0x3c] sm:$0xff]
    %v278 = vld [vmem:[%s4 + $0x44] sm:$0xf]
    %v279 = vld [vmem:[%s4 + $0x48] sm:$0xff]
    %v280 = vld [vmem:[%s4 + $0x50] sm:$0xf]
    %v281 = vld [vmem:[%s4 + $0x54] sm:$0xff]
    %v282 = vld [vmem:[%s4 + $0x5c] sm:$0xf]
    %v283 = vld [vmem:[%s4 + $0x60] sm:$0xff]
    %v284 = vld [vmem:[%s4 + $0x68] sm:$0xf]
    %v285 = vld [vmem:[%s4 + $0x6c] sm:$0xff]
    %v286 = vld [vmem:[%s4 + $0x74] sm:$0xf]
    %v287 = vld [vmem:[%s4 + $0x78] sm:$0xff]
    %v288 = vld [vmem:[%s4 + $0x80] sm:$0xf]
    %v289 = vld [vmem:[%s4 + $0x84] sm:$0xff]
    %v290 = vld [vmem:[%s4 + $0x8c] sm:$0xf]
    %v291 = vld [vmem:[%s4 + $0x90] sm:$0xff]
    %v292 = vld [vmem:[%s4 + $0x98] sm:$0xf]
    %v293 = vld [vmem:[%s4 + $0x9c] sm:$0xff]
    %v294 = vld [vmem:[%s4 + $0xa4] sm:$0xf]
    %v295 = vld [vmem:[%s4 + $0xa8] sm:$0xff]
    %v296 = vld [vmem:[%s4 + $0xb0] sm:$0xf]
    %v297 = vld [vmem:[%s4 + $0xb4] sm:$0xff]
    %v298 = vld [vmem:[%s4 + $0xbc] sm:$0xf]
    %v299 = vld [vmem:[%s5] sm:$0x7]
    %v300 = vld [vmem:[#allocation4] sm:$0xf]
    %v301 = vld [vmem:[#allocation4 + $0x4] sm:$0xf]
    %v302 = vld [vmem:[#allocation4 + $0x8] sm:$0xf]
    %v303 = vld [vmem:[#allocation4 + $0xc] sm:$0xf]
    %v304 = vld [vmem:[#allocation4 + $0x10] sm:$0xf]
    %v305 = vld [vmem:[#allocation4 + $0x14] sm:$0xf]
    %v306 = vld [vmem:[#allocation4 + $0x18] sm:$0xf]
    %v307 = vld [vmem:[#allocation4 + $0x1c] sm:$0xf]
    %v308 = vld [vmem:[#allocation4 + $0x20] sm:$0xf]
    %v309 = vld [vmem:[#allocation4 + $0x24] sm:$0xf]
    %v310 = vld [vmem:[#allocation4 + $0x28] sm:$0xf]
    %v311 = vld [vmem:[#allocation4 + $0x2c] sm:$0xf]
    %v312 = vld [vmem:[#allocation4 + $0x30] sm:$0xf]
    %v313 = vld [vmem:[#allocation4 + $0x34] sm:$0xf]
    %v314 = vld [vmem:[#allocation4 + $0x38] sm:$0xf]
    %v315 = vld [vmem:[#allocation4 + $0x3c] sm:$0xf]
    %v316 = vld [vmem:[%s7] sm:$0x1]
    %v317 = vpack.c.bf16 %v266, %v266
    %v319 = vperm.slane %v299, 0
    %v320 = vperm.slane %v299, 1
    %v321 = vperm.slane %v299, 2
    %v357 = vunpack.c.l.b16 %v267
    %v358 = vunpack.c.h.b16 %v267
    %v359 = vunpack.c.l.b16 %v268
    %v360 = vunpack.c.l.b16 %v269
    %v361 = vunpack.c.h.b16 %v269
    %v362 = vunpack.c.l.b16 %v270
    %v363 = vunpack.c.l.b16 %v271
    %v364 = vunpack.c.h.b16 %v271
    %v365 = vunpack.c.l.b16 %v272
    %v366 = vunpack.c.l.b16 %v273
    %v367 = vunpack.c.h.b16 %v273
    %v368 = vunpack.c.l.b16 %v274
    %v369 = vunpack.c.l.b16 %v275
    %v370 = vunpack.c.h.b16 %v275
    %v371 = vunpack.c.l.b16 %v276
    %v372 = vunpack.c.l.b16 %v277
    %v373 = vunpack.c.h.b16 %v277
    %v374 = vunpack.c.l.b16 %v278
    %v375 = vunpack.c.l.b16 %v279
    %v376 = vunpack.c.h.b16 %v279
    %v377 = vunpack.c.l.b16 %v280
    %v378 = vunpack.c.l.b16 %v281
    %v379 = vunpack.c.h.b16 %v281
    %v380 = vunpack.c.l.b16 %v282
    %v381 = vunpack.c.l.b16 %v283
    %v382 = vunpack.c.h.b16 %v283
    %v383 = vunpack.c.l.b16 %v284
    %v384 = vunpack.c.l.b16 %v285
    %v385 = vunpack.c.h.b16 %v285
    %v386 = vunpack.c.l.b16 %v286
    %v387 = vunpack.c.l.b16 %v287
    %v388 = vunpack.c.h.b16 %v287
    %v389 = vunpack.c.l.b16 %v288
    %v390 = vunpack.c.l.b16 %v289
    %v391 = vunpack.c.h.b16 %v289
    %v392 = vunpack.c.l.b16 %v290
    %v393 = vunpack.c.l.b16 %v291
    %v394 = vunpack.c.h.b16 %v291
    %v395 = vunpack.c.l.b16 %v292
    %v396 = vunpack.c.l.b16 %v293
    %v397 = vunpack.c.h.b16 %v293
    %v398 = vunpack.c.l.b16 %v294
    %v399 = vunpack.c.l.b16 %v295
    %v400 = vunpack.c.h.b16 %v295
    %v401 = vunpack.c.l.b16 %v296
    %v402 = vunpack.c.l.b16 %v297
    %v403 = vunpack.c.h.b16 %v297
    %v404 = vunpack.c.l.b16 %v298
    %v405 = vpack.c.b16 %v360, %v357
    %v406 = vpack.c.b16 %v361, %v358
    %v407 = vpack.c.b16 %v362, %v359
    %v408 = vpack.c.b16 %v366, %v363
    %v409 = vpack.c.b16 %v367, %v364
    %v410 = vpack.c.b16 %v368, %v365
    %v411 = vpack.c.b16 %v372, %v369
    %v412 = vpack.c.b16 %v373, %v370
    %v413 = vpack.c.b16 %v374, %v371
    %v414 = vpack.c.b16 %v378, %v375
    %v415 = vpack.c.b16 %v379, %v376
    %v416 = vpack.c.b16 %v380, %v377
    %v417 = vpack.c.b16 %v384, %v381
    %v418 = vpack.c.b16 %v385, %v382
    %v419 = vpack.c.b16 %v386, %v383
    %v420 = vpack.c.b16 %v390, %v387
    %v421 = vpack.c.b16 %v391, %v388
    %v422 = vpack.c.b16 %v392, %v389
    %v423 = vpack.c.b16 %v396, %v393
    %v424 = vpack.c.b16 %v397, %v394
    %v425 = vpack.c.b16 %v398, %v395
    %v426 = vpack.c.b16 %v402, %v399
    %v427 = vpack.c.b16 %v403, %v400
    %v428 = vpack.c.b16 %v404, %v401
    %453 = vmatpush.bf16.msra.mxu0 %v426
    %454 = vmatpush.bf16.msra.mxu0 %v423
    %455 = vmatpush.bf16.msra.mxu0 %v420
    %456 = vmatpush.bf16.msra.mxu0 %v417
    %457 = vmatpush.bf16.msra.mxu0 %v414
    %458 = vmatpush.bf16.msra.mxu0 %v411
    %459 = vmatpush.bf16.msra.mxu0 %v408
    %460 = vmatpush.bf16.msra.mxu0 %v405
    %461 = vmatmul.bf16.gmra.mxu0 %v317
    %v462 = vpop.f32.mrf.mxu0
    %v463 = vadd.f32 %v319, %v462
    %v464 = vpop.f32.mrf.mxu0
    %465 = vdwg.mxu0
    %466 = vmatpush.bf16.msra.mxu0 %v427
    %467 = vmatpush.bf16.msra.mxu0 %v424
    %468 = vmatpush.bf16.msra.mxu0 %v421
    %469 = vmatpush.bf16.msra.mxu0 %v418
    %470 = vmatpush.bf16.msra.mxu0 %v415
    %471 = vmatpush.bf16.msra.mxu0 %v412
    %472 = vmatpush.bf16.msra.mxu0 %v409
    %473 = vmatpush.bf16.msra.mxu0 %v406
    %474 = vmatmul.bf16.gmra.mxu0 %v317
    %v475 = vpop.f32.mrf.mxu0
    %v476 = vadd.f32 %v320, %v475
    %v477 = vpop.f32.mrf.mxu0
    %478 = vdwg.mxu0
    %479 = vmatpush.bf16.msra.mxu0 %v428
    %480 = vmatpush.bf16.msra.mxu0 %v425
    %481 = vmatpush.bf16.msra.mxu0 %v422
    %482 = vmatpush.bf16.msra.mxu0 %v419
    %483 = vmatpush.bf16.msra.mxu0 %v416
    %484 = vmatpush.bf16.msra.mxu0 %v413
    %485 = vmatpush.bf16.msra.mxu0 %v410
    %486 = vmatpush.bf16.msra.mxu0 %v407
    %487 = vmatmul.bf16.gmra.mxu0 %v317
    %v488 = vpop.f32.mrf.mxu0
    %v489 = vadd.f32 %v321, %v488
    %v490 = vpop.f32.mrf.mxu0
    %491 = vdwg.mxu0
    %v493 = vrot.slane %v463, 4
    %v495 = vpack.c.bf16 %v463, %v463
    %v496 = vpack.c.bf16 %v493, %v493
    %v498 = vrot.slane %v476, 4
    %v500 = vpack.c.bf16 %v476, %v476
    %v501 = vpack.c.bf16 %v498, %v498
    %v503 = vrot.slane %v489, 4
    %v505 = vpack.c.bf16 %v489, %v489
    %v506 = vpack.c.bf16 %v503, %v503
    %vm507 = vcmask 261120
    %v509 = vsel %vm507, %v495, 0
    %v512 = vsel %vm507, %v500, 0
    %514 = vmatpush.bf16.xpose.msra.mxu0 0
    %515 = vmatpush.bf16.xpose.msra.mxu0 0
    %516 = vmatpush.bf16.xpose.msra.mxu0 0
    %517 = vmatpush.bf16.xpose.msra.mxu0 0
    %518 = vmatpush.bf16.xpose.msra.mxu0 0
    %519 = vmatpush.bf16.xpose.msra.mxu0 0
    %520 = vmatpush.bf16.xpose.msra.mxu0 0
    %521 = vmatpush.bf16.xpose.msra.mxu0 %v512
    %522 = vmatmul.bf16.gmra.mxu0 %v509
    %v523 = vpop.f32.mrf.mxu0
    %v524 = vadd.f32 0.0, %v523
    %v525 = vpop.f32.mrf.mxu0
    %526 = vdwg.mxu0
    %v528 = vsel %vm507, %v496, 0
    %v531 = vsel %vm507, %v501, 0
    %533 = vmatpush.bf16.xpose.msra.mxu0 0
    %534 = vmatpush.bf16.xpose.msra.mxu0 0
    %535 = vmatpush.bf16.xpose.msra.mxu0 0
    %536 = vmatpush.bf16.xpose.msra.mxu0 0
    %537 = vmatpush.bf16.xpose.msra.mxu0 0
    %538 = vmatpush.bf16.xpose.msra.mxu0 0
    %539 = vmatpush.bf16.xpose.msra.mxu0 0
    %540 = vmatpush.bf16.xpose.msra.mxu0 %v531
    %541 = vmatmul.bf16.gmra.mxu0 %v528
    %v542 = vpop.f32.mrf.mxu0
    %v543 = vadd.f32 0.0, %v542
    %v544 = vpop.f32.mrf.mxu0
    %545 = vdwg.mxu0
    %vm546 = vcmask 27648
    %v547 = vsel %vm546, %v524, -inf
    %548 = vmax.xlane.f32.xlu0 %v547
    %v549 = vpop.xlane.xlu0 %548
    %v550 = vsel %vm546, %v543, -inf
    %551 = vmax.xlane.f32.xlu0 %v550
    %v552 = vpop.xlane.xlu0 %551
    %v553 = vsub.f32 %v524, %v549
    %v554 = vsub.f32 %v543, %v552
    %v555 = vmul.f32 %v553, 1.442695
    %v556 = vpow.pop %v555
    %v557 = vmul.f32 %v554, 1.442695
    %v558 = vpow.pop %v557
    %v559 = vsel %vm546, %v556, 0.0
    %560 = vadd.xlane.f32.xlu0 %v559
    %v561 = vpop.xlane.xlu0 %560
    %v562 = vsel %vm546, %v558, 0.0
    %563 = vadd.xlane.f32.xlu0 %v562
    %v564 = vpop.xlane.xlu0 %563
    %v565 = vrcp.pop %v561
    %v566 = vrcp.pop %v564
    %v567 = vmul.f32 %v556, %v565
    %v568 = vmul.f32 %v558, %v566
    %v569 = vpack.c.bf16 %v567, %v567
    %v570 = vpack.c.bf16 %v568, %v568
    %vm571 = vcmask 31744
    %v573 = vsel %vm571, %v569, 0
    %vm575 = vcmask 1041408
    %v577 = vsel %vm575, %v505, 0
    %579 = vmatpush.bf16.msra.mxu0 0
    %580 = vmatpush.bf16.msra.mxu0 0
    %581 = vmatpush.bf16.msra.mxu0 0
    %582 = vmatpush.bf16.msra.mxu0 0
    %583 = vmatpush.bf16.msra.mxu0 0
    %584 = vmatpush.bf16.msra.mxu0 0
    %585 = vmatpush.bf16.msra.mxu0 0
    %586 = vmatpush.bf16.msra.mxu0 %v577
    %587 = vmatmul.bf16.gmra.mxu0 %v573
    %v588 = vpop.f32.mrf.mxu0
    %v589 = vadd.f32 0.0, %v588
    %v590 = vpop.f32.mrf.mxu0
    %591 = vdwg.mxu0
    %v593 = vsel %vm571, %v570, 0
    %v596 = vsel %vm575, %v506, 0
    %598 = vmatpush.bf16.msra.mxu0 0
    %599 = vmatpush.bf16.msra.mxu0 0
    %600 = vmatpush.bf16.msra.mxu0 0
    %601 = vmatpush.bf16.msra.mxu0 0
    %602 = vmatpush.bf16.msra.mxu0 0
    %603 = vmatpush.bf16.msra.mxu0 0
    %604 = vmatpush.bf16.msra.mxu0 0
    %605 = vmatpush.bf16.msra.mxu0 %v596
    %606 = vmatmul.bf16.gmra.mxu0 %v593
    %v607 = vpop.f32.mrf.mxu0
    %v608 = vadd.f32 0.0, %v607
    %v609 = vpop.f32.mrf.mxu0
    %610 = vdwg.mxu0
    %v612 = vunpack.c.l.b16 %v495
    %v613 = vpack.c.b16 %v612, %v612
    %614 = vrot.lane.b32.xlu0 %v613, 96
    %v615 = vpop.permute.xlu0 %614
    %v617 = vunpack.c.l.b16 %v500
    %v618 = vpack.c.b16 %v617, %v617
    %619 = vrot.lane.b32.xlu0 %v618, 96
    %v620 = vpop.permute.xlu0 %619
    %v622 = vsel %vm507, %v615, 0
    %v625 = vsel %vm507, %v620, 0
    %627 = vmatpush.bf16.xpose.msra.mxu0 0
    %628 = vmatpush.bf16.xpose.msra.mxu0 0
    %629 = vmatpush.bf16.xpose.msra.mxu0 0
    %630 = vmatpush.bf16.xpose.msra.mxu0 0
    %631 = vmatpush.bf16.xpose.msra.mxu0 0
    %632 = vmatpush.bf16.xpose.msra.mxu0 0
    %633 = vmatpush.bf16.xpose.msra.mxu0 0
    %634 = vmatpush.bf16.xpose.msra.mxu0 %v625
    %635 = vmatmul.bf16.gmra.mxu0 %v622
    %v636 = vpop.f32.mrf.mxu0
    %v637 = vadd.f32 0.0, %v636
    %v638 = vpop.f32.mrf.mxu0
    %639 = vdwg.mxu0
    %v641 = vunpack.c.l.b16 %v496
    %v642 = vpack.c.b16 %v641, %v641
    %643 = vrot.lane.b32.xlu0 %v642, 96
    %v644 = vpop.permute.xlu0 %643
    %v646 = vunpack.c.l.b16 %v501
    %v647 = vpack.c.b16 %v646, %v646
    %648 = vrot.lane.b32.xlu0 %v647, 96
    %v649 = vpop.permute.xlu0 %648
    %v651 = vsel %vm507, %v644, 0
    %v654 = vsel %vm507, %v649, 0
    %656 = vmatpush.bf16.xpose.msra.mxu0 0
    %657 = vmatpush.bf16.xpose.msra.mxu0 0
    %658 = vmatpush.bf16.xpose.msra.mxu0 0
    %659 = vmatpush.bf16.xpose.msra.mxu0 0
    %660 = vmatpush.bf16.xpose.msra.mxu0 0
    %661 = vmatpush.bf16.xpose.msra.mxu0 0
    %662 = vmatpush.bf16.xpose.msra.mxu0 0
    %663 = vmatpush.bf16.xpose.msra.mxu0 %v654
    %664 = vmatmul.bf16.gmra.mxu0 %v651
    %v665 = vpop.f32.mrf.mxu0
    %v666 = vadd.f32 0.0, %v665
    %v667 = vpop.f32.mrf.mxu0
    %668 = vdwg.mxu0
    %v669 = vsel %vm546, %v637, -inf
    %670 = vmax.xlane.f32.xlu0 %v669
    %v671 = vpop.xlane.xlu0 %670
    %v672 = vsel %vm546, %v666, -inf
    %673 = vmax.xlane.f32.xlu0 %v672
    %v674 = vpop.xlane.xlu0 %673
    %v675 = vsub.f32 %v637, %v671
    %v676 = vsub.f32 %v666, %v674
    %v677 = vmul.f32 %v675, 1.442695
    %v678 = vpow.pop %v677
    %v679 = vmul.f32 %v676, 1.442695
    %v680 = vpow.pop %v679
    %v681 = vsel %vm546, %v678, 0.0
    %682 = vadd.xlane.f32.xlu0 %v681
    %v683 = vpop.xlane.xlu0 %682
    %v684 = vsel %vm546, %v680, 0.0
    %685 = vadd.xlane.f32.xlu0 %v684
    %v686 = vpop.xlane.xlu0 %685
    %v687 = vrcp.pop %v683
    %v688 = vrcp.pop %v686
    %v689 = vmul.f32 %v678, %v687
    %v690 = vmul.f32 %v680, %v688
    %v691 = vpack.c.bf16 %v689, %v689
    %v692 = vpack.c.bf16 %v690, %v690
    %v694 = vunpack.c.l.b16 %v505
    %v695 = vpack.c.b16 %v694, %v694
    %696 = vrot.lane.b32.xlu0 %v695, 96
    %v697 = vpop.permute.xlu0 %696
    %v699 = vsel %vm571, %v691, 0
    %v702 = vsel %vm575, %v697, 0
    %704 = vmatpush.bf16.msra.mxu0 0
    %705 = vmatpush.bf16.msra.mxu0 0
    %706 = vmatpush.bf16.msra.mxu0 0
    %707 = vmatpush.bf16.msra.mxu0 0
    %708 = vmatpush.bf16.msra.mxu0 0
    %709 = vmatpush.bf16.msra.mxu0 0
    %710 = vmatpush.bf16.msra.mxu0 0
    %711 = vmatpush.bf16.msra.mxu0 %v702
    %712 = vmatmul.bf16.gmra.mxu0 %v699
    %v713 = vpop.f32.mrf.mxu0
    %v714 = vadd.f32 0.0, %v713
    %v715 = vpop.f32.mrf.mxu0
    %716 = vdwg.mxu0
    %v718 = vunpack.c.l.b16 %v506
    %v719 = vpack.c.b16 %v718, %v718
    %720 = vrot.lane.b32.xlu0 %v719, 96
    %v721 = vpop.permute.xlu0 %720
    %v723 = vsel %vm571, %v692, 0
    %v726 = vsel %vm575, %v721, 0
    %728 = vmatpush.bf16.msra.mxu0 0
    %729 = vmatpush.bf16.msra.mxu0 0
    %730 = vmatpush.bf16.msra.mxu0 0
    %731 = vmatpush.bf16.msra.mxu0 0
    %732 = vmatpush.bf16.msra.mxu0 0
    %733 = vmatpush.bf16.msra.mxu0 0
    %734 = vmatpush.bf16.msra.mxu0 0
    %735 = vmatpush.bf16.msra.mxu0 %v726
    %736 = vmatmul.bf16.gmra.mxu0 %v723
    %v737 = vpop.f32.mrf.mxu0
    %v738 = vadd.f32 0.0, %v737
    %v739 = vpop.f32.mrf.mxu0
    %740 = vdwg.mxu0
    %741 = vrot.lane.b32.xlu0 %v613, 64
    %v742 = vpop.permute.xlu0 %741
    %743 = vrot.lane.b32.xlu0 %v618, 64
    %v744 = vpop.permute.xlu0 %743
    %v746 = vsel %vm507, %v742, 0
    %v749 = vsel %vm507, %v744, 0
    %751 = vmatpush.bf16.xpose.msra.mxu0 0
    %752 = vmatpush.bf16.xpose.msra.mxu0 0
    %753 = vmatpush.bf16.xpose.msra.mxu0 0
    %754 = vmatpush.bf16.xpose.msra.mxu0 0
    %755 = vmatpush.bf16.xpose.msra.mxu0 0
    %756 = vmatpush.bf16.xpose.msra.mxu0 0
    %757 = vmatpush.bf16.xpose.msra.mxu0 0
    %758 = vmatpush.bf16.xpose.msra.mxu0 %v749
    %759 = vmatmul.bf16.gmra.mxu0 %v746
    %v760 = vpop.f32.mrf.mxu0
    %v761 = vadd.f32 0.0, %v760
    %v762 = vpop.f32.mrf.mxu0
    %763 = vdwg.mxu0
    %764 = vrot.lane.b32.xlu0 %v642, 64
    %v765 = vpop.permute.xlu0 %764
    %766 = vrot.lane.b32.xlu0 %v647, 64
    %v767 = vpop.permute.xlu0 %766
    %v769 = vsel %vm507, %v765, 0
    %v772 = vsel %vm507, %v767, 0
    %774 = vmatpush.bf16.xpose.msra.mxu0 0
    %775 = vmatpush.bf16.xpose.msra.mxu0 0
    %776 = vmatpush.bf16.xpose.msra.mxu0 0
    %777 = vmatpush.bf16.xpose.msra.mxu0 0
    %778 = vmatpush.bf16.xpose.msra.mxu0 0
    %779 = vmatpush.bf16.xpose.msra.mxu0 0
    %780 = vmatpush.bf16.xpose.msra.mxu0 0
    %781 = vmatpush.bf16.xpose.msra.mxu0 %v772
    %782 = vmatmul.bf16.gmra.mxu0 %v769
    %v783 = vpop.f32.mrf.mxu0
    %v784 = vadd.f32 0.0, %v783
    %v785 = vpop.f32.mrf.mxu0
    %786 = vdwg.mxu0
    %v787 = vsel %vm546, %v761, -inf
    %788 = vmax.xlane.f32.xlu0 %v787
    %v789 = vpop.xlane.xlu0 %788
    %v790 = vsel %vm546, %v784, -inf
    %791 = vmax.xlane.f32.xlu0 %v790
    %v792 = vpop.xlane.xlu0 %791
    %v793 = vsub.f32 %v761, %v789
    %v794 = vsub.f32 %v784, %v792
    %v795 = vmul.f32 %v793, 1.442695
    %v796 = vpow.pop %v795
    %v797 = vmul.f32 %v794, 1.442695
    %v798 = vpow.pop %v797
    %v799 = vsel %vm546, %v796, 0.0
    %800 = vadd.xlane.f32.xlu0 %v799
    %v801 = vpop.xlane.xlu0 %800
    %v802 = vsel %vm546, %v798, 0.0
    %803 = vadd.xlane.f32.xlu0 %v802
    %v804 = vpop.xlane.xlu0 %803
    %v805 = vrcp.pop %v801
    %v806 = vrcp.pop %v804
    %v807 = vmul.f32 %v796, %v805
    %v808 = vmul.f32 %v798, %v806
    %v809 = vpack.c.bf16 %v807, %v807
    %v810 = vpack.c.bf16 %v808, %v808
    %811 = vrot.lane.b32.xlu0 %v695, 64
    %v812 = vpop.permute.xlu0 %811
    %v814 = vsel %vm571, %v809, 0
    %v817 = vsel %vm575, %v812, 0
    %819 = vmatpush.bf16.msra.mxu0 0
    %820 = vmatpush.bf16.msra.mxu0 0
    %821 = vmatpush.bf16.msra.mxu0 0
    %822 = vmatpush.bf16.msra.mxu0 0
    %823 = vmatpush.bf16.msra.mxu0 0
    %824 = vmatpush.bf16.msra.mxu0 0
    %825 = vmatpush.bf16.msra.mxu0 0
    %826 = vmatpush.bf16.msra.mxu0 %v817
    %827 = vmatmul.bf16.gmra.mxu0 %v814
    %v828 = vpop.f32.mrf.mxu0
    %v829 = vadd.f32 0.0, %v828
    %v830 = vpop.f32.mrf.mxu0
    %831 = vdwg.mxu0
    %832 = vrot.lane.b32.xlu0 %v719, 64
    %v833 = vpop.permute.xlu0 %832
    %v835 = vsel %vm571, %v810, 0
    %v838 = vsel %vm575, %v833, 0
    %840 = vmatpush.bf16.msra.mxu0 0
    %841 = vmatpush.bf16.msra.mxu0 0
    %842 = vmatpush.bf16.msra.mxu0 0
    %843 = vmatpush.bf16.msra.mxu0 0
    %844 = vmatpush.bf16.msra.mxu0 0
    %845 = vmatpush.bf16.msra.mxu0 0
    %846 = vmatpush.bf16.msra.mxu0 0
    %847 = vmatpush.bf16.msra.mxu0 %v838
    %848 = vmatmul.bf16.gmra.mxu0 %v835
    %v849 = vpop.f32.mrf.mxu0
    %v850 = vadd.f32 0.0, %v849
    %v851 = vpop.f32.mrf.mxu0
    %852 = vdwg.mxu0
    %853 = vrot.lane.b32.xlu0 %v613, 32
    %v854 = vpop.permute.xlu0 %853
    %855 = vrot.lane.b32.xlu0 %v618, 32
    %v856 = vpop.permute.xlu0 %855
    %v858 = vsel %vm507, %v854, 0
    %v861 = vsel %vm507, %v856, 0
    %863 = vmatpush.bf16.xpose.msra.mxu0 0
    %864 = vmatpush.bf16.xpose.msra.mxu0 0
    %865 = vmatpush.bf16.xpose.msra.mxu0 0
    %866 = vmatpush.bf16.xpose.msra.mxu0 0
    %867 = vmatpush.bf16.xpose.msra.mxu0 0
    %868 = vmatpush.bf16.xpose.msra.mxu0 0
    %869 = vmatpush.bf16.xpose.msra.mxu0 0
    %870 = vmatpush.bf16.xpose.msra.mxu0 %v861
    %871 = vmatmul.bf16.gmra.mxu0 %v858
    %v872 = vpop.f32.mrf.mxu0
    %v873 = vadd.f32 0.0, %v872
    %v874 = vpop.f32.mrf.mxu0
    %875 = vdwg.mxu0
    %876 = vrot.lane.b32.xlu0 %v642, 32
    %v877 = vpop.permute.xlu0 %876
    %878 = vrot.lane.b32.xlu0 %v647, 32
    %v879 = vpop.permute.xlu0 %878
    %v881 = vsel %vm507, %v877, 0
    %v884 = vsel %vm507, %v879, 0
    %886 = vmatpush.bf16.xpose.msra.mxu0 0
    %887 = vmatpush.bf16.xpose.msra.mxu0 0
    %888 = vmatpush.bf16.xpose.msra.mxu0 0
    %889 = vmatpush.bf16.xpose.msra.mxu0 0
    %890 = vmatpush.bf16.xpose.msra.mxu0 0
    %891 = vmatpush.bf16.xpose.msra.mxu0 0
    %892 = vmatpush.bf16.xpose.msra.mxu0 0
    %893 = vmatpush.bf16.xpose.msra.mxu0 %v884
    %894 = vmatmul.bf16.gmra.mxu0 %v881
    %v895 = vpop.f32.mrf.mxu0
    %v896 = vadd.f32 0.0, %v895
    %v897 = vpop.f32.mrf.mxu0
    %898 = vdwg.mxu0
    %v899 = vsel %vm546, %v873, -inf
    %900 = vmax.xlane.f32.xlu0 %v899
    %v901 = vpop.xlane.xlu0 %900
    %v902 = vsel %vm546, %v896, -inf
    %903 = vmax.xlane.f32.xlu0 %v902
    %v904 = vpop.xlane.xlu0 %903
    %v905 = vsub.f32 %v873, %v901
    %v906 = vsub.f32 %v896, %v904
    %v907 = vmul.f32 %v905, 1.442695
    %v908 = vpow.pop %v907
    %v909 = vmul.f32 %v906, 1.442695
    %v910 = vpow.pop %v909
    %v911 = vsel %vm546, %v908, 0.0
    %912 = vadd.xlane.f32.xlu0 %v911
    %v913 = vpop.xlane.xlu0 %912
    %v914 = vsel %vm546, %v910, 0.0
    %915 = vadd.xlane.f32.xlu0 %v914
    %v916 = vpop.xlane.xlu0 %915
    %v917 = vrcp.pop %v913
    %v918 = vrcp.pop %v916
    %v919 = vmul.f32 %v908, %v917
    %v920 = vmul.f32 %v910, %v918
    %v921 = vpack.c.bf16 %v919, %v919
    %v922 = vpack.c.bf16 %v920, %v920
    %923 = vrot.lane.b32.xlu0 %v695, 32
    %v924 = vpop.permute.xlu0 %923
    %v926 = vsel %vm571, %v921, 0
    %v929 = vsel %vm575, %v924, 0
    %931 = vmatpush.bf16.msra.mxu0 0
    %932 = vmatpush.bf16.msra.mxu0 0
    %933 = vmatpush.bf16.msra.mxu0 0
    %934 = vmatpush.bf16.msra.mxu0 0
    %935 = vmatpush.bf16.msra.mxu0 0
    %936 = vmatpush.bf16.msra.mxu0 0
    %937 = vmatpush.bf16.msra.mxu0 0
    %938 = vmatpush.bf16.msra.mxu0 %v929
    %939 = vmatmul.bf16.gmra.mxu0 %v926
    %v940 = vpop.f32.mrf.mxu0
    %v941 = vadd.f32 0.0, %v940
    %v942 = vpop.f32.mrf.mxu0
    %943 = vdwg.mxu0
    %944 = vrot.lane.b32.xlu0 %v719, 32
    %v945 = vpop.permute.xlu0 %944
    %v947 = vsel %vm571, %v922, 0
    %v950 = vsel %vm575, %v945, 0
    %952 = vmatpush.bf16.msra.mxu0 0
    %953 = vmatpush.bf16.msra.mxu0 0
    %954 = vmatpush.bf16.msra.mxu0 0
    %955 = vmatpush.bf16.msra.mxu0 0
    %956 = vmatpush.bf16.msra.mxu0 0
    %957 = vmatpush.bf16.msra.mxu0 0
    %958 = vmatpush.bf16.msra.mxu0 0
    %959 = vmatpush.bf16.msra.mxu0 %v950
    %960 = vmatmul.bf16.gmra.mxu0 %v947
    %v961 = vpop.f32.mrf.mxu0
    %v962 = vadd.f32 0.0, %v961
    %v963 = vpop.f32.mrf.mxu0
    %964 = vdwg.mxu0
    %967 = vst [vmem:[#allocation1] ss:$2 sm:$0xff] %v589
    %s968 = scalar_lea.vmem [#allocation1], 1
    %969 = vst [vmem:[%s968] ss:$2 sm:$0xff] %v608
    %v970 = vld.sshfl [vmem:[#allocation1] sm:$0xff pattern:$0x75316420]
    %974 = vst [vmem:[#allocation1] ss:$2 sm:$0xff] %v714
    %s975 = scalar_lea.vmem [#allocation1], 1
    %976 = vst [vmem:[%s975] ss:$2 sm:$0xff] %v738
    %v977 = vld.sshfl [vmem:[#allocation1] sm:$0xff pattern:$0x75316420]
    %978 = vrot.lane.b32.xlu0 %v977, 32
    %v979 = vpop.permute.xlu0 %978
    %983 = vst [vmem:[#allocation1] ss:$2 sm:$0xff] %v829
    %s984 = scalar_lea.vmem [#allocation1], 1
    %985 = vst [vmem:[%s984] ss:$2 sm:$0xff] %v850
    %v986 = vld.sshfl [vmem:[#allocation1] sm:$0xff pattern:$0x75316420]
    %987 = vrot.lane.b32.xlu0 %v986, 64
    %v988 = vpop.permute.xlu0 %987
    %992 = vst [vmem:[#allocation1] ss:$2 sm:$0xff] %v941
    %s993 = scalar_lea.vmem [#allocation1], 1
    %994 = vst [vmem:[%s993] ss:$2 sm:$0xff] %v962
    %v995 = vld.sshfl [vmem:[#allocation1] sm:$0xff pattern:$0x75316420]
    %996 = vrot.lane.b32.xlu0 %v995, 96
    %v997 = vpop.permute.xlu0 %996
    %v999 = vsel %vm507, %v970, %v979
    %v1000 = vsel %vm230, %v999, %v988
    %vm1001 = vcmask 785408
    %v1002 = vsel %vm1001, %v1000, %v997
    %v1003 = vpack.c.bf16 %v1002, %v1002
    %v1005 = vperm.slane %v316, 0
    %v1023 = vunpack.c.l.b16 %v300
    %v1024 = vunpack.c.l.b16 %v301
    %v1025 = vunpack.c.l.b16 %v302
    %v1026 = vunpack.c.l.b16 %v303
    %v1027 = vunpack.c.l.b16 %v304
    %v1028 = vunpack.c.l.b16 %v305
    %v1029 = vunpack.c.l.b16 %v306
    %v1030 = vunpack.c.l.b16 %v307
    %v1031 = vunpack.c.l.b16 %v308
    %v1032 = vunpack.c.l.b16 %v309
    %v1033 = vunpack.c.l.b16 %v310
    %v1034 = vunpack.c.l.b16 %v311
    %v1035 = vunpack.c.l.b16 %v312
    %v1036 = vunpack.c.l.b16 %v313
    %v1037 = vunpack.c.l.b16 %v314
    %v1038 = vunpack.c.l.b16 %v315
    %v1039 = vpack.c.b16 %v1024, %v1023
    %v1040 = vpack.c.b16 %v1026, %v1025
    %v1041 = vpack.c.b16 %v1028, %v1027
    %v1042 = vpack.c.b16 %v1030, %v1029
    %v1043 = vpack.c.b16 %v1032, %v1031
    %v1044 = vpack.c.b16 %v1034, %v1033
    %v1045 = vpack.c.b16 %v1036, %v1035
    %v1046 = vpack.c.b16 %v1038, %v1037
    %1055 = vmatpush.bf16.msra.mxu0 %v1046
    %1056 = vmatpush.bf16.msra.mxu0 %v1045
    %1057 = vmatpush.bf16.msra.mxu0 %v1044
    %1058 = vmatpush.bf16.msra.mxu0 %v1043
    %1059 = vmatpush.bf16.msra.mxu0 %v1042
    %1060 = vmatpush.bf16.msra.mxu0 %v1041
    %1061 = vmatpush.bf16.msra.mxu0 %v1040
    %1062 = vmatpush.bf16.msra.mxu0 %v1039
    %1063 = vmatmul.bf16.gmra.mxu0 %v1003
    %v1064 = vpop.f32.mrf.mxu0
    %v1065 = vadd.f32 %v1005, %v1064
    %v1066 = vpop.f32.mrf.mxu0
    %1067 = vdwg.mxu0
    %v1068 = vadd.f32 %v266, %v1065
    %v1069 = vld [vmem:[%s8] sm:$0x1]
    %v1070 = vld [vmem:[%s9] sm:$0x1]
    %1071 = vadd.xlane.f32.xlu0 %v1068
    %v1072 = vpop.xlane.xlu0 %1071
    %v1073 = vrcp.pop 128.0
    %v1074 = vmul.f32 128.0, %v1073
    %v1075 = vsub.f32 1.0, %v1074
    %v1076 = vmul.f32 %v1073, %v1075
    %v1077 = vadd.f32 %v1073, %v1076
    %vm1078 = vweird.f32 %v1073
    %v1079 = vsel %vm1078, %v1073, %v1077
    %v1080 = vmul.f32 %v1072, %v1079
    %v1081 = vsub.f32 %v1068, %v1080
    %v1082 = vmul.f32 %v1081, %v1081
    %1083 = vadd.xlane.f32.xlu0 %v1082
    %v1084 = vpop.xlane.xlu0 %1083
    %v1085 = vmul.f32 %v1084, %v1079
    %v1086 = vadd.f32 %v1085, 1e-05
    %v1087 = vrsqrt.pop %v1086
    %v1088 = vmul.f32 %v1087, %v1086
    %v1089 = vmul.f32 %v1088, %v1087
    %v1090 = vmul.f32 0.5, %v1089
    %v1091 = vsub.f32 1.5, %v1090
    %v1092 = vmul.f32 %v1087, %v1091
    %vm1093 = vweird.f32 %v1086
    %vm1094 = vweird.f32 %v1087
    %vm1095 = vmor %vm1093, %vm1094
    %v1096 = vsel %vm1095, %v1087, %v1092
    %v1097 = vmul.f32 %v1081, %v1096
    %v1099 = vperm.slane %v1069, 0
    %v1101 = vmul.f32 %v1097, %v1099
    %v1103 = vperm.slane %v1070, 0
    %v1105 = vadd.f32 %v1101, %v1103
    %v1106 = vld [vmem:[#allocation6] sm:$0xff]
    %v1107 = vld [vmem:[#allocation6 + $0x8] sm:$0xff]
    %v1108 = vld [vmem:[#allocation6 + $0x10] sm:$0xff]
    %v1109 = vld [vmem:[#allocation6 + $0x18] sm:$0xff]
    %v1110 = vld [vmem:[#allocation6 + $0x20] sm:$0xff]
    %v1111 = vld [vmem:[#allocation6 + $0x28] sm:$0xff]
    %v1112 = vld [vmem:[#allocation6 + $0x30] sm:$0xff]
    %v1113 = vld [vmem:[#allocation6 + $0x38] sm:$0xff]
    %v1114 = vld [vmem:[#allocation6 + $0x40] sm:$0xff]
    %v1115 = vld [vmem:[#allocation6 + $0x48] sm:$0xff]
    %v1116 = vld [vmem:[#allocation6 + $0x50] sm:$0xff]
    %v1117 = vld [vmem:[#allocation6 + $0x58] sm:$0xff]
    %v1118 = vld [vmem:[#allocation6 + $0x60] sm:$0xff]
    %v1119 = vld [vmem:[#allocation6 + $0x68] sm:$0xff]
    %v1120 = vld [vmem:[#allocation6 + $0x70] sm:$0xff]
    %v1121 = vld [vmem:[#allocation6 + $0x78] sm:$0xff]
    %v1122 = vld [vmem:[%s11] sm:$0x3]
    %v1123 = vld [vmem:[#allocation7] sm:$0xf]
    %v1124 = vld [vmem:[#allocation7 + $0x4] sm:$0xf]
    %v1125 = vld [vmem:[#allocation7 + $0x8] sm:$0xf]
    %v1126 = vld [vmem:[#allocation7 + $0xc] sm:$0xf]
    %v1127 = vld [vmem:[#allocation7 + $0x10] sm:$0xf]
    %v1128 = vld [vmem:[#allocation7 + $0x14] sm:$0xf]
    %v1129 = vld [vmem:[#allocation7 + $0x18] sm:$0xf]
    %v1130 = vld [vmem:[#allocation7 + $0x1c] sm:$0xf]
    %v1131 = vld [vmem:[#allocation7 + $0x20] sm:$0xf]
    %v1132 = vld [vmem:[#allocation7 + $0x24] sm:$0xf]
    %v1133 = vld [vmem:[#allocation7 + $0x28] sm:$0xf]
    %v1134 = vld [vmem:[#allocation7 + $0x2c] sm:$0xf]
    %v1135 = vld [vmem:[#allocation7 + $0x30] sm:$0xf]
    %v1136 = vld [vmem:[#allocation7 + $0x34] sm:$0xf]
    %v1137 = vld [vmem:[#allocation7 + $0x38] sm:$0xf]
    %v1138 = vld [vmem:[#allocation7 + $0x3c] sm:$0xf]
    %v1139 = vld [vmem:[#allocation7 + $0x40] sm:$0xf]
    %v1140 = vld [vmem:[#allocation7 + $0x44] sm:$0xf]
    %v1141 = vld [vmem:[#allocation7 + $0x48] sm:$0xf]
    %v1142 = vld [vmem:[#allocation7 + $0x4c] sm:$0xf]
    %v1143 = vld [vmem:[#allocation7 + $0x50] sm:$0xf]
    %v1144 = vld [vmem:[#allocation7 + $0x54] sm:$0xf]
    %v1145 = vld [vmem:[#allocation7 + $0x58] sm:$0xf]
    %v1146 = vld [vmem:[#allocation7 + $0x5c] sm:$0xf]
    %v1147 = vld [vmem:[#allocation7 + $0x60] sm:$0xf]
    %v1148 = vld [vmem:[#allocation7 + $0x64] sm:$0xf]
    %v1149 = vld [vmem:[#allocation7 + $0x68] sm:$0xf]
    %v1150 = vld [vmem:[#allocation7 + $0x6c] sm:$0xf]
    %v1151 = vld [vmem:[#allocation7 + $0x70] sm:$0xf]
    %v1152 = vld [vmem:[#allocation7 + $0x74] sm:$0xf]
    %v1153 = vld [vmem:[#allocation7 + $0x78] sm:$0xf]
    %v1154 = vld [vmem:[#allocation7 + $0x7c] sm:$0xf]
    %v1155 = vld [vmem:[%s13] sm:$0x1]
    %v1156 = vpack.c.bf16 %v1105, %v1105
    %v1158 = vperm.slane %v1122, 0
    %v1159 = vperm.slane %v1122, 1
    %v1178 = vunpack.c.l.b16 %v1106
    %v1179 = vunpack.c.h.b16 %v1106
    %v1180 = vunpack.c.l.b16 %v1107
    %v1181 = vunpack.c.h.b16 %v1107
    %v1182 = vunpack.c.l.b16 %v1108
    %v1183 = vunpack.c.h.b16 %v1108
    %v1184 = vunpack.c.l.b16 %v1109
    %v1185 = vunpack.c.h.b16 %v1109
    %v1186 = vunpack.c.l.b16 %v1110
    %v1187 = vunpack.c.h.b16 %v1110
    %v1188 = vunpack.c.l.b16 %v1111
    %v1189 = vunpack.c.h.b16 %v1111
    %v1190 = vunpack.c.l.b16 %v1112
    %v1191 = vunpack.c.h.b16 %v1112
    %v1192 = vunpack.c.l.b16 %v1113
    %v1193 = vunpack.c.h.b16 %v1113
    %v1194 = vunpack.c.l.b16 %v1114
    %v1195 = vunpack.c.h.b16 %v1114
    %v1196 = vunpack.c.l.b16 %v1115
    %v1197 = vunpack.c.h.b16 %v1115
    %v1198 = vunpack.c.l.b16 %v1116
    %v1199 = vunpack.c.h.b16 %v1116
    %v1200 = vunpack.c.l.b16 %v1117
    %v1201 = vunpack.c.h.b16 %v1117
    %v1202 = vunpack.c.l.b16 %v1118
    %v1203 = vunpack.c.h.b16 %v1118
    %v1204 = vunpack.c.l.b16 %v1119
    %v1205 = vunpack.c.h.b16 %v1119
    %v1206 = vunpack.c.l.b16 %v1120
    %v1207 = vunpack.c.h.b16 %v1120
    %v1208 = vunpack.c.l.b16 %v1121
    %v1209 = vunpack.c.h.b16 %v1121
    %v1210 = vpack.c.b16 %v1180, %v1178
    %v1211 = vpack.c.b16 %v1181, %v1179
    %v1212 = vpack.c.b16 %v1184, %v1182
    %v1213 = vpack.c.b16 %v1185, %v1183
    %v1214 = vpack.c.b16 %v1188, %v1186
    %v1215 = vpack.c.b16 %v1189, %v1187
    %v1216 = vpack.c.b16 %v1192, %v1190
    %v1217 = vpack.c.b16 %v1193, %v1191
    %v1218 = vpack.c.b16 %v1196, %v1194
    %v1219 = vpack.c.b16 %v1197, %v1195
    %v1220 = vpack.c.b16 %v1200, %v1198
    %v1221 = vpack.c.b16 %v1201, %v1199
    %v1222 = vpack.c.b16 %v1204, %v1202
    %v1223 = vpack.c.b16 %v1205, %v1203
    %v1224 = vpack.c.b16 %v1208, %v1206
    %v1225 = vpack.c.b16 %v1209, %v1207
    %1242 = vmatpush.bf16.msra.mxu0 %v1224
    %1243 = vmatpush.bf16.msra.mxu0 %v1222
    %1244 = vmatpush.bf16.msra.mxu0 %v1220
    %1245 = vmatpush.bf16.msra.mxu0 %v1218
    %1246 = vmatpush.bf16.msra.mxu0 %v1216
    %1247 = vmatpush.bf16.msra.mxu0 %v1214
    %1248 = vmatpush.bf16.msra.mxu0 %v1212
    %1249 = vmatpush.bf16.msra.mxu0 %v1210
    %1250 = vmatmul.bf16.gmra.mxu0 %v1156
    %v1251 = vpop.f32.mrf.mxu0
    %v1252 = vadd.f32 %v1158, %v1251
    %v1253 = vpop.f32.mrf.mxu0
    %1254 = vdwg.mxu0
    %1255 = vmatpush.bf16.msra.mxu0 %v1225
    %1256 = vmatpush.bf16.msra.mxu0 %v1223
    %1257 = vmatpush.bf16.msra.mxu0 %v1221
    %1258 = vmatpush.bf16.msra.mxu0 %v1219
    %1259 = vmatpush.bf16.msra.mxu0 %v1217
    %1260 = vmatpush.bf16.msra.mxu0 %v1215
    %1261 = vmatpush.bf16.msra.mxu0 %v1213
    %1262 = vmatpush.bf16.msra.mxu0 %v1211
    %1263 = vmatmul.bf16.gmra.mxu0 %v1156
    %v1264 = vpop.f32.mrf.mxu0
    %v1265 = vadd.f32 %v1159, %v1264
    %v1266 = vpop.f32.mrf.mxu0
    %1267 = vdwg.mxu0
    %v1268 = vmax.f32 %v1252, 0.0
    %v1269 = vmax.f32 %v1265, 0.0
    %v1270 = vpack.c.bf16 %v1268, %v1268
    %v1271 = vpack.c.bf16 %v1269, %v1269
    %v1273 = vperm.slane %v1155, 0
    %v1307 = vunpack.c.l.b16 %v1123
    %v1308 = vunpack.c.l.b16 %v1124
    %v1309 = vunpack.c.l.b16 %v1125
    %v1310 = vunpack.c.l.b16 %v1126
    %v1311 = vunpack.c.l.b16 %v1127
    %v1312 = vunpack.c.l.b16 %v1128
    %v1313 = vunpack.c.l.b16 %v1129
    %v1314 = vunpack.c.l.b16 %v1130
    %v1315 = vunpack.c.l.b16 %v1131
    %v1316 = vunpack.c.l.b16 %v1132
    %v1317 = vunpack.c.l.b16 %v1133
    %v1318 = vunpack.c.l.b16 %v1134
    %v1319 = vunpack.c.l.b16 %v1135
    %v1320 = vunpack.c.l.b16 %v1136
    %v1321 = vunpack.c.l.b16 %v1137
    %v1322 = vunpack.c.l.b16 %v1138
    %v1323 = vunpack.c.l.b16 %v1139
    %v1324 = vunpack.c.l.b16 %v1140
    %v1325 = vunpack.c.l.b16 %v1141
    %v1326 = vunpack.c.l.b16 %v1142
    %v1327 = vunpack.c.l.b16 %v1143
    %v1328 = vunpack.c.l.b16 %v1144
    %v1329 = vunpack.c.l.b16 %v1145
    %v1330 = vunpack.c.l.b16 %v1146
    %v1331 = vunpack.c.l.b16 %v1147
    %v1332 = vunpack.c.l.b16 %v1148
    %v1333 = vunpack.c.l.b16 %v1149
    %v1334 = vunpack.c.l.b16 %v1150
    %v1335 = vunpack.c.l.b16 %v1151
    %v1336 = vunpack.c.l.b16 %v1152
    %v1337 = vunpack.c.l.b16 %v1153
    %v1338 = vunpack.c.l.b16 %v1154
    %v1339 = vpack.c.b16 %v1308, %v1307
    %v1340 = vpack.c.b16 %v1310, %v1309
    %v1341 = vpack.c.b16 %v1312, %v1311
    %v1342 = vpack.c.b16 %v1314, %v1313
    %v1343 = vpack.c.b16 %v1316, %v1315
    %v1344 = vpack.c.b16 %v1318, %v1317
    %v1345 = vpack.c.b16 %v1320, %v1319
    %v1346 = vpack.c.b16 %v1322, %v1321
    %v1347 = vpack.c.b16 %v1324, %v1323
    %v1348 = vpack.c.b16 %v1326, %v1325
    %v1349 = vpack.c.b16 %v1328, %v1327
    %v1350 = vpack.c.b16 %v1330, %v1329
    %v1351 = vpack.c.b16 %v1332, %v1331
    %v1352 = vpack.c.b16 %v1334, %v1333
    %v1353 = vpack.c.b16 %v1336, %v1335
    %v1354 = vpack.c.b16 %v1338, %v1337
    %1371 = vmatpush.bf16.msra.mxu0 %v1346
    %1372 = vmatpush.bf16.msra.mxu0 %v1345
    %1373 = vmatpush.bf16.msra.mxu0 %v1344
    %1374 = vmatpush.bf16.msra.mxu0 %v1343
    %1375 = vmatpush.bf16.msra.mxu0 %v1342
    %1376 = vmatpush.bf16.msra.mxu0 %v1341
    %1377 = vmatpush.bf16.msra.mxu0 %v1340
    %1378 = vmatpush.bf16.msra.mxu0 %v1339
    %1379 = vmatmul.bf16.gmra.mxu0 %v1270
    %v1380 = vpop.f32.mrf.mxu0
    %v1381 = vadd.f32 %v1273, %v1380
    %v1382 = vpop.f32.mrf.mxu0
    %1383 = vdwg.mxu0
    %1384 = vmatpush.bf16.msra.mxu0 %v1354
    %1385 = vmatpush.bf16.msra.mxu0 %v1353
    %1386 = vmatpush.bf16.msra.mxu0 %v1352
    %1387 = vmatpush.bf16.msra.mxu0 %v1351
    %1388 = vmatpush.bf16.msra.mxu0 %v1350
    %1389 = vmatpush.bf16.msra.mxu0 %v1349
    %1390 = vmatpush.bf16.msra.mxu0 %v1348
    %1391 = vmatpush.bf16.msra.mxu0 %v1347
    %1392 = vmatmul.bf16.gmra.mxu0 %v1271
    %v1393 = vpop.f32.mrf.mxu0
    %v1394 = vadd.f32 %v1381, %v1393
    %v1395 = vpop.f32.mrf.mxu0
    %1396 = vdwg.mxu0
    %v1397 = vadd.f32 %v1105, %v1394
    %v1398 = vld [vmem:[%s14] sm:$0x1]
    %v1399 = vld [vmem:[%s15] sm:$0x1]
    %1400 = vadd.xlane.f32.xlu0 %v1397
    %v1401 = vpop.xlane.xlu0 %1400
    %v1402 = vmul.f32 %v1401, %v1079
    %v1403 = vsub.f32 %v1397, %v1402
    %v1404 = vmul.f32 %v1403, %v1403
    %1405 = vadd.xlane.f32.xlu0 %v1404
    %v1406 = vpop.xlane.xlu0 %1405
    %v1407 = vmul.f32 %v1406, %v1079
    %v1408 = vadd.f32 %v1407, 1e-05
    %v1409 = vrsqrt.pop %v1408
    %v1410 = vmul.f32 %v1409, %v1408
    %v1411 = vmul.f32 %v1410, %v1409
    %v1412 = vmul.f32 0.5, %v1411
    %v1413 = vsub.f32 1.5, %v1412
    %v1414 = vmul.f32 %v1409, %v1413
    %vm1415 = vweird.f32 %v1408
    %vm1416 = vweird.f32 %v1409
    %vm1417 = vmor %vm1415, %vm1416
    %v1418 = vsel %vm1417, %v1409, %v1414
    %v1419 = vmul.f32 %v1403, %v1418
    %v1421 = vperm.slane %v1398, 0
    %v1423 = vmul.f32 %v1419, %v1421
    %v1425 = vperm.slane %v1399, 0
    %v1427 = vadd.f32 %v1423, %v1425
    %s1428 = scalar_lea.vmem %s4, 192
    %v1429 = vld [vmem:[%s1428] sm:$0xff]
    %v1430 = vld [vmem:[%s1428 + $0x8] sm:$0xf]
    %v1431 = vld [vmem:[%s1428 + $0xc] sm:$0xff]
    %v1432 = vld [vmem:[%s1428 + $0x14] sm:$0xf]
    %v1433 = vld [vmem:[%s1428 + $0x18] sm:$0xff]
    %v1434 = vld [vmem:[%s1428 + $0x20] sm:$0xf]
    %v1435 = vld [vmem:[%s1428 + $0x24] sm:$0xff]
    %v1436 = vld [vmem:[%s1428 + $0x2c] sm:$0xf]
    %v1437 = vld [vmem:[%s1428 + $0x30] sm:$0xff]
    %v1438 = vld [vmem:[%s1428 + $0x38] sm:$0xf]
    %v1439 = vld [vmem:[%s1428 + $0x3c] sm:$0xff]
    %v1440 = vld [vmem:[%s1428 + $0x44] sm:$0xf]
    %v1441 = vld [vmem:[%s1428 + $0x48] sm:$0xff]
    %v1442 = vld [vmem:[%s1428 + $0x50] sm:$0xf]
    %v1443 = vld [vmem:[%s1428 + $0x54] sm:$0xff]
    %v1444 = vld [vmem:[%s1428 + $0x5c] sm:$0xf]
    %v1445 = vld [vmem:[%s1428 + $0x60] sm:$0xff]
    %v1446 = vld [vmem:[%s1428 + $0x68] sm:$0xf]
    %v1447 = vld [vmem:[%s1428 + $0x6c] sm:$0xff]
    %v1448 = vld [vmem:[%s1428 + $0x74] sm:$0xf]
    %v1449 = vld [vmem:[%s1428 + $0x78] sm:$0xff]
    %v1450 = vld [vmem:[%s1428 + $0x80] sm:$0xf]
    %v1451 = vld [vmem:[%s1428 + $0x84] sm:$0xff]
    %v1452 = vld [vmem:[%s1428 + $0x8c] sm:$0xf]
    %v1453 = vld [vmem:[%s1428 + $0x90] sm:$0xff]
    %v1454 = vld [vmem:[%s1428 + $0x98] sm:$0xf]
    %v1455 = vld [vmem:[%s1428 + $0x9c] sm:$0xff]
    %v1456 = vld [vmem:[%s1428 + $0xa4] sm:$0xf]
    %v1457 = vld [vmem:[%s1428 + $0xa8] sm:$0xff]
    %v1458 = vld [vmem:[%s1428 + $0xb0] sm:$0xf]
    %v1459 = vld [vmem:[%s1428 + $0xb4] sm:$0xff]
    %v1460 = vld [vmem:[%s1428 + $0xbc] sm:$0xf]
    %s1461 = scalar_lea.vmem %s5, 3
    %v1462 = vld [vmem:[%s1461] sm:$0x7]
    %s1463 = scalar_lea.vmem [#allocation4], 64
    %v1464 = vld [vmem:[%s1463] sm:$0xf]
    %v1465 = vld [vmem:[%s1463 + $0x4] sm:$0xf]
    %v1466 = vld [vmem:[%s1463 + $0x8] sm:$0xf]
    %v1467 = vld [vmem:[%s1463 + $0xc] sm:$0xf]
    %v1468 = vld [vmem:[%s1463 + $0x10] sm:$0xf]
    %v1469 = vld [vmem:[%s1463 + $0x14] sm:$0xf]
    %v1470 = vld [vmem:[%s1463 + $0x18] sm:$0xf]
    %v1471 = vld [vmem:[%s1463 + $0x1c] sm:$0xf]
    %v1472 = vld [vmem:[%s1463 + $0x20] sm:$0xf]
    %v1473 = vld [vmem:[%s1463 + $0x24] sm:$0xf]
    %v1474 = vld [vmem:[%s1463 + $0x28] sm:$0xf]
    %v1475 = vld [vmem:[%s1463 + $0x2c] sm:$0xf]
    %v1476 = vld [vmem:[%s1463 + $0x30] sm:$0xf]
    %v1477 = vld [vmem:[%s1463 + $0x34] sm:$0xf]
    %v1478 = vld [vmem:[%s1463 + $0x38] sm:$0xf]
    %v1479 = vld [vmem:[%s1463 + $0x3c] sm:$0xf]
    %s1480 = scalar_lea.vmem %s7, 1
    %v1481 = vld [vmem:[%s1480] sm:$0x1]
    %v1482 = vpack.c.bf16 %v1427, %v1427
    %v1484 = vperm.slane %v1462, 0
    %v1485 = vperm.slane %v1462, 1
    %v1486 = vperm.slane %v1462, 2
    %v1522 = vunpack.c.l.b16 %v1429
    %v1523 = vunpack.c.h.b16 %v1429
    %v1524 = vunpack.c.l.b16 %v1430
    %v1525 = vunpack.c.l.b16 %v1431
    %v1526 = vunpack.c.h.b16 %v1431
    %v1527 = vunpack.c.l.b16 %v1432
    %v1528 = vunpack.c.l.b16 %v1433
    %v1529 = vunpack.c.h.b16 %v1433
    %v1530 = vunpack.c.l.b16 %v1434
    %v1531 = vunpack.c.l.b16 %v1435
    %v1532 = vunpack.c.h.b16 %v1435
    %v1533 = vunpack.c.l.b16 %v1436
    %v1534 = vunpack.c.l.b16 %v1437
    %v1535 = vunpack.c.h.b16 %v1437
    %v1536 = vunpack.c.l.b16 %v1438
    %v1537 = vunpack.c.l.b16 %v1439
    %v1538 = vunpack.c.h.b16 %v1439
    %v1539 = vunpack.c.l.b16 %v1440
    %v1540 = vunpack.c.l.b16 %v1441
    %v1541 = vunpack.c.h.b16 %v1441
    %v1542 = vunpack.c.l.b16 %v1442
    %v1543 = vunpack.c.l.b16 %v1443
    %v1544 = vunpack.c.h.b16 %v1443
    %v1545 = vunpack.c.l.b16 %v1444
    %v1546 = vunpack.c.l.b16 %v1445
    %v1547 = vunpack.c.h.b16 %v1445
    %v1548 = vunpack.c.l.b16 %v1446
    %v1549 = vunpack.c.l.b16 %v1447
    %v1550 = vunpack.c.h.b16 %v1447
    %v1551 = vunpack.c.l.b16 %v1448
    %v1552 = vunpack.c.l.b16 %v1449
    %v1553 = vunpack.c.h.b16 %v1449
    %v1554 = vunpack.c.l.b16 %v1450
    %v1555 = vunpack.c.l.b16 %v1451
    %v1556 = vunpack.c.h.b16 %v1451
    %v1557 = vunpack.c.l.b16 %v1452
    %v1558 = vunpack.c.l.b16 %v1453
    %v1559 = vunpack.c.h.b16 %v1453
    %v1560 = vunpack.c.l.b16 %v1454
    %v1561 = vunpack.c.l.b16 %v1455
    %v1562 = vunpack.c.h.b16 %v1455
    %v1563 = vunpack.c.l.b16 %v1456
    %v1564 = vunpack.c.l.b16 %v1457
    %v1565 = vunpack.c.h.b16 %v1457
    %v1566 = vunpack.c.l.b16 %v1458
    %v1567 = vunpack.c.l.b16 %v1459
    %v1568 = vunpack.c.h.b16 %v1459
    %v1569 = vunpack.c.l.b16 %v1460
    %v1570 = vpack.c.b16 %v1525, %v1522
    %v1571 = vpack.c.b16 %v1526, %v1523
    %v1572 = vpack.c.b16 %v1527, %v1524
    %v1573 = vpack.c.b16 %v1531, %v1528
    %v1574 = vpack.c.b16 %v1532, %v1529
    %v1575 = vpack.c.b16 %v1533, %v1530
    %v1576 = vpack.c.b16 %v1537, %v1534
    %v1577 = vpack.c.b16 %v1538, %v1535
    %v1578 = vpack.c.b16 %v1539, %v1536
    %v1579 = vpack.c.b16 %v1543, %v1540
    %v1580 = vpack.c.b16 %v1544, %v1541
    %v1581 = vpack.c.b16 %v1545, %v1542
    %v1582 = vpack.c.b16 %v1549, %v1546
    %v1583 = vpack.c.b16 %v1550, %v1547
    %v1584 = vpack.c.b16 %v1551, %v1548
    %v1585 = vpack.c.b16 %v1555, %v1552
    %v1586 = vpack.c.b16 %v1556, %v1553
    %v1587 = vpack.c.b16 %v1557, %v1554
    %v1588 = vpack.c.b16 %v1561, %v1558
    %v1589 = vpack.c.b16 %v1562, %v1559
    %v1590 = vpack.c.b16 %v1563, %v1560
    %v1591 = vpack.c.b16 %v1567, %v1564
    %v1592 = vpack.c.b16 %v1568, %v1565
    %v1593 = vpack.c.b16 %v1569, %v1566
    %1618 = vmatpush.bf16.msra.mxu0 %v1591
    %1619 = vmatpush.bf16.msra.mxu0 %v1588
    %1620 = vmatpush.bf16.msra.mxu0 %v1585
    %1621 = vmatpush.bf16.msra.mxu0 %v1582
    %1622 = vmatpush.bf16.msra.mxu0 %v1579
    %1623 = vmatpush.bf16.msra.mxu0 %v1576
    %1624 = vmatpush.bf16.msra.mxu0 %v1573
    %1625 = vmatpush.bf16.msra.mxu0 %v1570
    %1626 = vmatmul.bf16.gmra.mxu0 %v1482
    %v1627 = vpop.f32.mrf.mxu0
    %v1628 = vadd.f32 %v1484, %v1627
    %v1629 = vpop.f32.mrf.mxu0
    %1630 = vdwg.mxu0
    %1631 = vmatpush.bf16.msra.mxu0 %v1592
    %1632 = vmatpush.bf16.msra.mxu0 %v1589
    %1633 = vmatpush.bf16.msra.mxu0 %v1586
    %1634 = vmatpush.bf16.msra.mxu0 %v1583
    %1635 = vmatpush.bf16.msra.mxu0 %v1580
    %1636 = vmatpush.bf16.msra.mxu0 %v1577
    %1637 = vmatpush.bf16.msra.mxu0 %v1574
    %1638 = vmatpush.bf16.msra.mxu0 %v1571
    %1639 = vmatmul.bf16.gmra.mxu0 %v1482
    %v1640 = vpop.f32.mrf.mxu0
    %v1641 = vadd.f32 %v1485, %v1640
    %v1642 = vpop.f32.mrf.mxu0
    %1643 = vdwg.mxu0
    %1644 = vmatpush.bf16.msra.mxu0 %v1593
    %1645 = vmatpush.bf16.msra.mxu0 %v1590
    %1646 = vmatpush.bf16.msra.mxu0 %v1587
    %1647 = vmatpush.bf16.msra.mxu0 %v1584
    %1648 = vmatpush.bf16.msra.mxu0 %v1581
    %1649 = vmatpush.bf16.msra.mxu0 %v1578
    %1650 = vmatpush.bf16.msra.mxu0 %v1575
    %1651 = vmatpush.bf16.msra.mxu0 %v1572
    %1652 = vmatmul.bf16.gmra.mxu0 %v1482
    %v1653 = vpop.f32.mrf.mxu0
    %v1654 = vadd.f32 %v1486, %v1653
    %v1655 = vpop.f32.mrf.mxu0
    %1656 = vdwg.mxu0
    %v1658 = vrot.slane %v1628, 4
    %v1660 = vpack.c.bf16 %v1628, %v1628
    %v1661 = vpack.c.bf16 %v1658, %v1658
    %v1663 = vrot.slane %v1641, 4
    %v1665 = vpack.c.bf16 %v1641, %v1641
    %v1666 = vpack.c.bf16 %v1663, %v1663
    %v1668 = vrot.slane %v1654, 4
    %v1670 = vpack.c.bf16 %v1654, %v1654
    %v1671 = vpack.c.bf16 %v1668, %v1668
    %v1673 = vsel %vm507, %v1660, 0
    %v1676 = vsel %vm507, %v1665, 0
    %1678 = vmatpush.bf16.xpose.msra.mxu0 0
    %1679 = vmatpush.bf16.xpose.msra.mxu0 0
    %1680 = vmatpush.bf16.xpose.msra.mxu0 0
    %1681 = vmatpush.bf16.xpose.msra.mxu0 0
    %1682 = vmatpush.bf16.xpose.msra.mxu0 0
    %1683 = vmatpush.bf16.xpose.msra.mxu0 0
    %1684 = vmatpush.bf16.xpose.msra.mxu0 0
    %1685 = vmatpush.bf16.xpose.msra.mxu0 %v1676
    %1686 = vmatmul.bf16.gmra.mxu0 %v1673
    %v1687 = vpop.f32.mrf.mxu0
    %v1688 = vadd.f32 0.0, %v1687
    %v1689 = vpop.f32.mrf.mxu0
    %1690 = vdwg.mxu0
    %v1692 = vsel %vm507, %v1661, 0
    %v1695 = vsel %vm507, %v1666, 0
    %1697 = vmatpush.bf16.xpose.msra.mxu0 0
    %1698 = vmatpush.bf16.xpose.msra.mxu0 0
    %1699 = vmatpush.bf16.xpose.msra.mxu0 0
    %1700 = vmatpush.bf16.xpose.msra.mxu0 0
    %1701 = vmatpush.bf16.xpose.msra.mxu0 0
    %1702 = vmatpush.bf16.xpose.msra.mxu0 0
    %1703 = vmatpush.bf16.xpose.msra.mxu0 0
    %1704 = vmatpush.bf16.xpose.msra.mxu0 %v1695
    %1705 = vmatmul.bf16.gmra.mxu0 %v1692
    %v1706 = vpop.f32.mrf.mxu0
    %v1707 = vadd.f32 0.0, %v1706
    %v1708 = vpop.f32.mrf.mxu0
    %1709 = vdwg.mxu0
    %v1710 = vsel %vm546, %v1688, -inf
    %1711 = vmax.xlane.f32.xlu0 %v1710
    %v1712 = vpop.xlane.xlu0 %1711
    %v1713 = vsel %vm546, %v1707, -inf
    %1714 = vmax.xlane.f32.xlu0 %v1713
    %v1715 = vpop.xlane.xlu0 %1714
    %v1716 = vsub.f32 %v1688, %v1712
    %v1717 = vsub.f32 %v1707, %v1715
    %v1718 = vmul.f32 %v1716, 1.442695
    %v1719 = vpow.pop %v1718
    %v1720 = vmul.f32 %v1717, 1.442695
    %v1721 = vpow.pop %v1720
    %v1722 = vsel %vm546, %v1719, 0.0
    %1723 = vadd.xlane.f32.xlu0 %v1722
    %v1724 = vpop.xlane.xlu0 %1723
    %v1725 = vsel %vm546, %v1721, 0.0
    %1726 = vadd.xlane.f32.xlu0 %v1725
    %v1727 = vpop.xlane.xlu0 %1726
    %v1728 = vrcp.pop %v1724
    %v1729 = vrcp.pop %v1727
    %v1730 = vmul.f32 %v1719, %v1728
    %v1731 = vmul.f32 %v1721, %v1729
    %v1732 = vpack.c.bf16 %v1730, %v1730
    %v1733 = vpack.c.bf16 %v1731, %v1731
    %v1735 = vsel %vm571, %v1732, 0
    %v1738 = vsel %vm575, %v1670, 0
    %1740 = vmatpush.bf16.msra.mxu0 0
    %1741 = vmatpush.bf16.msra.mxu0 0
    %1742 = vmatpush.bf16.msra.mxu0 0
    %1743 = vmatpush.bf16.msra.mxu0 0
    %1744 = vmatpush.bf16.msra.mxu0 0
    %1745 = vmatpush.bf16.msra.mxu0 0
    %1746 = vmatpush.bf16.msra.mxu0 0
    %1747 = vmatpush.bf16.msra.mxu0 %v1738
    %1748 = vmatmul.bf16.gmra.mxu0 %v1735
    %v1749 = vpop.f32.mrf.mxu0
    %v1750 = vadd.f32 0.0, %v1749
    %v1751 = vpop.f32.mrf.mxu0
    %1752 = vdwg.mxu0
    %v1754 = vsel %vm571, %v1733, 0
    %v1757 = vsel %vm575, %v1671, 0
    %1759 = vmatpush.bf16.msra.mxu0 0
    %1760 = vmatpush.bf16.msra.mxu0 0
    %1761 = vmatpush.bf16.msra.mxu0 0
    %1762 = vmatpush.bf16.msra.mxu0 0
    %1763 = vmatpush.bf16.msra.mxu0 0
    %1764 = vmatpush.bf16.msra.mxu0 0
    %1765 = vmatpush.bf16.msra.mxu0 0
    %1766 = vmatpush.bf16.msra.mxu0 %v1757
    %1767 = vmatmul.bf16.gmra.mxu0 %v1754
    %v1768 = vpop.f32.mrf.mxu0
    %v1769 = vadd.f32 0.0, %v1768
    %v1770 = vpop.f32.mrf.mxu0
    %1771 = vdwg.mxu0
    %v1773 = vunpack.c.l.b16 %v1660
    %v1774 = vpack.c.b16 %v1773, %v1773
    %1775 = vrot.lane.b32.xlu0 %v1774, 96
    %v1776 = vpop.permute.xlu0 %1775
    %v1778 = vunpack.c.l.b16 %v1665
    %v1779 = vpack.c.b16 %v1778, %v1778
    %1780 = vrot.lane.b32.xlu0 %v1779, 96
    %v1781 = vpop.permute.xlu0 %1780
    %v1783 = vsel %vm507, %v1776, 0
    %v1786 = vsel %vm507, %v1781, 0
    %1788 = vmatpush.bf16.xpose.msra.mxu0 0
    %1789 = vmatpush.bf16.xpose.msra.mxu0 0
    %1790 = vmatpush.bf16.xpose.msra.mxu0 0
    %1791 = vmatpush.bf16.xpose.msra.mxu0 0
    %1792 = vmatpush.bf16.xpose.msra.mxu0 0
    %1793 = vmatpush.bf16.xpose.msra.mxu0 0
    %1794 = vmatpush.bf16.xpose.msra.mxu0 0
    %1795 = vmatpush.bf16.xpose.msra.mxu0 %v1786
    %1796 = vmatmul.bf16.gmra.mxu0 %v1783
    %v1797 = vpop.f32.mrf.mxu0
    %v1798 = vadd.f32 0.0, %v1797
    %v1799 = vpop.f32.mrf.mxu0
    %1800 = vdwg.mxu0
    %v1802 = vunpack.c.l.b16 %v1661
    %v1803 = vpack.c.b16 %v1802, %v1802
    %1804 = vrot.lane.b32.xlu0 %v1803, 96
    %v1805 = vpop.permute.xlu0 %1804
    %v1807 = vunpack.c.l.b16 %v1666
    %v1808 = vpack.c.b16 %v1807, %v1807
    %1809 = vrot.lane.b32.xlu0 %v1808, 96
    %v1810 = vpop.permute.xlu0 %1809
    %v1812 = vsel %vm507, %v1805, 0
    %v1815 = vsel %vm507, %v1810, 0
    %1817 = vmatpush.bf16.xpose.msra.mxu0 0
    %1818 = vmatpush.bf16.xpose.msra.mxu0 0
    %1819 = vmatpush.bf16.xpose.msra.mxu0 0
    %1820 = vmatpush.bf16.xpose.msra.mxu0 0
    %1821 = vmatpush.bf16.xpose.msra.mxu0 0
    %1822 = vmatpush.bf16.xpose.msra.mxu0 0
    %1823 = vmatpush.bf16.xpose.msra.mxu0 0
    %1824 = vmatpush.bf16.xpose.msra.mxu0 %v1815
    %1825 = vmatmul.bf16.gmra.mxu0 %v1812
    %v1826 = vpop.f32.mrf.mxu0
    %v1827 = vadd.f32 0.0, %v1826
    %v1828 = vpop.f32.mrf.mxu0
    %1829 = vdwg.mxu0
    %v1830 = vsel %vm546, %v1798, -inf
    %1831 = vmax.xlane.f32.xlu0 %v1830
    %v1832 = vpop.xlane.xlu0 %1831
    %v1833 = vsel %vm546, %v1827, -inf
    %1834 = vmax.xlane.f32.xlu0 %v1833
    %v1835 = vpop.xlane.xlu0 %1834
    %v1836 = vsub.f32 %v1798, %v1832
    %v1837 = vsub.f32 %v1827, %v1835
    %v1838 = vmul.f32 %v1836, 1.442695
    %v1839 = vpow.pop %v1838
    %v1840 = vmul.f32 %v1837, 1.442695
    %v1841 = vpow.pop %v1840
    %v1842 = vsel %vm546, %v1839, 0.0
    %1843 = vadd.xlane.f32.xlu0 %v1842
    %v1844 = vpop.xlane.xlu0 %1843
    %v1845 = vsel %vm546, %v1841, 0.0
    %1846 = vadd.xlane.f32.xlu0 %v1845
    %v1847 = vpop.xlane.xlu0 %1846
    %v1848 = vrcp.pop %v1844
    %v1849 = vrcp.pop %v1847
    %v1850 = vmul.f32 %v1839, %v1848
    %v1851 = vmul.f32 %v1841, %v1849
    %v1852 = vpack.c.bf16 %v1850, %v1850
    %v1853 = vpack.c.bf16 %v1851, %v1851
    %v1855 = vunpack.c.l.b16 %v1670
    %v1856 = vpack.c.b16 %v1855, %v1855
    %1857 = vrot.lane.b32.xlu0 %v1856, 96
    %v1858 = vpop.permute.xlu0 %1857
    %v1860 = vsel %vm571, %v1852, 0
    %v1863 = vsel %vm575, %v1858, 0
    %1865 = vmatpush.bf16.msra.mxu0 0
    %1866 = vmatpush.bf16.msra.mxu0 0
    %1867 = vmatpush.bf16.msra.mxu0 0
    %1868 = vmatpush.bf16.msra.mxu0 0
    %1869 = vmatpush.bf16.msra.mxu0 0
    %1870 = vmatpush.bf16.msra.mxu0 0
    %1871 = vmatpush.bf16.msra.mxu0 0
    %1872 = vmatpush.bf16.msra.mxu0 %v1863
    %1873 = vmatmul.bf16.gmra.mxu0 %v1860
    %v1874 = vpop.f32.mrf.mxu0
    %v1875 = vadd.f32 0.0, %v1874
    %v1876 = vpop.f32.mrf.mxu0
    %1877 = vdwg.mxu0
    %v1879 = vunpack.c.l.b16 %v1671
    %v1880 = vpack.c.b16 %v1879, %v1879
    %1881 = vrot.lane.b32.xlu0 %v1880, 96
    %v1882 = vpop.permute.xlu0 %1881
    %v1884 = vsel %vm571, %v1853, 0
    %v1887 = vsel %vm575, %v1882, 0
    %1889 = vmatpush.bf16.msra.mxu0 0
    %1890 = vmatpush.bf16.msra.mxu0 0
    %1891 = vmatpush.bf16.msra.mxu0 0
    %1892 = vmatpush.bf16.msra.mxu0 0
    %1893 = vmatpush.bf16.msra.mxu0 0
    %1894 = vmatpush.bf16.msra.mxu0 0
    %1895 = vmatpush.bf16.msra.mxu0 0
    %1896 = vmatpush.bf16.msra.mxu0 %v1887
    %1897 = vmatmul.bf16.gmra.mxu0 %v1884
    %v1898 = vpop.f32.mrf.mxu0
    %v1899 = vadd.f32 0.0, %v1898
    %v1900 = vpop.f32.mrf.mxu0
    %1901 = vdwg.mxu0
    %1902 = vrot.lane.b32.xlu0 %v1774, 64
    %v1903 = vpop.permute.xlu0 %1902
    %1904 = vrot.lane.b32.xlu0 %v1779, 64
    %v1905 = vpop.permute.xlu0 %1904
    %v1907 = vsel %vm507, %v1903, 0
    %v1910 = vsel %vm507, %v1905, 0
    %1912 = vmatpush.bf16.xpose.msra.mxu0 0
    %1913 = vmatpush.bf16.xpose.msra.mxu0 0
    %1914 = vmatpush.bf16.xpose.msra.mxu0 0
    %1915 = vmatpush.bf16.xpose.msra.mxu0 0
    %1916 = vmatpush.bf16.xpose.msra.mxu0 0
    %1917 = vmatpush.bf16.xpose.msra.mxu0 0
    %1918 = vmatpush.bf16.xpose.msra.mxu0 0
    %1919 = vmatpush.bf16.xpose.msra.mxu0 %v1910
    %1920 = vmatmul.bf16.gmra.mxu0 %v1907
    %v1921 = vpop.f32.mrf.mxu0
    %v1922 = vadd.f32 0.0, %v1921
    %v1923 = vpop.f32.mrf.mxu0
    %1924 = vdwg.mxu0
    %1925 = vrot.lane.b32.xlu0 %v1803, 64
    %v1926 = vpop.permute.xlu0 %1925
    %1927 = vrot.lane.b32.xlu0 %v1808, 64
    %v1928 = vpop.permute.xlu0 %1927
    %v1930 = vsel %vm507, %v1926, 0
    %v1933 = vsel %vm507, %v1928, 0
    %1935 = vmatpush.bf16.xpose.msra.mxu0 0
    %1936 = vmatpush.bf16.xpose.msra.mxu0 0
    %1937 = vmatpush.bf16.xpose.msra.mxu0 0
    %1938 = vmatpush.bf16.xpose.msra.mxu0 0
    %1939 = vmatpush.bf16.xpose.msra.mxu0 0
    %1940 = vmatpush.bf16.xpose.msra.mxu0 0
    %1941 = vmatpush.bf16.xpose.msra.mxu0 0
    %1942 = vmatpush.bf16.xpose.msra.mxu0 %v1933
    %1943 = vmatmul.bf16.gmra.mxu0 %v1930
    %v1944 = vpop.f32.mrf.mxu0
    %v1945 = vadd.f32 0.0, %v1944
    %v1946 = vpop.f32.mrf.mxu0
    %1947 = vdwg.mxu0
    %v1948 = vsel %vm546, %v1922, -inf
    %1949 = vmax.xlane.f32.xlu0 %v1948
    %v1950 = vpop.xlane.xlu0 %1949
    %v1951 = vsel %vm546, %v1945, -inf
    %1952 = vmax.xlane.f32.xlu0 %v1951
    %v1953 = vpop.xlane.xlu0 %1952
    %v1954 = vsub.f32 %v1922, %v1950
    %v1955 = vsub.f32 %v1945, %v1953
    %v1956 = vmul.f32 %v1954, 1.442695
    %v1957 = vpow.pop %v1956
    %v1958 = vmul.f32 %v1955, 1.442695
    %v1959 = vpow.pop %v1958
    %v1960 = vsel %vm546, %v1957, 0.0
    %1961 = vadd.xlane.f32.xlu0 %v1960
    %v1962 = vpop.xlane.xlu0 %1961
    %v1963 = vsel %vm546, %v1959, 0.0
    %1964 = vadd.xlane.f32.xlu0 %v1963
    %v1965 = vpop.xlane.xlu0 %1964
    %v1966 = vrcp.pop %v1962
    %v1967 = vrcp.pop %v1965
    %v1968 = vmul.f32 %v1957, %v1966
    %v1969 = vmul.f32 %v1959, %v1967
    %v1970 = vpack.c.bf16 %v1968, %v1968
    %v1971 = vpack.c.bf16 %v1969, %v1969
    %1972 = vrot.lane.b32.xlu0 %v1856, 64
    %v1973 = vpop.permute.xlu0 %1972
    %v1975 = vsel %vm571, %v1970, 0
    %v1978 = vsel %vm575, %v1973, 0
    %1980 = vmatpush.bf16.msra.mxu0 0
    %1981 = vmatpush.bf16.msra.mxu0 0
    %1982 = vmatpush.bf16.msra.mxu0 0
    %1983 = vmatpush.bf16.msra.mxu0 0
    %1984 = vmatpush.bf16.msra.mxu0 0
    %1985 = vmatpush.bf16.msra.mxu0 0
    %1986 = vmatpush.bf16.msra.mxu0 0
    %1987 = vmatpush.bf16.msra.mxu0 %v1978
    %1988 = vmatmul.bf16.gmra.mxu0 %v1975
    %v1989 = vpop.f32.mrf.mxu0
    %v1990 = vadd.f32 0.0, %v1989
    %v1991 = vpop.f32.mrf.mxu0
    %1992 = vdwg.mxu0
    %1993 = vrot.lane.b32.xlu0 %v1880, 64
    %v1994 = vpop.permute.xlu0 %1993
    %v1996 = vsel %vm571, %v1971, 0
    %v1999 = vsel %vm575, %v1994, 0
    %2001 = vmatpush.bf16.msra.mxu0 0
    %2002 = vmatpush.bf16.msra.mxu0 0
    %2003 = vmatpush.bf16.msra.mxu0 0
    %2004 = vmatpush.bf16.msra.mxu0 0
    %2005 = vmatpush.bf16.msra.mxu0 0
    %2006 = vmatpush.bf16.msra.mxu0 0
    %2007 = vmatpush.bf16.msra.mxu0 0
    %2008 = vmatpush.bf16.msra.mxu0 %v1999
    %2009 = vmatmul.bf16.gmra.mxu0 %v1996
    %v2010 = vpop.f32.mrf.mxu0
    %v2011 = vadd.f32 0.0, %v2010
    %v2012 = vpop.f32.mrf.mxu0
    %2013 = vdwg.mxu0
    %2014 = vrot.lane.b32.xlu0 %v1774, 32
    %v2015 = vpop.permute.xlu0 %2014
    %2016 = vrot.lane.b32.xlu0 %v1779, 32
    %v2017 = vpop.permute.xlu0 %2016
    %v2019 = vsel %vm507, %v2015, 0
    %v2022 = vsel %vm507, %v2017, 0
    %2024 = vmatpush.bf16.xpose.msra.mxu0 0
    %2025 = vmatpush.bf16.xpose.msra.mxu0 0
    %2026 = vmatpush.bf16.xpose.msra.mxu0 0
    %2027 = vmatpush.bf16.xpose.msra.mxu0 0
    %2028 = vmatpush.bf16.xpose.msra.mxu0 0
    %2029 = vmatpush.bf16.xpose.msra.mxu0 0
    %2030 = vmatpush.bf16.xpose.msra.mxu0 0
    %2031 = vmatpush.bf16.xpose.msra.mxu0 %v2022
    %2032 = vmatmul.bf16.gmra.mxu0 %v2019
    %v2033 = vpop.f32.mrf.mxu0
    %v2034 = vadd.f32 0.0, %v2033
    %v2035 = vpop.f32.mrf.mxu0
    %2036 = vdwg.mxu0
    %2037 = vrot.lane.b32.xlu0 %v1803, 32
    %v2038 = vpop.permute.xlu0 %2037
    %2039 = vrot.lane.b32.xlu0 %v1808, 32
    %v2040 = vpop.permute.xlu0 %2039
    %v2042 = vsel %vm507, %v2038, 0
    %v2045 = vsel %vm507, %v2040, 0
    %2047 = vmatpush.bf16.xpose.msra.mxu0 0
    %2048 = vmatpush.bf16.xpose.msra.mxu0 0
    %2049 = vmatpush.bf16.xpose.msra.mxu0 0
    %2050 = vmatpush.bf16.xpose.msra.mxu0 0
    %2051 = vmatpush.bf16.xpose.msra.mxu0 0
    %2052 = vmatpush.bf16.xpose.msra.mxu0 0
    %2053 = vmatpush.bf16.xpose.msra.mxu0 0
    %2054 = vmatpush.bf16.xpose.msra.mxu0 %v2045
    %2055 = vmatmul.bf16.gmra.mxu0 %v2042
    %v2056 = vpop.f32.mrf.mxu0
    %v2057 = vadd.f32 0.0, %v2056
    %v2058 = vpop.f32.mrf.mxu0
    %2059 = vdwg.mxu0
    %v2060 = vsel %vm546, %v2034, -inf
    %2061 = vmax.xlane.f32.xlu0 %v2060
    %v2062 = vpop.xlane.xlu0 %2061
    %v2063 = vsel %vm546, %v2057, -inf
    %2064 = vmax.xlane.f32.xlu0 %v2063
    %v2065 = vpop.xlane.xlu0 %2064
    %v2066 = vsub.f32 %v2034, %v2062
    %v2067 = vsub.f32 %v2057, %v2065
    %v2068 = vmul.f32 %v2066, 1.442695
    %v2069 = vpow.pop %v2068
    %v2070 = vmul.f32 %v2067, 1.442695
    %v2071 = vpow.pop %v2070
    %v2072 = vsel %vm546, %v2069, 0.0
    %2073 = vadd.xlane.f32.xlu0 %v2072
    %v2074 = vpop.xlane.xlu0 %2073
    %v2075 = vsel %vm546, %v2071, 0.0
    %2076 = vadd.xlane.f32.xlu0 %v2075
    %v2077 = vpop.xlane.xlu0 %2076
    %v2078 = vrcp.pop %v2074
    %v2079 = vrcp.pop %v2077
    %v2080 = vmul.f32 %v2069, %v2078
    %v2081 = vmul.f32 %v2071, %v2079
    %v2082 = vpack.c.bf16 %v2080, %v2080
    %v2083 = vpack.c.bf16 %v2081, %v2081
    %2084 = vrot.lane.b32.xlu0 %v1856, 32
    %v2085 = vpop.permute.xlu0 %2084
    %v2087 = vsel %vm571, %v2082, 0
    %v2090 = vsel %vm575, %v2085, 0
    %2092 = vmatpush.bf16.msra.mxu0 0
    %2093 = vmatpush.bf16.msra.mxu0 0
    %2094 = vmatpush.bf16.msra.mxu0 0
    %2095 = vmatpush.bf16.msra.mxu0 0
    %2096 = vmatpush.bf16.msra.mxu0 0
    %2097 = vmatpush.bf16.msra.mxu0 0
    %2098 = vmatpush.bf16.msra.mxu0 0
    %2099 = vmatpush.bf16.msra.mxu0 %v2090
    %2100 = vmatmul.bf16.gmra.mxu0 %v2087
    %v2101 = vpop.f32.mrf.mxu0
    %v2102 = vadd.f32 0.0, %v2101
    %v2103 = vpop.f32.mrf.mxu0
    %2104 = vdwg.mxu0
    %2105 = vrot.lane.b32.xlu0 %v1880, 32
    %v2106 = vpop.permute.xlu0 %2105
    %v2108 = vsel %vm571, %v2083, 0
    %v2111 = vsel %vm575, %v2106, 0
    %2113 = vmatpush.bf16.msra.mxu0 0
    %2114 = vmatpush.bf16.msra.mxu0 0
    %2115 = vmatpush.bf16.msra.mxu0 0
    %2116 = vmatpush.bf16.msra.mxu0 0
    %2117 = vmatpush.bf16.msra.mxu0 0
    %2118 = vmatpush.bf16.msra.mxu0 0
    %2119 = vmatpush.bf16.msra.mxu0 0
    %2120 = vmatpush.bf16.msra.mxu0 %v2111
    %2121 = vmatmul.bf16.gmra.mxu0 %v2108
    %v2122 = vpop.f32.mrf.mxu0
    %v2123 = vadd.f32 0.0, %v2122
    %v2124 = vpop.f32.mrf.mxu0
    %2125 = vdwg.mxu0
    %2128 = vst [vmem:[#allocation1] ss:$2 sm:$0xff] %v1750
    %s2129 = scalar_lea.vmem [#allocation1], 1
    %2130 = vst [vmem:[%s2129] ss:$2 sm:$0xff] %v1769
    %v2131 = vld.sshfl [vmem:[#allocation1] sm:$0xff pattern:$0x75316420]
    %2135 = vst [vmem:[#allocation1] ss:$2 sm:$0xff] %v1875
    %s2136 = scalar_lea.vmem [#allocation1], 1
    %2137 = vst [vmem:[%s2136] ss:$2 sm:$0xff] %v1899
    %v2138 = vld.sshfl [vmem:[#allocation1] sm:$0xff pattern:$0x75316420]
    %2139 = vrot.lane.b32.xlu0 %v2138, 32
    %v2140 = vpop.permute.xlu0 %2139
    %2144 = vst [vmem:[#allocation1] ss:$2 sm:$0xff] %v1990
    %s2145 = scalar_lea.vmem [#allocation1], 1
    %2146 = vst [vmem:[%s2145] ss:$2 sm:$0xff] %v2011
    %v2147 = vld.sshfl [vmem:[#allocation1] sm:$0xff pattern:$0x75316420]
    %2148 = vrot.lane.b32.xlu0 %v2147, 64
    %v2149 = vpop.permute.xlu0 %2148
    %2153 = vst [vmem:[#allocation1] ss:$2 sm:$0xff] %v2102
    %s2154 = scalar_lea.vmem [#allocation1], 1
    %2155 = vst [vmem:[%s2154] ss:$2 sm:$0xff] %v2123
    %v2156 = vld.sshfl [vmem:[#allocation1] sm:$0xff pattern:$0x75316420]
    %2157 = vrot.lane.b32.xlu0 %v2156, 96
    %v2158 = vpop.permute.xlu0 %2157
    %v2160 = vsel %vm507, %v2131, %v2140
    %v2161 = vsel %vm230, %v2160, %v2149
    %v2162 = vsel %vm1001, %v2161, %v2158
    %v2163 = vpack.c.bf16 %v2162, %v2162
    %v2165 = vperm.slane %v1481, 0
    %v2183 = vunpack.c.l.b16 %v1464
    %v2184 = vunpack.c.l.b16 %v1465
    %v2185 = vunpack.c.l.b16 %v1466
    %v2186 = vunpack.c.l.b16 %v1467
    %v2187 = vunpack.c.l.b16 %v1468
    %v2188 = vunpack.c.l.b16 %v1469
    %v2189 = vunpack.c.l.b16 %v1470
    %v2190 = vunpack.c.l.b16 %v1471
    %v2191 = vunpack.c.l.b16 %v1472
    %v2192 = vunpack.c.l.b16 %v1473
    %v2193 = vunpack.c.l.b16 %v1474
    %v2194 = vunpack.c.l.b16 %v1475
    %v2195 = vunpack.c.l.b16 %v1476
    %v2196 = vunpack.c.l.b16 %v1477
    %v2197 = vunpack.c.l.b16 %v1478
    %v2198 = vunpack.c.l.b16 %v1479
    %v2199 = vpack.c.b16 %v2184, %v2183
    %v2200 = vpack.c.b16 %v2186, %v2185
    %v2201 = vpack.c.b16 %v2188, %v2187
    %v2202 = vpack.c.b16 %v2190, %v2189
    %v2203 = vpack.c.b16 %v2192, %v2191
    %v2204 = vpack.c.b16 %v2194, %v2193
    %v2205 = vpack.c.b16 %v2196, %v2195
    %v2206 = vpack.c.b16 %v2198, %v2197
    %2215 = vmatpush.bf16.msra.mxu0 %v2206
    %2216 = vmatpush.bf16.msra.mxu0 %v2205
    %2217 = vmatpush.bf16.msra.mxu0 %v2204
    %2218 = vmatpush.bf16.msra.mxu0 %v2203
    %2219 = vmatpush.bf16.msra.mxu0 %v2202
    %2220 = vmatpush.bf16.msra.mxu0 %v2201
    %2221 = vmatpush.bf16.msra.mxu0 %v2200
    %2222 = vmatpush.bf16.msra.mxu0 %v2199
    %2223 = vmatmul.bf16.gmra.mxu0 %v2163
    %v2224 = vpop.f32.mrf.mxu0
    %v2225 = vadd.f32 %v2165, %v2224
    %v2226 = vpop.f32.mrf.mxu0
    %2227 = vdwg.mxu0
    %v2228 = vadd.f32 %v1427, %v2225
    %s2229 = scalar_lea.vmem %s8, 1
    %v2230 = vld [vmem:[%s2229] sm:$0x1]
    %s2231 = scalar_lea.vmem %s9, 1
    %v2232 = vld [vmem:[%s2231] sm:$0x1]
    %2233 = vadd.xlane.f32.xlu0 %v2228
    %v2234 = vpop.xlane.xlu0 %2233
    %v2235 = vmul.f32 %v2234, %v1079
    %v2236 = vsub.f32 %v2228, %v2235
    %v2237 = vmul.f32 %v2236, %v2236
    %2238 = vadd.xlane.f32.xlu0 %v2237
    %v2239 = vpop.xlane.xlu0 %2238
    %v2240 = vmul.f32 %v2239, %v1079
    %v2241 = vadd.f32 %v2240, 1e-05
    %v2242 = vrsqrt.pop %v2241
    %v2243 = vmul.f32 %v2242, %v2241
    %v2244 = vmul.f32 %v2243, %v2242
    %v2245 = vmul.f32 0.5, %v2244
    %v2246 = vsub.f32 1.5, %v2245
    %v2247 = vmul.f32 %v2242, %v2246
    %vm2248 = vweird.f32 %v2241
    %vm2249 = vweird.f32 %v2242
    %vm2250 = vmor %vm2248, %vm2249
    %v2251 = vsel %vm2250, %v2242, %v2247
    %v2252 = vmul.f32 %v2236, %v2251
    %v2254 = vperm.slane %v2230, 0
    %v2256 = vmul.f32 %v2252, %v2254
    %v2258 = vperm.slane %v2232, 0
    %v2260 = vadd.f32 %v2256, %v2258
    %s2261 = scalar_lea.vmem [#allocation6], 128
    %v2262 = vld [vmem:[%s2261] sm:$0xff]
    %v2263 = vld [vmem:[%s2261 + $0x8] sm:$0xff]
    %v2264 = vld [vmem:[%s2261 + $0x10] sm:$0xff]
    %v2265 = vld [vmem:[%s2261 + $0x18] sm:$0xff]
    %v2266 = vld [vmem:[%s2261 + $0x20] sm:$0xff]
    %v2267 = vld [vmem:[%s2261 + $0x28] sm:$0xff]
    %v2268 = vld [vmem:[%s2261 + $0x30] sm:$0xff]
    %v2269 = vld [vmem:[%s2261 + $0x38] sm:$0xff]
    %v2270 = vld [vmem:[%s2261 + $0x40] sm:$0xff]
    %v2271 = vld [vmem:[%s2261 + $0x48] sm:$0xff]
    %v2272 = vld [vmem:[%s2261 + $0x50] sm:$0xff]
    %v2273 = vld [vmem:[%s2261 + $0x58] sm:$0xff]
    %v2274 = vld [vmem:[%s2261 + $0x60] sm:$0xff]
    %v2275 = vld [vmem:[%s2261 + $0x68] sm:$0xff]
    %v2276 = vld [vmem:[%s2261 + $0x70] sm:$0xff]
    %v2277 = vld [vmem:[%s2261 + $0x78] sm:$0xff]
    %s2278 = scalar_lea.vmem %s11, 2
    %v2279 = vld [vmem:[%s2278] sm:$0x3]
    %s2280 = scalar_lea.vmem [#allocation7], 128
    %v2281 = vld [vmem:[%s2280] sm:$0xf]
    %v2282 = vld [vmem:[%s2280 + $0x4] sm:$0xf]
    %v2283 = vld [vmem:[%s2280 + $0x8] sm:$0xf]
    %v2284 = vld [vmem:[%s2280 + $0xc] sm:$0xf]
    %v2285 = vld [vmem:[%s2280 + $0x10] sm:$0xf]
    %v2286 = vld [vmem:[%s2280 + $0x14] sm:$0xf]
    %v2287 = vld [vmem:[%s2280 + $0x18] sm:$0xf]
    %v2288 = vld [vmem:[%s2280 + $0x1c] sm:$0xf]
    %v2289 = vld [vmem:[%s2280 + $0x20] sm:$0xf]
    %v2290 = vld [vmem:[%s2280 + $0x24] sm:$0xf]
    %v2291 = vld [vmem:[%s2280 + $0x28] sm:$0xf]
    %v2292 = vld [vmem:[%s2280 + $0x2c] sm:$0xf]
    %v2293 = vld [vmem:[%s2280 + $0x30] sm:$0xf]
    %v2294 = vld [vmem:[%s2280 + $0x34] sm:$0xf]
    %v2295 = vld [vmem:[%s2280 + $0x38] sm:$0xf]
    %v2296 = vld [vmem:[%s2280 + $0x3c] sm:$0xf]
    %v2297 = vld [vmem:[%s2280 + $0x40] sm:$0xf]
    %v2298 = vld [vmem:[%s2280 + $0x44] sm:$0xf]
    %v2299 = vld [vmem:[%s2280 + $0x48] sm:$0xf]
    %v2300 = vld [vmem:[%s2280 + $0x4c] sm:$0xf]
    %v2301 = vld [vmem:[%s2280 + $0x50] sm:$0xf]
    %v2302 = vld [vmem:[%s2280 + $0x54] sm:$0xf]
    %v2303 = vld [vmem:[%s2280 + $0x58] sm:$0xf]
    %v2304 = vld [vmem:[%s2280 + $0x5c] sm:$0xf]
    %v2305 = vld [vmem:[%s2280 + $0x60] sm:$0xf]
    %v2306 = vld [vmem:[%s2280 + $0x64] sm:$0xf]
    %v2307 = vld [vmem:[%s2280 + $0x68] sm:$0xf]
    %v2308 = vld [vmem:[%s2280 + $0x6c] sm:$0xf]
    %v2309 = vld [vmem:[%s2280 + $0x70] sm:$0xf]
    %v2310 = vld [vmem:[%s2280 + $0x74] sm:$0xf]
    %v2311 = vld [vmem:[%s2280 + $0x78] sm:$0xf]
    %v2312 = vld [vmem:[%s2280 + $0x7c] sm:$0xf]
    %s2313 = scalar_lea.vmem %s13, 1
    %v2314 = vld [vmem:[%s2313] sm:$0x1]
    %v2315 = vpack.c.bf16 %v2260, %v2260
    %v2317 = vperm.slane %v2279, 0
    %v2318 = vperm.slane %v2279, 1
    %v2337 = vunpack.c.l.b16 %v2262
    %v2338 = vunpack.c.h.b16 %v2262
    %v2339 = vunpack.c.l.b16 %v2263
    %v2340 = vunpack.c.h.b16 %v2263
    %v2341 = vunpack.c.l.b16 %v2264
    %v2342 = vunpack.c.h.b16 %v2264
    %v2343 = vunpack.c.l.b16 %v2265
    %v2344 = vunpack.c.h.b16 %v2265
    %v2345 = vunpack.c.l.b16 %v2266
    %v2346 = vunpack.c.h.b16 %v2266
    %v2347 = vunpack.c.l.b16 %v2267
    %v2348 = vunpack.c.h.b16 %v2267
    %v2349 = vunpack.c.l.b16 %v2268
    %v2350 = vunpack.c.h.b16 %v2268
    %v2351 = vunpack.c.l.b16 %v2269
    %v2352 = vunpack.c.h.b16 %v2269
    %v2353 = vunpack.c.l.b16 %v2270
    %v2354 = vunpack.c.h.b16 %v2270
    %v2355 = vunpack.c.l.b16 %v2271
    %v2356 = vunpack.c.h.b16 %v2271
    %v2357 = vunpack.c.l.b16 %v2272
    %v2358 = vunpack.c.h.b16 %v2272
    %v2359 = vunpack.c.l.b16 %v2273
    %v2360 = vunpack.c.h.b16 %v2273
    %v2361 = vunpack.c.l.b16 %v2274
    %v2362 = vunpack.c.h.b16 %v2274
    %v2363 = vunpack.c.l.b16 %v2275
    %v2364 = vunpack.c.h.b16 %v2275
    %v2365 = vunpack.c.l.b16 %v2276
    %v2366 = vunpack.c.h.b16 %v2276
    %v2367 = vunpack.c.l.b16 %v2277
    %v2368 = vunpack.c.h.b16 %v2277
    %v2369 = vpack.c.b16 %v2339, %v2337
    %v2370 = vpack.c.b16 %v2340, %v2338
    %v2371 = vpack.c.b16 %v2343, %v2341
    %v2372 = vpack.c.b16 %v2344, %v2342
    %v2373 = vpack.c.b16 %v2347, %v2345
    %v2374 = vpack.c.b16 %v2348, %v2346
    %v2375 = vpack.c.b16 %v2351, %v2349
    %v2376 = vpack.c.b16 %v2352, %v2350
    %v2377 = vpack.c.b16 %v2355, %v2353
    %v2378 = vpack.c.b16 %v2356, %v2354
    %v2379 = vpack.c.b16 %v2359, %v2357
    %v2380 = vpack.c.b16 %v2360, %v2358
    %v2381 = vpack.c.b16 %v2363, %v2361
    %v2382 = vpack.c.b16 %v2364, %v2362
    %v2383 = vpack.c.b16 %v2367, %v2365
    %v2384 = vpack.c.b16 %v2368, %v2366
    %2401 = vmatpush.bf16.msra.mxu0 %v2383
    %2402 = vmatpush.bf16.msra.mxu0 %v2381
    %2403 = vmatpush.bf16.msra.mxu0 %v2379
    %2404 = vmatpush.bf16.msra.mxu0 %v2377
    %2405 = vmatpush.bf16.msra.mxu0 %v2375
    %2406 = vmatpush.bf16.msra.mxu0 %v2373
    %2407 = vmatpush.bf16.msra.mxu0 %v2371
    %2408 = vmatpush.bf16.msra.mxu0 %v2369
    %2409 = vmatmul.bf16.gmra.mxu0 %v2315
    %v2410 = vpop.f32.mrf.mxu0
    %v2411 = vadd.f32 %v2317, %v2410
    %v2412 = vpop.f32.mrf.mxu0
    %2413 = vdwg.mxu0
    %2414 = vmatpush.bf16.msra.mxu0 %v2384
    %2415 = vmatpush.bf16.msra.mxu0 %v2382
    %2416 = vmatpush.bf16.msra.mxu0 %v2380
    %2417 = vmatpush.bf16.msra.mxu0 %v2378
    %2418 = vmatpush.bf16.msra.mxu0 %v2376
    %2419 = vmatpush.bf16.msra.mxu0 %v2374
    %2420 = vmatpush.bf16.msra.mxu0 %v2372
    %2421 = vmatpush.bf16.msra.mxu0 %v2370
    %2422 = vmatmul.bf16.gmra.mxu0 %v2315
    %v2423 = vpop.f32.mrf.mxu0
    %v2424 = vadd.f32 %v2318, %v2423
    %v2425 = vpop.f32.mrf.mxu0
    %2426 = vdwg.mxu0
    %v2427 = vmax.f32 %v2411, 0.0
    %v2428 = vmax.f32 %v2424, 0.0
    %v2429 = vpack.c.bf16 %v2427, %v2427
    %v2430 = vpack.c.bf16 %v2428, %v2428
    %v2432 = vperm.slane %v2314, 0
    %v2466 = vunpack.c.l.b16 %v2281
    %v2467 = vunpack.c.l.b16 %v2282
    %v2468 = vunpack.c.l.b16 %v2283
    %v2469 = vunpack.c.l.b16 %v2284
    %v2470 = vunpack.c.l.b16 %v2285
    %v2471 = vunpack.c.l.b16 %v2286
    %v2472 = vunpack.c.l.b16 %v2287
    %v2473 = vunpack.c.l.b16 %v2288
    %v2474 = vunpack.c.l.b16 %v2289
    %v2475 = vunpack.c.l.b16 %v2290
    %v2476 = vunpack.c.l.b16 %v2291
    %v2477 = vunpack.c.l.b16 %v2292
    %v2478 = vunpack.c.l.b16 %v2293
    %v2479 = vunpack.c.l.b16 %v2294
    %v2480 = vunpack.c.l.b16 %v2295
    %v2481 = vunpack.c.l.b16 %v2296
    %v2482 = vunpack.c.l.b16 %v2297
    %v2483 = vunpack.c.l.b16 %v2298
    %v2484 = vunpack.c.l.b16 %v2299
    %v2485 = vunpack.c.l.b16 %v2300
    %v2486 = vunpack.c.l.b16 %v2301
    %v2487 = vunpack.c.l.b16 %v2302
    %v2488 = vunpack.c.l.b16 %v2303
    %v2489 = vunpack.c.l.b16 %v2304
    %v2490 = vunpack.c.l.b16 %v2305
    %v2491 = vunpack.c.l.b16 %v2306
    %v2492 = vunpack.c.l.b16 %v2307
    %v2493 = vunpack.c.l.b16 %v2308
    %v2494 = vunpack.c.l.b16 %v2309
    %v2495 = vunpack.c.l.b16 %v2310
    %v2496 = vunpack.c.l.b16 %v2311
    %v2497 = vunpack.c.l.b16 %v2312
    %v2498 = vpack.c.b16 %v2467, %v2466
    %v2499 = vpack.c.b16 %v2469, %v2468
    %v2500 = vpack.c.b16 %v2471, %v2470
    %v2501 = vpack.c.b16 %v2473, %v2472
    %v2502 = vpack.c.b16 %v2475, %v2474
    %v2503 = vpack.c.b16 %v2477, %v2476
    %v2504 = vpack.c.b16 %v2479, %v2478
    %v2505 = vpack.c.b16 %v2481, %v2480
    %v2506 = vpack.c.b16 %v2483, %v2482
    %v2507 = vpack.c.b16 %v2485, %v2484
    %v2508 = vpack.c.b16 %v2487, %v2486
    %v2509 = vpack.c.b16 %v2489, %v2488
    %v2510 = vpack.c.b16 %v2491, %v2490
    %v2511 = vpack.c.b16 %v2493, %v2492
    %v2512 = vpack.c.b16 %v2495, %v2494
    %v2513 = vpack.c.b16 %v2497, %v2496
    %2530 = vmatpush.bf16.msra.mxu0 %v2505
    %2531 = vmatpush.bf16.msra.mxu0 %v2504
    %2532 = vmatpush.bf16.msra.mxu0 %v2503
    %2533 = vmatpush.bf16.msra.mxu0 %v2502
    %2534 = vmatpush.bf16.msra.mxu0 %v2501
    %2535 = vmatpush.bf16.msra.mxu0 %v2500
    %2536 = vmatpush.bf16.msra.mxu0 %v2499
    %2537 = vmatpush.bf16.msra.mxu0 %v2498
    %2538 = vmatmul.bf16.gmra.mxu0 %v2429
    %v2539 = vpop.f32.mrf.mxu0
    %v2540 = vadd.f32 %v2432, %v2539
    %v2541 = vpop.f32.mrf.mxu0
    %2542 = vdwg.mxu0
    %2543 = vmatpush.bf16.msra.mxu0 %v2513
    %2544 = vmatpush.bf16.msra.mxu0 %v2512
    %2545 = vmatpush.bf16.msra.mxu0 %v2511
    %2546 = vmatpush.bf16.msra.mxu0 %v2510
    %2547 = vmatpush.bf16.msra.mxu0 %v2509
    %2548 = vmatpush.bf16.msra.mxu0 %v2508
    %2549 = vmatpush.bf16.msra.mxu0 %v2507
    %2550 = vmatpush.bf16.msra.mxu0 %v2506
    %2551 = vmatmul.bf16.gmra.mxu0 %v2430
    %v2552 = vpop.f32.mrf.mxu0
    %v2553 = vadd.f32 %v2540, %v2552
    %v2554 = vpop.f32.mrf.mxu0
    %2555 = vdwg.mxu0
    %v2556 = vadd.f32 %v2260, %v2553
    %s2557 = scalar_lea.vmem %s14, 1
    %v2558 = vld [vmem:[%s2557] sm:$0x1]
    %s2559 = scalar_lea.vmem %s15, 1
    %v2560 = vld [vmem:[%s2559] sm:$0x1]
    %2561 = vadd.xlane.f32.xlu0 %v2556
    %v2562 = vpop.xlane.xlu0 %2561
    %v2563 = vmul.f32 %v2562, %v1079
    %v2564 = vsub.f32 %v2556, %v2563
    %v2565 = vmul.f32 %v2564, %v2564
    %2566 = vadd.xlane.f32.xlu0 %v2565
    %v2567 = vpop.xlane.xlu0 %2566
    %v2568 = vmul.f32 %v2567, %v1079
    %v2569 = vadd.f32 %v2568, 1e-05
    %v2570 = vrsqrt.pop %v2569
    %v2571 = vmul.f32 %v2570, %v2569
    %v2572 = vmul.f32 %v2571, %v2570
    %v2573 = vmul.f32 0.5, %v2572
    %v2574 = vsub.f32 1.5, %v2573
    %v2575 = vmul.f32 %v2570, %v2574
    %vm2576 = vweird.f32 %v2569
    %vm2577 = vweird.f32 %v2570
    %vm2578 = vmor %vm2576, %vm2577
    %v2579 = vsel %vm2578, %v2570, %v2575
    %v2580 = vmul.f32 %v2564, %v2579
    %v2582 = vperm.slane %v2558, 0
    %v2584 = vmul.f32 %v2580, %v2582
    %v2586 = vperm.slane %v2560, 0
    %v2588 = vadd.f32 %v2584, %v2586
    %v2590 = vrot.slane %v2588, 4
    %v2592 = vpack.c.bf16 %v2588, %v2588
    %v2593 = vpack.c.bf16 %v2590, %v2590
    %2594 = vst [vmem:[%s16] sm:$0x3] %v2592
    %2595 = vst [vmem:[%s16 + $0x2] sm:$0x3] %v2593
    // Predicated region
    $region82: #{forward.2} parent=1 // pred_check
      _
    $region83: #{forward.2} parent=1 // pred_check_branch
      %2597 = sbr.rel (0) target = $region85
    $region84: #{forward.2} parent=1 // pred_region
      _
    $region85: #{forward.2} parent=1 // pred_fallthru
      _
    // Predicated region
    $region86: #{forward.2} parent=1 // pred_check
      _
    $region87: #{forward.2} parent=1 // pred_check_branch
      %2599 = sbr.rel (0) target = $region89
    $region88: #{forward.2} parent=1 // pred_region
      _
    $region89: #{forward.2} parent=1 // pred_fallthru
      _
    %2600 = vsyncpa [#allocation3], 1
    %2601 = vsyncpa [#allocation5], 1
    %2602 = vsyncpa [#allocation8], 1

// kernel: forward.3
$region0: #{forward.3}
  #allocation0 [shape = 'u32[]', space=smem, size = 0x4, offset = 0x4, fixed_abs, tag = 'smem constant byte address 0x4 - core index']
  #allocation1 [shape = 'u32[72,128]{1,0:T(1,128)}', space=vmem, size = 0x9000, scoped, tag = 'internal scratch']
  %s0 = inlined_call_operand.vmem [shape: f32[2,8,128], index: 0, kind: input, shape index: {}]
  %s1 = inlined_call_operand.vmem [shape: bf16[2,4,128], index: 1, kind: input, shape index: {}]
  %s2 = inlined_call_operand.vmem [shape: bf16[2,128,384], index: 2, kind: input, shape index: {}]
  %s3 = inlined_call_operand.vmem [shape: f32[2,1,384], index: 3, kind: input, shape index: {}]
  %s4 = inlined_call_operand.hbm [shape: bf16[2,128,128], index: 4, kind: input, shape index: {}]
  %s5 = inlined_call_operand.vmem [shape: f32[2,1,128], index: 5, kind: input, shape index: {}]
  %s6 = inlined_call_operand.vmem [shape: f32[2,1,128], index: 6, kind: input, shape index: {}]
  %s7 = inlined_call_operand.vmem [shape: f32[2,1,128], index: 7, kind: input, shape index: {}]
  %s8 = inlined_call_operand.hbm [shape: bf16[2,128,128], index: 8, kind: input, shape index: {}]
  %s9 = inlined_call_operand.vmem [shape: f32[2,1,128], index: 9, kind: input, shape index: {}]
  %s10 = inlined_call_operand.vmem [shape: bf16[2,128,256], index: 10, kind: input, shape index: {}]
  %s11 = inlined_call_operand.vmem [shape: f32[2,1,256], index: 11, kind: input, shape index: {}]
  %s12 = inlined_call_operand.hbm [shape: bf16[2,128,128], index: 12, kind: input, shape index: {}]
  %s13 = inlined_call_operand.vmem [shape: f32[2,1,128], index: 13, kind: input, shape index: {}]
  %s14 = inlined_call_operand.vmem [shape: f32[2,1,128], index: 14, kind: input, shape index: {}]
  %s15 = inlined_call_operand.vmem [shape: f32[2,1,128], index: 15, kind: input, shape index: {}]
  %s16 = inlined_call_operand.hbm [shape: bf16[2,128,256], index: 16, kind: input, shape index: {}]
  %s17 = inlined_call_operand.vmem [shape: f32[2,1,256], index: 17, kind: input, shape index: {}]
  %s18 = inlined_call_operand.hbm [shape: bf16[2,256,128], index: 18, kind: input, shape index: {}]
  %s19 = inlined_call_operand.vmem [shape: f32[2,1,128], index: 19, kind: input, shape index: {}]
  %s20 = inlined_call_operand.vmem [shape: f32[2,1,128], index: 20, kind: input, shape index: {}]
  %s21 = inlined_call_operand.vmem [shape: f32[2,1,128], index: 21, kind: input, shape index: {}]
  %s22 = inlined_call_operand.hbm [shape: bf16[128,128], index: 22, kind: input, shape index: {}]
  %s23 = inlined_call_operand.vmem [shape: f32[1,128], index: 23, kind: input, shape index: {}]
  %s24 = inlined_call_operand.hbm [shape: f32[16,128], index: 24, kind: output, shape index: {}]
  %s25 = sld [smem:[#allocation0]]
  $region130: #{forward.3} parent=0
    _
  %s27 = ssub.s32 1, %s25
  %s28 = scalar_select 0, %s27, %s25
  $region1: #{forward.3} parent=0
    #allocation2 [shape = 'u8[65536]{0}', space=vmem, size = 0x10000, scoped, tag = 'input window, operand 4, single buffered']
    #allocation3 [shape = 's32[1]{0}', space=sflag, size = 0x4, scoped, tag = 'scoped memory for forward.3']
    #allocation4 [shape = 's32[1]{0}', space=sflag, size = 0x4, scoped, tag = 'scoped memory for forward.3']
    #allocation5 [shape = 'u8[65536]{0}', space=vmem, size = 0x10000, scoped, tag = 'input window, operand 8, single buffered']
    #allocation6 [shape = 's32[1]{0}', space=sflag, size = 0x4, scoped, tag = 'scoped memory for forward.3']
    #allocation7 [shape = 'u8[65536]{0}', space=vmem, size = 0x10000, scoped, tag = 'input window, operand 12, single buffered']
    #allocation8 [shape = 'u8[131072]{0}', space=vmem, size = 0x20000, scoped, tag = 'input window, operand 16, single buffered']
    #allocation9 [shape = 's32[1]{0}', space=sflag, size = 0x4, scoped, tag = 'scoped memory for forward.3']
    #allocation10 [shape = 'u8[131072]{0}', space=vmem, size = 0x20000, scoped, tag = 'input window, operand 18, single buffered']
    #allocation11 [shape = 'u8[32768]{0}', space=vmem, size = 0x8000, scoped, tag = 'input window, operand 22, single buffered']
    #allocation12 [shape = 's32[1]{0}', space=sflag, size = 0x4, scoped, tag = 'scoped memory for forward.3']
    #allocation13 [shape = 'u8[8192]{0}', space=vmem, size = 0x2000, scoped, tag = 'output window, operand 0, single buffered']
    %29 = vsyncpa [#allocation3], 0
    %30 = vsyncpa [#allocation6], 0
    %31 = vsyncpa [#allocation9], 0
    %32 = vsyncpa [#allocation12], 0
    %33 = vsyncpa [#allocation4], 0
    // Predicated region
    $region2: #{forward.3} parent=1 // pred_check
      _
    $region3: #{forward.3} parent=1 // pred_check_branch
      %35 = sbr.rel (0) target = $region5
    $region4: #{forward.3} parent=1 // pred_region
      _
    $region5: #{forward.3} parent=1 // pred_fallthru
      _
    // Predicated region
    $region6: #{forward.3} parent=1 // pred_check
      _
    $region7: #{forward.3} parent=1 // pred_check_branch
      %37 = sbr.rel (0) target = $region9
    $region8: #{forward.3} parent=1 // pred_region
      _
    $region9: #{forward.3} parent=1 // pred_fallthru
      _
    // Predicated region
    $region10: #{forward.3} parent=1 // pred_check
      _
    $region11: #{forward.3} parent=1 // pred_check_branch
      %39 = sbr.rel (0) target = $region13
    $region12: #{forward.3} parent=1 // pred_region
      _
    $region13: #{forward.3} parent=1 // pred_fallthru
      _
    // Predicated region
    $region14: #{forward.3} parent=1 // pred_check
      _
    $region15: #{forward.3} parent=1 // pred_check_branch
      %41 = sbr.rel (0) target = $region17
    $region16: #{forward.3} parent=1 // pred_region
      _
    $region17: #{forward.3} parent=1 // pred_fallthru
      _
    // Predicated region
    $region18: #{forward.3} parent=1 // pred_check
      _
    $region19: #{forward.3} parent=1 // pred_check_branch
      %43 = sbr.rel (0) target = $region21
    $region20: #{forward.3} parent=1 // pred_region
      %45 = vsyncadd [#allocation3], 0
      %s46 = sshll.u32 %s4, 4
      %s47 = int_to_ptr.hbm [resolvable:$true] %s46
      %s48 = sshll.u32 [#allocation2], 4
      %s49 = int_to_ptr.vmem [resolvable:$true] %s48
      %54 = dma.hbm_to_vmem [thread:$0]  %s47, 2048, %s49, [#allocation3], 64, 64, 4
    $region21: #{forward.3} parent=1 // pred_fallthru
      _
    // Predicated region
    $region22: #{forward.3} parent=1 // pred_check
      _
    $region23: #{forward.3} parent=1 // pred_check_branch
      %56 = sbr.rel (0) target = $region25
    $region24: #{forward.3} parent=1 // pred_region
      _
    $region25: #{forward.3} parent=1 // pred_fallthru
      _
    // Predicated region
    $region26: #{forward.3} parent=1 // pred_check
      _
    $region27: #{forward.3} parent=1 // pred_check_branch
      %58 = sbr.rel (0) target = $region29
    $region28: #{forward.3} parent=1 // pred_region
      _
    $region29: #{forward.3} parent=1 // pred_fallthru
      _
    // Predicated region
    $region30: #{forward.3} parent=1 // pred_check
      _
    $region31: #{forward.3} parent=1 // pred_check_branch
      %60 = sbr.rel (0) target = $region33
    $region32: #{forward.3} parent=1 // pred_region
      _
    $region33: #{forward.3} parent=1 // pred_fallthru
      _
    // Predicated region
    $region34: #{forward.3} parent=1 // pred_check
      _
    $region35: #{forward.3} parent=1 // pred_check_branch
      %62 = sbr.rel (0) target = $region37
    $region36: #{forward.3} parent=1 // pred_region
      %64 = vsyncadd [#allocation6], 0
      %s65 = sshll.u32 %s8, 4
      %s66 = int_to_ptr.hbm [resolvable:$true] %s65
      %s67 = sshll.u32 [#allocation5], 4
      %s68 = int_to_ptr.vmem [resolvable:$true] %s67
      %73 = dma.hbm_to_vmem [thread:$0]  %s66, 2048, %s68, [#allocation6], 64, 64, 4
    $region37: #{forward.3} parent=1 // pred_fallthru
      _
    // Predicated region
    $region38: #{forward.3} parent=1 // pred_check
      _
    $region39: #{forward.3} parent=1 // pred_check_branch
      %75 = sbr.rel (0) target = $region41
    $region40: #{forward.3} parent=1 // pred_region
      _
    $region41: #{forward.3} parent=1 // pred_fallthru
      _
    // Predicated region
    $region42: #{forward.3} parent=1 // pred_check
      _
    $region43: #{forward.3} parent=1 // pred_check_branch
      %77 = sbr.rel (0) target = $region45
    $region44: #{forward.3} parent=1 // pred_region
      _
    $region45: #{forward.3} parent=1 // pred_fallthru
      _
    // Predicated region
    $region46: #{forward.3} parent=1 // pred_check
      _
    $region47: #{forward.3} parent=1 // pred_check_branch
      %79 = sbr.rel (0) target = $region49
    $region48: #{forward.3} parent=1 // pred_region
      _
    $region49: #{forward.3} parent=1 // pred_fallthru
      _
    // Predicated region
    $region50: #{forward.3} parent=1 // pred_check
      _
    $region51: #{forward.3} parent=1 // pred_check_branch
      %81 = sbr.rel (0) target = $region53
    $region52: #{forward.3} parent=1 // pred_region
      %83 = vsyncadd [#allocation6], 0
      %s84 = sshll.u32 %s12, 4
      %s85 = int_to_ptr.hbm [resolvable:$true] %s84
      %s86 = sshll.u32 [#allocation7], 4
      %s87 = int_to_ptr.vmem [resolvable:$true] %s86
      %92 = dma.hbm_to_vmem [thread:$0]  %s85, 2048, %s87, [#allocation6], 64, 64, 4
    $region53: #{forward.3} parent=1 // pred_fallthru
      _
    // Predicated region
    $region54: #{forward.3} parent=1 // pred_check
      _
    $region55: #{forward.3} parent=1 // pred_check_branch
      %94 = sbr.rel (0) target = $region57
    $region56: #{forward.3} parent=1 // pred_region
      _
    $region57: #{forward.3} parent=1 // pred_fallthru
      _
    // Predicated region
    $region58: #{forward.3} parent=1 // pred_check
      _
    $region59: #{forward.3} parent=1 // pred_check_branch
      %96 = sbr.rel (0) target = $region61
    $region60: #{forward.3} parent=1 // pred_region
      _
    $region61: #{forward.3} parent=1 // pred_fallthru
      _
    // Predicated region
    $region62: #{forward.3} parent=1 // pred_check
      _
    $region63: #{forward.3} parent=1 // pred_check_branch
      %98 = sbr.rel (0) target = $region65
    $region64: #{forward.3} parent=1 // pred_region
      _
    $region65: #{forward.3} parent=1 // pred_fallthru
      _
    // Predicated region
    $region66: #{forward.3} parent=1 // pred_check
      _
    $region67: #{forward.3} parent=1 // pred_check_branch
      %100 = sbr.rel (0) target = $region69
    $region68: #{forward.3} parent=1 // pred_region
      %102 = vsyncadd [#allocation9], 0
      %s103 = sshll.u32 %s16, 4
      %s104 = int_to_ptr.hbm [resolvable:$true] %s103
      %s105 = sshll.u32 [#allocation8], 4
      %s106 = int_to_ptr.vmem [resolvable:$true] %s105
      %111 = dma.hbm_to_vmem [thread:$0]  %s104, 4096, %s106, [#allocation9], 128, 128, 8
    $region69: #{forward.3} parent=1 // pred_fallthru
      _
    // Predicated region
    $region70: #{forward.3} parent=1 // pred_check
      _
    $region71: #{forward.3} parent=1 // pred_check_branch
      %113 = sbr.rel (0) target = $region73
    $region72: #{forward.3} parent=1 // pred_region
      _
    $region73: #{forward.3} parent=1 // pred_fallthru
      _
    // Predicated region
    $region74: #{forward.3} parent=1 // pred_check
      _
    $region75: #{forward.3} parent=1 // pred_check_branch
      %115 = sbr.rel (0) target = $region77
    $region76: #{forward.3} parent=1 // pred_region
      %117 = vsyncadd [#allocation9], 0
      %s118 = sshll.u32 %s18, 4
      %s119 = int_to_ptr.hbm [resolvable:$true] %s118
      %s120 = sshll.u32 [#allocation10], 4
      %s121 = int_to_ptr.vmem [resolvable:$true] %s120
      %126 = dma.hbm_to_vmem [thread:$0]  %s119, 4096, %s121, [#allocation9], 64, 64, 4
    $region77: #{forward.3} parent=1 // pred_fallthru
      _
    // Predicated region
    $region78: #{forward.3} parent=1 // pred_check
      _
    $region79: #{forward.3} parent=1 // pred_check_branch
      %128 = sbr.rel (0) target = $region81
    $region80: #{forward.3} parent=1 // pred_region
      _
    $region81: #{forward.3} parent=1 // pred_fallthru
      _
    // Predicated region
    $region82: #{forward.3} parent=1 // pred_check
      _
    $region83: #{forward.3} parent=1 // pred_check_branch
      %130 = sbr.rel (0) target = $region85
    $region84: #{forward.3} parent=1 // pred_region
      _
    $region85: #{forward.3} parent=1 // pred_fallthru
      _
    // Predicated region
    $region86: #{forward.3} parent=1 // pred_check
      _
    $region87: #{forward.3} parent=1 // pred_check_branch
      %132 = sbr.rel (0) target = $region89
    $region88: #{forward.3} parent=1 // pred_region
      _
    $region89: #{forward.3} parent=1 // pred_fallthru
      _
    // Predicated region
    $region90: #{forward.3} parent=1 // pred_check
      _
    $region91: #{forward.3} parent=1 // pred_check_branch
      %134 = sbr.rel (0) target = $region93
    $region92: #{forward.3} parent=1 // pred_region
      %136 = vsyncadd [#allocation12], 0
      %s137 = sshll.u32 %s22, 4
      %s138 = int_to_ptr.hbm [resolvable:$true] %s137
      %s139 = sshll.u32 [#allocation11], 4
      %s140 = int_to_ptr.vmem [resolvable:$true] %s139
      %145 = dma.hbm_to_vmem [thread:$0]  %s138, 1024, %s140, [#allocation12], 64, 64, 4
    $region93: #{forward.3} parent=1 // pred_fallthru
      _
    // Predicated region
    $region94: #{forward.3} parent=1 // pred_check
      _
    $region95: #{forward.3} parent=1 // pred_check_branch
      %147 = sbr.rel (0) target = $region97
    $region96: #{forward.3} parent=1 // pred_region
      _
    $region97: #{forward.3} parent=1 // pred_fallthru
      _
    // Predicated region
    $region98: #{forward.3} parent=1 // pred_check
      _
    $region99: #{forward.3} parent=1 // pred_check_branch
      %149 = sbr.rel (0) target = $region101
    $region100: #{forward.3} parent=1 // pred_region
      %151 = dma.done [#allocation3], 2048
    $region101: #{forward.3} parent=1 // pred_fallthru
      _
    // Predicated region
    $region102: #{forward.3} parent=1 // pred_check
      _
    $region103: #{forward.3} parent=1 // pred_check_branch
      %153 = sbr.rel (0) target = $region105
    $region104: #{forward.3} parent=1 // pred_region
      %155 = dma.done [#allocation6], 2048
    $region105: #{forward.3} parent=1 // pred_fallthru
      _
    // Predicated region
    $region106: #{forward.3} parent=1 // pred_check
      _
    $region107: #{forward.3} parent=1 // pred_check_branch
      %157 = sbr.rel (0) target = $region109
    $region108: #{forward.3} parent=1 // pred_region
      %159 = dma.done [#allocation6], 2048
    $region109: #{forward.3} parent=1 // pred_fallthru
      _
    // Predicated region
    $region110: #{forward.3} parent=1 // pred_check
      _
    $region111: #{forward.3} parent=1 // pred_check_branch
      %161 = sbr.rel (0) target = $region113
    $region112: #{forward.3} parent=1 // pred_region
      %163 = dma.done [#allocation9], 4096
    $region113: #{forward.3} parent=1 // pred_fallthru
      _
    // Predicated region
    $region114: #{forward.3} parent=1 // pred_check
      _
    $region115: #{forward.3} parent=1 // pred_check_branch
      %165 = sbr.rel (0) target = $region117
    $region116: #{forward.3} parent=1 // pred_region
      %167 = dma.done [#allocation9], 4096
    $region117: #{forward.3} parent=1 // pred_fallthru
      _
    // Predicated region
    $region118: #{forward.3} parent=1 // pred_check
      _
    $region119: #{forward.3} parent=1 // pred_check_branch
      %169 = sbr.rel (0) target = $region121
    $region120: #{forward.3} parent=1 // pred_region
      %171 = dma.done [#allocation12], 1024
    $region121: #{forward.3} parent=1 // pred_fallthru
      _
    %v173 = vld [vmem:[%s0] sm:$0xff]
    %v174 = vld [vmem:[%s0 + $0x8] sm:$0xff]
    %v175 = vld [vmem:[%s1] sm:$0x3]
    %v176 = vld [vmem:[%s1 + $0x2] sm:$0x3]
    %v177 = vld [vmem:[%s2] sm:$0xff]
    %v178 = vld [vmem:[%s2 + $0x8] sm:$0xf]
    %v179 = vld [vmem:[%s2 + $0xc] sm:$0xff]
    %v180 = vld [vmem:[%s2 + $0x14] sm:$0xf]
    %v181 = vld [vmem:[%s2 + $0x18] sm:$0xff]
    %v182 = vld [vmem:[%s2 + $0x20] sm:$0xf]
    %v183 = vld [vmem:[%s2 + $0x24] sm:$0xff]
    %v184 = vld [vmem:[%s2 + $0x2c] sm:$0xf]
    %v185 = vld [vmem:[%s2 + $0x30] sm:$0xff]
    %v186 = vld [vmem:[%s2 + $0x38] sm:$0xf]
    %v187 = vld [vmem:[%s2 + $0x3c] sm:$0xff]
    %v188 = vld [vmem:[%s2 + $0x44] sm:$0xf]
    %v189 = vld [vmem:[%s2 + $0x48] sm:$0xff]
    %v190 = vld [vmem:[%s2 + $0x50] sm:$0xf]
    %v191 = vld [vmem:[%s2 + $0x54] sm:$0xff]
    %v192 = vld [vmem:[%s2 + $0x5c] sm:$0xf]
    %v193 = vld [vmem:[%s2 + $0x60] sm:$0xff]
    %v194 = vld [vmem:[%s2 + $0x68] sm:$0xf]
    %v195 = vld [vmem:[%s2 + $0x6c] sm:$0xff]
    %v196 = vld [vmem:[%s2 + $0x74] sm:$0xf]
    %v197 = vld [vmem:[%s2 + $0x78] sm:$0xff]
    %v198 = vld [vmem:[%s2 + $0x80] sm:$0xf]
    %v199 = vld [vmem:[%s2 + $0x84] sm:$0xff]
    %v200 = vld [vmem:[%s2 + $0x8c] sm:$0xf]
    %v201 = vld [vmem:[%s2 + $0x90] sm:$0xff]
    %v202 = vld [vmem:[%s2 + $0x98] sm:$0xf]
    %v203 = vld [vmem:[%s2 + $0x9c] sm:$0xff]
    %v204 = vld [vmem:[%s2 + $0xa4] sm:$0xf]
    %v205 = vld [vmem:[%s2 + $0xa8] sm:$0xff]
    %v206 = vld [vmem:[%s2 + $0xb0] sm:$0xf]
    %v207 = vld [vmem:[%s2 + $0xb4] sm:$0xff]
    %v208 = vld [vmem:[%s2 + $0xbc] sm:$0xf]
    %v209 = vld [vmem:[%s3] sm:$0x7]
    %v210 = vld [vmem:[#allocation2] sm:$0xf]
    %v211 = vld [vmem:[#allocation2 + $0x4] sm:$0xf]
    %v212 = vld [vmem:[#allocation2 + $0x8] sm:$0xf]
    %v213 = vld [vmem:[#allocation2 + $0xc] sm:$0xf]
    %v214 = vld [vmem:[#allocation2 + $0x10] sm:$0xf]
    %v215 = vld [vmem:[#allocation2 + $0x14] sm:$0xf]
    %v216 = vld [vmem:[#allocation2 + $0x18] sm:$0xf]
    %v217 = vld [vmem:[#allocation2 + $0x1c] sm:$0xf]
    %v218 = vld [vmem:[#allocation2 + $0x20] sm:$0xf]
    %v219 = vld [vmem:[#allocation2 + $0x24] sm:$0xf]
    %v220 = vld [vmem:[#allocation2 + $0x28] sm:$0xf]
    %v221 = vld [vmem:[#allocation2 + $0x2c] sm:$0xf]
    %v222 = vld [vmem:[#allocation2 + $0x30] sm:$0xf]
    %v223 = vld [vmem:[#allocation2 + $0x34] sm:$0xf]
    %v224 = vld [vmem:[#allocation2 + $0x38] sm:$0xf]
    %v225 = vld [vmem:[#allocation2 + $0x3c] sm:$0xf]
    %v226 = vld [vmem:[%s5] sm:$0x1]
    %v227 = vpack.c.bf16 %v174, %v173
    %v229 = vperm.slane %v209, 0
    %v230 = vperm.slane %v209, 1
    %v231 = vperm.slane %v209, 2
    %v267 = vunpack.c.l.b16 %v177
    %v268 = vunpack.c.h.b16 %v177
    %v269 = vunpack.c.l.b16 %v178
    %v270 = vunpack.c.l.b16 %v179
    %v271 = vunpack.c.h.b16 %v179
    %v272 = vunpack.c.l.b16 %v180
    %v273 = vunpack.c.l.b16 %v181
    %v274 = vunpack.c.h.b16 %v181
    %v275 = vunpack.c.l.b16 %v182
    %v276 = vunpack.c.l.b16 %v183
    %v277 = vunpack.c.h.b16 %v183
    %v278 = vunpack.c.l.b16 %v184
    %v279 = vunpack.c.l.b16 %v185
    %v280 = vunpack.c.h.b16 %v185
    %v281 = vunpack.c.l.b16 %v186
    %v282 = vunpack.c.l.b16 %v187
    %v283 = vunpack.c.h.b16 %v187
    %v284 = vunpack.c.l.b16 %v188
    %v285 = vunpack.c.l.b16 %v189
    %v286 = vunpack.c.h.b16 %v189
    %v287 = vunpack.c.l.b16 %v190
    %v288 = vunpack.c.l.b16 %v191
    %v289 = vunpack.c.h.b16 %v191
    %v290 = vunpack.c.l.b16 %v192
    %v291 = vunpack.c.l.b16 %v193
    %v292 = vunpack.c.h.b16 %v193
    %v293 = vunpack.c.l.b16 %v194
    %v294 = vunpack.c.l.b16 %v195
    %v295 = vunpack.c.h.b16 %v195
    %v296 = vunpack.c.l.b16 %v196
    %v297 = vunpack.c.l.b16 %v197
    %v298 = vunpack.c.h.b16 %v197
    %v299 = vunpack.c.l.b16 %v198
    %v300 = vunpack.c.l.b16 %v199
    %v301 = vunpack.c.h.b16 %v199
    %v302 = vunpack.c.l.b16 %v200
    %v303 = vunpack.c.l.b16 %v201
    %v304 = vunpack.c.h.b16 %v201
    %v305 = vunpack.c.l.b16 %v202
    %v306 = vunpack.c.l.b16 %v203
    %v307 = vunpack.c.h.b16 %v203
    %v308 = vunpack.c.l.b16 %v204
    %v309 = vunpack.c.l.b16 %v205
    %v310 = vunpack.c.h.b16 %v205
    %v311 = vunpack.c.l.b16 %v206
    %v312 = vunpack.c.l.b16 %v207
    %v313 = vunpack.c.h.b16 %v207
    %v314 = vunpack.c.l.b16 %v208
    %v315 = vpack.c.b16 %v270, %v267
    %v316 = vpack.c.b16 %v271, %v268
    %v317 = vpack.c.b16 %v272, %v269
    %v318 = vpack.c.b16 %v276, %v273
    %v319 = vpack.c.b16 %v277, %v274
    %v320 = vpack.c.b16 %v278, %v275
    %v321 = vpack.c.b16 %v282, %v279
    %v322 = vpack.c.b16 %v283, %v280
    %v323 = vpack.c.b16 %v284, %v281
    %v324 = vpack.c.b16 %v288, %v285
    %v325 = vpack.c.b16 %v289, %v286
    %v326 = vpack.c.b16 %v290, %v287
    %v327 = vpack.c.b16 %v294, %v291
    %v328 = vpack.c.b16 %v295, %v292
    %v329 = vpack.c.b16 %v296, %v293
    %v330 = vpack.c.b16 %v300, %v297
    %v331 = vpack.c.b16 %v301, %v298
    %v332 = vpack.c.b16 %v302, %v299
    %v333 = vpack.c.b16 %v306, %v303
    %v334 = vpack.c.b16 %v307, %v304
    %v335 = vpack.c.b16 %v308, %v305
    %v336 = vpack.c.b16 %v312, %v309
    %v337 = vpack.c.b16 %v313, %v310
    %v338 = vpack.c.b16 %v314, %v311
    %363 = vmatpush.bf16.msra.mxu0 %v336
    %364 = vmatpush.bf16.msra.mxu0 %v333
    %365 = vmatpush.bf16.msra.mxu0 %v330
    %366 = vmatpush.bf16.msra.mxu0 %v327
    %367 = vmatpush.bf16.msra.mxu0 %v324
    %368 = vmatpush.bf16.msra.mxu0 %v321
    %369 = vmatpush.bf16.msra.mxu0 %v318
    %370 = vmatpush.bf16.msra.mxu0 %v315
    %371 = vmatmul.bf16.gmra.mxu0 %v227
    %v372 = vpop.f32.mrf.mxu0
    %v373 = vadd.f32 %v229, %v372
    %v374 = vpop.f32.mrf.mxu0
    %v375 = vadd.f32 %v229, %v374
    %376 = vdwg.mxu0
    %377 = vmatpush.bf16.msra.mxu0 %v337
    %378 = vmatpush.bf16.msra.mxu0 %v334
    %379 = vmatpush.bf16.msra.mxu0 %v331
    %380 = vmatpush.bf16.msra.mxu0 %v328
    %381 = vmatpush.bf16.msra.mxu0 %v325
    %382 = vmatpush.bf16.msra.mxu0 %v322
    %383 = vmatpush.bf16.msra.mxu0 %v319
    %384 = vmatpush.bf16.msra.mxu0 %v316
    %385 = vmatmul.bf16.gmra.mxu0 %v227
    %v386 = vpop.f32.mrf.mxu0
    %v387 = vadd.f32 %v230, %v386
    %v388 = vpop.f32.mrf.mxu0
    %v389 = vadd.f32 %v230, %v388
    %390 = vdwg.mxu0
    %391 = vmatpush.bf16.msra.mxu0 %v338
    %392 = vmatpush.bf16.msra.mxu0 %v335
    %393 = vmatpush.bf16.msra.mxu0 %v332
    %394 = vmatpush.bf16.msra.mxu0 %v329
    %395 = vmatpush.bf16.msra.mxu0 %v326
    %396 = vmatpush.bf16.msra.mxu0 %v323
    %397 = vmatpush.bf16.msra.mxu0 %v320
    %398 = vmatpush.bf16.msra.mxu0 %v317
    %399 = vmatmul.bf16.gmra.mxu0 %v227
    %v400 = vpop.f32.mrf.mxu0
    %v401 = vadd.f32 %v231, %v400
    %v402 = vpop.f32.mrf.mxu0
    %v403 = vadd.f32 %v231, %v402
    %404 = vdwg.mxu0
    %v405 = vlaneseq
    %v406 = vshrl.u32 %v405, 7
    %v407 = vlaneseq
    %v408 = vand.u32 %v407, 127
    %vm409 = vcmp.le.s32.totalorder %v408, %v406
    %v410 = vpack.c.bf16 %v373, %v373
    %v411 = vpack.c.bf16 %v375, %v375
    %v412 = vpack.c.bf16 %v387, %v387
    %v413 = vpack.c.bf16 %v389, %v389
    %v414 = vpack.c.bf16 %v401, %v401
    %v415 = vpack.c.bf16 %v403, %v403
    %vm416 = vcmask 261120
    %v418 = vsel %vm416, %v410, 0
    %v421 = vsel %vm416, %v412, 0
    %423 = vmatpush.bf16.xpose.msra.mxu0 0
    %424 = vmatpush.bf16.xpose.msra.mxu0 0
    %425 = vmatpush.bf16.xpose.msra.mxu0 0
    %426 = vmatpush.bf16.xpose.msra.mxu0 0
    %427 = vmatpush.bf16.xpose.msra.mxu0 0
    %428 = vmatpush.bf16.xpose.msra.mxu0 0
    %429 = vmatpush.bf16.xpose.msra.mxu0 0
    %430 = vmatpush.bf16.xpose.msra.mxu0 %v421
    %431 = vmatmul.bf16.gmra.mxu0 %v418
    %v432 = vpop.f32.mrf.mxu0
    %v433 = vadd.f32 0.0, %v432
    %v434 = vpop.f32.mrf.mxu0
    %435 = vdwg.mxu0
    %v437 = vsel %vm416, %v411, 0
    %v440 = vsel %vm416, %v413, 0
    %442 = vmatpush.bf16.xpose.msra.mxu0 0
    %443 = vmatpush.bf16.xpose.msra.mxu0 0
    %444 = vmatpush.bf16.xpose.msra.mxu0 0
    %445 = vmatpush.bf16.xpose.msra.mxu0 0
    %446 = vmatpush.bf16.xpose.msra.mxu0 0
    %447 = vmatpush.bf16.xpose.msra.mxu0 0
    %448 = vmatpush.bf16.xpose.msra.mxu0 0
    %449 = vmatpush.bf16.xpose.msra.mxu0 %v440
    %450 = vmatmul.bf16.gmra.mxu0 %v437
    %v451 = vpop.f32.mrf.mxu0
    %v452 = vadd.f32 0.0, %v451
    %v453 = vpop.f32.mrf.mxu0
    %454 = vdwg.mxu0
    %v455 = vsel %vm409, 1, 0
    %vm456 = vcmp.eq.s32.totalorder %v455, 1
    %v457 = vsel %vm456, %v433, -1e+30
    %v458 = vsel %vm456, %v452, -1e+30
    %vm459 = vcmask 64512
    %v460 = vsel %vm459, %v457, -inf
    %461 = vmax.xlane.f32.xlu0 %v460
    %v462 = vpop.xlane.xlu0 %461
    %v463 = vsel %vm459, %v458, -inf
    %464 = vmax.xlane.f32.xlu0 %v463
    %v465 = vpop.xlane.xlu0 %464
    %v466 = vsub.f32 %v457, %v462
    %v467 = vsub.f32 %v458, %v465
    %v468 = vmul.f32 %v466, 1.442695
    %v469 = vpow.pop %v468
    %v470 = vmul.f32 %v467, 1.442695
    %v471 = vpow.pop %v470
    %v472 = vsel %vm459, %v469, 0.0
    %473 = vadd.xlane.f32.xlu0 %v472
    %v474 = vpop.xlane.xlu0 %473
    %v475 = vsel %vm459, %v471, 0.0
    %476 = vadd.xlane.f32.xlu0 %v475
    %v477 = vpop.xlane.xlu0 %476
    %v478 = vrcp.pop %v474
    %v479 = vrcp.pop %v477
    %v480 = vmul.f32 %v469, %v478
    %v481 = vmul.f32 %v471, %v479
    %v482 = vpack.c.bf16 %v480, %v480
    %v483 = vpack.c.bf16 %v481, %v481
    %v485 = vsel %vm459, %v482, 0
    %vm487 = vcmask 1043456
    %v489 = vsel %vm487, %v414, 0
    %491 = vmatpush.bf16.msra.mxu0 0
    %492 = vmatpush.bf16.msra.mxu0 0
    %493 = vmatpush.bf16.msra.mxu0 0
    %494 = vmatpush.bf16.msra.mxu0 0
    %495 = vmatpush.bf16.msra.mxu0 0
    %496 = vmatpush.bf16.msra.mxu0 0
    %497 = vmatpush.bf16.msra.mxu0 0
    %498 = vmatpush.bf16.msra.mxu0 %v489
    %499 = vmatmul.bf16.gmra.mxu0 %v485
    %v500 = vpop.f32.mrf.mxu0
    %v501 = vadd.f32 0.0, %v500
    %v502 = vpop.f32.mrf.mxu0
    %503 = vdwg.mxu0
    %v505 = vsel %vm459, %v483, 0
    %v508 = vsel %vm487, %v415, 0
    %510 = vmatpush.bf16.msra.mxu0 0
    %511 = vmatpush.bf16.msra.mxu0 0
    %512 = vmatpush.bf16.msra.mxu0 0
    %513 = vmatpush.bf16.msra.mxu0 0
    %514 = vmatpush.bf16.msra.mxu0 0
    %515 = vmatpush.bf16.msra.mxu0 0
    %516 = vmatpush.bf16.msra.mxu0 0
    %517 = vmatpush.bf16.msra.mxu0 %v508
    %518 = vmatmul.bf16.gmra.mxu0 %v505
    %v519 = vpop.f32.mrf.mxu0
    %v520 = vadd.f32 0.0, %v519
    %v521 = vpop.f32.mrf.mxu0
    %522 = vdwg.mxu0
    %v524 = vunpack.c.l.b16 %v410
    %v525 = vpack.c.b16 %v524, %v524
    %526 = vrot.lane.b32.xlu0 %v525, 96
    %v527 = vpop.permute.xlu0 %526
    %v529 = vunpack.c.l.b16 %v412
    %v530 = vpack.c.b16 %v529, %v529
    %531 = vrot.lane.b32.xlu0 %v530, 96
    %v532 = vpop.permute.xlu0 %531
    %v534 = vsel %vm416, %v527, 0
    %v537 = vsel %vm416, %v532, 0
    %539 = vmatpush.bf16.xpose.msra.mxu0 0
    %540 = vmatpush.bf16.xpose.msra.mxu0 0
    %541 = vmatpush.bf16.xpose.msra.mxu0 0
    %542 = vmatpush.bf16.xpose.msra.mxu0 0
    %543 = vmatpush.bf16.xpose.msra.mxu0 0
    %544 = vmatpush.bf16.xpose.msra.mxu0 0
    %545 = vmatpush.bf16.xpose.msra.mxu0 0
    %546 = vmatpush.bf16.xpose.msra.mxu0 %v537
    %547 = vmatmul.bf16.gmra.mxu0 %v534
    %v548 = vpop.f32.mrf.mxu0
    %v549 = vadd.f32 0.0, %v548
    %v550 = vpop.f32.mrf.mxu0
    %551 = vdwg.mxu0
    %v553 = vunpack.c.l.b16 %v411
    %v554 = vpack.c.b16 %v553, %v553
    %555 = vrot.lane.b32.xlu0 %v554, 96
    %v556 = vpop.permute.xlu0 %555
    %v558 = vunpack.c.l.b16 %v413
    %v559 = vpack.c.b16 %v558, %v558
    %560 = vrot.lane.b32.xlu0 %v559, 96
    %v561 = vpop.permute.xlu0 %560
    %v563 = vsel %vm416, %v556, 0
    %v566 = vsel %vm416, %v561, 0
    %568 = vmatpush.bf16.xpose.msra.mxu0 0
    %569 = vmatpush.bf16.xpose.msra.mxu0 0
    %570 = vmatpush.bf16.xpose.msra.mxu0 0
    %571 = vmatpush.bf16.xpose.msra.mxu0 0
    %572 = vmatpush.bf16.xpose.msra.mxu0 0
    %573 = vmatpush.bf16.xpose.msra.mxu0 0
    %574 = vmatpush.bf16.xpose.msra.mxu0 0
    %575 = vmatpush.bf16.xpose.msra.mxu0 %v566
    %576 = vmatmul.bf16.gmra.mxu0 %v563
    %v577 = vpop.f32.mrf.mxu0
    %v578 = vadd.f32 0.0, %v577
    %v579 = vpop.f32.mrf.mxu0
    %580 = vdwg.mxu0
    %v581 = vsel %vm456, %v549, -1e+30
    %v582 = vsel %vm456, %v578, -1e+30
    %v583 = vsel %vm459, %v581, -inf
    %584 = vmax.xlane.f32.xlu0 %v583
    %v585 = vpop.xlane.xlu0 %584
    %v586 = vsel %vm459, %v582, -inf
    %587 = vmax.xlane.f32.xlu0 %v586
    %v588 = vpop.xlane.xlu0 %587
    %v589 = vsub.f32 %v581, %v585
    %v590 = vsub.f32 %v582, %v588
    %v591 = vmul.f32 %v589, 1.442695
    %v592 = vpow.pop %v591
    %v593 = vmul.f32 %v590, 1.442695
    %v594 = vpow.pop %v593
    %v595 = vsel %vm459, %v592, 0.0
    %596 = vadd.xlane.f32.xlu0 %v595
    %v597 = vpop.xlane.xlu0 %596
    %v598 = vsel %vm459, %v594, 0.0
    %599 = vadd.xlane.f32.xlu0 %v598
    %v600 = vpop.xlane.xlu0 %599
    %v601 = vrcp.pop %v597
    %v602 = vrcp.pop %v600
    %v603 = vmul.f32 %v592, %v601
    %v604 = vmul.f32 %v594, %v602
    %v605 = vpack.c.bf16 %v603, %v603
    %v606 = vpack.c.bf16 %v604, %v604
    %v608 = vunpack.c.l.b16 %v414
    %v609 = vpack.c.b16 %v608, %v608
    %610 = vrot.lane.b32.xlu0 %v609, 96
    %v611 = vpop.permute.xlu0 %610
    %v613 = vsel %vm459, %v605, 0
    %v616 = vsel %vm487, %v611, 0
    %618 = vmatpush.bf16.msra.mxu0 0
    %619 = vmatpush.bf16.msra.mxu0 0
    %620 = vmatpush.bf16.msra.mxu0 0
    %621 = vmatpush.bf16.msra.mxu0 0
    %622 = vmatpush.bf16.msra.mxu0 0
    %623 = vmatpush.bf16.msra.mxu0 0
    %624 = vmatpush.bf16.msra.mxu0 0
    %625 = vmatpush.bf16.msra.mxu0 %v616
    %626 = vmatmul.bf16.gmra.mxu0 %v613
    %v627 = vpop.f32.mrf.mxu0
    %v628 = vadd.f32 0.0, %v627
    %v629 = vpop.f32.mrf.mxu0
    %630 = vdwg.mxu0
    %v632 = vunpack.c.l.b16 %v415
    %v633 = vpack.c.b16 %v632, %v632
    %634 = vrot.lane.b32.xlu0 %v633, 96
    %v635 = vpop.permute.xlu0 %634
    %v637 = vsel %vm459, %v606, 0
    %v640 = vsel %vm487, %v635, 0
    %642 = vmatpush.bf16.msra.mxu0 0
    %643 = vmatpush.bf16.msra.mxu0 0
    %644 = vmatpush.bf16.msra.mxu0 0
    %645 = vmatpush.bf16.msra.mxu0 0
    %646 = vmatpush.bf16.msra.mxu0 0
    %647 = vmatpush.bf16.msra.mxu0 0
    %648 = vmatpush.bf16.msra.mxu0 0
    %649 = vmatpush.bf16.msra.mxu0 %v640
    %650 = vmatmul.bf16.gmra.mxu0 %v637
    %v651 = vpop.f32.mrf.mxu0
    %v652 = vadd.f32 0.0, %v651
    %v653 = vpop.f32.mrf.mxu0
    %654 = vdwg.mxu0
    %655 = vrot.lane.b32.xlu0 %v525, 64
    %v656 = vpop.permute.xlu0 %655
    %657 = vrot.lane.b32.xlu0 %v530, 64
    %v658 = vpop.permute.xlu0 %657
    %v660 = vsel %vm416, %v656, 0
    %v663 = vsel %vm416, %v658, 0
    %665 = vmatpush.bf16.xpose.msra.mxu0 0
    %666 = vmatpush.bf16.xpose.msra.mxu0 0
    %667 = vmatpush.bf16.xpose.msra.mxu0 0
    %668 = vmatpush.bf16.xpose.msra.mxu0 0
    %669 = vmatpush.bf16.xpose.msra.mxu0 0
    %670 = vmatpush.bf16.xpose.msra.mxu0 0
    %671 = vmatpush.bf16.xpose.msra.mxu0 0
    %672 = vmatpush.bf16.xpose.msra.mxu0 %v663
    %673 = vmatmul.bf16.gmra.mxu0 %v660
    %v674 = vpop.f32.mrf.mxu0
    %v675 = vadd.f32 0.0, %v674
    %v676 = vpop.f32.mrf.mxu0
    %677 = vdwg.mxu0
    %678 = vrot.lane.b32.xlu0 %v554, 64
    %v679 = vpop.permute.xlu0 %678
    %680 = vrot.lane.b32.xlu0 %v559, 64
    %v681 = vpop.permute.xlu0 %680
    %v683 = vsel %vm416, %v679, 0
    %v686 = vsel %vm416, %v681, 0
    %688 = vmatpush.bf16.xpose.msra.mxu0 0
    %689 = vmatpush.bf16.xpose.msra.mxu0 0
    %690 = vmatpush.bf16.xpose.msra.mxu0 0
    %691 = vmatpush.bf16.xpose.msra.mxu0 0
    %692 = vmatpush.bf16.xpose.msra.mxu0 0
    %693 = vmatpush.bf16.xpose.msra.mxu0 0
    %694 = vmatpush.bf16.xpose.msra.mxu0 0
    %695 = vmatpush.bf16.xpose.msra.mxu0 %v686
    %696 = vmatmul.bf16.gmra.mxu0 %v683
    %v697 = vpop.f32.mrf.mxu0
    %v698 = vadd.f32 0.0, %v697
    %v699 = vpop.f32.mrf.mxu0
    %700 = vdwg.mxu0
    %v701 = vsel %vm456, %v675, -1e+30
    %v702 = vsel %vm456, %v698, -1e+30
    %v703 = vsel %vm459, %v701, -inf
    %704 = vmax.xlane.f32.xlu0 %v703
    %v705 = vpop.xlane.xlu0 %704
    %v706 = vsel %vm459, %v702, -inf
    %707 = vmax.xlane.f32.xlu0 %v706
    %v708 = vpop.xlane.xlu0 %707
    %v709 = vsub.f32 %v701, %v705
    %v710 = vsub.f32 %v702, %v708
    %v711 = vmul.f32 %v709, 1.442695
    %v712 = vpow.pop %v711
    %v713 = vmul.f32 %v710, 1.442695
    %v714 = vpow.pop %v713
    %v715 = vsel %vm459, %v712, 0.0
    %716 = vadd.xlane.f32.xlu0 %v715
    %v717 = vpop.xlane.xlu0 %716
    %v718 = vsel %vm459, %v714, 0.0
    %719 = vadd.xlane.f32.xlu0 %v718
    %v720 = vpop.xlane.xlu0 %719
    %v721 = vrcp.pop %v717
    %v722 = vrcp.pop %v720
    %v723 = vmul.f32 %v712, %v721
    %v724 = vmul.f32 %v714, %v722
    %v725 = vpack.c.bf16 %v723, %v723
    %v726 = vpack.c.bf16 %v724, %v724
    %727 = vrot.lane.b32.xlu0 %v609, 64
    %v728 = vpop.permute.xlu0 %727
    %v730 = vsel %vm459, %v725, 0
    %v733 = vsel %vm487, %v728, 0
    %735 = vmatpush.bf16.msra.mxu0 0
    %736 = vmatpush.bf16.msra.mxu0 0
    %737 = vmatpush.bf16.msra.mxu0 0
    %738 = vmatpush.bf16.msra.mxu0 0
    %739 = vmatpush.bf16.msra.mxu0 0
    %740 = vmatpush.bf16.msra.mxu0 0
    %741 = vmatpush.bf16.msra.mxu0 0
    %742 = vmatpush.bf16.msra.mxu0 %v733
    %743 = vmatmul.bf16.gmra.mxu0 %v730
    %v744 = vpop.f32.mrf.mxu0
    %v745 = vadd.f32 0.0, %v744
    %v746 = vpop.f32.mrf.mxu0
    %747 = vdwg.mxu0
    %748 = vrot.lane.b32.xlu0 %v633, 64
    %v749 = vpop.permute.xlu0 %748
    %v751 = vsel %vm459, %v726, 0
    %v754 = vsel %vm487, %v749, 0
    %756 = vmatpush.bf16.msra.mxu0 0
    %757 = vmatpush.bf16.msra.mxu0 0
    %758 = vmatpush.bf16.msra.mxu0 0
    %759 = vmatpush.bf16.msra.mxu0 0
    %760 = vmatpush.bf16.msra.mxu0 0
    %761 = vmatpush.bf16.msra.mxu0 0
    %762 = vmatpush.bf16.msra.mxu0 0
    %763 = vmatpush.bf16.msra.mxu0 %v754
    %764 = vmatmul.bf16.gmra.mxu0 %v751
    %v765 = vpop.f32.mrf.mxu0
    %v766 = vadd.f32 0.0, %v765
    %v767 = vpop.f32.mrf.mxu0
    %768 = vdwg.mxu0
    %769 = vrot.lane.b32.xlu0 %v525, 32
    %v770 = vpop.permute.xlu0 %769
    %771 = vrot.lane.b32.xlu0 %v530, 32
    %v772 = vpop.permute.xlu0 %771
    %v774 = vsel %vm416, %v770, 0
    %v777 = vsel %vm416, %v772, 0
    %779 = vmatpush.bf16.xpose.msra.mxu0 0
    %780 = vmatpush.bf16.xpose.msra.mxu0 0
    %781 = vmatpush.bf16.xpose.msra.mxu0 0
    %782 = vmatpush.bf16.xpose.msra.mxu0 0
    %783 = vmatpush.bf16.xpose.msra.mxu0 0
    %784 = vmatpush.bf16.xpose.msra.mxu0 0
    %785 = vmatpush.bf16.xpose.msra.mxu0 0
    %786 = vmatpush.bf16.xpose.msra.mxu0 %v777
    %787 = vmatmul.bf16.gmra.mxu0 %v774
    %v788 = vpop.f32.mrf.mxu0
    %v789 = vadd.f32 0.0, %v788
    %v790 = vpop.f32.mrf.mxu0
    %791 = vdwg.mxu0
    %792 = vrot.lane.b32.xlu0 %v554, 32
    %v793 = vpop.permute.xlu0 %792
    %794 = vrot.lane.b32.xlu0 %v559, 32
    %v795 = vpop.permute.xlu0 %794
    %v797 = vsel %vm416, %v793, 0
    %v800 = vsel %vm416, %v795, 0
    %802 = vmatpush.bf16.xpose.msra.mxu0 0
    %803 = vmatpush.bf16.xpose.msra.mxu0 0
    %804 = vmatpush.bf16.xpose.msra.mxu0 0
    %805 = vmatpush.bf16.xpose.msra.mxu0 0
    %806 = vmatpush.bf16.xpose.msra.mxu0 0
    %807 = vmatpush.bf16.xpose.msra.mxu0 0
    %808 = vmatpush.bf16.xpose.msra.mxu0 0
    %809 = vmatpush.bf16.xpose.msra.mxu0 %v800
    %810 = vmatmul.bf16.gmra.mxu0 %v797
    %v811 = vpop.f32.mrf.mxu0
    %v812 = vadd.f32 0.0, %v811
    %v813 = vpop.f32.mrf.mxu0
    %814 = vdwg.mxu0
    %v815 = vsel %vm456, %v789, -1e+30
    %v816 = vsel %vm456, %v812, -1e+30
    %v817 = vsel %vm459, %v815, -inf
    %818 = vmax.xlane.f32.xlu0 %v817
    %v819 = vpop.xlane.xlu0 %818
    %v820 = vsel %vm459, %v816, -inf
    %821 = vmax.xlane.f32.xlu0 %v820
    %v822 = vpop.xlane.xlu0 %821
    %v823 = vsub.f32 %v815, %v819
    %v824 = vsub.f32 %v816, %v822
    %v825 = vmul.f32 %v823, 1.442695
    %v826 = vpow.pop %v825
    %v827 = vmul.f32 %v824, 1.442695
    %v828 = vpow.pop %v827
    %v829 = vsel %vm459, %v826, 0.0
    %830 = vadd.xlane.f32.xlu0 %v829
    %v831 = vpop.xlane.xlu0 %830
    %v832 = vsel %vm459, %v828, 0.0
    %833 = vadd.xlane.f32.xlu0 %v832
    %v834 = vpop.xlane.xlu0 %833
    %v835 = vrcp.pop %v831
    %v836 = vrcp.pop %v834
    %v837 = vmul.f32 %v826, %v835
    %v838 = vmul.f32 %v828, %v836
    %v839 = vpack.c.bf16 %v837, %v837
    %v840 = vpack.c.bf16 %v838, %v838
    %841 = vrot.lane.b32.xlu0 %v609, 32
    %v842 = vpop.permute.xlu0 %841
    %v844 = vsel %vm459, %v839, 0
    %v847 = vsel %vm487, %v842, 0
    %849 = vmatpush.bf16.msra.mxu0 0
    %850 = vmatpush.bf16.msra.mxu0 0
    %851 = vmatpush.bf16.msra.mxu0 0
    %852 = vmatpush.bf16.msra.mxu0 0
    %853 = vmatpush.bf16.msra.mxu0 0
    %854 = vmatpush.bf16.msra.mxu0 0
    %855 = vmatpush.bf16.msra.mxu0 0
    %856 = vmatpush.bf16.msra.mxu0 %v847
    %857 = vmatmul.bf16.gmra.mxu0 %v844
    %v858 = vpop.f32.mrf.mxu0
    %v859 = vadd.f32 0.0, %v858
    %v860 = vpop.f32.mrf.mxu0
    %861 = vdwg.mxu0
    %862 = vrot.lane.b32.xlu0 %v633, 32
    %v863 = vpop.permute.xlu0 %862
    %v865 = vsel %vm459, %v840, 0
    %v868 = vsel %vm487, %v863, 0
    %870 = vmatpush.bf16.msra.mxu0 0
    %871 = vmatpush.bf16.msra.mxu0 0
    %872 = vmatpush.bf16.msra.mxu0 0
    %873 = vmatpush.bf16.msra.mxu0 0
    %874 = vmatpush.bf16.msra.mxu0 0
    %875 = vmatpush.bf16.msra.mxu0 0
    %876 = vmatpush.bf16.msra.mxu0 0
    %877 = vmatpush.bf16.msra.mxu0 %v868
    %878 = vmatmul.bf16.gmra.mxu0 %v865
    %v879 = vpop.f32.mrf.mxu0
    %v880 = vadd.f32 0.0, %v879
    %v881 = vpop.f32.mrf.mxu0
    %882 = vdwg.mxu0
    %885 = vrot.lane.b32.xlu0 %v628, 32
    %v886 = vpop.permute.xlu0 %885
    %887 = vrot.lane.b32.xlu0 %v652, 32
    %v888 = vpop.permute.xlu0 %887
    %893 = vrot.lane.b32.xlu0 %v745, 64
    %v894 = vpop.permute.xlu0 %893
    %895 = vrot.lane.b32.xlu0 %v766, 64
    %v896 = vpop.permute.xlu0 %895
    %901 = vrot.lane.b32.xlu0 %v859, 96
    %v902 = vpop.permute.xlu0 %901
    %903 = vrot.lane.b32.xlu0 %v880, 96
    %v904 = vpop.permute.xlu0 %903
    %v907 = vsel %vm416, %v501, %v886
    %v908 = vsel %vm416, %v520, %v888
    %vm909 = vcmask 523264
    %v910 = vsel %vm909, %v907, %v894
    %v911 = vsel %vm909, %v908, %v896
    %vm912 = vcmask 785408
    %v913 = vsel %vm912, %v910, %v902
    %v914 = vsel %vm912, %v911, %v904
    %v915 = vpack.c.bf16 %v914, %v913
    %v917 = vperm.slane %v226, 0
    %v935 = vunpack.c.l.b16 %v210
    %v936 = vunpack.c.l.b16 %v211
    %v937 = vunpack.c.l.b16 %v212
    %v938 = vunpack.c.l.b16 %v213
    %v939 = vunpack.c.l.b16 %v214
    %v940 = vunpack.c.l.b16 %v215
    %v941 = vunpack.c.l.b16 %v216
    %v942 = vunpack.c.l.b16 %v217
    %v943 = vunpack.c.l.b16 %v218
    %v944 = vunpack.c.l.b16 %v219
    %v945 = vunpack.c.l.b16 %v220
    %v946 = vunpack.c.l.b16 %v221
    %v947 = vunpack.c.l.b16 %v222
    %v948 = vunpack.c.l.b16 %v223
    %v949 = vunpack.c.l.b16 %v224
    %v950 = vunpack.c.l.b16 %v225
    %v951 = vpack.c.b16 %v936, %v935
    %v952 = vpack.c.b16 %v938, %v937
    %v953 = vpack.c.b16 %v940, %v939
    %v954 = vpack.c.b16 %v942, %v941
    %v955 = vpack.c.b16 %v944, %v943
    %v956 = vpack.c.b16 %v946, %v945
    %v957 = vpack.c.b16 %v948, %v947
    %v958 = vpack.c.b16 %v950, %v949
    %967 = vmatpush.bf16.msra.mxu0 %v958
    %968 = vmatpush.bf16.msra.mxu0 %v957
    %969 = vmatpush.bf16.msra.mxu0 %v956
    %970 = vmatpush.bf16.msra.mxu0 %v955
    %971 = vmatpush.bf16.msra.mxu0 %v954
    %972 = vmatpush.bf16.msra.mxu0 %v953
    %973 = vmatpush.bf16.msra.mxu0 %v952
    %974 = vmatpush.bf16.msra.mxu0 %v951
    %975 = vmatmul.bf16.gmra.mxu0 %v915
    %v976 = vpop.f32.mrf.mxu0
    %v977 = vadd.f32 %v917, %v976
    %v978 = vpop.f32.mrf.mxu0
    %v979 = vadd.f32 %v917, %v978
    %980 = vdwg.mxu0
    %v981 = vadd.f32 %v173, %v977
    %v982 = vadd.f32 %v174, %v979
    %v983 = vld [vmem:[%s6] sm:$0x1]
    %v984 = vld [vmem:[%s7] sm:$0x1]
    %985 = vadd.xlane.f32.xlu0 %v981
    %v986 = vpop.xlane.xlu0 %985
    %987 = vadd.xlane.f32.xlu0 %v982
    %v988 = vpop.xlane.xlu0 %987
    %v989 = vrcp.pop 128.0
    %v990 = vmul.f32 128.0, %v989
    %v991 = vsub.f32 1.0, %v990
    %v992 = vmul.f32 %v989, %v991
    %v993 = vadd.f32 %v989, %v992
    %vm994 = vweird.f32 %v989
    %v995 = vsel %vm994, %v989, %v993
    %v996 = vmul.f32 %v986, %v995
    %v997 = vmul.f32 %v988, %v995
    %v998 = vsub.f32 %v981, %v996
    %v999 = vsub.f32 %v982, %v997
    %v1000 = vmul.f32 %v998, %v998
    %v1001 = vmul.f32 %v999, %v999
    %1002 = vadd.xlane.f32.xlu0 %v1000
    %v1003 = vpop.xlane.xlu0 %1002
    %1004 = vadd.xlane.f32.xlu0 %v1001
    %v1005 = vpop.xlane.xlu0 %1004
    %v1006 = vmul.f32 %v1003, %v995
    %v1007 = vmul.f32 %v1005, %v995
    %v1008 = vadd.f32 %v1006, 1e-05
    %v1009 = vadd.f32 %v1007, 1e-05
    %v1010 = vrsqrt.pop %v1008
    %v1011 = vmul.f32 %v1010, %v1008
    %v1012 = vmul.f32 %v1011, %v1010
    %v1013 = vmul.f32 0.5, %v1012
    %v1014 = vsub.f32 1.5, %v1013
    %v1015 = vmul.f32 %v1010, %v1014
    %vm1016 = vweird.f32 %v1008
    %vm1017 = vweird.f32 %v1010
    %vm1018 = vmor %vm1016, %vm1017
    %v1019 = vsel %vm1018, %v1010, %v1015
    %v1020 = vrsqrt.pop %v1009
    %v1021 = vmul.f32 %v1020, %v1009
    %v1022 = vmul.f32 %v1021, %v1020
    %v1023 = vmul.f32 0.5, %v1022
    %v1024 = vsub.f32 1.5, %v1023
    %v1025 = vmul.f32 %v1020, %v1024
    %vm1026 = vweird.f32 %v1009
    %vm1027 = vweird.f32 %v1020
    %vm1028 = vmor %vm1026, %vm1027
    %v1029 = vsel %vm1028, %v1020, %v1025
    %v1030 = vmul.f32 %v998, %v1019
    %v1031 = vmul.f32 %v999, %v1029
    %v1033 = vperm.slane %v983, 0
    %v1035 = vmul.f32 %v1030, %v1033
    %v1036 = vmul.f32 %v1031, %v1033
    %v1038 = vperm.slane %v984, 0
    %v1040 = vadd.f32 %v1035, %v1038
    %v1041 = vadd.f32 %v1036, %v1038
    %v1042 = vld [vmem:[#allocation5] sm:$0xf]
    %v1043 = vld [vmem:[#allocation5 + $0x4] sm:$0xf]
    %v1044 = vld [vmem:[#allocation5 + $0x8] sm:$0xf]
    %v1045 = vld [vmem:[#allocation5 + $0xc] sm:$0xf]
    %v1046 = vld [vmem:[#allocation5 + $0x10] sm:$0xf]
    %v1047 = vld [vmem:[#allocation5 + $0x14] sm:$0xf]
    %v1048 = vld [vmem:[#allocation5 + $0x18] sm:$0xf]
    %v1049 = vld [vmem:[#allocation5 + $0x1c] sm:$0xf]
    %v1050 = vld [vmem:[#allocation5 + $0x20] sm:$0xf]
    %v1051 = vld [vmem:[#allocation5 + $0x24] sm:$0xf]
    %v1052 = vld [vmem:[#allocation5 + $0x28] sm:$0xf]
    %v1053 = vld [vmem:[#allocation5 + $0x2c] sm:$0xf]
    %v1054 = vld [vmem:[#allocation5 + $0x30] sm:$0xf]
    %v1055 = vld [vmem:[#allocation5 + $0x34] sm:$0xf]
    %v1056 = vld [vmem:[#allocation5 + $0x38] sm:$0xf]
    %v1057 = vld [vmem:[#allocation5 + $0x3c] sm:$0xf]
    %v1058 = vld [vmem:[%s9] sm:$0x1]
    %v1059 = vld [vmem:[%s10] sm:$0xff]
    %v1060 = vld [vmem:[%s10 + $0x8] sm:$0xff]
    %v1061 = vld [vmem:[%s10 + $0x10] sm:$0xff]
    %v1062 = vld [vmem:[%s10 + $0x18] sm:$0xff]
    %v1063 = vld [vmem:[%s10 + $0x20] sm:$0xff]
    %v1064 = vld [vmem:[%s10 + $0x28] sm:$0xff]
    %v1065 = vld [vmem:[%s10 + $0x30] sm:$0xff]
    %v1066 = vld [vmem:[%s10 + $0x38] sm:$0xff]
    %v1067 = vld [vmem:[%s10 + $0x40] sm:$0xff]
    %v1068 = vld [vmem:[%s10 + $0x48] sm:$0xff]
    %v1069 = vld [vmem:[%s10 + $0x50] sm:$0xff]
    %v1070 = vld [vmem:[%s10 + $0x58] sm:$0xff]
    %v1071 = vld [vmem:[%s10 + $0x60] sm:$0xff]
    %v1072 = vld [vmem:[%s10 + $0x68] sm:$0xff]
    %v1073 = vld [vmem:[%s10 + $0x70] sm:$0xff]
    %v1074 = vld [vmem:[%s10 + $0x78] sm:$0xff]
    %v1075 = vld [vmem:[%s11] sm:$0x3]
    %v1076 = vld [vmem:[#allocation7] sm:$0xf]
    %v1077 = vld [vmem:[#allocation7 + $0x4] sm:$0xf]
    %v1078 = vld [vmem:[#allocation7 + $0x8] sm:$0xf]
    %v1079 = vld [vmem:[#allocation7 + $0xc] sm:$0xf]
    %v1080 = vld [vmem:[#allocation7 + $0x10] sm:$0xf]
    %v1081 = vld [vmem:[#allocation7 + $0x14] sm:$0xf]
    %v1082 = vld [vmem:[#allocation7 + $0x18] sm:$0xf]
    %v1083 = vld [vmem:[#allocation7 + $0x1c] sm:$0xf]
    %v1084 = vld [vmem:[#allocation7 + $0x20] sm:$0xf]
    %v1085 = vld [vmem:[#allocation7 + $0x24] sm:$0xf]
    %v1086 = vld [vmem:[#allocation7 + $0x28] sm:$0xf]
    %v1087 = vld [vmem:[#allocation7 + $0x2c] sm:$0xf]
    %v1088 = vld [vmem:[#allocation7 + $0x30] sm:$0xf]
    %v1089 = vld [vmem:[#allocation7 + $0x34] sm:$0xf]
    %v1090 = vld [vmem:[#allocation7 + $0x38] sm:$0xf]
    %v1091 = vld [vmem:[#allocation7 + $0x3c] sm:$0xf]
    %v1092 = vld [vmem:[%s13] sm:$0x1]
    %v1093 = vpack.c.bf16 %v1041, %v1040
    %v1095 = vperm.slane %v1058, 0
    %v1113 = vunpack.c.l.b16 %v1042
    %v1114 = vunpack.c.l.b16 %v1043
    %v1115 = vunpack.c.l.b16 %v1044
    %v1116 = vunpack.c.l.b16 %v1045
    %v1117 = vunpack.c.l.b16 %v1046
    %v1118 = vunpack.c.l.b16 %v1047
    %v1119 = vunpack.c.l.b16 %v1048
    %v1120 = vunpack.c.l.b16 %v1049
    %v1121 = vunpack.c.l.b16 %v1050
    %v1122 = vunpack.c.l.b16 %v1051
    %v1123 = vunpack.c.l.b16 %v1052
    %v1124 = vunpack.c.l.b16 %v1053
    %v1125 = vunpack.c.l.b16 %v1054
    %v1126 = vunpack.c.l.b16 %v1055
    %v1127 = vunpack.c.l.b16 %v1056
    %v1128 = vunpack.c.l.b16 %v1057
    %v1129 = vpack.c.b16 %v1114, %v1113
    %v1130 = vpack.c.b16 %v1116, %v1115
    %v1131 = vpack.c.b16 %v1118, %v1117
    %v1132 = vpack.c.b16 %v1120, %v1119
    %v1133 = vpack.c.b16 %v1122, %v1121
    %v1134 = vpack.c.b16 %v1124, %v1123
    %v1135 = vpack.c.b16 %v1126, %v1125
    %v1136 = vpack.c.b16 %v1128, %v1127
    %1145 = vmatpush.bf16.msra.mxu0 %v1136
    %1146 = vmatpush.bf16.msra.mxu0 %v1135
    %1147 = vmatpush.bf16.msra.mxu0 %v1134
    %1148 = vmatpush.bf16.msra.mxu0 %v1133
    %1149 = vmatpush.bf16.msra.mxu0 %v1132
    %1150 = vmatpush.bf16.msra.mxu0 %v1131
    %1151 = vmatpush.bf16.msra.mxu0 %v1130
    %1152 = vmatpush.bf16.msra.mxu0 %v1129
    %1153 = vmatmul.bf16.gmra.mxu0 %v1093
    %v1154 = vpop.f32.mrf.mxu0
    %v1155 = vadd.f32 %v1095, %v1154
    %v1156 = vpop.f32.mrf.mxu0
    %v1157 = vadd.f32 %v1095, %v1156
    %1158 = vdwg.mxu0
    %v1160 = vperm.slane %v1075, 0
    %v1161 = vperm.slane %v1075, 1
    %1165 = vst [vmem:[#allocation1] ss:$4 sm:$0xff] %v175
    %s1167 = scalar_lea.vmem [#allocation1], 1
    %1168 = vst [vmem:[%s1167] ss:$4 sm:$0xff] %v176
    %v1169 = vld.sshfl [vmem:[#allocation1] sm:$0xff pattern:$0x73625140]
    %v1187 = vunpack.c.l.b16 %v1059
    %v1188 = vunpack.c.h.b16 %v1059
    %v1189 = vunpack.c.l.b16 %v1060
    %v1190 = vunpack.c.h.b16 %v1060
    %v1191 = vunpack.c.l.b16 %v1061
    %v1192 = vunpack.c.h.b16 %v1061
    %v1193 = vunpack.c.l.b16 %v1062
    %v1194 = vunpack.c.h.b16 %v1062
    %v1195 = vunpack.c.l.b16 %v1063
    %v1196 = vunpack.c.h.b16 %v1063
    %v1197 = vunpack.c.l.b16 %v1064
    %v1198 = vunpack.c.h.b16 %v1064
    %v1199 = vunpack.c.l.b16 %v1065
    %v1200 = vunpack.c.h.b16 %v1065
    %v1201 = vunpack.c.l.b16 %v1066
    %v1202 = vunpack.c.h.b16 %v1066
    %v1203 = vunpack.c.l.b16 %v1067
    %v1204 = vunpack.c.h.b16 %v1067
    %v1205 = vunpack.c.l.b16 %v1068
    %v1206 = vunpack.c.h.b16 %v1068
    %v1207 = vunpack.c.l.b16 %v1069
    %v1208 = vunpack.c.h.b16 %v1069
    %v1209 = vunpack.c.l.b16 %v1070
    %v1210 = vunpack.c.h.b16 %v1070
    %v1211 = vunpack.c.l.b16 %v1071
    %v1212 = vunpack.c.h.b16 %v1071
    %v1213 = vunpack.c.l.b16 %v1072
    %v1214 = vunpack.c.h.b16 %v1072
    %v1215 = vunpack.c.l.b16 %v1073
    %v1216 = vunpack.c.h.b16 %v1073
    %v1217 = vunpack.c.l.b16 %v1074
    %v1218 = vunpack.c.h.b16 %v1074
    %v1219 = vpack.c.b16 %v1189, %v1187
    %v1220 = vpack.c.b16 %v1190, %v1188
    %v1221 = vpack.c.b16 %v1193, %v1191
    %v1222 = vpack.c.b16 %v1194, %v1192
    %v1223 = vpack.c.b16 %v1197, %v1195
    %v1224 = vpack.c.b16 %v1198, %v1196
    %v1225 = vpack.c.b16 %v1201, %v1199
    %v1226 = vpack.c.b16 %v1202, %v1200
    %v1227 = vpack.c.b16 %v1205, %v1203
    %v1228 = vpack.c.b16 %v1206, %v1204
    %v1229 = vpack.c.b16 %v1209, %v1207
    %v1230 = vpack.c.b16 %v1210, %v1208
    %v1231 = vpack.c.b16 %v1213, %v1211
    %v1232 = vpack.c.b16 %v1214, %v1212
    %v1233 = vpack.c.b16 %v1217, %v1215
    %v1234 = vpack.c.b16 %v1218, %v1216
    %1251 = vmatpush.bf16.msra.mxu0 %v1233
    %1252 = vmatpush.bf16.msra.mxu0 %v1231
    %1253 = vmatpush.bf16.msra.mxu0 %v1229
    %1254 = vmatpush.bf16.msra.mxu0 %v1227
    %1255 = vmatpush.bf16.msra.mxu0 %v1225
    %1256 = vmatpush.bf16.msra.mxu0 %v1223
    %1257 = vmatpush.bf16.msra.mxu0 %v1221
    %1258 = vmatpush.bf16.msra.mxu0 %v1219
    %1259 = vmatmul.bf16.gmra.mxu0 %v1169
    %v1260 = vpop.f32.mrf.mxu0
    %v1261 = vadd.f32 %v1160, %v1260
    %v1262 = vpop.f32.mrf.mxu0
    %1263 = vdwg.mxu0
    %1264 = vmatpush.bf16.msra.mxu0 %v1234
    %1265 = vmatpush.bf16.msra.mxu0 %v1232
    %1266 = vmatpush.bf16.msra.mxu0 %v1230
    %1267 = vmatpush.bf16.msra.mxu0 %v1228
    %1268 = vmatpush.bf16.msra.mxu0 %v1226
    %1269 = vmatpush.bf16.msra.mxu0 %v1224
    %1270 = vmatpush.bf16.msra.mxu0 %v1222
    %1271 = vmatpush.bf16.msra.mxu0 %v1220
    %1272 = vmatmul.bf16.gmra.mxu0 %v1169
    %v1273 = vpop.f32.mrf.mxu0
    %v1274 = vadd.f32 %v1161, %v1273
    %v1275 = vpop.f32.mrf.mxu0
    %1276 = vdwg.mxu0
    %v1277 = vpack.c.bf16 %v1155, %v1155
    %v1278 = vpack.c.bf16 %v1157, %v1157
    %v1280 = vrot.slane %v1261, 4
    %v1282 = vpack.c.bf16 %v1261, %v1261
    %v1283 = vpack.c.bf16 %v1280, %v1280
    %v1285 = vrot.slane %v1274, 4
    %v1287 = vpack.c.bf16 %v1274, %v1274
    %v1288 = vpack.c.bf16 %v1285, %v1285
    %v1290 = vsel %vm416, %v1277, 0
    %v1293 = vsel %vm416, %v1282, 0
    %1295 = vmatpush.bf16.xpose.msra.mxu0 0
    %1296 = vmatpush.bf16.xpose.msra.mxu0 0
    %1297 = vmatpush.bf16.xpose.msra.mxu0 0
    %1298 = vmatpush.bf16.xpose.msra.mxu0 0
    %1299 = vmatpush.bf16.xpose.msra.mxu0 0
    %1300 = vmatpush.bf16.xpose.msra.mxu0 0
    %1301 = vmatpush.bf16.xpose.msra.mxu0 0
    %1302 = vmatpush.bf16.xpose.msra.mxu0 %v1293
    %1303 = vmatmul.bf16.gmra.mxu0 %v1290
    %v1304 = vpop.f32.mrf.mxu0
    %v1305 = vadd.f32 0.0, %v1304
    %v1306 = vpop.f32.mrf.mxu0
    %1307 = vdwg.mxu0
    %v1309 = vsel %vm416, %v1278, 0
    %v1312 = vsel %vm416, %v1283, 0
    %1314 = vmatpush.bf16.xpose.msra.mxu0 0
    %1315 = vmatpush.bf16.xpose.msra.mxu0 0
    %1316 = vmatpush.bf16.xpose.msra.mxu0 0
    %1317 = vmatpush.bf16.xpose.msra.mxu0 0
    %1318 = vmatpush.bf16.xpose.msra.mxu0 0
    %1319 = vmatpush.bf16.xpose.msra.mxu0 0
    %1320 = vmatpush.bf16.xpose.msra.mxu0 0
    %1321 = vmatpush.bf16.xpose.msra.mxu0 %v1312
    %1322 = vmatmul.bf16.gmra.mxu0 %v1309
    %v1323 = vpop.f32.mrf.mxu0
    %v1324 = vadd.f32 0.0, %v1323
    %v1325 = vpop.f32.mrf.mxu0
    %1326 = vdwg.mxu0
    %vm1327 = vcmask 31744
    %v1328 = vsel %vm1327, %v1305, -inf
    %1329 = vmax.xlane.f32.xlu0 %v1328
    %v1330 = vpop.xlane.xlu0 %1329
    %v1331 = vsel %vm1327, %v1324, -inf
    %1332 = vmax.xlane.f32.xlu0 %v1331
    %v1333 = vpop.xlane.xlu0 %1332
    %v1334 = vsub.f32 %v1305, %v1330
    %v1335 = vsub.f32 %v1324, %v1333
    %v1336 = vmul.f32 %v1334, 1.442695
    %v1337 = vpow.pop %v1336
    %v1338 = vmul.f32 %v1335, 1.442695
    %v1339 = vpow.pop %v1338
    %v1340 = vsel %vm1327, %v1337, 0.0
    %1341 = vadd.xlane.f32.xlu0 %v1340
    %v1342 = vpop.xlane.xlu0 %1341
    %v1343 = vsel %vm1327, %v1339, 0.0
    %1344 = vadd.xlane.f32.xlu0 %v1343
    %v1345 = vpop.xlane.xlu0 %1344
    %v1346 = vrcp.pop %v1342
    %v1347 = vrcp.pop %v1345
    %v1348 = vmul.f32 %v1337, %v1346
    %v1349 = vmul.f32 %v1339, %v1347
    %v1350 = vpack.c.bf16 %v1348, %v1348
    %v1351 = vpack.c.bf16 %v1349, %v1349
    %v1353 = vsel %vm1327, %v1350, 0
    %vm1355 = vcmask 1041408
    %v1357 = vsel %vm1355, %v1287, 0
    %1359 = vmatpush.bf16.msra.mxu0 0
    %1360 = vmatpush.bf16.msra.mxu0 0
    %1361 = vmatpush.bf16.msra.mxu0 0
    %1362 = vmatpush.bf16.msra.mxu0 0
    %1363 = vmatpush.bf16.msra.mxu0 0
    %1364 = vmatpush.bf16.msra.mxu0 0
    %1365 = vmatpush.bf16.msra.mxu0 0
    %1366 = vmatpush.bf16.msra.mxu0 %v1357
    %1367 = vmatmul.bf16.gmra.mxu0 %v1353
    %v1368 = vpop.f32.mrf.mxu0
    %v1369 = vadd.f32 0.0, %v1368
    %v1370 = vpop.f32.mrf.mxu0
    %1371 = vdwg.mxu0
    %v1373 = vsel %vm1327, %v1351, 0
    %v1376 = vsel %vm1355, %v1288, 0
    %1378 = vmatpush.bf16.msra.mxu0 0
    %1379 = vmatpush.bf16.msra.mxu0 0
    %1380 = vmatpush.bf16.msra.mxu0 0
    %1381 = vmatpush.bf16.msra.mxu0 0
    %1382 = vmatpush.bf16.msra.mxu0 0
    %1383 = vmatpush.bf16.msra.mxu0 0
    %1384 = vmatpush.bf16.msra.mxu0 0
    %1385 = vmatpush.bf16.msra.mxu0 %v1376
    %1386 = vmatmul.bf16.gmra.mxu0 %v1373
    %v1387 = vpop.f32.mrf.mxu0
    %v1388 = vadd.f32 0.0, %v1387
    %v1389 = vpop.f32.mrf.mxu0
    %1390 = vdwg.mxu0
    %v1392 = vunpack.c.l.b16 %v1277
    %v1393 = vpack.c.b16 %v1392, %v1392
    %1394 = vrot.lane.b32.xlu0 %v1393, 96
    %v1395 = vpop.permute.xlu0 %1394
    %v1397 = vunpack.c.l.b16 %v1282
    %v1398 = vpack.c.b16 %v1397, %v1397
    %1399 = vrot.lane.b32.xlu0 %v1398, 96
    %v1400 = vpop.permute.xlu0 %1399
    %v1402 = vsel %vm416, %v1395, 0
    %v1405 = vsel %vm416, %v1400, 0
    %1407 = vmatpush.bf16.xpose.msra.mxu0 0
    %1408 = vmatpush.bf16.xpose.msra.mxu0 0
    %1409 = vmatpush.bf16.xpose.msra.mxu0 0
    %1410 = vmatpush.bf16.xpose.msra.mxu0 0
    %1411 = vmatpush.bf16.xpose.msra.mxu0 0
    %1412 = vmatpush.bf16.xpose.msra.mxu0 0
    %1413 = vmatpush.bf16.xpose.msra.mxu0 0
    %1414 = vmatpush.bf16.xpose.msra.mxu0 %v1405
    %1415 = vmatmul.bf16.gmra.mxu0 %v1402
    %v1416 = vpop.f32.mrf.mxu0
    %v1417 = vadd.f32 0.0, %v1416
    %v1418 = vpop.f32.mrf.mxu0
    %1419 = vdwg.mxu0
    %v1421 = vunpack.c.l.b16 %v1278
    %v1422 = vpack.c.b16 %v1421, %v1421
    %1423 = vrot.lane.b32.xlu0 %v1422, 96
    %v1424 = vpop.permute.xlu0 %1423
    %v1426 = vunpack.c.l.b16 %v1283
    %v1427 = vpack.c.b16 %v1426, %v1426
    %1428 = vrot.lane.b32.xlu0 %v1427, 96
    %v1429 = vpop.permute.xlu0 %1428
    %v1431 = vsel %vm416, %v1424, 0
    %v1434 = vsel %vm416, %v1429, 0
    %1436 = vmatpush.bf16.xpose.msra.mxu0 0
    %1437 = vmatpush.bf16.xpose.msra.mxu0 0
    %1438 = vmatpush.bf16.xpose.msra.mxu0 0
    %1439 = vmatpush.bf16.xpose.msra.mxu0 0
    %1440 = vmatpush.bf16.xpose.msra.mxu0 0
    %1441 = vmatpush.bf16.xpose.msra.mxu0 0
    %1442 = vmatpush.bf16.xpose.msra.mxu0 0
    %1443 = vmatpush.bf16.xpose.msra.mxu0 %v1434
    %1444 = vmatmul.bf16.gmra.mxu0 %v1431
    %v1445 = vpop.f32.mrf.mxu0
    %v1446 = vadd.f32 0.0, %v1445
    %v1447 = vpop.f32.mrf.mxu0
    %1448 = vdwg.mxu0
    %v1449 = vsel %vm1327, %v1417, -inf
    %1450 = vmax.xlane.f32.xlu0 %v1449
    %v1451 = vpop.xlane.xlu0 %1450
    %v1452 = vsel %vm1327, %v1446, -inf
    %1453 = vmax.xlane.f32.xlu0 %v1452
    %v1454 = vpop.xlane.xlu0 %1453
    %v1455 = vsub.f32 %v1417, %v1451
    %v1456 = vsub.f32 %v1446, %v1454
    %v1457 = vmul.f32 %v1455, 1.442695
    %v1458 = vpow.pop %v1457
    %v1459 = vmul.f32 %v1456, 1.442695
    %v1460 = vpow.pop %v1459
    %v1461 = vsel %vm1327, %v1458, 0.0
    %1462 = vadd.xlane.f32.xlu0 %v1461
    %v1463 = vpop.xlane.xlu0 %1462
    %v1464 = vsel %vm1327, %v1460, 0.0
    %1465 = vadd.xlane.f32.xlu0 %v1464
    %v1466 = vpop.xlane.xlu0 %1465
    %v1467 = vrcp.pop %v1463
    %v1468 = vrcp.pop %v1466
    %v1469 = vmul.f32 %v1458, %v1467
    %v1470 = vmul.f32 %v1460, %v1468
    %v1471 = vpack.c.bf16 %v1469, %v1469
    %v1472 = vpack.c.bf16 %v1470, %v1470
    %v1474 = vunpack.c.l.b16 %v1287
    %v1475 = vpack.c.b16 %v1474, %v1474
    %1476 = vrot.lane.b32.xlu0 %v1475, 96
    %v1477 = vpop.permute.xlu0 %1476
    %v1479 = vsel %vm1327, %v1471, 0
    %v1482 = vsel %vm1355, %v1477, 0
    %1484 = vmatpush.bf16.msra.mxu0 0
    %1485 = vmatpush.bf16.msra.mxu0 0
    %1486 = vmatpush.bf16.msra.mxu0 0
    %1487 = vmatpush.bf16.msra.mxu0 0
    %1488 = vmatpush.bf16.msra.mxu0 0
    %1489 = vmatpush.bf16.msra.mxu0 0
    %1490 = vmatpush.bf16.msra.mxu0 0
    %1491 = vmatpush.bf16.msra.mxu0 %v1482
    %1492 = vmatmul.bf16.gmra.mxu0 %v1479
    %v1493 = vpop.f32.mrf.mxu0
    %v1494 = vadd.f32 0.0, %v1493
    %v1495 = vpop.f32.mrf.mxu0
    %1496 = vdwg.mxu0
    %v1498 = vunpack.c.l.b16 %v1288
    %v1499 = vpack.c.b16 %v1498, %v1498
    %1500 = vrot.lane.b32.xlu0 %v1499, 96
    %v1501 = vpop.permute.xlu0 %1500
    %v1503 = vsel %vm1327, %v1472, 0
    %v1506 = vsel %vm1355, %v1501, 0
    %1508 = vmatpush.bf16.msra.mxu0 0
    %1509 = vmatpush.bf16.msra.mxu0 0
    %1510 = vmatpush.bf16.msra.mxu0 0
    %1511 = vmatpush.bf16.msra.mxu0 0
    %1512 = vmatpush.bf16.msra.mxu0 0
    %1513 = vmatpush.bf16.msra.mxu0 0
    %1514 = vmatpush.bf16.msra.mxu0 0
    %1515 = vmatpush.bf16.msra.mxu0 %v1506
    %1516 = vmatmul.bf16.gmra.mxu0 %v1503
    %v1517 = vpop.f32.mrf.mxu0
    %v1518 = vadd.f32 0.0, %v1517
    %v1519 = vpop.f32.mrf.mxu0
    %1520 = vdwg.mxu0
    %1521 = vrot.lane.b32.xlu0 %v1393, 64
    %v1522 = vpop.permute.xlu0 %1521
    %1523 = vrot.lane.b32.xlu0 %v1398, 64
    %v1524 = vpop.permute.xlu0 %1523
    %v1526 = vsel %vm416, %v1522, 0
    %v1529 = vsel %vm416, %v1524, 0
    %1531 = vmatpush.bf16.xpose.msra.mxu0 0
    %1532 = vmatpush.bf16.xpose.msra.mxu0 0
    %1533 = vmatpush.bf16.xpose.msra.mxu0 0
    %1534 = vmatpush.bf16.xpose.msra.mxu0 0
    %1535 = vmatpush.bf16.xpose.msra.mxu0 0
    %1536 = vmatpush.bf16.xpose.msra.mxu0 0
    %1537 = vmatpush.bf16.xpose.msra.mxu0 0
    %1538 = vmatpush.bf16.xpose.msra.mxu0 %v1529
    %1539 = vmatmul.bf16.gmra.mxu0 %v1526
    %v1540 = vpop.f32.mrf.mxu0
    %v1541 = vadd.f32 0.0, %v1540
    %v1542 = vpop.f32.mrf.mxu0
    %1543 = vdwg.mxu0
    %1544 = vrot.lane.b32.xlu0 %v1422, 64
    %v1545 = vpop.permute.xlu0 %1544
    %1546 = vrot.lane.b32.xlu0 %v1427, 64
    %v1547 = vpop.permute.xlu0 %1546
    %v1549 = vsel %vm416, %v1545, 0
    %v1552 = vsel %vm416, %v1547, 0
    %1554 = vmatpush.bf16.xpose.msra.mxu0 0
    %1555 = vmatpush.bf16.xpose.msra.mxu0 0
    %1556 = vmatpush.bf16.xpose.msra.mxu0 0
    %1557 = vmatpush.bf16.xpose.msra.mxu0 0
    %1558 = vmatpush.bf16.xpose.msra.mxu0 0
    %1559 = vmatpush.bf16.xpose.msra.mxu0 0
    %1560 = vmatpush.bf16.xpose.msra.mxu0 0
    %1561 = vmatpush.bf16.xpose.msra.mxu0 %v1552
    %1562 = vmatmul.bf16.gmra.mxu0 %v1549
    %v1563 = vpop.f32.mrf.mxu0
    %v1564 = vadd.f32 0.0, %v1563
    %v1565 = vpop.f32.mrf.mxu0
    %1566 = vdwg.mxu0
    %v1567 = vsel %vm1327, %v1541, -inf
    %1568 = vmax.xlane.f32.xlu0 %v1567
    %v1569 = vpop.xlane.xlu0 %1568
    %v1570 = vsel %vm1327, %v1564, -inf
    %1571 = vmax.xlane.f32.xlu0 %v1570
    %v1572 = vpop.xlane.xlu0 %1571
    %v1573 = vsub.f32 %v1541, %v1569
    %v1574 = vsub.f32 %v1564, %v1572
    %v1575 = vmul.f32 %v1573, 1.442695
    %v1576 = vpow.pop %v1575
    %v1577 = vmul.f32 %v1574, 1.442695
    %v1578 = vpow.pop %v1577
    %v1579 = vsel %vm1327, %v1576, 0.0
    %1580 = vadd.xlane.f32.xlu0 %v1579
    %v1581 = vpop.xlane.xlu0 %1580
    %v1582 = vsel %vm1327, %v1578, 0.0
    %1583 = vadd.xlane.f32.xlu0 %v1582
    %v1584 = vpop.xlane.xlu0 %1583
    %v1585 = vrcp.pop %v1581
    %v1586 = vrcp.pop %v1584
    %v1587 = vmul.f32 %v1576, %v1585
    %v1588 = vmul.f32 %v1578, %v1586
    %v1589 = vpack.c.bf16 %v1587, %v1587
    %v1590 = vpack.c.bf16 %v1588, %v1588
    %1591 = vrot.lane.b32.xlu0 %v1475, 64
    %v1592 = vpop.permute.xlu0 %1591
    %v1594 = vsel %vm1327, %v1589, 0
    %v1597 = vsel %vm1355, %v1592, 0
    %1599 = vmatpush.bf16.msra.mxu0 0
    %1600 = vmatpush.bf16.msra.mxu0 0
    %1601 = vmatpush.bf16.msra.mxu0 0
    %1602 = vmatpush.bf16.msra.mxu0 0
    %1603 = vmatpush.bf16.msra.mxu0 0
    %1604 = vmatpush.bf16.msra.mxu0 0
    %1605 = vmatpush.bf16.msra.mxu0 0
    %1606 = vmatpush.bf16.msra.mxu0 %v1597
    %1607 = vmatmul.bf16.gmra.mxu0 %v1594
    %v1608 = vpop.f32.mrf.mxu0
    %v1609 = vadd.f32 0.0, %v1608
    %v1610 = vpop.f32.mrf.mxu0
    %1611 = vdwg.mxu0
    %1612 = vrot.lane.b32.xlu0 %v1499, 64
    %v1613 = vpop.permute.xlu0 %1612
    %v1615 = vsel %vm1327, %v1590, 0
    %v1618 = vsel %vm1355, %v1613, 0
    %1620 = vmatpush.bf16.msra.mxu0 0
    %1621 = vmatpush.bf16.msra.mxu0 0
    %1622 = vmatpush.bf16.msra.mxu0 0
    %1623 = vmatpush.bf16.msra.mxu0 0
    %1624 = vmatpush.bf16.msra.mxu0 0
    %1625 = vmatpush.bf16.msra.mxu0 0
    %1626 = vmatpush.bf16.msra.mxu0 0
    %1627 = vmatpush.bf16.msra.mxu0 %v1618
    %1628 = vmatmul.bf16.gmra.mxu0 %v1615
    %v1629 = vpop.f32.mrf.mxu0
    %v1630 = vadd.f32 0.0, %v1629
    %v1631 = vpop.f32.mrf.mxu0
    %1632 = vdwg.mxu0
    %1633 = vrot.lane.b32.xlu0 %v1393, 32
    %v1634 = vpop.permute.xlu0 %1633
    %1635 = vrot.lane.b32.xlu0 %v1398, 32
    %v1636 = vpop.permute.xlu0 %1635
    %v1638 = vsel %vm416, %v1634, 0
    %v1641 = vsel %vm416, %v1636, 0
    %1643 = vmatpush.bf16.xpose.msra.mxu0 0
    %1644 = vmatpush.bf16.xpose.msra.mxu0 0
    %1645 = vmatpush.bf16.xpose.msra.mxu0 0
    %1646 = vmatpush.bf16.xpose.msra.mxu0 0
    %1647 = vmatpush.bf16.xpose.msra.mxu0 0
    %1648 = vmatpush.bf16.xpose.msra.mxu0 0
    %1649 = vmatpush.bf16.xpose.msra.mxu0 0
    %1650 = vmatpush.bf16.xpose.msra.mxu0 %v1641
    %1651 = vmatmul.bf16.gmra.mxu0 %v1638
    %v1652 = vpop.f32.mrf.mxu0
    %v1653 = vadd.f32 0.0, %v1652
    %v1654 = vpop.f32.mrf.mxu0
    %1655 = vdwg.mxu0
    %1656 = vrot.lane.b32.xlu0 %v1422, 32
    %v1657 = vpop.permute.xlu0 %1656
    %1658 = vrot.lane.b32.xlu0 %v1427, 32
    %v1659 = vpop.permute.xlu0 %1658
    %v1661 = vsel %vm416, %v1657, 0
    %v1664 = vsel %vm416, %v1659, 0
    %1666 = vmatpush.bf16.xpose.msra.mxu0 0
    %1667 = vmatpush.bf16.xpose.msra.mxu0 0
    %1668 = vmatpush.bf16.xpose.msra.mxu0 0
    %1669 = vmatpush.bf16.xpose.msra.mxu0 0
    %1670 = vmatpush.bf16.xpose.msra.mxu0 0
    %1671 = vmatpush.bf16.xpose.msra.mxu0 0
    %1672 = vmatpush.bf16.xpose.msra.mxu0 0
    %1673 = vmatpush.bf16.xpose.msra.mxu0 %v1664
    %1674 = vmatmul.bf16.gmra.mxu0 %v1661
    %v1675 = vpop.f32.mrf.mxu0
    %v1676 = vadd.f32 0.0, %v1675
    %v1677 = vpop.f32.mrf.mxu0
    %1678 = vdwg.mxu0
    %v1679 = vsel %vm1327, %v1653, -inf
    %1680 = vmax.xlane.f32.xlu0 %v1679
    %v1681 = vpop.xlane.xlu0 %1680
    %v1682 = vsel %vm1327, %v1676, -inf
    %1683 = vmax.xlane.f32.xlu0 %v1682
    %v1684 = vpop.xlane.xlu0 %1683
    %v1685 = vsub.f32 %v1653, %v1681
    %v1686 = vsub.f32 %v1676, %v1684
    %v1687 = vmul.f32 %v1685, 1.442695
    %v1688 = vpow.pop %v1687
    %v1689 = vmul.f32 %v1686, 1.442695
    %v1690 = vpow.pop %v1689
    %v1691 = vsel %vm1327, %v1688, 0.0
    %1692 = vadd.xlane.f32.xlu0 %v1691
    %v1693 = vpop.xlane.xlu0 %1692
    %v1694 = vsel %vm1327, %v1690, 0.0
    %1695 = vadd.xlane.f32.xlu0 %v1694
    %v1696 = vpop.xlane.xlu0 %1695
    %v1697 = vrcp.pop %v1693
    %v1698 = vrcp.pop %v1696
    %v1699 = vmul.f32 %v1688, %v1697
    %v1700 = vmul.f32 %v1690, %v1698
    %v1701 = vpack.c.bf16 %v1699, %v1699
    %v1702 = vpack.c.bf16 %v1700, %v1700
    %1703 = vrot.lane.b32.xlu0 %v1475, 32
    %v1704 = vpop.permute.xlu0 %1703
    %v1706 = vsel %vm1327, %v1701, 0
    %v1709 = vsel %vm1355, %v1704, 0
    %1711 = vmatpush.bf16.msra.mxu0 0
    %1712 = vmatpush.bf16.msra.mxu0 0
    %1713 = vmatpush.bf16.msra.mxu0 0
    %1714 = vmatpush.bf16.msra.mxu0 0
    %1715 = vmatpush.bf16.msra.mxu0 0
    %1716 = vmatpush.bf16.msra.mxu0 0
    %1717 = vmatpush.bf16.msra.mxu0 0
    %1718 = vmatpush.bf16.msra.mxu0 %v1709
    %1719 = vmatmul.bf16.gmra.mxu0 %v1706
    %v1720 = vpop.f32.mrf.mxu0
    %v1721 = vadd.f32 0.0, %v1720
    %v1722 = vpop.f32.mrf.mxu0
    %1723 = vdwg.mxu0
    %1724 = vrot.lane.b32.xlu0 %v1499, 32
    %v1725 = vpop.permute.xlu0 %1724
    %v1727 = vsel %vm1327, %v1702, 0
    %v1730 = vsel %vm1355, %v1725, 0
    %1732 = vmatpush.bf16.msra.mxu0 0
    %1733 = vmatpush.bf16.msra.mxu0 0
    %1734 = vmatpush.bf16.msra.mxu0 0
    %1735 = vmatpush.bf16.msra.mxu0 0
    %1736 = vmatpush.bf16.msra.mxu0 0
    %1737 = vmatpush.bf16.msra.mxu0 0
    %1738 = vmatpush.bf16.msra.mxu0 0
    %1739 = vmatpush.bf16.msra.mxu0 %v1730
    %1740 = vmatmul.bf16.gmra.mxu0 %v1727
    %v1741 = vpop.f32.mrf.mxu0
    %v1742 = vadd.f32 0.0, %v1741
    %v1743 = vpop.f32.mrf.mxu0
    %1744 = vdwg.mxu0
    %1747 = vrot.lane.b32.xlu0 %v1494, 32
    %v1748 = vpop.permute.xlu0 %1747
    %1749 = vrot.lane.b32.xlu0 %v1518, 32
    %v1750 = vpop.permute.xlu0 %1749
    %1755 = vrot.lane.b32.xlu0 %v1609, 64
    %v1756 = vpop.permute.xlu0 %1755
    %1757 = vrot.lane.b32.xlu0 %v1630, 64
    %v1758 = vpop.permute.xlu0 %1757
    %1763 = vrot.lane.b32.xlu0 %v1721, 96
    %v1764 = vpop.permute.xlu0 %1763
    %1765 = vrot.lane.b32.xlu0 %v1742, 96
    %v1766 = vpop.permute.xlu0 %1765
    %v1769 = vsel %vm416, %v1369, %v1748
    %v1770 = vsel %vm416, %v1388, %v1750
    %v1771 = vsel %vm909, %v1769, %v1756
    %v1772 = vsel %vm909, %v1770, %v1758
    %v1773 = vsel %vm912, %v1771, %v1764
    %v1774 = vsel %vm912, %v1772, %v1766
    %v1775 = vpack.c.bf16 %v1774, %v1773
    %v1777 = vperm.slane %v1092, 0
    %v1795 = vunpack.c.l.b16 %v1076
    %v1796 = vunpack.c.l.b16 %v1077
    %v1797 = vunpack.c.l.b16 %v1078
    %v1798 = vunpack.c.l.b16 %v1079
    %v1799 = vunpack.c.l.b16 %v1080
    %v1800 = vunpack.c.l.b16 %v1081
    %v1801 = vunpack.c.l.b16 %v1082
    %v1802 = vunpack.c.l.b16 %v1083
    %v1803 = vunpack.c.l.b16 %v1084
    %v1804 = vunpack.c.l.b16 %v1085
    %v1805 = vunpack.c.l.b16 %v1086
    %v1806 = vunpack.c.l.b16 %v1087
    %v1807 = vunpack.c.l.b16 %v1088
    %v1808 = vunpack.c.l.b16 %v1089
    %v1809 = vunpack.c.l.b16 %v1090
    %v1810 = vunpack.c.l.b16 %v1091
    %v1811 = vpack.c.b16 %v1796, %v1795
    %v1812 = vpack.c.b16 %v1798, %v1797
    %v1813 = vpack.c.b16 %v1800, %v1799
    %v1814 = vpack.c.b16 %v1802, %v1801
    %v1815 = vpack.c.b16 %v1804, %v1803
    %v1816 = vpack.c.b16 %v1806, %v1805
    %v1817 = vpack.c.b16 %v1808, %v1807
    %v1818 = vpack.c.b16 %v1810, %v1809
    %1827 = vmatpush.bf16.msra.mxu0 %v1818
    %1828 = vmatpush.bf16.msra.mxu0 %v1817
    %1829 = vmatpush.bf16.msra.mxu0 %v1816
    %1830 = vmatpush.bf16.msra.mxu0 %v1815
    %1831 = vmatpush.bf16.msra.mxu0 %v1814
    %1832 = vmatpush.bf16.msra.mxu0 %v1813
    %1833 = vmatpush.bf16.msra.mxu0 %v1812
    %1834 = vmatpush.bf16.msra.mxu0 %v1811
    %1835 = vmatmul.bf16.gmra.mxu0 %v1775
    %v1836 = vpop.f32.mrf.mxu0
    %v1837 = vadd.f32 %v1777, %v1836
    %v1838 = vpop.f32.mrf.mxu0
    %v1839 = vadd.f32 %v1777, %v1838
    %1840 = vdwg.mxu0
    %v1841 = vadd.f32 %v1040, %v1837
    %v1842 = vadd.f32 %v1041, %v1839
    %v1843 = vld [vmem:[%s14] sm:$0x1]
    %v1844 = vld [vmem:[%s15] sm:$0x1]
    %1845 = vadd.xlane.f32.xlu0 %v1841
    %v1846 = vpop.xlane.xlu0 %1845
    %1847 = vadd.xlane.f32.xlu0 %v1842
    %v1848 = vpop.xlane.xlu0 %1847
    %v1849 = vmul.f32 %v1846, %v995
    %v1850 = vmul.f32 %v1848, %v995
    %v1851 = vsub.f32 %v1841, %v1849
    %v1852 = vsub.f32 %v1842, %v1850
    %v1853 = vmul.f32 %v1851, %v1851
    %v1854 = vmul.f32 %v1852, %v1852
    %1855 = vadd.xlane.f32.xlu0 %v1853
    %v1856 = vpop.xlane.xlu0 %1855
    %1857 = vadd.xlane.f32.xlu0 %v1854
    %v1858 = vpop.xlane.xlu0 %1857
    %v1859 = vmul.f32 %v1856, %v995
    %v1860 = vmul.f32 %v1858, %v995
    %v1861 = vadd.f32 %v1859, 1e-05
    %v1862 = vadd.f32 %v1860, 1e-05
    %v1863 = vrsqrt.pop %v1861
    %v1864 = vmul.f32 %v1863, %v1861
    %v1865 = vmul.f32 %v1864, %v1863
    %v1866 = vmul.f32 0.5, %v1865
    %v1867 = vsub.f32 1.5, %v1866
    %v1868 = vmul.f32 %v1863, %v1867
    %vm1869 = vweird.f32 %v1861
    %vm1870 = vweird.f32 %v1863
    %vm1871 = vmor %vm1869, %vm1870
    %v1872 = vsel %vm1871, %v1863, %v1868
    %v1873 = vrsqrt.pop %v1862
    %v1874 = vmul.f32 %v1873, %v1862
    %v1875 = vmul.f32 %v1874, %v1873
    %v1876 = vmul.f32 0.5, %v1875
    %v1877 = vsub.f32 1.5, %v1876
    %v1878 = vmul.f32 %v1873, %v1877
    %vm1879 = vweird.f32 %v1862
    %vm1880 = vweird.f32 %v1873
    %vm1881 = vmor %vm1879, %vm1880
    %v1882 = vsel %vm1881, %v1873, %v1878
    %v1883 = vmul.f32 %v1851, %v1872
    %v1884 = vmul.f32 %v1852, %v1882
    %v1886 = vperm.slane %v1843, 0
    %v1888 = vmul.f32 %v1883, %v1886
    %v1889 = vmul.f32 %v1884, %v1886
    %v1891 = vperm.slane %v1844, 0
    %v1893 = vadd.f32 %v1888, %v1891
    %v1894 = vadd.f32 %v1889, %v1891
    %v1895 = vld [vmem:[#allocation8] sm:$0xff]
    %v1896 = vld [vmem:[#allocation8 + $0x8] sm:$0xff]
    %v1897 = vld [vmem:[#allocation8 + $0x10] sm:$0xff]
    %v1898 = vld [vmem:[#allocation8 + $0x18] sm:$0xff]
    %v1899 = vld [vmem:[#allocation8 + $0x20] sm:$0xff]
    %v1900 = vld [vmem:[#allocation8 + $0x28] sm:$0xff]
    %v1901 = vld [vmem:[#allocation8 + $0x30] sm:$0xff]
    %v1902 = vld [vmem:[#allocation8 + $0x38] sm:$0xff]
    %v1903 = vld [vmem:[#allocation8 + $0x40] sm:$0xff]
    %v1904 = vld [vmem:[#allocation8 + $0x48] sm:$0xff]
    %v1905 = vld [vmem:[#allocation8 + $0x50] sm:$0xff]
    %v1906 = vld [vmem:[#allocation8 + $0x58] sm:$0xff]
    %v1907 = vld [vmem:[#allocation8 + $0x60] sm:$0xff]
    %v1908 = vld [vmem:[#allocation8 + $0x68] sm:$0xff]
    %v1909 = vld [vmem:[#allocation8 + $0x70] sm:$0xff]
    %v1910 = vld [vmem:[#allocation8 + $0x78] sm:$0xff]
    %v1911 = vld [vmem:[%s17] sm:$0x3]
    %v1912 = vld [vmem:[#allocation10] sm:$0xf]
    %v1913 = vld [vmem:[#allocation10 + $0x4] sm:$0xf]
    %v1914 = vld [vmem:[#allocation10 + $0x8] sm:$0xf]
    %v1915 = vld [vmem:[#allocation10 + $0xc] sm:$0xf]
    %v1916 = vld [vmem:[#allocation10 + $0x10] sm:$0xf]
    %v1917 = vld [vmem:[#allocation10 + $0x14] sm:$0xf]
    %v1918 = vld [vmem:[#allocation10 + $0x18] sm:$0xf]
    %v1919 = vld [vmem:[#allocation10 + $0x1c] sm:$0xf]
    %v1920 = vld [vmem:[#allocation10 + $0x20] sm:$0xf]
    %v1921 = vld [vmem:[#allocation10 + $0x24] sm:$0xf]
    %v1922 = vld [vmem:[#allocation10 + $0x28] sm:$0xf]
    %v1923 = vld [vmem:[#allocation10 + $0x2c] sm:$0xf]
    %v1924 = vld [vmem:[#allocation10 + $0x30] sm:$0xf]
    %v1925 = vld [vmem:[#allocation10 + $0x34] sm:$0xf]
    %v1926 = vld [vmem:[#allocation10 + $0x38] sm:$0xf]
    %v1927 = vld [vmem:[#allocation10 + $0x3c] sm:$0xf]
    %v1928 = vld [vmem:[#allocation10 + $0x40] sm:$0xf]
    %v1929 = vld [vmem:[#allocation10 + $0x44] sm:$0xf]
    %v1930 = vld [vmem:[#allocation10 + $0x48] sm:$0xf]
    %v1931 = vld [vmem:[#allocation10 + $0x4c] sm:$0xf]
    %v1932 = vld [vmem:[#allocation10 + $0x50] sm:$0xf]
    %v1933 = vld [vmem:[#allocation10 + $0x54] sm:$0xf]
    %v1934 = vld [vmem:[#allocation10 + $0x58] sm:$0xf]
    %v1935 = vld [vmem:[#allocation10 + $0x5c] sm:$0xf]
    %v1936 = vld [vmem:[#allocation10 + $0x60] sm:$0xf]
    %v1937 = vld [vmem:[#allocation10 + $0x64] sm:$0xf]
    %v1938 = vld [vmem:[#allocation10 + $0x68] sm:$0xf]
    %v1939 = vld [vmem:[#allocation10 + $0x6c] sm:$0xf]
    %v1940 = vld [vmem:[#allocation10 + $0x70] sm:$0xf]
    %v1941 = vld [vmem:[#allocation10 + $0x74] sm:$0xf]
    %v1942 = vld [vmem:[#allocation10 + $0x78] sm:$0xf]
    %v1943 = vld [vmem:[#allocation10 + $0x7c] sm:$0xf]
    %v1944 = vld [vmem:[%s19] sm:$0x1]
    %v1945 = vpack.c.bf16 %v1894, %v1893
    %v1947 = vperm.slane %v1911, 0
    %v1948 = vperm.slane %v1911, 1
    %v1967 = vunpack.c.l.b16 %v1895
    %v1968 = vunpack.c.h.b16 %v1895
    %v1969 = vunpack.c.l.b16 %v1896
    %v1970 = vunpack.c.h.b16 %v1896
    %v1971 = vunpack.c.l.b16 %v1897
    %v1972 = vunpack.c.h.b16 %v1897
    %v1973 = vunpack.c.l.b16 %v1898
    %v1974 = vunpack.c.h.b16 %v1898
    %v1975 = vunpack.c.l.b16 %v1899
    %v1976 = vunpack.c.h.b16 %v1899
    %v1977 = vunpack.c.l.b16 %v1900
    %v1978 = vunpack.c.h.b16 %v1900
    %v1979 = vunpack.c.l.b16 %v1901
    %v1980 = vunpack.c.h.b16 %v1901
    %v1981 = vunpack.c.l.b16 %v1902
    %v1982 = vunpack.c.h.b16 %v1902
    %v1983 = vunpack.c.l.b16 %v1903
    %v1984 = vunpack.c.h.b16 %v1903
    %v1985 = vunpack.c.l.b16 %v1904
    %v1986 = vunpack.c.h.b16 %v1904
    %v1987 = vunpack.c.l.b16 %v1905
    %v1988 = vunpack.c.h.b16 %v1905
    %v1989 = vunpack.c.l.b16 %v1906
    %v1990 = vunpack.c.h.b16 %v1906
    %v1991 = vunpack.c.l.b16 %v1907
    %v1992 = vunpack.c.h.b16 %v1907
    %v1993 = vunpack.c.l.b16 %v1908
    %v1994 = vunpack.c.h.b16 %v1908
    %v1995 = vunpack.c.l.b16 %v1909
    %v1996 = vunpack.c.h.b16 %v1909
    %v1997 = vunpack.c.l.b16 %v1910
    %v1998 = vunpack.c.h.b16 %v1910
    %v1999 = vpack.c.b16 %v1969, %v1967
    %v2000 = vpack.c.b16 %v1970, %v1968
    %v2001 = vpack.c.b16 %v1973, %v1971
    %v2002 = vpack.c.b16 %v1974, %v1972
    %v2003 = vpack.c.b16 %v1977, %v1975
    %v2004 = vpack.c.b16 %v1978, %v1976
    %v2005 = vpack.c.b16 %v1981, %v1979
    %v2006 = vpack.c.b16 %v1982, %v1980
    %v2007 = vpack.c.b16 %v1985, %v1983
    %v2008 = vpack.c.b16 %v1986, %v1984
    %v2009 = vpack.c.b16 %v1989, %v1987
    %v2010 = vpack.c.b16 %v1990, %v1988
    %v2011 = vpack.c.b16 %v1993, %v1991
    %v2012 = vpack.c.b16 %v1994, %v1992
    %v2013 = vpack.c.b16 %v1997, %v1995
    %v2014 = vpack.c.b16 %v1998, %v1996
    %2031 = vmatpush.bf16.msra.mxu0 %v2013
    %2032 = vmatpush.bf16.msra.mxu0 %v2011
    %2033 = vmatpush.bf16.msra.mxu0 %v2009
    %2034 = vmatpush.bf16.msra.mxu0 %v2007
    %2035 = vmatpush.bf16.msra.mxu0 %v2005
    %2036 = vmatpush.bf16.msra.mxu0 %v2003
    %2037 = vmatpush.bf16.msra.mxu0 %v2001
    %2038 = vmatpush.bf16.msra.mxu0 %v1999
    %2039 = vmatmul.bf16.gmra.mxu0 %v1945
    %v2040 = vpop.f32.mrf.mxu0
    %v2041 = vadd.f32 %v1947, %v2040
    %v2042 = vpop.f32.mrf.mxu0
    %v2043 = vadd.f32 %v1947, %v2042
    %2044 = vdwg.mxu0
    %2045 = vmatpush.bf16.msra.mxu0 %v2014
    %2046 = vmatpush.bf16.msra.mxu0 %v2012
    %2047 = vmatpush.bf16.msra.mxu0 %v2010
    %2048 = vmatpush.bf16.msra.mxu0 %v2008
    %2049 = vmatpush.bf16.msra.mxu0 %v2006
    %2050 = vmatpush.bf16.msra.mxu0 %v2004
    %2051 = vmatpush.bf16.msra.mxu0 %v2002
    %2052 = vmatpush.bf16.msra.mxu0 %v2000
    %2053 = vmatmul.bf16.gmra.mxu0 %v1945
    %v2054 = vpop.f32.mrf.mxu0
    %v2055 = vadd.f32 %v1948, %v2054
    %v2056 = vpop.f32.mrf.mxu0
    %v2057 = vadd.f32 %v1948, %v2056
    %2058 = vdwg.mxu0
    %v2059 = vmax.f32 %v2041, 0.0
    %v2060 = vmax.f32 %v2055, 0.0
    %v2061 = vmax.f32 %v2043, 0.0
    %v2062 = vmax.f32 %v2057, 0.0
    %v2063 = vpack.c.bf16 %v2061, %v2059
    %v2064 = vpack.c.bf16 %v2062, %v2060
    %v2066 = vperm.slane %v1944, 0
    %v2100 = vunpack.c.l.b16 %v1912
    %v2101 = vunpack.c.l.b16 %v1913
    %v2102 = vunpack.c.l.b16 %v1914
    %v2103 = vunpack.c.l.b16 %v1915
    %v2104 = vunpack.c.l.b16 %v1916
    %v2105 = vunpack.c.l.b16 %v1917
    %v2106 = vunpack.c.l.b16 %v1918
    %v2107 = vunpack.c.l.b16 %v1919
    %v2108 = vunpack.c.l.b16 %v1920
    %v2109 = vunpack.c.l.b16 %v1921
    %v2110 = vunpack.c.l.b16 %v1922
    %v2111 = vunpack.c.l.b16 %v1923
    %v2112 = vunpack.c.l.b16 %v1924
    %v2113 = vunpack.c.l.b16 %v1925
    %v2114 = vunpack.c.l.b16 %v1926
    %v2115 = vunpack.c.l.b16 %v1927
    %v2116 = vunpack.c.l.b16 %v1928
    %v2117 = vunpack.c.l.b16 %v1929
    %v2118 = vunpack.c.l.b16 %v1930
    %v2119 = vunpack.c.l.b16 %v1931
    %v2120 = vunpack.c.l.b16 %v1932
    %v2121 = vunpack.c.l.b16 %v1933
    %v2122 = vunpack.c.l.b16 %v1934
    %v2123 = vunpack.c.l.b16 %v1935
    %v2124 = vunpack.c.l.b16 %v1936
    %v2125 = vunpack.c.l.b16 %v1937
    %v2126 = vunpack.c.l.b16 %v1938
    %v2127 = vunpack.c.l.b16 %v1939
    %v2128 = vunpack.c.l.b16 %v1940
    %v2129 = vunpack.c.l.b16 %v1941
    %v2130 = vunpack.c.l.b16 %v1942
    %v2131 = vunpack.c.l.b16 %v1943
    %v2132 = vpack.c.b16 %v2101, %v2100
    %v2133 = vpack.c.b16 %v2103, %v2102
    %v2134 = vpack.c.b16 %v2105, %v2104
    %v2135 = vpack.c.b16 %v2107, %v2106
    %v2136 = vpack.c.b16 %v2109, %v2108
    %v2137 = vpack.c.b16 %v2111, %v2110
    %v2138 = vpack.c.b16 %v2113, %v2112
    %v2139 = vpack.c.b16 %v2115, %v2114
    %v2140 = vpack.c.b16 %v2117, %v2116
    %v2141 = vpack.c.b16 %v2119, %v2118
    %v2142 = vpack.c.b16 %v2121, %v2120
    %v2143 = vpack.c.b16 %v2123, %v2122
    %v2144 = vpack.c.b16 %v2125, %v2124
    %v2145 = vpack.c.b16 %v2127, %v2126
    %v2146 = vpack.c.b16 %v2129, %v2128
    %v2147 = vpack.c.b16 %v2131, %v2130
    %2164 = vmatpush.bf16.msra.mxu0 %v2139
    %2165 = vmatpush.bf16.msra.mxu0 %v2138
    %2166 = vmatpush.bf16.msra.mxu0 %v2137
    %2167 = vmatpush.bf16.msra.mxu0 %v2136
    %2168 = vmatpush.bf16.msra.mxu0 %v2135
    %2169 = vmatpush.bf16.msra.mxu0 %v2134
    %2170 = vmatpush.bf16.msra.mxu0 %v2133
    %2171 = vmatpush.bf16.msra.mxu0 %v2132
    %2172 = vmatmul.bf16.gmra.mxu0 %v2063
    %v2173 = vpop.f32.mrf.mxu0
    %v2174 = vadd.f32 %v2066, %v2173
    %v2175 = vpop.f32.mrf.mxu0
    %v2176 = vadd.f32 %v2066, %v2175
    %2177 = vdwg.mxu0
    %2178 = vmatpush.bf16.msra.mxu0 %v2147
    %2179 = vmatpush.bf16.msra.mxu0 %v2146
    %2180 = vmatpush.bf16.msra.mxu0 %v2145
    %2181 = vmatpush.bf16.msra.mxu0 %v2144
    %2182 = vmatpush.bf16.msra.mxu0 %v2143
    %2183 = vmatpush.bf16.msra.mxu0 %v2142
    %2184 = vmatpush.bf16.msra.mxu0 %v2141
    %2185 = vmatpush.bf16.msra.mxu0 %v2140
    %2186 = vmatmul.bf16.gmra.mxu0 %v2064
    %v2187 = vpop.f32.mrf.mxu0
    %v2188 = vadd.f32 %v2174, %v2187
    %v2189 = vpop.f32.mrf.mxu0
    %v2190 = vadd.f32 %v2176, %v2189
    %2191 = vdwg.mxu0
    %v2192 = vadd.f32 %v1893, %v2188
    %v2193 = vadd.f32 %v1894, %v2190
    %v2194 = vld [vmem:[%s20] sm:$0x1]
    %v2195 = vld [vmem:[%s21] sm:$0x1]
    %2196 = vadd.xlane.f32.xlu0 %v2192
    %v2197 = vpop.xlane.xlu0 %2196
    %2198 = vadd.xlane.f32.xlu0 %v2193
    %v2199 = vpop.xlane.xlu0 %2198
    %v2200 = vmul.f32 %v2197, %v995
    %v2201 = vmul.f32 %v2199, %v995
    %v2202 = vsub.f32 %v2192, %v2200
    %v2203 = vsub.f32 %v2193, %v2201
    %v2204 = vmul.f32 %v2202, %v2202
    %v2205 = vmul.f32 %v2203, %v2203
    %2206 = vadd.xlane.f32.xlu0 %v2204
    %v2207 = vpop.xlane.xlu0 %2206
    %2208 = vadd.xlane.f32.xlu0 %v2205
    %v2209 = vpop.xlane.xlu0 %2208
    %v2210 = vmul.f32 %v2207, %v995
    %v2211 = vmul.f32 %v2209, %v995
    %v2212 = vadd.f32 %v2210, 1e-05
    %v2213 = vadd.f32 %v2211, 1e-05
    %v2214 = vrsqrt.pop %v2212
    %v2215 = vmul.f32 %v2214, %v2212
    %v2216 = vmul.f32 %v2215, %v2214
    %v2217 = vmul.f32 0.5, %v2216
    %v2218 = vsub.f32 1.5, %v2217
    %v2219 = vmul.f32 %v2214, %v2218
    %vm2220 = vweird.f32 %v2212
    %vm2221 = vweird.f32 %v2214
    %vm2222 = vmor %vm2220, %vm2221
    %v2223 = vsel %vm2222, %v2214, %v2219
    %v2224 = vrsqrt.pop %v2213
    %v2225 = vmul.f32 %v2224, %v2213
    %v2226 = vmul.f32 %v2225, %v2224
    %v2227 = vmul.f32 0.5, %v2226
    %v2228 = vsub.f32 1.5, %v2227
    %v2229 = vmul.f32 %v2224, %v2228
    %vm2230 = vweird.f32 %v2213
    %vm2231 = vweird.f32 %v2224
    %vm2232 = vmor %vm2230, %vm2231
    %v2233 = vsel %vm2232, %v2224, %v2229
    %v2234 = vmul.f32 %v2202, %v2223
    %v2235 = vmul.f32 %v2203, %v2233
    %v2237 = vperm.slane %v2194, 0
    %v2239 = vmul.f32 %v2234, %v2237
    %v2240 = vmul.f32 %v2235, %v2237
    %v2242 = vperm.slane %v2195, 0
    %v2244 = vadd.f32 %v2239, %v2242
    %v2245 = vadd.f32 %v2240, %v2242
    %s2246 = scalar_lea.vmem %s2, 192
    %v2247 = vld [vmem:[%s2246] sm:$0xff]
    %v2248 = vld [vmem:[%s2246 + $0x8] sm:$0xf]
    %v2249 = vld [vmem:[%s2246 + $0xc] sm:$0xff]
    %v2250 = vld [vmem:[%s2246 + $0x14] sm:$0xf]
    %v2251 = vld [vmem:[%s2246 + $0x18] sm:$0xff]
    %v2252 = vld [vmem:[%s2246 + $0x20] sm:$0xf]
    %v2253 = vld [vmem:[%s2246 + $0x24] sm:$0xff]
    %v2254 = vld [vmem:[%s2246 + $0x2c] sm:$0xf]
    %v2255 = vld [vmem:[%s2246 + $0x30] sm:$0xff]
    %v2256 = vld [vmem:[%s2246 + $0x38] sm:$0xf]
    %v2257 = vld [vmem:[%s2246 + $0x3c] sm:$0xff]
    %v2258 = vld [vmem:[%s2246 + $0x44] sm:$0xf]
    %v2259 = vld [vmem:[%s2246 + $0x48] sm:$0xff]
    %v2260 = vld [vmem:[%s2246 + $0x50] sm:$0xf]
    %v2261 = vld [vmem:[%s2246 + $0x54] sm:$0xff]
    %v2262 = vld [vmem:[%s2246 + $0x5c] sm:$0xf]
    %v2263 = vld [vmem:[%s2246 + $0x60] sm:$0xff]
    %v2264 = vld [vmem:[%s2246 + $0x68] sm:$0xf]
    %v2265 = vld [vmem:[%s2246 + $0x6c] sm:$0xff]
    %v2266 = vld [vmem:[%s2246 + $0x74] sm:$0xf]
    %v2267 = vld [vmem:[%s2246 + $0x78] sm:$0xff]
    %v2268 = vld [vmem:[%s2246 + $0x80] sm:$0xf]
    %v2269 = vld [vmem:[%s2246 + $0x84] sm:$0xff]
    %v2270 = vld [vmem:[%s2246 + $0x8c] sm:$0xf]
    %v2271 = vld [vmem:[%s2246 + $0x90] sm:$0xff]
    %v2272 = vld [vmem:[%s2246 + $0x98] sm:$0xf]
    %v2273 = vld [vmem:[%s2246 + $0x9c] sm:$0xff]
    %v2274 = vld [vmem:[%s2246 + $0xa4] sm:$0xf]
    %v2275 = vld [vmem:[%s2246 + $0xa8] sm:$0xff]
    %v2276 = vld [vmem:[%s2246 + $0xb0] sm:$0xf]
    %v2277 = vld [vmem:[%s2246 + $0xb4] sm:$0xff]
    %v2278 = vld [vmem:[%s2246 + $0xbc] sm:$0xf]
    %s2279 = scalar_lea.vmem %s3, 3
    %v2280 = vld [vmem:[%s2279] sm:$0x7]
    %s2281 = scalar_lea.vmem [#allocation2], 64
    %v2282 = vld [vmem:[%s2281] sm:$0xf]
    %v2283 = vld [vmem:[%s2281 + $0x4] sm:$0xf]
    %v2284 = vld [vmem:[%s2281 + $0x8] sm:$0xf]
    %v2285 = vld [vmem:[%s2281 + $0xc] sm:$0xf]
    %v2286 = vld [vmem:[%s2281 + $0x10] sm:$0xf]
    %v2287 = vld [vmem:[%s2281 + $0x14] sm:$0xf]
    %v2288 = vld [vmem:[%s2281 + $0x18] sm:$0xf]
    %v2289 = vld [vmem:[%s2281 + $0x1c] sm:$0xf]
    %v2290 = vld [vmem:[%s2281 + $0x20] sm:$0xf]
    %v2291 = vld [vmem:[%s2281 + $0x24] sm:$0xf]
    %v2292 = vld [vmem:[%s2281 + $0x28] sm:$0xf]
    %v2293 = vld [vmem:[%s2281 + $0x2c] sm:$0xf]
    %v2294 = vld [vmem:[%s2281 + $0x30] sm:$0xf]
    %v2295 = vld [vmem:[%s2281 + $0x34] sm:$0xf]
    %v2296 = vld [vmem:[%s2281 + $0x38] sm:$0xf]
    %v2297 = vld [vmem:[%s2281 + $0x3c] sm:$0xf]
    %s2298 = scalar_lea.vmem %s5, 1
    %v2299 = vld [vmem:[%s2298] sm:$0x1]
    %v2300 = vpack.c.bf16 %v2245, %v2244
    %v2302 = vperm.slane %v2280, 0
    %v2303 = vperm.slane %v2280, 1
    %v2304 = vperm.slane %v2280, 2
    %v2340 = vunpack.c.l.b16 %v2247
    %v2341 = vunpack.c.h.b16 %v2247
    %v2342 = vunpack.c.l.b16 %v2248
    %v2343 = vunpack.c.l.b16 %v2249
    %v2344 = vunpack.c.h.b16 %v2249
    %v2345 = vunpack.c.l.b16 %v2250
    %v2346 = vunpack.c.l.b16 %v2251
    %v2347 = vunpack.c.h.b16 %v2251
    %v2348 = vunpack.c.l.b16 %v2252
    %v2349 = vunpack.c.l.b16 %v2253
    %v2350 = vunpack.c.h.b16 %v2253
    %v2351 = vunpack.c.l.b16 %v2254
    %v2352 = vunpack.c.l.b16 %v2255
    %v2353 = vunpack.c.h.b16 %v2255
    %v2354 = vunpack.c.l.b16 %v2256
    %v2355 = vunpack.c.l.b16 %v2257
    %v2356 = vunpack.c.h.b16 %v2257
    %v2357 = vunpack.c.l.b16 %v2258
    %v2358 = vunpack.c.l.b16 %v2259
    %v2359 = vunpack.c.h.b16 %v2259
    %v2360 = vunpack.c.l.b16 %v2260
    %v2361 = vunpack.c.l.b16 %v2261
    %v2362 = vunpack.c.h.b16 %v2261
    %v2363 = vunpack.c.l.b16 %v2262
    %v2364 = vunpack.c.l.b16 %v2263
    %v2365 = vunpack.c.h.b16 %v2263
    %v2366 = vunpack.c.l.b16 %v2264
    %v2367 = vunpack.c.l.b16 %v2265
    %v2368 = vunpack.c.h.b16 %v2265
    %v2369 = vunpack.c.l.b16 %v2266
    %v2370 = vunpack.c.l.b16 %v2267
    %v2371 = vunpack.c.h.b16 %v2267
    %v2372 = vunpack.c.l.b16 %v2268
    %v2373 = vunpack.c.l.b16 %v2269
    %v2374 = vunpack.c.h.b16 %v2269
    %v2375 = vunpack.c.l.b16 %v2270
    %v2376 = vunpack.c.l.b16 %v2271
    %v2377 = vunpack.c.h.b16 %v2271
    %v2378 = vunpack.c.l.b16 %v2272
    %v2379 = vunpack.c.l.b16 %v2273
    %v2380 = vunpack.c.h.b16 %v2273
    %v2381 = vunpack.c.l.b16 %v2274
    %v2382 = vunpack.c.l.b16 %v2275
    %v2383 = vunpack.c.h.b16 %v2275
    %v2384 = vunpack.c.l.b16 %v2276
    %v2385 = vunpack.c.l.b16 %v2277
    %v2386 = vunpack.c.h.b16 %v2277
    %v2387 = vunpack.c.l.b16 %v2278
    %v2388 = vpack.c.b16 %v2343, %v2340
    %v2389 = vpack.c.b16 %v2344, %v2341
    %v2390 = vpack.c.b16 %v2345, %v2342
    %v2391 = vpack.c.b16 %v2349, %v2346
    %v2392 = vpack.c.b16 %v2350, %v2347
    %v2393 = vpack.c.b16 %v2351, %v2348
    %v2394 = vpack.c.b16 %v2355, %v2352
    %v2395 = vpack.c.b16 %v2356, %v2353
    %v2396 = vpack.c.b16 %v2357, %v2354
    %v2397 = vpack.c.b16 %v2361, %v2358
    %v2398 = vpack.c.b16 %v2362, %v2359
    %v2399 = vpack.c.b16 %v2363, %v2360
    %v2400 = vpack.c.b16 %v2367, %v2364
    %v2401 = vpack.c.b16 %v2368, %v2365
    %v2402 = vpack.c.b16 %v2369, %v2366
    %v2403 = vpack.c.b16 %v2373, %v2370
    %v2404 = vpack.c.b16 %v2374, %v2371
    %v2405 = vpack.c.b16 %v2375, %v2372
    %v2406 = vpack.c.b16 %v2379, %v2376
    %v2407 = vpack.c.b16 %v2380, %v2377
    %v2408 = vpack.c.b16 %v2381, %v2378
    %v2409 = vpack.c.b16 %v2385, %v2382
    %v2410 = vpack.c.b16 %v2386, %v2383
    %v2411 = vpack.c.b16 %v2387, %v2384
    %2436 = vmatpush.bf16.msra.mxu0 %v2409
    %2437 = vmatpush.bf16.msra.mxu0 %v2406
    %2438 = vmatpush.bf16.msra.mxu0 %v2403
    %2439 = vmatpush.bf16.msra.mxu0 %v2400
    %2440 = vmatpush.bf16.msra.mxu0 %v2397
    %2441 = vmatpush.bf16.msra.mxu0 %v2394
    %2442 = vmatpush.bf16.msra.mxu0 %v2391
    %2443 = vmatpush.bf16.msra.mxu0 %v2388
    %2444 = vmatmul.bf16.gmra.mxu0 %v2300
    %v2445 = vpop.f32.mrf.mxu0
    %v2446 = vadd.f32 %v2302, %v2445
    %v2447 = vpop.f32.mrf.mxu0
    %v2448 = vadd.f32 %v2302, %v2447
    %2449 = vdwg.mxu0
    %2450 = vmatpush.bf16.msra.mxu0 %v2410
    %2451 = vmatpush.bf16.msra.mxu0 %v2407
    %2452 = vmatpush.bf16.msra.mxu0 %v2404
    %2453 = vmatpush.bf16.msra.mxu0 %v2401
    %2454 = vmatpush.bf16.msra.mxu0 %v2398
    %2455 = vmatpush.bf16.msra.mxu0 %v2395
    %2456 = vmatpush.bf16.msra.mxu0 %v2392
    %2457 = vmatpush.bf16.msra.mxu0 %v2389
    %2458 = vmatmul.bf16.gmra.mxu0 %v2300
    %v2459 = vpop.f32.mrf.mxu0
    %v2460 = vadd.f32 %v2303, %v2459
    %v2461 = vpop.f32.mrf.mxu0
    %v2462 = vadd.f32 %v2303, %v2461
    %2463 = vdwg.mxu0
    %2464 = vmatpush.bf16.msra.mxu0 %v2411
    %2465 = vmatpush.bf16.msra.mxu0 %v2408
    %2466 = vmatpush.bf16.msra.mxu0 %v2405
    %2467 = vmatpush.bf16.msra.mxu0 %v2402
    %2468 = vmatpush.bf16.msra.mxu0 %v2399
    %2469 = vmatpush.bf16.msra.mxu0 %v2396
    %2470 = vmatpush.bf16.msra.mxu0 %v2393
    %2471 = vmatpush.bf16.msra.mxu0 %v2390
    %2472 = vmatmul.bf16.gmra.mxu0 %v2300
    %v2473 = vpop.f32.mrf.mxu0
    %v2474 = vadd.f32 %v2304, %v2473
    %v2475 = vpop.f32.mrf.mxu0
    %v2476 = vadd.f32 %v2304, %v2475
    %2477 = vdwg.mxu0
    %v2478 = vpack.c.bf16 %v2446, %v2446
    %v2479 = vpack.c.bf16 %v2448, %v2448
    %v2480 = vpack.c.bf16 %v2460, %v2460
    %v2481 = vpack.c.bf16 %v2462, %v2462
    %v2482 = vpack.c.bf16 %v2474, %v2474
    %v2483 = vpack.c.bf16 %v2476, %v2476
    %v2485 = vsel %vm416, %v2478, 0
    %v2488 = vsel %vm416, %v2480, 0
    %2490 = vmatpush.bf16.xpose.msra.mxu0 0
    %2491 = vmatpush.bf16.xpose.msra.mxu0 0
    %2492 = vmatpush.bf16.xpose.msra.mxu0 0
    %2493 = vmatpush.bf16.xpose.msra.mxu0 0
    %2494 = vmatpush.bf16.xpose.msra.mxu0 0
    %2495 = vmatpush.bf16.xpose.msra.mxu0 0
    %2496 = vmatpush.bf16.xpose.msra.mxu0 0
    %2497 = vmatpush.bf16.xpose.msra.mxu0 %v2488
    %2498 = vmatmul.bf16.gmra.mxu0 %v2485
    %v2499 = vpop.f32.mrf.mxu0
    %v2500 = vadd.f32 0.0, %v2499
    %v2501 = vpop.f32.mrf.mxu0
    %2502 = vdwg.mxu0
    %v2504 = vsel %vm416, %v2479, 0
    %v2507 = vsel %vm416, %v2481, 0
    %2509 = vmatpush.bf16.xpose.msra.mxu0 0
    %2510 = vmatpush.bf16.xpose.msra.mxu0 0
    %2511 = vmatpush.bf16.xpose.msra.mxu0 0
    %2512 = vmatpush.bf16.xpose.msra.mxu0 0
    %2513 = vmatpush.bf16.xpose.msra.mxu0 0
    %2514 = vmatpush.bf16.xpose.msra.mxu0 0
    %2515 = vmatpush.bf16.xpose.msra.mxu0 0
    %2516 = vmatpush.bf16.xpose.msra.mxu0 %v2507
    %2517 = vmatmul.bf16.gmra.mxu0 %v2504
    %v2518 = vpop.f32.mrf.mxu0
    %v2519 = vadd.f32 0.0, %v2518
    %v2520 = vpop.f32.mrf.mxu0
    %2521 = vdwg.mxu0
    %v2522 = vsel %vm456, %v2500, -1e+30
    %v2523 = vsel %vm456, %v2519, -1e+30
    %v2524 = vsel %vm459, %v2522, -inf
    %2525 = vmax.xlane.f32.xlu0 %v2524
    %v2526 = vpop.xlane.xlu0 %2525
    %v2527 = vsel %vm459, %v2523, -inf
    %2528 = vmax.xlane.f32.xlu0 %v2527
    %v2529 = vpop.xlane.xlu0 %2528
    %v2530 = vsub.f32 %v2522, %v2526
    %v2531 = vsub.f32 %v2523, %v2529
    %v2532 = vmul.f32 %v2530, 1.442695
    %v2533 = vpow.pop %v2532
    %v2534 = vmul.f32 %v2531, 1.442695
    %v2535 = vpow.pop %v2534
    %v2536 = vsel %vm459, %v2533, 0.0
    %2537 = vadd.xlane.f32.xlu0 %v2536
    %v2538 = vpop.xlane.xlu0 %2537
    %v2539 = vsel %vm459, %v2535, 0.0
    %2540 = vadd.xlane.f32.xlu0 %v2539
    %v2541 = vpop.xlane.xlu0 %2540
    %v2542 = vrcp.pop %v2538
    %v2543 = vrcp.pop %v2541
    %v2544 = vmul.f32 %v2533, %v2542
    %v2545 = vmul.f32 %v2535, %v2543
    %v2546 = vpack.c.bf16 %v2544, %v2544
    %v2547 = vpack.c.bf16 %v2545, %v2545
    %v2549 = vsel %vm459, %v2546, 0
    %v2552 = vsel %vm487, %v2482, 0
    %2554 = vmatpush.bf16.msra.mxu0 0
    %2555 = vmatpush.bf16.msra.mxu0 0
    %2556 = vmatpush.bf16.msra.mxu0 0
    %2557 = vmatpush.bf16.msra.mxu0 0
    %2558 = vmatpush.bf16.msra.mxu0 0
    %2559 = vmatpush.bf16.msra.mxu0 0
    %2560 = vmatpush.bf16.msra.mxu0 0
    %2561 = vmatpush.bf16.msra.mxu0 %v2552
    %2562 = vmatmul.bf16.gmra.mxu0 %v2549
    %v2563 = vpop.f32.mrf.mxu0
    %v2564 = vadd.f32 0.0, %v2563
    %v2565 = vpop.f32.mrf.mxu0
    %2566 = vdwg.mxu0
    %v2568 = vsel %vm459, %v2547, 0
    %v2571 = vsel %vm487, %v2483, 0
    %2573 = vmatpush.bf16.msra.mxu0 0
    %2574 = vmatpush.bf16.msra.mxu0 0
    %2575 = vmatpush.bf16.msra.mxu0 0
    %2576 = vmatpush.bf16.msra.mxu0 0
    %2577 = vmatpush.bf16.msra.mxu0 0
    %2578 = vmatpush.bf16.msra.mxu0 0
    %2579 = vmatpush.bf16.msra.mxu0 0
    %2580 = vmatpush.bf16.msra.mxu0 %v2571
    %2581 = vmatmul.bf16.gmra.mxu0 %v2568
    %v2582 = vpop.f32.mrf.mxu0
    %v2583 = vadd.f32 0.0, %v2582
    %v2584 = vpop.f32.mrf.mxu0
    %2585 = vdwg.mxu0
    %v2587 = vunpack.c.l.b16 %v2478
    %v2588 = vpack.c.b16 %v2587, %v2587
    %2589 = vrot.lane.b32.xlu0 %v2588, 96
    %v2590 = vpop.permute.xlu0 %2589
    %v2592 = vunpack.c.l.b16 %v2480
    %v2593 = vpack.c.b16 %v2592, %v2592
    %2594 = vrot.lane.b32.xlu0 %v2593, 96
    %v2595 = vpop.permute.xlu0 %2594
    %v2597 = vsel %vm416, %v2590, 0
    %v2600 = vsel %vm416, %v2595, 0
    %2602 = vmatpush.bf16.xpose.msra.mxu0 0
    %2603 = vmatpush.bf16.xpose.msra.mxu0 0
    %2604 = vmatpush.bf16.xpose.msra.mxu0 0
    %2605 = vmatpush.bf16.xpose.msra.mxu0 0
    %2606 = vmatpush.bf16.xpose.msra.mxu0 0
    %2607 = vmatpush.bf16.xpose.msra.mxu0 0
    %2608 = vmatpush.bf16.xpose.msra.mxu0 0
    %2609 = vmatpush.bf16.xpose.msra.mxu0 %v2600
    %2610 = vmatmul.bf16.gmra.mxu0 %v2597
    %v2611 = vpop.f32.mrf.mxu0
    %v2612 = vadd.f32 0.0, %v2611
    %v2613 = vpop.f32.mrf.mxu0
    %2614 = vdwg.mxu0
    %v2616 = vunpack.c.l.b16 %v2479
    %v2617 = vpack.c.b16 %v2616, %v2616
    %2618 = vrot.lane.b32.xlu0 %v2617, 96
    %v2619 = vpop.permute.xlu0 %2618
    %v2621 = vunpack.c.l.b16 %v2481
    %v2622 = vpack.c.b16 %v2621, %v2621
    %2623 = vrot.lane.b32.xlu0 %v2622, 96
    %v2624 = vpop.permute.xlu0 %2623
    %v2626 = vsel %vm416, %v2619, 0
    %v2629 = vsel %vm416, %v2624, 0
    %2631 = vmatpush.bf16.xpose.msra.mxu0 0
    %2632 = vmatpush.bf16.xpose.msra.mxu0 0
    %2633 = vmatpush.bf16.xpose.msra.mxu0 0
    %2634 = vmatpush.bf16.xpose.msra.mxu0 0
    %2635 = vmatpush.bf16.xpose.msra.mxu0 0
    %2636 = vmatpush.bf16.xpose.msra.mxu0 0
    %2637 = vmatpush.bf16.xpose.msra.mxu0 0
    %2638 = vmatpush.bf16.xpose.msra.mxu0 %v2629
    %2639 = vmatmul.bf16.gmra.mxu0 %v2626
    %v2640 = vpop.f32.mrf.mxu0
    %v2641 = vadd.f32 0.0, %v2640
    %v2642 = vpop.f32.mrf.mxu0
    %2643 = vdwg.mxu0
    %v2644 = vsel %vm456, %v2612, -1e+30
    %v2645 = vsel %vm456, %v2641, -1e+30
    %v2646 = vsel %vm459, %v2644, -inf
    %2647 = vmax.xlane.f32.xlu0 %v2646
    %v2648 = vpop.xlane.xlu0 %2647
    %v2649 = vsel %vm459, %v2645, -inf
    %2650 = vmax.xlane.f32.xlu0 %v2649
    %v2651 = vpop.xlane.xlu0 %2650
    %v2652 = vsub.f32 %v2644, %v2648
    %v2653 = vsub.f32 %v2645, %v2651
    %v2654 = vmul.f32 %v2652, 1.442695
    %v2655 = vpow.pop %v2654
    %v2656 = vmul.f32 %v2653, 1.442695
    %v2657 = vpow.pop %v2656
    %v2658 = vsel %vm459, %v2655, 0.0
    %2659 = vadd.xlane.f32.xlu0 %v2658
    %v2660 = vpop.xlane.xlu0 %2659
    %v2661 = vsel %vm459, %v2657, 0.0
    %2662 = vadd.xlane.f32.xlu0 %v2661
    %v2663 = vpop.xlane.xlu0 %2662
    %v2664 = vrcp.pop %v2660
    %v2665 = vrcp.pop %v2663
    %v2666 = vmul.f32 %v2655, %v2664
    %v2667 = vmul.f32 %v2657, %v2665
    %v2668 = vpack.c.bf16 %v2666, %v2666
    %v2669 = vpack.c.bf16 %v2667, %v2667
    %v2671 = vunpack.c.l.b16 %v2482
    %v2672 = vpack.c.b16 %v2671, %v2671
    %2673 = vrot.lane.b32.xlu0 %v2672, 96
    %v2674 = vpop.permute.xlu0 %2673
    %v2676 = vsel %vm459, %v2668, 0
    %v2679 = vsel %vm487, %v2674, 0
    %2681 = vmatpush.bf16.msra.mxu0 0
    %2682 = vmatpush.bf16.msra.mxu0 0
    %2683 = vmatpush.bf16.msra.mxu0 0
    %2684 = vmatpush.bf16.msra.mxu0 0
    %2685 = vmatpush.bf16.msra.mxu0 0
    %2686 = vmatpush.bf16.msra.mxu0 0
    %2687 = vmatpush.bf16.msra.mxu0 0
    %2688 = vmatpush.bf16.msra.mxu0 %v2679
    %2689 = vmatmul.bf16.gmra.mxu0 %v2676
    %v2690 = vpop.f32.mrf.mxu0
    %v2691 = vadd.f32 0.0, %v2690
    %v2692 = vpop.f32.mrf.mxu0
    %2693 = vdwg.mxu0
    %v2695 = vunpack.c.l.b16 %v2483
    %v2696 = vpack.c.b16 %v2695, %v2695
    %2697 = vrot.lane.b32.xlu0 %v2696, 96
    %v2698 = vpop.permute.xlu0 %2697
    %v2700 = vsel %vm459, %v2669, 0
    %v2703 = vsel %vm487, %v2698, 0
    %2705 = vmatpush.bf16.msra.mxu0 0
    %2706 = vmatpush.bf16.msra.mxu0 0
    %2707 = vmatpush.bf16.msra.mxu0 0
    %2708 = vmatpush.bf16.msra.mxu0 0
    %2709 = vmatpush.bf16.msra.mxu0 0
    %2710 = vmatpush.bf16.msra.mxu0 0
    %2711 = vmatpush.bf16.msra.mxu0 0
    %2712 = vmatpush.bf16.msra.mxu0 %v2703
    %2713 = vmatmul.bf16.gmra.mxu0 %v2700
    %v2714 = vpop.f32.mrf.mxu0
    %v2715 = vadd.f32 0.0, %v2714
    %v2716 = vpop.f32.mrf.mxu0
    %2717 = vdwg.mxu0
    %2718 = vrot.lane.b32.xlu0 %v2588, 64
    %v2719 = vpop.permute.xlu0 %2718
    %2720 = vrot.lane.b32.xlu0 %v2593, 64
    %v2721 = vpop.permute.xlu0 %2720
    %v2723 = vsel %vm416, %v2719, 0
    %v2726 = vsel %vm416, %v2721, 0
    %2728 = vmatpush.bf16.xpose.msra.mxu0 0
    %2729 = vmatpush.bf16.xpose.msra.mxu0 0
    %2730 = vmatpush.bf16.xpose.msra.mxu0 0
    %2731 = vmatpush.bf16.xpose.msra.mxu0 0
    %2732 = vmatpush.bf16.xpose.msra.mxu0 0
    %2733 = vmatpush.bf16.xpose.msra.mxu0 0
    %2734 = vmatpush.bf16.xpose.msra.mxu0 0
    %2735 = vmatpush.bf16.xpose.msra.mxu0 %v2726
    %2736 = vmatmul.bf16.gmra.mxu0 %v2723
    %v2737 = vpop.f32.mrf.mxu0
    %v2738 = vadd.f32 0.0, %v2737
    %v2739 = vpop.f32.mrf.mxu0
    %2740 = vdwg.mxu0
    %2741 = vrot.lane.b32.xlu0 %v2617, 64
    %v2742 = vpop.permute.xlu0 %2741
    %2743 = vrot.lane.b32.xlu0 %v2622, 64
    %v2744 = vpop.permute.xlu0 %2743
    %v2746 = vsel %vm416, %v2742, 0
    %v2749 = vsel %vm416, %v2744, 0
    %2751 = vmatpush.bf16.xpose.msra.mxu0 0
    %2752 = vmatpush.bf16.xpose.msra.mxu0 0
    %2753 = vmatpush.bf16.xpose.msra.mxu0 0
    %2754 = vmatpush.bf16.xpose.msra.mxu0 0
    %2755 = vmatpush.bf16.xpose.msra.mxu0 0
    %2756 = vmatpush.bf16.xpose.msra.mxu0 0
    %2757 = vmatpush.bf16.xpose.msra.mxu0 0
    %2758 = vmatpush.bf16.xpose.msra.mxu0 %v2749
    %2759 = vmatmul.bf16.gmra.mxu0 %v2746
    %v2760 = vpop.f32.mrf.mxu0
    %v2761 = vadd.f32 0.0, %v2760
    %v2762 = vpop.f32.mrf.mxu0
    %2763 = vdwg.mxu0
    %v2764 = vsel %vm456, %v2738, -1e+30
    %v2765 = vsel %vm456, %v2761, -1e+30
    %v2766 = vsel %vm459, %v2764, -inf
    %2767 = vmax.xlane.f32.xlu0 %v2766
    %v2768 = vpop.xlane.xlu0 %2767
    %v2769 = vsel %vm459, %v2765, -inf
    %2770 = vmax.xlane.f32.xlu0 %v2769
    %v2771 = vpop.xlane.xlu0 %2770
    %v2772 = vsub.f32 %v2764, %v2768
    %v2773 = vsub.f32 %v2765, %v2771
    %v2774 = vmul.f32 %v2772, 1.442695
    %v2775 = vpow.pop %v2774
    %v2776 = vmul.f32 %v2773, 1.442695
    %v2777 = vpow.pop %v2776
    %v2778 = vsel %vm459, %v2775, 0.0
    %2779 = vadd.xlane.f32.xlu0 %v2778
    %v2780 = vpop.xlane.xlu0 %2779
    %v2781 = vsel %vm459, %v2777, 0.0
    %2782 = vadd.xlane.f32.xlu0 %v2781
    %v2783 = vpop.xlane.xlu0 %2782
    %v2784 = vrcp.pop %v2780
    %v2785 = vrcp.pop %v2783
    %v2786 = vmul.f32 %v2775, %v2784
    %v2787 = vmul.f32 %v2777, %v2785
    %v2788 = vpack.c.bf16 %v2786, %v2786
    %v2789 = vpack.c.bf16 %v2787, %v2787
    %2790 = vrot.lane.b32.xlu0 %v2672, 64
    %v2791 = vpop.permute.xlu0 %2790
    %v2793 = vsel %vm459, %v2788, 0
    %v2796 = vsel %vm487, %v2791, 0
    %2798 = vmatpush.bf16.msra.mxu0 0
    %2799 = vmatpush.bf16.msra.mxu0 0
    %2800 = vmatpush.bf16.msra.mxu0 0
    %2801 = vmatpush.bf16.msra.mxu0 0
    %2802 = vmatpush.bf16.msra.mxu0 0
    %2803 = vmatpush.bf16.msra.mxu0 0
    %2804 = vmatpush.bf16.msra.mxu0 0
    %2805 = vmatpush.bf16.msra.mxu0 %v2796
    %2806 = vmatmul.bf16.gmra.mxu0 %v2793
    %v2807 = vpop.f32.mrf.mxu0
    %v2808 = vadd.f32 0.0, %v2807
    %v2809 = vpop.f32.mrf.mxu0
    %2810 = vdwg.mxu0
    %2811 = vrot.lane.b32.xlu0 %v2696, 64
    %v2812 = vpop.permute.xlu0 %2811
    %v2814 = vsel %vm459, %v2789, 0
    %v2817 = vsel %vm487, %v2812, 0
    %2819 = vmatpush.bf16.msra.mxu0 0
    %2820 = vmatpush.bf16.msra.mxu0 0
    %2821 = vmatpush.bf16.msra.mxu0 0
    %2822 = vmatpush.bf16.msra.mxu0 0
    %2823 = vmatpush.bf16.msra.mxu0 0
    %2824 = vmatpush.bf16.msra.mxu0 0
    %2825 = vmatpush.bf16.msra.mxu0 0
    %2826 = vmatpush.bf16.msra.mxu0 %v2817
    %2827 = vmatmul.bf16.gmra.mxu0 %v2814
    %v2828 = vpop.f32.mrf.mxu0
    %v2829 = vadd.f32 0.0, %v2828
    %v2830 = vpop.f32.mrf.mxu0
    %2831 = vdwg.mxu0
    %2832 = vrot.lane.b32.xlu0 %v2588, 32
    %v2833 = vpop.permute.xlu0 %2832
    %2834 = vrot.lane.b32.xlu0 %v2593, 32
    %v2835 = vpop.permute.xlu0 %2834
    %v2837 = vsel %vm416, %v2833, 0
    %v2840 = vsel %vm416, %v2835, 0
    %2842 = vmatpush.bf16.xpose.msra.mxu0 0
    %2843 = vmatpush.bf16.xpose.msra.mxu0 0
    %2844 = vmatpush.bf16.xpose.msra.mxu0 0
    %2845 = vmatpush.bf16.xpose.msra.mxu0 0
    %2846 = vmatpush.bf16.xpose.msra.mxu0 0
    %2847 = vmatpush.bf16.xpose.msra.mxu0 0
    %2848 = vmatpush.bf16.xpose.msra.mxu0 0
    %2849 = vmatpush.bf16.xpose.msra.mxu0 %v2840
    %2850 = vmatmul.bf16.gmra.mxu0 %v2837
    %v2851 = vpop.f32.mrf.mxu0
    %v2852 = vadd.f32 0.0, %v2851
    %v2853 = vpop.f32.mrf.mxu0
    %2854 = vdwg.mxu0
    %2855 = vrot.lane.b32.xlu0 %v2617, 32
    %v2856 = vpop.permute.xlu0 %2855
    %2857 = vrot.lane.b32.xlu0 %v2622, 32
    %v2858 = vpop.permute.xlu0 %2857
    %v2860 = vsel %vm416, %v2856, 0
    %v2863 = vsel %vm416, %v2858, 0
    %2865 = vmatpush.bf16.xpose.msra.mxu0 0
    %2866 = vmatpush.bf16.xpose.msra.mxu0 0
    %2867 = vmatpush.bf16.xpose.msra.mxu0 0
    %2868 = vmatpush.bf16.xpose.msra.mxu0 0
    %2869 = vmatpush.bf16.xpose.msra.mxu0 0
    %2870 = vmatpush.bf16.xpose.msra.mxu0 0
    %2871 = vmatpush.bf16.xpose.msra.mxu0 0
    %2872 = vmatpush.bf16.xpose.msra.mxu0 %v2863
    %2873 = vmatmul.bf16.gmra.mxu0 %v2860
    %v2874 = vpop.f32.mrf.mxu0
    %v2875 = vadd.f32 0.0, %v2874
    %v2876 = vpop.f32.mrf.mxu0
    %2877 = vdwg.mxu0
    %v2878 = vsel %vm456, %v2852, -1e+30
    %v2879 = vsel %vm456, %v2875, -1e+30
    %v2880 = vsel %vm459, %v2878, -inf
    %2881 = vmax.xlane.f32.xlu0 %v2880
    %v2882 = vpop.xlane.xlu0 %2881
    %v2883 = vsel %vm459, %v2879, -inf
    %2884 = vmax.xlane.f32.xlu0 %v2883
    %v2885 = vpop.xlane.xlu0 %2884
    %v2886 = vsub.f32 %v2878, %v2882
    %v2887 = vsub.f32 %v2879, %v2885
    %v2888 = vmul.f32 %v2886, 1.442695
    %v2889 = vpow.pop %v2888
    %v2890 = vmul.f32 %v2887, 1.442695
    %v2891 = vpow.pop %v2890
    %v2892 = vsel %vm459, %v2889, 0.0
    %2893 = vadd.xlane.f32.xlu0 %v2892
    %v2894 = vpop.xlane.xlu0 %2893
    %v2895 = vsel %vm459, %v2891, 0.0
    %2896 = vadd.xlane.f32.xlu0 %v2895
    %v2897 = vpop.xlane.xlu0 %2896
    %v2898 = vrcp.pop %v2894
    %v2899 = vrcp.pop %v2897
    %v2900 = vmul.f32 %v2889, %v2898
    %v2901 = vmul.f32 %v2891, %v2899
    %v2902 = vpack.c.bf16 %v2900, %v2900
    %v2903 = vpack.c.bf16 %v2901, %v2901
    %2904 = vrot.lane.b32.xlu0 %v2672, 32
    %v2905 = vpop.permute.xlu0 %2904
    %v2907 = vsel %vm459, %v2902, 0
    %v2910 = vsel %vm487, %v2905, 0
    %2912 = vmatpush.bf16.msra.mxu0 0
    %2913 = vmatpush.bf16.msra.mxu0 0
    %2914 = vmatpush.bf16.msra.mxu0 0
    %2915 = vmatpush.bf16.msra.mxu0 0
    %2916 = vmatpush.bf16.msra.mxu0 0
    %2917 = vmatpush.bf16.msra.mxu0 0
    %2918 = vmatpush.bf16.msra.mxu0 0
    %2919 = vmatpush.bf16.msra.mxu0 %v2910
    %2920 = vmatmul.bf16.gmra.mxu0 %v2907
    %v2921 = vpop.f32.mrf.mxu0
    %v2922 = vadd.f32 0.0, %v2921
    %v2923 = vpop.f32.mrf.mxu0
    %2924 = vdwg.mxu0
    %2925 = vrot.lane.b32.xlu0 %v2696, 32
    %v2926 = vpop.permute.xlu0 %2925
    %v2928 = vsel %vm459, %v2903, 0
    %v2931 = vsel %vm487, %v2926, 0
    %2933 = vmatpush.bf16.msra.mxu0 0
    %2934 = vmatpush.bf16.msra.mxu0 0
    %2935 = vmatpush.bf16.msra.mxu0 0
    %2936 = vmatpush.bf16.msra.mxu0 0
    %2937 = vmatpush.bf16.msra.mxu0 0
    %2938 = vmatpush.bf16.msra.mxu0 0
    %2939 = vmatpush.bf16.msra.mxu0 0
    %2940 = vmatpush.bf16.msra.mxu0 %v2931
    %2941 = vmatmul.bf16.gmra.mxu0 %v2928
    %v2942 = vpop.f32.mrf.mxu0
    %v2943 = vadd.f32 0.0, %v2942
    %v2944 = vpop.f32.mrf.mxu0
    %2945 = vdwg.mxu0
    %2948 = vrot.lane.b32.xlu0 %v2691, 32
    %v2949 = vpop.permute.xlu0 %2948
    %2950 = vrot.lane.b32.xlu0 %v2715, 32
    %v2951 = vpop.permute.xlu0 %2950
    %2956 = vrot.lane.b32.xlu0 %v2808, 64
    %v2957 = vpop.permute.xlu0 %2956
    %2958 = vrot.lane.b32.xlu0 %v2829, 64
    %v2959 = vpop.permute.xlu0 %2958
    %2964 = vrot.lane.b32.xlu0 %v2922, 96
    %v2965 = vpop.permute.xlu0 %2964
    %2966 = vrot.lane.b32.xlu0 %v2943, 96
    %v2967 = vpop.permute.xlu0 %2966
    %v2970 = vsel %vm416, %v2564, %v2949
    %v2971 = vsel %vm416, %v2583, %v2951
    %v2972 = vsel %vm909, %v2970, %v2957
    %v2973 = vsel %vm909, %v2971, %v2959
    %v2974 = vsel %vm912, %v2972, %v2965
    %v2975 = vsel %vm912, %v2973, %v2967
    %v2976 = vpack.c.bf16 %v2975, %v2974
    %v2978 = vperm.slane %v2299, 0
    %v2996 = vunpack.c.l.b16 %v2282
    %v2997 = vunpack.c.l.b16 %v2283
    %v2998 = vunpack.c.l.b16 %v2284
    %v2999 = vunpack.c.l.b16 %v2285
    %v3000 = vunpack.c.l.b16 %v2286
    %v3001 = vunpack.c.l.b16 %v2287
    %v3002 = vunpack.c.l.b16 %v2288
    %v3003 = vunpack.c.l.b16 %v2289
    %v3004 = vunpack.c.l.b16 %v2290
    %v3005 = vunpack.c.l.b16 %v2291
    %v3006 = vunpack.c.l.b16 %v2292
    %v3007 = vunpack.c.l.b16 %v2293
    %v3008 = vunpack.c.l.b16 %v2294
    %v3009 = vunpack.c.l.b16 %v2295
    %v3010 = vunpack.c.l.b16 %v2296
    %v3011 = vunpack.c.l.b16 %v2297
    %v3012 = vpack.c.b16 %v2997, %v2996
    %v3013 = vpack.c.b16 %v2999, %v2998
    %v3014 = vpack.c.b16 %v3001, %v3000
    %v3015 = vpack.c.b16 %v3003, %v3002
    %v3016 = vpack.c.b16 %v3005, %v3004
    %v3017 = vpack.c.b16 %v3007, %v3006
    %v3018 = vpack.c.b16 %v3009, %v3008
    %v3019 = vpack.c.b16 %v3011, %v3010
    %3028 = vmatpush.bf16.msra.mxu0 %v3019
    %3029 = vmatpush.bf16.msra.mxu0 %v3018
    %3030 = vmatpush.bf16.msra.mxu0 %v3017
    %3031 = vmatpush.bf16.msra.mxu0 %v3016
    %3032 = vmatpush.bf16.msra.mxu0 %v3015
    %3033 = vmatpush.bf16.msra.mxu0 %v3014
    %3034 = vmatpush.bf16.msra.mxu0 %v3013
    %3035 = vmatpush.bf16.msra.mxu0 %v3012
    %3036 = vmatmul.bf16.gmra.mxu0 %v2976
    %v3037 = vpop.f32.mrf.mxu0
    %v3038 = vadd.f32 %v2978, %v3037
    %v3039 = vpop.f32.mrf.mxu0
    %v3040 = vadd.f32 %v2978, %v3039
    %3041 = vdwg.mxu0
    %v3042 = vadd.f32 %v2244, %v3038
    %v3043 = vadd.f32 %v2245, %v3040
    %s3044 = scalar_lea.vmem %s6, 1
    %v3045 = vld [vmem:[%s3044] sm:$0x1]
    %s3046 = scalar_lea.vmem %s7, 1
    %v3047 = vld [vmem:[%s3046] sm:$0x1]
    %3048 = vadd.xlane.f32.xlu0 %v3042
    %v3049 = vpop.xlane.xlu0 %3048
    %3050 = vadd.xlane.f32.xlu0 %v3043
    %v3051 = vpop.xlane.xlu0 %3050
    %v3052 = vmul.f32 %v3049, %v995
    %v3053 = vmul.f32 %v3051, %v995
    %v3054 = vsub.f32 %v3042, %v3052
    %v3055 = vsub.f32 %v3043, %v3053
    %v3056 = vmul.f32 %v3054, %v3054
    %v3057 = vmul.f32 %v3055, %v3055
    %3058 = vadd.xlane.f32.xlu0 %v3056
    %v3059 = vpop.xlane.xlu0 %3058
    %3060 = vadd.xlane.f32.xlu0 %v3057
    %v3061 = vpop.xlane.xlu0 %3060
    %v3062 = vmul.f32 %v3059, %v995
    %v3063 = vmul.f32 %v3061, %v995
    %v3064 = vadd.f32 %v3062, 1e-05
    %v3065 = vadd.f32 %v3063, 1e-05
    %v3066 = vrsqrt.pop %v3064
    %v3067 = vmul.f32 %v3066, %v3064
    %v3068 = vmul.f32 %v3067, %v3066
    %v3069 = vmul.f32 0.5, %v3068
    %v3070 = vsub.f32 1.5, %v3069
    %v3071 = vmul.f32 %v3066, %v3070
    %vm3072 = vweird.f32 %v3064
    %vm3073 = vweird.f32 %v3066
    %vm3074 = vmor %vm3072, %vm3073
    %v3075 = vsel %vm3074, %v3066, %v3071
    %v3076 = vrsqrt.pop %v3065
    %v3077 = vmul.f32 %v3076, %v3065
    %v3078 = vmul.f32 %v3077, %v3076
    %v3079 = vmul.f32 0.5, %v3078
    %v3080 = vsub.f32 1.5, %v3079
    %v3081 = vmul.f32 %v3076, %v3080
    %vm3082 = vweird.f32 %v3065
    %vm3083 = vweird.f32 %v3076
    %vm3084 = vmor %vm3082, %vm3083
    %v3085 = vsel %vm3084, %v3076, %v3081
    %v3086 = vmul.f32 %v3054, %v3075
    %v3087 = vmul.f32 %v3055, %v3085
    %v3089 = vperm.slane %v3045, 0
    %v3091 = vmul.f32 %v3086, %v3089
    %v3092 = vmul.f32 %v3087, %v3089
    %v3094 = vperm.slane %v3047, 0
    %v3096 = vadd.f32 %v3091, %v3094
    %v3097 = vadd.f32 %v3092, %v3094
    %s3098 = scalar_lea.vmem [#allocation5], 64
    %v3099 = vld [vmem:[%s3098] sm:$0xf]
    %v3100 = vld [vmem:[%s3098 + $0x4] sm:$0xf]
    %v3101 = vld [vmem:[%s3098 + $0x8] sm:$0xf]
    %v3102 = vld [vmem:[%s3098 + $0xc] sm:$0xf]
    %v3103 = vld [vmem:[%s3098 + $0x10] sm:$0xf]
    %v3104 = vld [vmem:[%s3098 + $0x14] sm:$0xf]
    %v3105 = vld [vmem:[%s3098 + $0x18] sm:$0xf]
    %v3106 = vld [vmem:[%s3098 + $0x1c] sm:$0xf]
    %v3107 = vld [vmem:[%s3098 + $0x20] sm:$0xf]
    %v3108 = vld [vmem:[%s3098 + $0x24] sm:$0xf]
    %v3109 = vld [vmem:[%s3098 + $0x28] sm:$0xf]
    %v3110 = vld [vmem:[%s3098 + $0x2c] sm:$0xf]
    %v3111 = vld [vmem:[%s3098 + $0x30] sm:$0xf]
    %v3112 = vld [vmem:[%s3098 + $0x34] sm:$0xf]
    %v3113 = vld [vmem:[%s3098 + $0x38] sm:$0xf]
    %v3114 = vld [vmem:[%s3098 + $0x3c] sm:$0xf]
    %s3115 = scalar_lea.vmem %s9, 1
    %v3116 = vld [vmem:[%s3115] sm:$0x1]
    %s3117 = scalar_lea.vmem %s10, 128
    %v3118 = vld [vmem:[%s3117] sm:$0xff]
    %v3119 = vld [vmem:[%s3117 + $0x8] sm:$0xff]
    %v3120 = vld [vmem:[%s3117 + $0x10] sm:$0xff]
    %v3121 = vld [vmem:[%s3117 + $0x18] sm:$0xff]
    %v3122 = vld [vmem:[%s3117 + $0x20] sm:$0xff]
    %v3123 = vld [vmem:[%s3117 + $0x28] sm:$0xff]
    %v3124 = vld [vmem:[%s3117 + $0x30] sm:$0xff]
    %v3125 = vld [vmem:[%s3117 + $0x38] sm:$0xff]
    %v3126 = vld [vmem:[%s3117 + $0x40] sm:$0xff]
    %v3127 = vld [vmem:[%s3117 + $0x48] sm:$0xff]
    %v3128 = vld [vmem:[%s3117 + $0x50] sm:$0xff]
    %v3129 = vld [vmem:[%s3117 + $0x58] sm:$0xff]
    %v3130 = vld [vmem:[%s3117 + $0x60] sm:$0xff]
    %v3131 = vld [vmem:[%s3117 + $0x68] sm:$0xff]
    %v3132 = vld [vmem:[%s3117 + $0x70] sm:$0xff]
    %v3133 = vld [vmem:[%s3117 + $0x78] sm:$0xff]
    %s3134 = scalar_lea.vmem %s11, 2
    %v3135 = vld [vmem:[%s3134] sm:$0x3]
    %s3136 = scalar_lea.vmem [#allocation7], 64
    %v3137 = vld [vmem:[%s3136] sm:$0xf]
    %v3138 = vld [vmem:[%s3136 + $0x4] sm:$0xf]
    %v3139 = vld [vmem:[%s3136 + $0x8] sm:$0xf]
    %v3140 = vld [vmem:[%s3136 + $0xc] sm:$0xf]
    %v3141 = vld [vmem:[%s3136 + $0x10] sm:$0xf]
    %v3142 = vld [vmem:[%s3136 + $0x14] sm:$0xf]
    %v3143 = vld [vmem:[%s3136 + $0x18] sm:$0xf]
    %v3144 = vld [vmem:[%s3136 + $0x1c] sm:$0xf]
    %v3145 = vld [vmem:[%s3136 + $0x20] sm:$0xf]
    %v3146 = vld [vmem:[%s3136 + $0x24] sm:$0xf]
    %v3147 = vld [vmem:[%s3136 + $0x28] sm:$0xf]
    %v3148 = vld [vmem:[%s3136 + $0x2c] sm:$0xf]
    %v3149 = vld [vmem:[%s3136 + $0x30] sm:$0xf]
    %v3150 = vld [vmem:[%s3136 + $0x34] sm:$0xf]
    %v3151 = vld [vmem:[%s3136 + $0x38] sm:$0xf]
    %v3152 = vld [vmem:[%s3136 + $0x3c] sm:$0xf]
    %s3153 = scalar_lea.vmem %s13, 1
    %v3154 = vld [vmem:[%s3153] sm:$0x1]
    %v3155 = vpack.c.bf16 %v3097, %v3096
    %v3157 = vperm.slane %v3116, 0
    %v3175 = vunpack.c.l.b16 %v3099
    %v3176 = vunpack.c.l.b16 %v3100
    %v3177 = vunpack.c.l.b16 %v3101
    %v3178 = vunpack.c.l.b16 %v3102
    %v3179 = vunpack.c.l.b16 %v3103
    %v3180 = vunpack.c.l.b16 %v3104
    %v3181 = vunpack.c.l.b16 %v3105
    %v3182 = vunpack.c.l.b16 %v3106
    %v3183 = vunpack.c.l.b16 %v3107
    %v3184 = vunpack.c.l.b16 %v3108
    %v3185 = vunpack.c.l.b16 %v3109
    %v3186 = vunpack.c.l.b16 %v3110
    %v3187 = vunpack.c.l.b16 %v3111
    %v3188 = vunpack.c.l.b16 %v3112
    %v3189 = vunpack.c.l.b16 %v3113
    %v3190 = vunpack.c.l.b16 %v3114
    %v3191 = vpack.c.b16 %v3176, %v3175
    %v3192 = vpack.c.b16 %v3178, %v3177
    %v3193 = vpack.c.b16 %v3180, %v3179
    %v3194 = vpack.c.b16 %v3182, %v3181
    %v3195 = vpack.c.b16 %v3184, %v3183
    %v3196 = vpack.c.b16 %v3186, %v3185
    %v3197 = vpack.c.b16 %v3188, %v3187
    %v3198 = vpack.c.b16 %v3190, %v3189
    %3207 = vmatpush.bf16.msra.mxu0 %v3198
    %3208 = vmatpush.bf16.msra.mxu0 %v3197
    %3209 = vmatpush.bf16.msra.mxu0 %v3196
    %3210 = vmatpush.bf16.msra.mxu0 %v3195
    %3211 = vmatpush.bf16.msra.mxu0 %v3194
    %3212 = vmatpush.bf16.msra.mxu0 %v3193
    %3213 = vmatpush.bf16.msra.mxu0 %v3192
    %3214 = vmatpush.bf16.msra.mxu0 %v3191
    %3215 = vmatmul.bf16.gmra.mxu0 %v3155
    %v3216 = vpop.f32.mrf.mxu0
    %v3217 = vadd.f32 %v3157, %v3216
    %v3218 = vpop.f32.mrf.mxu0
    %v3219 = vadd.f32 %v3157, %v3218
    %3220 = vdwg.mxu0
    %v3222 = vperm.slane %v3135, 0
    %v3223 = vperm.slane %v3135, 1
    %3226 = vst [vmem:[#allocation1] ss:$4 sm:$0xff] %v175
    %s3227 = scalar_lea.vmem [#allocation1], 1
    %3228 = vst [vmem:[%s3227] ss:$4 sm:$0xff] %v176
    %v3229 = vld.sshfl [vmem:[#allocation1] sm:$0xff pattern:$0x73625140]
    %v3247 = vunpack.c.l.b16 %v3118
    %v3248 = vunpack.c.h.b16 %v3118
    %v3249 = vunpack.c.l.b16 %v3119
    %v3250 = vunpack.c.h.b16 %v3119
    %v3251 = vunpack.c.l.b16 %v3120
    %v3252 = vunpack.c.h.b16 %v3120
    %v3253 = vunpack.c.l.b16 %v3121
    %v3254 = vunpack.c.h.b16 %v3121
    %v3255 = vunpack.c.l.b16 %v3122
    %v3256 = vunpack.c.h.b16 %v3122
    %v3257 = vunpack.c.l.b16 %v3123
    %v3258 = vunpack.c.h.b16 %v3123
    %v3259 = vunpack.c.l.b16 %v3124
    %v3260 = vunpack.c.h.b16 %v3124
    %v3261 = vunpack.c.l.b16 %v3125
    %v3262 = vunpack.c.h.b16 %v3125
    %v3263 = vunpack.c.l.b16 %v3126
    %v3264 = vunpack.c.h.b16 %v3126
    %v3265 = vunpack.c.l.b16 %v3127
    %v3266 = vunpack.c.h.b16 %v3127
    %v3267 = vunpack.c.l.b16 %v3128
    %v3268 = vunpack.c.h.b16 %v3128
    %v3269 = vunpack.c.l.b16 %v3129
    %v3270 = vunpack.c.h.b16 %v3129
    %v3271 = vunpack.c.l.b16 %v3130
    %v3272 = vunpack.c.h.b16 %v3130
    %v3273 = vunpack.c.l.b16 %v3131
    %v3274 = vunpack.c.h.b16 %v3131
    %v3275 = vunpack.c.l.b16 %v3132
    %v3276 = vunpack.c.h.b16 %v3132
    %v3277 = vunpack.c.l.b16 %v3133
    %v3278 = vunpack.c.h.b16 %v3133
    %v3279 = vpack.c.b16 %v3249, %v3247
    %v3280 = vpack.c.b16 %v3250, %v3248
    %v3281 = vpack.c.b16 %v3253, %v3251
    %v3282 = vpack.c.b16 %v3254, %v3252
    %v3283 = vpack.c.b16 %v3257, %v3255
    %v3284 = vpack.c.b16 %v3258, %v3256
    %v3285 = vpack.c.b16 %v3261, %v3259
    %v3286 = vpack.c.b16 %v3262, %v3260
    %v3287 = vpack.c.b16 %v3265, %v3263
    %v3288 = vpack.c.b16 %v3266, %v3264
    %v3289 = vpack.c.b16 %v3269, %v3267
    %v3290 = vpack.c.b16 %v3270, %v3268
    %v3291 = vpack.c.b16 %v3273, %v3271
    %v3292 = vpack.c.b16 %v3274, %v3272
    %v3293 = vpack.c.b16 %v3277, %v3275
    %v3294 = vpack.c.b16 %v3278, %v3276
    %3311 = vmatpush.bf16.msra.mxu0 %v3293
    %3312 = vmatpush.bf16.msra.mxu0 %v3291
    %3313 = vmatpush.bf16.msra.mxu0 %v3289
    %3314 = vmatpush.bf16.msra.mxu0 %v3287
    %3315 = vmatpush.bf16.msra.mxu0 %v3285
    %3316 = vmatpush.bf16.msra.mxu0 %v3283
    %3317 = vmatpush.bf16.msra.mxu0 %v3281
    %3318 = vmatpush.bf16.msra.mxu0 %v3279
    %3319 = vmatmul.bf16.gmra.mxu0 %v3229
    %v3320 = vpop.f32.mrf.mxu0
    %v3321 = vadd.f32 %v3222, %v3320
    %v3322 = vpop.f32.mrf.mxu0
    %3323 = vdwg.mxu0
    %3324 = vmatpush.bf16.msra.mxu0 %v3294
    %3325 = vmatpush.bf16.msra.mxu0 %v3292
    %3326 = vmatpush.bf16.msra.mxu0 %v3290
    %3327 = vmatpush.bf16.msra.mxu0 %v3288
    %3328 = vmatpush.bf16.msra.mxu0 %v3286
    %3329 = vmatpush.bf16.msra.mxu0 %v3284
    %3330 = vmatpush.bf16.msra.mxu0 %v3282
    %3331 = vmatpush.bf16.msra.mxu0 %v3280
    %3332 = vmatmul.bf16.gmra.mxu0 %v3229
    %v3333 = vpop.f32.mrf.mxu0
    %v3334 = vadd.f32 %v3223, %v3333
    %v3335 = vpop.f32.mrf.mxu0
    %3336 = vdwg.mxu0
    %v3337 = vpack.c.bf16 %v3217, %v3217
    %v3338 = vpack.c.bf16 %v3219, %v3219
    %v3340 = vrot.slane %v3321, 4
    %v3342 = vpack.c.bf16 %v3321, %v3321
    %v3343 = vpack.c.bf16 %v3340, %v3340
    %v3345 = vrot.slane %v3334, 4
    %v3347 = vpack.c.bf16 %v3334, %v3334
    %v3348 = vpack.c.bf16 %v3345, %v3345
    %v3350 = vsel %vm416, %v3337, 0
    %v3353 = vsel %vm416, %v3342, 0
    %3355 = vmatpush.bf16.xpose.msra.mxu0 0
    %3356 = vmatpush.bf16.xpose.msra.mxu0 0
    %3357 = vmatpush.bf16.xpose.msra.mxu0 0
    %3358 = vmatpush.bf16.xpose.msra.mxu0 0
    %3359 = vmatpush.bf16.xpose.msra.mxu0 0
    %3360 = vmatpush.bf16.xpose.msra.mxu0 0
    %3361 = vmatpush.bf16.xpose.msra.mxu0 0
    %3362 = vmatpush.bf16.xpose.msra.mxu0 %v3353
    %3363 = vmatmul.bf16.gmra.mxu0 %v3350
    %v3364 = vpop.f32.mrf.mxu0
    %v3365 = vadd.f32 0.0, %v3364
    %v3366 = vpop.f32.mrf.mxu0
    %3367 = vdwg.mxu0
    %v3369 = vsel %vm416, %v3338, 0
    %v3372 = vsel %vm416, %v3343, 0
    %3374 = vmatpush.bf16.xpose.msra.mxu0 0
    %3375 = vmatpush.bf16.xpose.msra.mxu0 0
    %3376 = vmatpush.bf16.xpose.msra.mxu0 0
    %3377 = vmatpush.bf16.xpose.msra.mxu0 0
    %3378 = vmatpush.bf16.xpose.msra.mxu0 0
    %3379 = vmatpush.bf16.xpose.msra.mxu0 0
    %3380 = vmatpush.bf16.xpose.msra.mxu0 0
    %3381 = vmatpush.bf16.xpose.msra.mxu0 %v3372
    %3382 = vmatmul.bf16.gmra.mxu0 %v3369
    %v3383 = vpop.f32.mrf.mxu0
    %v3384 = vadd.f32 0.0, %v3383
    %v3385 = vpop.f32.mrf.mxu0
    %3386 = vdwg.mxu0
    %v3387 = vsel %vm1327, %v3365, -inf
    %3388 = vmax.xlane.f32.xlu0 %v3387
    %v3389 = vpop.xlane.xlu0 %3388
    %v3390 = vsel %vm1327, %v3384, -inf
    %3391 = vmax.xlane.f32.xlu0 %v3390
    %v3392 = vpop.xlane.xlu0 %3391
    %v3393 = vsub.f32 %v3365, %v3389
    %v3394 = vsub.f32 %v3384, %v3392
    %v3395 = vmul.f32 %v3393, 1.442695
    %v3396 = vpow.pop %v3395
    %v3397 = vmul.f32 %v3394, 1.442695
    %v3398 = vpow.pop %v3397
    %v3399 = vsel %vm1327, %v3396, 0.0
    %3400 = vadd.xlane.f32.xlu0 %v3399
    %v3401 = vpop.xlane.xlu0 %3400
    %v3402 = vsel %vm1327, %v3398, 0.0
    %3403 = vadd.xlane.f32.xlu0 %v3402
    %v3404 = vpop.xlane.xlu0 %3403
    %v3405 = vrcp.pop %v3401
    %v3406 = vrcp.pop %v3404
    %v3407 = vmul.f32 %v3396, %v3405
    %v3408 = vmul.f32 %v3398, %v3406
    %v3409 = vpack.c.bf16 %v3407, %v3407
    %v3410 = vpack.c.bf16 %v3408, %v3408
    %v3412 = vsel %vm1327, %v3409, 0
    %v3415 = vsel %vm1355, %v3347, 0
    %3417 = vmatpush.bf16.msra.mxu0 0
    %3418 = vmatpush.bf16.msra.mxu0 0
    %3419 = vmatpush.bf16.msra.mxu0 0
    %3420 = vmatpush.bf16.msra.mxu0 0
    %3421 = vmatpush.bf16.msra.mxu0 0
    %3422 = vmatpush.bf16.msra.mxu0 0
    %3423 = vmatpush.bf16.msra.mxu0 0
    %3424 = vmatpush.bf16.msra.mxu0 %v3415
    %3425 = vmatmul.bf16.gmra.mxu0 %v3412
    %v3426 = vpop.f32.mrf.mxu0
    %v3427 = vadd.f32 0.0, %v3426
    %v3428 = vpop.f32.mrf.mxu0
    %3429 = vdwg.mxu0
    %v3431 = vsel %vm1327, %v3410, 0
    %v3434 = vsel %vm1355, %v3348, 0
    %3436 = vmatpush.bf16.msra.mxu0 0
    %3437 = vmatpush.bf16.msra.mxu0 0
    %3438 = vmatpush.bf16.msra.mxu0 0
    %3439 = vmatpush.bf16.msra.mxu0 0
    %3440 = vmatpush.bf16.msra.mxu0 0
    %3441 = vmatpush.bf16.msra.mxu0 0
    %3442 = vmatpush.bf16.msra.mxu0 0
    %3443 = vmatpush.bf16.msra.mxu0 %v3434
    %3444 = vmatmul.bf16.gmra.mxu0 %v3431
    %v3445 = vpop.f32.mrf.mxu0
    %v3446 = vadd.f32 0.0, %v3445
    %v3447 = vpop.f32.mrf.mxu0
    %3448 = vdwg.mxu0
    %v3450 = vunpack.c.l.b16 %v3337
    %v3451 = vpack.c.b16 %v3450, %v3450
    %3452 = vrot.lane.b32.xlu0 %v3451, 96
    %v3453 = vpop.permute.xlu0 %3452
    %v3455 = vunpack.c.l.b16 %v3342
    %v3456 = vpack.c.b16 %v3455, %v3455
    %3457 = vrot.lane.b32.xlu0 %v3456, 96
    %v3458 = vpop.permute.xlu0 %3457
    %v3460 = vsel %vm416, %v3453, 0
    %v3463 = vsel %vm416, %v3458, 0
    %3465 = vmatpush.bf16.xpose.msra.mxu0 0
    %3466 = vmatpush.bf16.xpose.msra.mxu0 0
    %3467 = vmatpush.bf16.xpose.msra.mxu0 0
    %3468 = vmatpush.bf16.xpose.msra.mxu0 0
    %3469 = vmatpush.bf16.xpose.msra.mxu0 0
    %3470 = vmatpush.bf16.xpose.msra.mxu0 0
    %3471 = vmatpush.bf16.xpose.msra.mxu0 0
    %3472 = vmatpush.bf16.xpose.msra.mxu0 %v3463
    %3473 = vmatmul.bf16.gmra.mxu0 %v3460
    %v3474 = vpop.f32.mrf.mxu0
    %v3475 = vadd.f32 0.0, %v3474
    %v3476 = vpop.f32.mrf.mxu0
    %3477 = vdwg.mxu0
    %v3479 = vunpack.c.l.b16 %v3338
    %v3480 = vpack.c.b16 %v3479, %v3479
    %3481 = vrot.lane.b32.xlu0 %v3480, 96
    %v3482 = vpop.permute.xlu0 %3481
    %v3484 = vunpack.c.l.b16 %v3343
    %v3485 = vpack.c.b16 %v3484, %v3484
    %3486 = vrot.lane.b32.xlu0 %v3485, 96
    %v3487 = vpop.permute.xlu0 %3486
    %v3489 = vsel %vm416, %v3482, 0
    %v3492 = vsel %vm416, %v3487, 0
    %3494 = vmatpush.bf16.xpose.msra.mxu0 0
    %3495 = vmatpush.bf16.xpose.msra.mxu0 0
    %3496 = vmatpush.bf16.xpose.msra.mxu0 0
    %3497 = vmatpush.bf16.xpose.msra.mxu0 0
    %3498 = vmatpush.bf16.xpose.msra.mxu0 0
    %3499 = vmatpush.bf16.xpose.msra.mxu0 0
    %3500 = vmatpush.bf16.xpose.msra.mxu0 0
    %3501 = vmatpush.bf16.xpose.msra.mxu0 %v3492
    %3502 = vmatmul.bf16.gmra.mxu0 %v3489
    %v3503 = vpop.f32.mrf.mxu0
    %v3504 = vadd.f32 0.0, %v3503
    %v3505 = vpop.f32.mrf.mxu0
    %3506 = vdwg.mxu0
    %v3507 = vsel %vm1327, %v3475, -inf
    %3508 = vmax.xlane.f32.xlu0 %v3507
    %v3509 = vpop.xlane.xlu0 %3508
    %v3510 = vsel %vm1327, %v3504, -inf
    %3511 = vmax.xlane.f32.xlu0 %v3510
    %v3512 = vpop.xlane.xlu0 %3511
    %v3513 = vsub.f32 %v3475, %v3509
    %v3514 = vsub.f32 %v3504, %v3512
    %v3515 = vmul.f32 %v3513, 1.442695
    %v3516 = vpow.pop %v3515
    %v3517 = vmul.f32 %v3514, 1.442695
    %v3518 = vpow.pop %v3517
    %v3519 = vsel %vm1327, %v3516, 0.0
    %3520 = vadd.xlane.f32.xlu0 %v3519
    %v3521 = vpop.xlane.xlu0 %3520
    %v3522 = vsel %vm1327, %v3518, 0.0
    %3523 = vadd.xlane.f32.xlu0 %v3522
    %v3524 = vpop.xlane.xlu0 %3523
    %v3525 = vrcp.pop %v3521
    %v3526 = vrcp.pop %v3524
    %v3527 = vmul.f32 %v3516, %v3525
    %v3528 = vmul.f32 %v3518, %v3526
    %v3529 = vpack.c.bf16 %v3527, %v3527
    %v3530 = vpack.c.bf16 %v3528, %v3528
    %v3532 = vunpack.c.l.b16 %v3347
    %v3533 = vpack.c.b16 %v3532, %v3532
    %3534 = vrot.lane.b32.xlu0 %v3533, 96
    %v3535 = vpop.permute.xlu0 %3534
    %v3537 = vsel %vm1327, %v3529, 0
    %v3540 = vsel %vm1355, %v3535, 0
    %3542 = vmatpush.bf16.msra.mxu0 0
    %3543 = vmatpush.bf16.msra.mxu0 0
    %3544 = vmatpush.bf16.msra.mxu0 0
    %3545 = vmatpush.bf16.msra.mxu0 0
    %3546 = vmatpush.bf16.msra.mxu0 0
    %3547 = vmatpush.bf16.msra.mxu0 0
    %3548 = vmatpush.bf16.msra.mxu0 0
    %3549 = vmatpush.bf16.msra.mxu0 %v3540
    %3550 = vmatmul.bf16.gmra.mxu0 %v3537
    %v3551 = vpop.f32.mrf.mxu0
    %v3552 = vadd.f32 0.0, %v3551
    %v3553 = vpop.f32.mrf.mxu0
    %3554 = vdwg.mxu0
    %v3556 = vunpack.c.l.b16 %v3348
    %v3557 = vpack.c.b16 %v3556, %v3556
    %3558 = vrot.lane.b32.xlu0 %v3557, 96
    %v3559 = vpop.permute.xlu0 %3558
    %v3561 = vsel %vm1327, %v3530, 0
    %v3564 = vsel %vm1355, %v3559, 0
    %3566 = vmatpush.bf16.msra.mxu0 0
    %3567 = vmatpush.bf16.msra.mxu0 0
    %3568 = vmatpush.bf16.msra.mxu0 0
    %3569 = vmatpush.bf16.msra.mxu0 0
    %3570 = vmatpush.bf16.msra.mxu0 0
    %3571 = vmatpush.bf16.msra.mxu0 0
    %3572 = vmatpush.bf16.msra.mxu0 0
    %3573 = vmatpush.bf16.msra.mxu0 %v3564
    %3574 = vmatmul.bf16.gmra.mxu0 %v3561
    %v3575 = vpop.f32.mrf.mxu0
    %v3576 = vadd.f32 0.0, %v3575
    %v3577 = vpop.f32.mrf.mxu0
    %3578 = vdwg.mxu0
    %3579 = vrot.lane.b32.xlu0 %v3451, 64
    %v3580 = vpop.permute.xlu0 %3579
    %3581 = vrot.lane.b32.xlu0 %v3456, 64
    %v3582 = vpop.permute.xlu0 %3581
    %v3584 = vsel %vm416, %v3580, 0
    %v3587 = vsel %vm416, %v3582, 0
    %3589 = vmatpush.bf16.xpose.msra.mxu0 0
    %3590 = vmatpush.bf16.xpose.msra.mxu0 0
    %3591 = vmatpush.bf16.xpose.msra.mxu0 0
    %3592 = vmatpush.bf16.xpose.msra.mxu0 0
    %3593 = vmatpush.bf16.xpose.msra.mxu0 0
    %3594 = vmatpush.bf16.xpose.msra.mxu0 0
    %3595 = vmatpush.bf16.xpose.msra.mxu0 0
    %3596 = vmatpush.bf16.xpose.msra.mxu0 %v3587
    %3597 = vmatmul.bf16.gmra.mxu0 %v3584
    %v3598 = vpop.f32.mrf.mxu0
    %v3599 = vadd.f32 0.0, %v3598
    %v3600 = vpop.f32.mrf.mxu0
    %3601 = vdwg.mxu0
    %3602 = vrot.lane.b32.xlu0 %v3480, 64
    %v3603 = vpop.permute.xlu0 %3602
    %3604 = vrot.lane.b32.xlu0 %v3485, 64
    %v3605 = vpop.permute.xlu0 %3604
    %v3607 = vsel %vm416, %v3603, 0
    %v3610 = vsel %vm416, %v3605, 0
    %3612 = vmatpush.bf16.xpose.msra.mxu0 0
    %3613 = vmatpush.bf16.xpose.msra.mxu0 0
    %3614 = vmatpush.bf16.xpose.msra.mxu0 0
    %3615 = vmatpush.bf16.xpose.msra.mxu0 0
    %3616 = vmatpush.bf16.xpose.msra.mxu0 0
    %3617 = vmatpush.bf16.xpose.msra.mxu0 0
    %3618 = vmatpush.bf16.xpose.msra.mxu0 0
    %3619 = vmatpush.bf16.xpose.msra.mxu0 %v3610
    %3620 = vmatmul.bf16.gmra.mxu0 %v3607
    %v3621 = vpop.f32.mrf.mxu0
    %v3622 = vadd.f32 0.0, %v3621
    %v3623 = vpop.f32.mrf.mxu0
    %3624 = vdwg.mxu0
    %v3625 = vsel %vm1327, %v3599, -inf
    %3626 = vmax.xlane.f32.xlu0 %v3625
    %v3627 = vpop.xlane.xlu0 %3626
    %v3628 = vsel %vm1327, %v3622, -inf
    %3629 = vmax.xlane.f32.xlu0 %v3628
    %v3630 = vpop.xlane.xlu0 %3629
    %v3631 = vsub.f32 %v3599, %v3627
    %v3632 = vsub.f32 %v3622, %v3630
    %v3633 = vmul.f32 %v3631, 1.442695
    %v3634 = vpow.pop %v3633
    %v3635 = vmul.f32 %v3632, 1.442695
    %v3636 = vpow.pop %v3635
    %v3637 = vsel %vm1327, %v3634, 0.0
    %3638 = vadd.xlane.f32.xlu0 %v3637
    %v3639 = vpop.xlane.xlu0 %3638
    %v3640 = vsel %vm1327, %v3636, 0.0
    %3641 = vadd.xlane.f32.xlu0 %v3640
    %v3642 = vpop.xlane.xlu0 %3641
    %v3643 = vrcp.pop %v3639
    %v3644 = vrcp.pop %v3642
    %v3645 = vmul.f32 %v3634, %v3643
    %v3646 = vmul.f32 %v3636, %v3644
    %v3647 = vpack.c.bf16 %v3645, %v3645
    %v3648 = vpack.c.bf16 %v3646, %v3646
    %3649 = vrot.lane.b32.xlu0 %v3533, 64
    %v3650 = vpop.permute.xlu0 %3649
    %v3652 = vsel %vm1327, %v3647, 0
    %v3655 = vsel %vm1355, %v3650, 0
    %3657 = vmatpush.bf16.msra.mxu0 0
    %3658 = vmatpush.bf16.msra.mxu0 0
    %3659 = vmatpush.bf16.msra.mxu0 0
    %3660 = vmatpush.bf16.msra.mxu0 0
    %3661 = vmatpush.bf16.msra.mxu0 0
    %3662 = vmatpush.bf16.msra.mxu0 0
    %3663 = vmatpush.bf16.msra.mxu0 0
    %3664 = vmatpush.bf16.msra.mxu0 %v3655
    %3665 = vmatmul.bf16.gmra.mxu0 %v3652
    %v3666 = vpop.f32.mrf.mxu0
    %v3667 = vadd.f32 0.0, %v3666
    %v3668 = vpop.f32.mrf.mxu0
    %3669 = vdwg.mxu0
    %3670 = vrot.lane.b32.xlu0 %v3557, 64
    %v3671 = vpop.permute.xlu0 %3670
    %v3673 = vsel %vm1327, %v3648, 0
    %v3676 = vsel %vm1355, %v3671, 0
    %3678 = vmatpush.bf16.msra.mxu0 0
    %3679 = vmatpush.bf16.msra.mxu0 0
    %3680 = vmatpush.bf16.msra.mxu0 0
    %3681 = vmatpush.bf16.msra.mxu0 0
    %3682 = vmatpush.bf16.msra.mxu0 0
    %3683 = vmatpush.bf16.msra.mxu0 0
    %3684 = vmatpush.bf16.msra.mxu0 0
    %3685 = vmatpush.bf16.msra.mxu0 %v3676
    %3686 = vmatmul.bf16.gmra.mxu0 %v3673
    %v3687 = vpop.f32.mrf.mxu0
    %v3688 = vadd.f32 0.0, %v3687
    %v3689 = vpop.f32.mrf.mxu0
    %3690 = vdwg.mxu0
    %3691 = vrot.lane.b32.xlu0 %v3451, 32
    %v3692 = vpop.permute.xlu0 %3691
    %3693 = vrot.lane.b32.xlu0 %v3456, 32
    %v3694 = vpop.permute.xlu0 %3693
    %v3696 = vsel %vm416, %v3692, 0
    %v3699 = vsel %vm416, %v3694, 0
    %3701 = vmatpush.bf16.xpose.msra.mxu0 0
    %3702 = vmatpush.bf16.xpose.msra.mxu0 0
    %3703 = vmatpush.bf16.xpose.msra.mxu0 0
    %3704 = vmatpush.bf16.xpose.msra.mxu0 0
    %3705 = vmatpush.bf16.xpose.msra.mxu0 0
    %3706 = vmatpush.bf16.xpose.msra.mxu0 0
    %3707 = vmatpush.bf16.xpose.msra.mxu0 0
    %3708 = vmatpush.bf16.xpose.msra.mxu0 %v3699
    %3709 = vmatmul.bf16.gmra.mxu0 %v3696
    %v3710 = vpop.f32.mrf.mxu0
    %v3711 = vadd.f32 0.0, %v3710
    %v3712 = vpop.f32.mrf.mxu0
    %3713 = vdwg.mxu0
    %3714 = vrot.lane.b32.xlu0 %v3480, 32
    %v3715 = vpop.permute.xlu0 %3714
    %3716 = vrot.lane.b32.xlu0 %v3485, 32
    %v3717 = vpop.permute.xlu0 %3716
    %v3719 = vsel %vm416, %v3715, 0
    %v3722 = vsel %vm416, %v3717, 0
    %3724 = vmatpush.bf16.xpose.msra.mxu0 0
    %3725 = vmatpush.bf16.xpose.msra.mxu0 0
    %3726 = vmatpush.bf16.xpose.msra.mxu0 0
    %3727 = vmatpush.bf16.xpose.msra.mxu0 0
    %3728 = vmatpush.bf16.xpose.msra.mxu0 0
    %3729 = vmatpush.bf16.xpose.msra.mxu0 0
    %3730 = vmatpush.bf16.xpose.msra.mxu0 0
    %3731 = vmatpush.bf16.xpose.msra.mxu0 %v3722
    %3732 = vmatmul.bf16.gmra.mxu0 %v3719
    %v3733 = vpop.f32.mrf.mxu0
    %v3734 = vadd.f32 0.0, %v3733
    %v3735 = vpop.f32.mrf.mxu0
    %3736 = vdwg.mxu0
    %v3737 = vsel %vm1327, %v3711, -inf
    %3738 = vmax.xlane.f32.xlu0 %v3737
    %v3739 = vpop.xlane.xlu0 %3738
    %v3740 = vsel %vm1327, %v3734, -inf
    %3741 = vmax.xlane.f32.xlu0 %v3740
    %v3742 = vpop.xlane.xlu0 %3741
    %v3743 = vsub.f32 %v3711, %v3739
    %v3744 = vsub.f32 %v3734, %v3742
    %v3745 = vmul.f32 %v3743, 1.442695
    %v3746 = vpow.pop %v3745
    %v3747 = vmul.f32 %v3744, 1.442695
    %v3748 = vpow.pop %v3747
    %v3749 = vsel %vm1327, %v3746, 0.0
    %3750 = vadd.xlane.f32.xlu0 %v3749
    %v3751 = vpop.xlane.xlu0 %3750
    %v3752 = vsel %vm1327, %v3748, 0.0
    %3753 = vadd.xlane.f32.xlu0 %v3752
    %v3754 = vpop.xlane.xlu0 %3753
    %v3755 = vrcp.pop %v3751
    %v3756 = vrcp.pop %v3754
    %v3757 = vmul.f32 %v3746, %v3755
    %v3758 = vmul.f32 %v3748, %v3756
    %v3759 = vpack.c.bf16 %v3757, %v3757
    %v3760 = vpack.c.bf16 %v3758, %v3758
    %3761 = vrot.lane.b32.xlu0 %v3533, 32
    %v3762 = vpop.permute.xlu0 %3761
    %v3764 = vsel %vm1327, %v3759, 0
    %v3767 = vsel %vm1355, %v3762, 0
    %3769 = vmatpush.bf16.msra.mxu0 0
    %3770 = vmatpush.bf16.msra.mxu0 0
    %3771 = vmatpush.bf16.msra.mxu0 0
    %3772 = vmatpush.bf16.msra.mxu0 0
    %3773 = vmatpush.bf16.msra.mxu0 0
    %3774 = vmatpush.bf16.msra.mxu0 0
    %3775 = vmatpush.bf16.msra.mxu0 0
    %3776 = vmatpush.bf16.msra.mxu0 %v3767
    %3777 = vmatmul.bf16.gmra.mxu0 %v3764
    %v3778 = vpop.f32.mrf.mxu0
    %v3779 = vadd.f32 0.0, %v3778
    %v3780 = vpop.f32.mrf.mxu0
    %3781 = vdwg.mxu0
    %3782 = vrot.lane.b32.xlu0 %v3557, 32
    %v3783 = vpop.permute.xlu0 %3782
    %v3785 = vsel %vm1327, %v3760, 0
    %v3788 = vsel %vm1355, %v3783, 0
    %3790 = vmatpush.bf16.msra.mxu0 0
    %3791 = vmatpush.bf16.msra.mxu0 0
    %3792 = vmatpush.bf16.msra.mxu0 0
    %3793 = vmatpush.bf16.msra.mxu0 0
    %3794 = vmatpush.bf16.msra.mxu0 0
    %3795 = vmatpush.bf16.msra.mxu0 0
    %3796 = vmatpush.bf16.msra.mxu0 0
    %3797 = vmatpush.bf16.msra.mxu0 %v3788
    %3798 = vmatmul.bf16.gmra.mxu0 %v3785
    %v3799 = vpop.f32.mrf.mxu0
    %v3800 = vadd.f32 0.0, %v3799
    %v3801 = vpop.f32.mrf.mxu0
    %3802 = vdwg.mxu0
    %3805 = vrot.lane.b32.xlu0 %v3552, 32
    %v3806 = vpop.permute.xlu0 %3805
    %3807 = vrot.lane.b32.xlu0 %v3576, 32
    %v3808 = vpop.permute.xlu0 %3807
    %3813 = vrot.lane.b32.xlu0 %v3667, 64
    %v3814 = vpop.permute.xlu0 %3813
    %3815 = vrot.lane.b32.xlu0 %v3688, 64
    %v3816 = vpop.permute.xlu0 %3815
    %3821 = vrot.lane.b32.xlu0 %v3779, 96
    %v3822 = vpop.permute.xlu0 %3821
    %3823 = vrot.lane.b32.xlu0 %v3800, 96
    %v3824 = vpop.permute.xlu0 %3823
    %v3827 = vsel %vm416, %v3427, %v3806
    %v3828 = vsel %vm416, %v3446, %v3808
    %v3829 = vsel %vm909, %v3827, %v3814
    %v3830 = vsel %vm909, %v3828, %v3816
    %v3831 = vsel %vm912, %v3829, %v3822
    %v3832 = vsel %vm912, %v3830, %v3824
    %v3833 = vpack.c.bf16 %v3832, %v3831
    %v3835 = vperm.slane %v3154, 0
    %v3853 = vunpack.c.l.b16 %v3137
    %v3854 = vunpack.c.l.b16 %v3138
    %v3855 = vunpack.c.l.b16 %v3139
    %v3856 = vunpack.c.l.b16 %v3140
    %v3857 = vunpack.c.l.b16 %v3141
    %v3858 = vunpack.c.l.b16 %v3142
    %v3859 = vunpack.c.l.b16 %v3143
    %v3860 = vunpack.c.l.b16 %v3144
    %v3861 = vunpack.c.l.b16 %v3145
    %v3862 = vunpack.c.l.b16 %v3146
    %v3863 = vunpack.c.l.b16 %v3147
    %v3864 = vunpack.c.l.b16 %v3148
    %v3865 = vunpack.c.l.b16 %v3149
    %v3866 = vunpack.c.l.b16 %v3150
    %v3867 = vunpack.c.l.b16 %v3151
    %v3868 = vunpack.c.l.b16 %v3152
    %v3869 = vpack.c.b16 %v3854, %v3853
    %v3870 = vpack.c.b16 %v3856, %v3855
    %v3871 = vpack.c.b16 %v3858, %v3857
    %v3872 = vpack.c.b16 %v3860, %v3859
    %v3873 = vpack.c.b16 %v3862, %v3861
    %v3874 = vpack.c.b16 %v3864, %v3863
    %v3875 = vpack.c.b16 %v3866, %v3865
    %v3876 = vpack.c.b16 %v3868, %v3867
    %3885 = vmatpush.bf16.msra.mxu0 %v3876
    %3886 = vmatpush.bf16.msra.mxu0 %v3875
    %3887 = vmatpush.bf16.msra.mxu0 %v3874
    %3888 = vmatpush.bf16.msra.mxu0 %v3873
    %3889 = vmatpush.bf16.msra.mxu0 %v3872
    %3890 = vmatpush.bf16.msra.mxu0 %v3871
    %3891 = vmatpush.bf16.msra.mxu0 %v3870
    %3892 = vmatpush.bf16.msra.mxu0 %v3869
    %3893 = vmatmul.bf16.gmra.mxu0 %v3833
    %v3894 = vpop.f32.mrf.mxu0
    %v3895 = vadd.f32 %v3835, %v3894
    %v3896 = vpop.f32.mrf.mxu0
    %v3897 = vadd.f32 %v3835, %v3896
    %3898 = vdwg.mxu0
    %v3899 = vadd.f32 %v3096, %v3895
    %v3900 = vadd.f32 %v3097, %v3897
    %s3901 = scalar_lea.vmem %s14, 1
    %v3902 = vld [vmem:[%s3901] sm:$0x1]
    %s3903 = scalar_lea.vmem %s15, 1
    %v3904 = vld [vmem:[%s3903] sm:$0x1]
    %3905 = vadd.xlane.f32.xlu0 %v3899
    %v3906 = vpop.xlane.xlu0 %3905
    %3907 = vadd.xlane.f32.xlu0 %v3900
    %v3908 = vpop.xlane.xlu0 %3907
    %v3909 = vmul.f32 %v3906, %v995
    %v3910 = vmul.f32 %v3908, %v995
    %v3911 = vsub.f32 %v3899, %v3909
    %v3912 = vsub.f32 %v3900, %v3910
    %v3913 = vmul.f32 %v3911, %v3911
    %v3914 = vmul.f32 %v3912, %v3912
    %3915 = vadd.xlane.f32.xlu0 %v3913
    %v3916 = vpop.xlane.xlu0 %3915
    %3917 = vadd.xlane.f32.xlu0 %v3914
    %v3918 = vpop.xlane.xlu0 %3917
    %v3919 = vmul.f32 %v3916, %v995
    %v3920 = vmul.f32 %v3918, %v995
    %v3921 = vadd.f32 %v3919, 1e-05
    %v3922 = vadd.f32 %v3920, 1e-05
    %v3923 = vrsqrt.pop %v3921
    %v3924 = vmul.f32 %v3923, %v3921
    %v3925 = vmul.f32 %v3924, %v3923
    %v3926 = vmul.f32 0.5, %v3925
    %v3927 = vsub.f32 1.5, %v3926
    %v3928 = vmul.f32 %v3923, %v3927
    %vm3929 = vweird.f32 %v3921
    %vm3930 = vweird.f32 %v3923
    %vm3931 = vmor %vm3929, %vm3930
    %v3932 = vsel %vm3931, %v3923, %v3928
    %v3933 = vrsqrt.pop %v3922
    %v3934 = vmul.f32 %v3933, %v3922
    %v3935 = vmul.f32 %v3934, %v3933
    %v3936 = vmul.f32 0.5, %v3935
    %v3937 = vsub.f32 1.5, %v3936
    %v3938 = vmul.f32 %v3933, %v3937
    %vm3939 = vweird.f32 %v3922
    %vm3940 = vweird.f32 %v3933
    %vm3941 = vmor %vm3939, %vm3940
    %v3942 = vsel %vm3941, %v3933, %v3938
    %v3943 = vmul.f32 %v3911, %v3932
    %v3944 = vmul.f32 %v3912, %v3942
    %v3946 = vperm.slane %v3902, 0
    %v3948 = vmul.f32 %v3943, %v3946
    %v3949 = vmul.f32 %v3944, %v3946
    %v3951 = vperm.slane %v3904, 0
    %v3953 = vadd.f32 %v3948, %v3951
    %v3954 = vadd.f32 %v3949, %v3951
    %s3955 = scalar_lea.vmem [#allocation8], 128
    %v3956 = vld [vmem:[%s3955] sm:$0xff]
    %v3957 = vld [vmem:[%s3955 + $0x8] sm:$0xff]
    %v3958 = vld [vmem:[%s3955 + $0x10] sm:$0xff]
    %v3959 = vld [vmem:[%s3955 + $0x18] sm:$0xff]
    %v3960 = vld [vmem:[%s3955 + $0x20] sm:$0xff]
    %v3961 = vld [vmem:[%s3955 + $0x28] sm:$0xff]
    %v3962 = vld [vmem:[%s3955 + $0x30] sm:$0xff]
    %v3963 = vld [vmem:[%s3955 + $0x38] sm:$0xff]
    %v3964 = vld [vmem:[%s3955 + $0x40] sm:$0xff]
    %v3965 = vld [vmem:[%s3955 + $0x48] sm:$0xff]
    %v3966 = vld [vmem:[%s3955 + $0x50] sm:$0xff]
    %v3967 = vld [vmem:[%s3955 + $0x58] sm:$0xff]
    %v3968 = vld [vmem:[%s3955 + $0x60] sm:$0xff]
    %v3969 = vld [vmem:[%s3955 + $0x68] sm:$0xff]
    %v3970 = vld [vmem:[%s3955 + $0x70] sm:$0xff]
    %v3971 = vld [vmem:[%s3955 + $0x78] sm:$0xff]
    %s3972 = scalar_lea.vmem %s17, 2
    %v3973 = vld [vmem:[%s3972] sm:$0x3]
    %s3974 = scalar_lea.vmem [#allocation10], 128
    %v3975 = vld [vmem:[%s3974] sm:$0xf]
    %v3976 = vld [vmem:[%s3974 + $0x4] sm:$0xf]
    %v3977 = vld [vmem:[%s3974 + $0x8] sm:$0xf]
    %v3978 = vld [vmem:[%s3974 + $0xc] sm:$0xf]
    %v3979 = vld [vmem:[%s3974 + $0x10] sm:$0xf]
    %v3980 = vld [vmem:[%s3974 + $0x14] sm:$0xf]
    %v3981 = vld [vmem:[%s3974 + $0x18] sm:$0xf]
    %v3982 = vld [vmem:[%s3974 + $0x1c] sm:$0xf]
    %v3983 = vld [vmem:[%s3974 + $0x20] sm:$0xf]
    %v3984 = vld [vmem:[%s3974 + $0x24] sm:$0xf]
    %v3985 = vld [vmem:[%s3974 + $0x28] sm:$0xf]
    %v3986 = vld [vmem:[%s3974 + $0x2c] sm:$0xf]
    %v3987 = vld [vmem:[%s3974 + $0x30] sm:$0xf]
    %v3988 = vld [vmem:[%s3974 + $0x34] sm:$0xf]
    %v3989 = vld [vmem:[%s3974 + $0x38] sm:$0xf]
    %v3990 = vld [vmem:[%s3974 + $0x3c] sm:$0xf]
    %v3991 = vld [vmem:[%s3974 + $0x40] sm:$0xf]
    %v3992 = vld [vmem:[%s3974 + $0x44] sm:$0xf]
    %v3993 = vld [vmem:[%s3974 + $0x48] sm:$0xf]
    %v3994 = vld [vmem:[%s3974 + $0x4c] sm:$0xf]
    %v3995 = vld [vmem:[%s3974 + $0x50] sm:$0xf]
    %v3996 = vld [vmem:[%s3974 + $0x54] sm:$0xf]
    %v3997 = vld [vmem:[%s3974 + $0x58] sm:$0xf]
    %v3998 = vld [vmem:[%s3974 + $0x5c] sm:$0xf]
    %v3999 = vld [vmem:[%s3974 + $0x60] sm:$0xf]
    %v4000 = vld [vmem:[%s3974 + $0x64] sm:$0xf]
    %v4001 = vld [vmem:[%s3974 + $0x68] sm:$0xf]
    %v4002 = vld [vmem:[%s3974 + $0x6c] sm:$0xf]
    %v4003 = vld [vmem:[%s3974 + $0x70] sm:$0xf]
    %v4004 = vld [vmem:[%s3974 + $0x74] sm:$0xf]
    %v4005 = vld [vmem:[%s3974 + $0x78] sm:$0xf]
    %v4006 = vld [vmem:[%s3974 + $0x7c] sm:$0xf]
    %s4007 = scalar_lea.vmem %s19, 1
    %v4008 = vld [vmem:[%s4007] sm:$0x1]
    %v4009 = vpack.c.bf16 %v3954, %v3953
    %v4011 = vperm.slane %v3973, 0
    %v4012 = vperm.slane %v3973, 1
    %v4031 = vunpack.c.l.b16 %v3956
    %v4032 = vunpack.c.h.b16 %v3956
    %v4033 = vunpack.c.l.b16 %v3957
    %v4034 = vunpack.c.h.b16 %v3957
    %v4035 = vunpack.c.l.b16 %v3958
    %v4036 = vunpack.c.h.b16 %v3958
    %v4037 = vunpack.c.l.b16 %v3959
    %v4038 = vunpack.c.h.b16 %v3959
    %v4039 = vunpack.c.l.b16 %v3960
    %v4040 = vunpack.c.h.b16 %v3960
    %v4041 = vunpack.c.l.b16 %v3961
    %v4042 = vunpack.c.h.b16 %v3961
    %v4043 = vunpack.c.l.b16 %v3962
    %v4044 = vunpack.c.h.b16 %v3962
    %v4045 = vunpack.c.l.b16 %v3963
    %v4046 = vunpack.c.h.b16 %v3963
    %v4047 = vunpack.c.l.b16 %v3964
    %v4048 = vunpack.c.h.b16 %v3964
    %v4049 = vunpack.c.l.b16 %v3965
    %v4050 = vunpack.c.h.b16 %v3965
    %v4051 = vunpack.c.l.b16 %v3966
    %v4052 = vunpack.c.h.b16 %v3966
    %v4053 = vunpack.c.l.b16 %v3967
    %v4054 = vunpack.c.h.b16 %v3967
    %v4055 = vunpack.c.l.b16 %v3968
    %v4056 = vunpack.c.h.b16 %v3968
    %v4057 = vunpack.c.l.b16 %v3969
    %v4058 = vunpack.c.h.b16 %v3969
    %v4059 = vunpack.c.l.b16 %v3970
    %v4060 = vunpack.c.h.b16 %v3970
    %v4061 = vunpack.c.l.b16 %v3971
    %v4062 = vunpack.c.h.b16 %v3971
    %v4063 = vpack.c.b16 %v4033, %v4031
    %v4064 = vpack.c.b16 %v4034, %v4032
    %v4065 = vpack.c.b16 %v4037, %v4035
    %v4066 = vpack.c.b16 %v4038, %v4036
    %v4067 = vpack.c.b16 %v4041, %v4039
    %v4068 = vpack.c.b16 %v4042, %v4040
    %v4069 = vpack.c.b16 %v4045, %v4043
    %v4070 = vpack.c.b16 %v4046, %v4044
    %v4071 = vpack.c.b16 %v4049, %v4047
    %v4072 = vpack.c.b16 %v4050, %v4048
    %v4073 = vpack.c.b16 %v4053, %v4051
    %v4074 = vpack.c.b16 %v4054, %v4052
    %v4075 = vpack.c.b16 %v4057, %v4055
    %v4076 = vpack.c.b16 %v4058, %v4056
    %v4077 = vpack.c.b16 %v4061, %v4059
    %v4078 = vpack.c.b16 %v4062, %v4060
    %4095 = vmatpush.bf16.msra.mxu0 %v4077
    %4096 = vmatpush.bf16.msra.mxu0 %v4075
    %4097 = vmatpush.bf16.msra.mxu0 %v4073
    %4098 = vmatpush.bf16.msra.mxu0 %v4071
    %4099 = vmatpush.bf16.msra.mxu0 %v4069
    %4100 = vmatpush.bf16.msra.mxu0 %v4067
    %4101 = vmatpush.bf16.msra.mxu0 %v4065
    %4102 = vmatpush.bf16.msra.mxu0 %v4063
    %4103 = vmatmul.bf16.gmra.mxu0 %v4009
    %v4104 = vpop.f32.mrf.mxu0
    %v4105 = vadd.f32 %v4011, %v4104
    %v4106 = vpop.f32.mrf.mxu0
    %v4107 = vadd.f32 %v4011, %v4106
    %4108 = vdwg.mxu0
    %4109 = vmatpush.bf16.msra.mxu0 %v4078
    %4110 = vmatpush.bf16.msra.mxu0 %v4076
    %4111 = vmatpush.bf16.msra.mxu0 %v4074
    %4112 = vmatpush.bf16.msra.mxu0 %v4072
    %4113 = vmatpush.bf16.msra.mxu0 %v4070
    %4114 = vmatpush.bf16.msra.mxu0 %v4068
    %4115 = vmatpush.bf16.msra.mxu0 %v4066
    %4116 = vmatpush.bf16.msra.mxu0 %v4064
    %4117 = vmatmul.bf16.gmra.mxu0 %v4009
    %v4118 = vpop.f32.mrf.mxu0
    %v4119 = vadd.f32 %v4012, %v4118
    %v4120 = vpop.f32.mrf.mxu0
    %v4121 = vadd.f32 %v4012, %v4120
    %4122 = vdwg.mxu0
    %v4123 = vmax.f32 %v4105, 0.0
    %v4124 = vmax.f32 %v4119, 0.0
    %v4125 = vmax.f32 %v4107, 0.0
    %v4126 = vmax.f32 %v4121, 0.0
    %v4127 = vpack.c.bf16 %v4125, %v4123
    %v4128 = vpack.c.bf16 %v4126, %v4124
    %v4130 = vperm.slane %v4008, 0
    %v4164 = vunpack.c.l.b16 %v3975
    %v4165 = vunpack.c.l.b16 %v3976
    %v4166 = vunpack.c.l.b16 %v3977
    %v4167 = vunpack.c.l.b16 %v3978
    %v4168 = vunpack.c.l.b16 %v3979
    %v4169 = vunpack.c.l.b16 %v3980
    %v4170 = vunpack.c.l.b16 %v3981
    %v4171 = vunpack.c.l.b16 %v3982
    %v4172 = vunpack.c.l.b16 %v3983
    %v4173 = vunpack.c.l.b16 %v3984
    %v4174 = vunpack.c.l.b16 %v3985
    %v4175 = vunpack.c.l.b16 %v3986
    %v4176 = vunpack.c.l.b16 %v3987
    %v4177 = vunpack.c.l.b16 %v3988
    %v4178 = vunpack.c.l.b16 %v3989
    %v4179 = vunpack.c.l.b16 %v3990
    %v4180 = vunpack.c.l.b16 %v3991
    %v4181 = vunpack.c.l.b16 %v3992
    %v4182 = vunpack.c.l.b16 %v3993
    %v4183 = vunpack.c.l.b16 %v3994
    %v4184 = vunpack.c.l.b16 %v3995
    %v4185 = vunpack.c.l.b16 %v3996
    %v4186 = vunpack.c.l.b16 %v3997
    %v4187 = vunpack.c.l.b16 %v3998
    %v4188 = vunpack.c.l.b16 %v3999
    %v4189 = vunpack.c.l.b16 %v4000
    %v4190 = vunpack.c.l.b16 %v4001
    %v4191 = vunpack.c.l.b16 %v4002
    %v4192 = vunpack.c.l.b16 %v4003
    %v4193 = vunpack.c.l.b16 %v4004
    %v4194 = vunpack.c.l.b16 %v4005
    %v4195 = vunpack.c.l.b16 %v4006
    %v4196 = vpack.c.b16 %v4165, %v4164
    %v4197 = vpack.c.b16 %v4167, %v4166
    %v4198 = vpack.c.b16 %v4169, %v4168
    %v4199 = vpack.c.b16 %v4171, %v4170
    %v4200 = vpack.c.b16 %v4173, %v4172
    %v4201 = vpack.c.b16 %v4175, %v4174
    %v4202 = vpack.c.b16 %v4177, %v4176
    %v4203 = vpack.c.b16 %v4179, %v4178
    %v4204 = vpack.c.b16 %v4181, %v4180
    %v4205 = vpack.c.b16 %v4183, %v4182
    %v4206 = vpack.c.b16 %v4185, %v4184
    %v4207 = vpack.c.b16 %v4187, %v4186
    %v4208 = vpack.c.b16 %v4189, %v4188
    %v4209 = vpack.c.b16 %v4191, %v4190
    %v4210 = vpack.c.b16 %v4193, %v4192
    %v4211 = vpack.c.b16 %v4195, %v4194
    %4228 = vmatpush.bf16.msra.mxu0 %v4203
    %4229 = vmatpush.bf16.msra.mxu0 %v4202
    %4230 = vmatpush.bf16.msra.mxu0 %v4201
    %4231 = vmatpush.bf16.msra.mxu0 %v4200
    %4232 = vmatpush.bf16.msra.mxu0 %v4199
    %4233 = vmatpush.bf16.msra.mxu0 %v4198
    %4234 = vmatpush.bf16.msra.mxu0 %v4197
    %4235 = vmatpush.bf16.msra.mxu0 %v4196
    %4236 = vmatmul.bf16.gmra.mxu0 %v4127
    %v4237 = vpop.f32.mrf.mxu0
    %v4238 = vadd.f32 %v4130, %v4237
    %v4239 = vpop.f32.mrf.mxu0
    %v4240 = vadd.f32 %v4130, %v4239
    %4241 = vdwg.mxu0
    %4242 = vmatpush.bf16.msra.mxu0 %v4211
    %4243 = vmatpush.bf16.msra.mxu0 %v4210
    %4244 = vmatpush.bf16.msra.mxu0 %v4209
    %4245 = vmatpush.bf16.msra.mxu0 %v4208
    %4246 = vmatpush.bf16.msra.mxu0 %v4207
    %4247 = vmatpush.bf16.msra.mxu0 %v4206
    %4248 = vmatpush.bf16.msra.mxu0 %v4205
    %4249 = vmatpush.bf16.msra.mxu0 %v4204
    %4250 = vmatmul.bf16.gmra.mxu0 %v4128
    %v4251 = vpop.f32.mrf.mxu0
    %v4252 = vadd.f32 %v4238, %v4251
    %v4253 = vpop.f32.mrf.mxu0
    %v4254 = vadd.f32 %v4240, %v4253
    %4255 = vdwg.mxu0
    %v4256 = vadd.f32 %v3953, %v4252
    %v4257 = vadd.f32 %v3954, %v4254
    %s4258 = scalar_lea.vmem %s20, 1
    %v4259 = vld [vmem:[%s4258] sm:$0x1]
    %s4260 = scalar_lea.vmem %s21, 1
    %v4261 = vld [vmem:[%s4260] sm:$0x1]
    %4262 = vadd.xlane.f32.xlu0 %v4256
    %v4263 = vpop.xlane.xlu0 %4262
    %4264 = vadd.xlane.f32.xlu0 %v4257
    %v4265 = vpop.xlane.xlu0 %4264
    %v4266 = vmul.f32 %v4263, %v995
    %v4267 = vmul.f32 %v4265, %v995
    %v4268 = vsub.f32 %v4256, %v4266
    %v4269 = vsub.f32 %v4257, %v4267
    %v4270 = vmul.f32 %v4268, %v4268
    %v4271 = vmul.f32 %v4269, %v4269
    %4272 = vadd.xlane.f32.xlu0 %v4270
    %v4273 = vpop.xlane.xlu0 %4272
    %4274 = vadd.xlane.f32.xlu0 %v4271
    %v4275 = vpop.xlane.xlu0 %4274
    %v4276 = vmul.f32 %v4273, %v995
    %v4277 = vmul.f32 %v4275, %v995
    %v4278 = vadd.f32 %v4276, 1e-05
    %v4279 = vadd.f32 %v4277, 1e-05
    %v4280 = vrsqrt.pop %v4278
    %v4281 = vmul.f32 %v4280, %v4278
    %v4282 = vmul.f32 %v4281, %v4280
    %v4283 = vmul.f32 0.5, %v4282
    %v4284 = vsub.f32 1.5, %v4283
    %v4285 = vmul.f32 %v4280, %v4284
    %vm4286 = vweird.f32 %v4278
    %vm4287 = vweird.f32 %v4280
    %vm4288 = vmor %vm4286, %vm4287
    %v4289 = vsel %vm4288, %v4280, %v4285
    %v4290 = vrsqrt.pop %v4279
    %v4291 = vmul.f32 %v4290, %v4279
    %v4292 = vmul.f32 %v4291, %v4290
    %v4293 = vmul.f32 0.5, %v4292
    %v4294 = vsub.f32 1.5, %v4293
    %v4295 = vmul.f32 %v4290, %v4294
    %vm4296 = vweird.f32 %v4279
    %vm4297 = vweird.f32 %v4290
    %vm4298 = vmor %vm4296, %vm4297
    %v4299 = vsel %vm4298, %v4290, %v4295
    %v4300 = vmul.f32 %v4268, %v4289
    %v4301 = vmul.f32 %v4269, %v4299
    %v4303 = vperm.slane %v4259, 0
    %v4305 = vmul.f32 %v4300, %v4303
    %v4306 = vmul.f32 %v4301, %v4303
    %v4308 = vperm.slane %v4261, 0
    %v4310 = vadd.f32 %v4305, %v4308
    %v4311 = vadd.f32 %v4306, %v4308
    %v4312 = vpack.c.bf16 %v4311, %v4310
    %v4313 = vld [vmem:[#allocation11] sm:$0xf]
    %v4314 = vld [vmem:[#allocation11 + $0x4] sm:$0xf]
    %v4315 = vld [vmem:[#allocation11 + $0x8] sm:$0xf]
    %v4316 = vld [vmem:[#allocation11 + $0xc] sm:$0xf]
    %v4317 = vld [vmem:[#allocation11 + $0x10] sm:$0xf]
    %v4318 = vld [vmem:[#allocation11 + $0x14] sm:$0xf]
    %v4319 = vld [vmem:[#allocation11 + $0x18] sm:$0xf]
    %v4320 = vld [vmem:[#allocation11 + $0x1c] sm:$0xf]
    %v4321 = vld [vmem:[#allocation11 + $0x20] sm:$0xf]
    %v4322 = vld [vmem:[#allocation11 + $0x24] sm:$0xf]
    %v4323 = vld [vmem:[#allocation11 + $0x28] sm:$0xf]
    %v4324 = vld [vmem:[#allocation11 + $0x2c] sm:$0xf]
    %v4325 = vld [vmem:[#allocation11 + $0x30] sm:$0xf]
    %v4326 = vld [vmem:[#allocation11 + $0x34] sm:$0xf]
    %v4327 = vld [vmem:[#allocation11 + $0x38] sm:$0xf]
    %v4328 = vld [vmem:[#allocation11 + $0x3c] sm:$0xf]
    %v4329 = vld [vmem:[%s23] sm:$0x1]
    %v4331 = vperm.slane %v4329, 0
    %v4349 = vunpack.c.l.b16 %v4313
    %v4350 = vunpack.c.l.b16 %v4314
    %v4351 = vunpack.c.l.b16 %v4315
    %v4352 = vunpack.c.l.b16 %v4316
    %v4353 = vunpack.c.l.b16 %v4317
    %v4354 = vunpack.c.l.b16 %v4318
    %v4355 = vunpack.c.l.b16 %v4319
    %v4356 = vunpack.c.l.b16 %v4320
    %v4357 = vunpack.c.l.b16 %v4321
    %v4358 = vunpack.c.l.b16 %v4322
    %v4359 = vunpack.c.l.b16 %v4323
    %v4360 = vunpack.c.l.b16 %v4324
    %v4361 = vunpack.c.l.b16 %v4325
    %v4362 = vunpack.c.l.b16 %v4326
    %v4363 = vunpack.c.l.b16 %v4327
    %v4364 = vunpack.c.l.b16 %v4328
    %v4365 = vpack.c.b16 %v4350, %v4349
    %v4366 = vpack.c.b16 %v4352, %v4351
    %v4367 = vpack.c.b16 %v4354, %v4353
    %v4368 = vpack.c.b16 %v4356, %v4355
    %v4369 = vpack.c.b16 %v4358, %v4357
    %v4370 = vpack.c.b16 %v4360, %v4359
    %v4371 = vpack.c.b16 %v4362, %v4361
    %v4372 = vpack.c.b16 %v4364, %v4363
    %4381 = vmatpush.bf16.msra.mxu0 %v4372
    %4382 = vmatpush.bf16.msra.mxu0 %v4371
    %4383 = vmatpush.bf16.msra.mxu0 %v4370
    %4384 = vmatpush.bf16.msra.mxu0 %v4369
    %4385 = vmatpush.bf16.msra.mxu0 %v4368
    %4386 = vmatpush.bf16.msra.mxu0 %v4367
    %4387 = vmatpush.bf16.msra.mxu0 %v4366
    %4388 = vmatpush.bf16.msra.mxu0 %v4365
    %4389 = vmatmul.bf16.gmra.mxu0 %v4312
    %v4390 = vpop.f32.mrf.mxu0
    %v4391 = vadd.f32 %v4331, %v4390
    %v4392 = vpop.f32.mrf.mxu0
    %v4393 = vadd.f32 %v4331, %v4392
    %4394 = vdwg.mxu0
    %4395 = vst [vmem:[#allocation13] sm:$0xff] %v4391
    %4396 = vst [vmem:[#allocation13 + $0x8] sm:$0xff] %v4393
    // Predicated region
    $region122: #{forward.3} parent=1 // pred_check
      _
    $region123: #{forward.3} parent=1 // pred_check_branch
      %4398 = sbr.rel (0) target = $region125
    $region124: #{forward.3} parent=1 // pred_region
      %4400 = vsyncadd [#allocation4], 0
      %s4401 = sshll.u32 [#allocation13], 4
      %s4402 = int_to_ptr.vmem [resolvable:$true] %s4401
      %s4403 = sshll.u32 %s24, 4
      %s4404 = int_to_ptr.hbm [resolvable:$true] %s4403
      %4409 = dma.vmem_to_hbm [thread:$0]  %s4402, 256, %s4404, [#allocation4], 128, 128, 8
    $region125: #{forward.3} parent=1 // pred_fallthru
      _
    // Predicated region
    $region126: #{forward.3} parent=1 // pred_check
      _
    $region127: #{forward.3} parent=1 // pred_check_branch
      %4411 = sbr.rel (0) target = $region129
    $region128: #{forward.3} parent=1 // pred_region
      %4413 = dma.done [#allocation4], 256
    $region129: #{forward.3} parent=1 // pred_fallthru
      _
    %4414 = vsyncpa [#allocation3], 1
    %4415 = vsyncpa [#allocation6], 1
    %4416 = vsyncpa [#allocation9], 1
    %4417 = vsyncpa [#allocation12], 1
    %4418 = vsyncpa [#allocation4], 1

</llo_original>
